<compile_context>
chip_gen: v7x
topology: tpu7x:2x2x1
jax: 0.10.0
libtpu: 0.0.40
codegen_flags: <defaults>
</compile_context>

<pallas_src>
import functools

import jax
import jax.numpy as jnp
from jax import lax
from jax.experimental import pallas as pl
from jax.experimental.pallas import tpu as pltpu


def _round_up(a, b):
    return (a + b - 1) // b * b


# ------------------------------- fused kernel ------------------------------ #

def _down_fused_kernel(x_ref, wd_ref, w0_ref, w1_ref, par_ref, mask_ref,
                       o_ref, p1_ref, fa_ref, fb_ref,
                       *, B_sub, CP, Hh, Wh, WF, RF, PR, TR):
    """B_sub images end-to-end: maxpool -> conv2x2 -> (conv3x3+relu+bn)x2 + residual.

    x_ref   : (4*B_sub, Hh*Wh, Cin) bf16, the 4 pool-window taps of each image as slabs
    wd_ref  : (4, Cin, CP)  bf16, 2x2 conv taps (dh*2 + dw)
    w0/w1   : (9, CP, CP)   bf16, 3x3 conv taps (dh*3 + dw)
    par_ref : (8, CP)       f32 rows: b_down, b0, scale0, shift0, b1, scale1, shift1, 0
    mask_ref: (RF, 1)       1.0 on valid (ho < Ho, wo < Wo) frame rows, else 0.0
    o_ref   : (B_sub*RF, CP) f32 output frames (valid rows extracted on the host)
    p1_ref  : (PR1, Cin)    bf16 padded frame feeding the 2x2 conv (reused across images)
    fa/fb   : (PR, CP)      bf16 ping-pong padded frames for the two 3x3 convs
    """
    f32 = jnp.float32
    bf16 = jnp.bfloat16

    # Per-channel parameters, hoisted once per grid step.
    bd = par_ref[0:1, :]
    b0 = par_ref[1:2, :]
    s0 = par_ref[2:3, :]
    t0 = par_ref[3:4, :]
    b1 = par_ref[4:5, :]
    s1 = par_ref[5:6, :]
    t1 = par_ref[6:7, :]

    # Zero only what is never overwritten: the small Cin-channel pooled frame (its pad cells
    # sit between the per-row pooled writes), and the top/bottom border rows of the two big
    # CP-channel frames.  The interior rows of fa/fb (incl. the pad columns) are rewritten
    # with masked values for every image, so this is enough and runs every step (megacore
    # safe -- each core re-initializes its own private scratch).
    p1_ref[...] = jnp.zeros_like(p1_ref)
    fa_ref[0:WF + 1, :] = jnp.zeros((WF + 1, CP), bf16)
    fa_ref[WF + 1 + RF:PR, :] = jnp.zeros((PR - WF - 1 - RF, CP), bf16)
    fb_ref[0:WF + 1, :] = jnp.zeros((WF + 1, CP), bf16)
    fb_ref[WF + 1 + RF:PR, :] = jnp.zeros((PR - WF - 1 - RF, CP), bf16)

    def conv_stage(src_ref, w_ref, k, epilogue):
        # k*k shifted-slice matmuls accumulated in f32, tiled over output-row blocks so the
        # accumulator stays in vregs; bf16 operands feed the MXU directly (no casts).
        def block(r0, nrows):
            acc = jnp.zeros((nrows, CP), f32)
            for dh in range(k):
                for dw in range(k):
                    patch = src_ref[pl.ds(r0 + dh * WF + dw, nrows), :]
                    acc = acc + jnp.dot(patch, w_ref[dh * k + dw],
                                        preferred_element_type=f32)
            epilogue(r0, nrows, acc)

        if RF <= TR:
            block(0, RF)
        else:
            nfull = RF // TR

            def body(i, carry):
                block(pl.multiple_of(i * TR, 8), TR)
                return carry

            lax.fori_loop(0, nfull, body, 0)
            tail = RF - nfull * TR
            if tail:
                block(nfull * TR, tail)

    for b in range(B_sub):
        # ---- stage 0: 2x2 / stride-2 max pool (window taps pre-packed as slabs) ----
        pooled = jnp.maximum(jnp.maximum(x_ref[4 * b + 0], x_ref[4 * b + 1]),
                             jnp.maximum(x_ref[4 * b + 2], x_ref[4 * b + 3]))
        for i in range(Hh):
            # place pooled row i inside the (pad=1) frame for the 2x2 conv
            p1_ref[pl.ds((i + 1) * WF + 1, Wh), :] = pooled[i * Wh:(i + 1) * Wh, :]

        ob = b * RF   # this image's row offset inside the output block

        # ---- stage 1: Conv2d(k=2, pad=1) + bias -> x1 (residual, kept in o_ref) ----
        def ep_down(r0, nrows, acc, ob=ob):
            m = mask_ref[pl.ds(r0, nrows), :]
            x1 = acc + bd
            o_ref[pl.ds(ob + r0, nrows), :] = x1
            fa_ref[pl.ds(WF + 1 + r0, nrows), :] = (x1 * m).astype(bf16)

        conv_stage(p1_ref, wd_ref, 2, ep_down)

        # ---- stage 2: conv_0 (3x3, pad 1) -> ReLU -> BatchNorm affine (eval stats) ----
        # TODO(synk): nn.Dropout2d is stochastic in train mode; eval-mode identity used here.
        def ep_c0(r0, nrows, acc):
            m = mask_ref[pl.ds(r0, nrows), :]
            h = jnp.maximum(acc + b0, 0.0) * s0 + t0
            fb_ref[pl.ds(WF + 1 + r0, nrows), :] = (h * m).astype(bf16)

        conv_stage(fa_ref, w0_ref, 3, ep_c0)

        # ---- stage 3: conv_1 (3x3, pad 1) -> ReLU -> BatchNorm affine -> + residual ----
        def ep_c1(r0, nrows, acc, ob=ob):
            y = jnp.maximum(acc + b1, 0.0) * s1 + t1
            rows = pl.ds(ob + r0, nrows)
            o_ref[rows, :] = o_ref[rows, :] + y

        conv_stage(fb_ref, w1_ref, 3, ep_c1)


# --------------------------------- wrapper --------------------------------- #

def down_forward(x_nchw, p, *, b_sub=None):
    """Pallas implementation of Down.forward. Input/output are NCHW like PyTorch."""
    N, Cin, H, W = x_nchw.shape
    assert H % 2 == 0 and W % 2 == 0, "MaxPool2d(2) path assumes even H, W"
    Cout = p['w_down'].shape[0]

    Hh, Wh = H // 2, W // 2              # pooled spatial size
    Ho, Wo = Hh + 1, Wh + 1              # conv(k=2, pad=1) output size (== ResBlock size)
    WF = Wo + 2                          # shared padded-frame width for all conv stages
    RF = _round_up(Ho * WF, 8)           # rows of the flattened output frame
    PR = _round_up(RF + 2 * WF + 2, 8)   # rows of the 3x3 padded frames
    PR1 = _round_up(RF + WF + 2, 8)      # rows of the 2x2 (pooled) padded frame
    CP = _round_up(Cout, 128)            # lane-dense channel padding
    TR = min(RF, 256)                    # accumulator row tile (multiple of 8)

    # Images per grid step: amortize per-step overhead when Cout << 128 pads the MXU,
    # while keeping the double-buffered output block modest.
    if b_sub is None:
        b_sub = 1
        if Cout < 64:
            for cand in (8, 4, 2):
                if N % cand == 0 and cand * RF * CP * 4 <= (8 << 20):
                    b_sub = cand
                    break
    assert N % b_sub == 0

    # ---- host-side layout (cheap reshapes/transposes, bf16 activations) ----
    # NCHW -> NHWC -> (N, Hh, 2, Wh, 2, C) -> (N, 2, 2, Hh, Wh, C) -> (N*4, Hh*Wh, C):
    # the four 2x2 pool-window taps become leading slabs.
    x = jnp.transpose(x_nchw, (0, 2, 3, 1)).astype(jnp.bfloat16)
    x = x.reshape(N, Hh, 2, Wh, 2, Cin).transpose(0, 2, 4, 1, 3, 5)
    x = x.reshape(N * 4, Hh * Wh, Cin)

    # Conv weights as per-tap (Cin, CP) matmul operands, bf16 for the MXU.
    def conv_taps(w, cin_pad):
        co, ci, kh, kw = w.shape
        t = jnp.transpose(w, (2, 3, 1, 0)).reshape(kh * kw, ci, co)
        t = jnp.pad(t, ((0, 0), (0, cin_pad - ci), (0, CP - co)))
        return t.astype(jnp.bfloat16)

    w_down = conv_taps(p['w_down'], Cin)     # (4, Cin, CP)
    w0 = conv_taps(p['w0'], CP)              # (9, CP, CP)
    w1 = conv_taps(p['w1'], CP)              # (9, CP, CP)

    def vec(v):
        return jnp.pad(v.astype(jnp.float32), (0, CP - v.shape[0]))

    par = jnp.stack([vec(p['b_down']), vec(p['b0']), vec(p['scale0']), vec(p['shift0']),
                     vec(p['b1']), vec(p['scale1']), vec(p['shift1']),
                     jnp.zeros((CP,), jnp.float32)])                       # (8, CP)

    rows = jnp.arange(RF)
    mask = ((rows // WF < Ho) & (rows % WF < Wo)).astype(jnp.float32).reshape(RF, 1)

    kernel = functools.partial(_down_fused_kernel, B_sub=b_sub, CP=CP, Hh=Hh, Wh=Wh,
                               WF=WF, RF=RF, PR=PR, TR=TR)

    # VMEM budget: double-buffered x/out blocks + weights + frames (+ margin), clamped.
    xblk_b = 4 * b_sub * Hh * Wh * max(Cin, 8) * 2
    oblk_b = b_sub * RF * CP * 4
    w_b = (4 * Cin * CP + 18 * CP * CP) * 2
    frames_b = (PR1 * max(Cin, 8) + 2 * PR * CP) * 2
    need = 2 * (xblk_b + oblk_b + w_b) + frames_b + (8 * CP + RF) * 4
    vmem_limit = int(min(max(need + (4 << 20), 32 << 20), 100 << 20))

    out = pl.pallas_call(
        kernel,
        grid=(N // b_sub,),
        out_shape=jax.ShapeDtypeStruct((N * RF, CP), jnp.float32),
        in_specs=[
            pl.BlockSpec((4 * b_sub, Hh * Wh, Cin), lambda n: (n, 0, 0)),  # pool-window taps
            pl.BlockSpec((4, Cin, CP), lambda n: (0, 0, 0)),               # w_down taps
            pl.BlockSpec((9, CP, CP), lambda n: (0, 0, 0)),                # conv_0 taps
            pl.BlockSpec((9, CP, CP), lambda n: (0, 0, 0)),                # conv_1 taps
            pl.BlockSpec((8, CP), lambda n: (0, 0)),                       # biases / bn affine
            pl.BlockSpec((RF, 1), lambda n: (0, 0)),                       # validity mask
        ],
        out_specs=pl.BlockSpec((b_sub * RF, CP), lambda n: (n, 0)),
        scratch_shapes=[
            pltpu.VMEM((PR1, Cin), jnp.bfloat16),   # padded frame for the 2x2 conv input
            pltpu.VMEM((PR, CP), jnp.bfloat16),     # frame A (x1 for conv_0)
            pltpu.VMEM((PR, CP), jnp.bfloat16),     # frame B (h for conv_1)
        ],
        compiler_params=pltpu.CompilerParams(
            dimension_semantics=("parallel",),
            vmem_limit_bytes=vmem_limit,
        ),
    )(x, w_down, w0, w1, par, mask)

    # Extract the valid (Ho, Wo, Cout) region from the padded frames and go back to NCHW.
    out = out.reshape(N, RF, CP)[:, :Ho * WF, :].reshape(N, Ho, WF, CP)[:, :, :Wo, :Cout]
    return jnp.transpose(out, (0, 3, 1, 2))


# ------------------------------ params / reference ------------------------- #

def init_params(key, cin, cout):
    ks = jax.random.split(key, 8)
    eps = 1e-5

    def u(k, shape, fan_in):
        bound = 1.0 / jnp.sqrt(float(fan_in))
        return jax.random.uniform(k, shape, jnp.float32, -bound, bound)

    p = {}
    p['w_down'] = u(ks[0], (cout, cin, 2, 2), cin * 4)
    p['b_down'] = u(ks[1], (cout,), cin * 4)
    p['w0'] = u(ks[2], (cout, cout, 3, 3), cout * 9)
    p['b0'] = u(ks[3], (cout,), cout * 9)
    p['w1'] = u(ks[4], (cout, cout, 3, 3), cout * 9)
    p['b1'] = u(ks[5], (cout,), cout * 9)

    # BatchNorm2d (eval mode): learnable gamma/beta, running stats at PyTorch init values.
    # TODO(synk): train-mode BatchNorm (batch statistics) is not modeled here.
    gamma0 = 1.0 + 0.1 * jax.random.normal(ks[6], (cout,), jnp.float32)
    beta0 = 0.05 * jnp.arange(cout, dtype=jnp.float32)
    gamma1 = 1.0 - 0.05 * jnp.arange(cout, dtype=jnp.float32) / cout
    beta1 = 0.1 * jax.random.normal(ks[7], (cout,), jnp.float32)
    mean = jnp.zeros((cout,), jnp.float32)
    var = jnp.ones((cout,), jnp.float32)
    p['scale0'] = gamma0 / jnp.sqrt(var + eps)
    p['shift0'] = beta0 - mean * p['scale0']
    p['scale1'] = gamma1 / jnp.sqrt(var + eps)
    p['shift1'] = beta1 - mean * p['scale1']
    return p


def down_reference(x_nchw, p):
    """Pure-JAX reference (lax.conv / reduce_window), all-f32, identical semantics."""
    x = jnp.transpose(x_nchw, (0, 2, 3, 1)).astype(jnp.float32)

    def conv(a, w, b, pad):
        rhs = jnp.transpose(w, (2, 3, 1, 0))  # HWIO
        y = lax.conv_general_dilated(a, rhs, (1, 1), [(pad, pad), (pad, pad)],
                                     dimension_numbers=('NHWC', 'HWIO', 'NHWC'))
        return y + b

    xpool = lax.reduce_window(x, -jnp.inf, lax.max, (1, 2, 2, 1), (1, 2, 2, 1), 'VALID')
    x1 = conv(xpool, p['w_down'], p['b_down'], 1)
    h = jnp.maximum(conv(x1, p['w0'], p['b0'], 1), 0.0) * p['scale0'] + p['shift0']
    h = jnp.maximum(conv(h, p['w1'], p['b1'], 1), 0.0) * p['scale1'] + p['shift1'] + x1
    return jnp.transpose(h, (0, 3, 1, 2))


if __name__ == "__main__":
    key = jax.random.PRNGKey(0)
    kx, kp = jax.random.split(key)

    N, Cin, H, W = 2, 4, 16, 16
    Cout = 8
    x = jax.random.normal(kx, (N, Cin, H, W), jnp.float32)
    params = init_params(kp, Cin, Cout)

    down_fn = jax.jit(down_forward)
    out = jax.block_until_ready(down_fn(x, params))
    ref = jax.block_until_ready(down_reference(x, params))

    assert out.shape == (N, Cout, H // 2 + 1, W // 2 + 1), out.shape
    err = float(jnp.max(jnp.abs(out - ref)))
    scale = float(jnp.max(jnp.abs(ref)))
    # bf16 inputs/activations/weights (f32 accumulation) vs the all-f32 lax.conv reference.
    tol = 3e-2 * scale + 1e-2
    assert err <= tol, f"max abs error {err} exceeds tolerance {tol} (ref scale {scale})"
    print("KERNEL_OK")
</pallas_src>

<mosaic_0001>
module attributes {stable_mosaic.version = 11 : i64} {
  func.func @_down_fused_kernel(%arg0: i32, %arg1: memref<8x64x4xbf16, #tpu.memory_space<vmem>>, %arg2: memref<4x4x128xbf16, #tpu.memory_space<vmem>>, %arg3: memref<9x128x128xbf16, #tpu.memory_space<vmem>>, %arg4: memref<9x128x128xbf16, #tpu.memory_space<vmem>>, %arg5: memref<8x128xf32, #tpu.memory_space<vmem>>, %arg6: memref<104x1xf32, #tpu.memory_space<vmem>>, %arg7: memref<208x128xf32, #tpu.memory_space<vmem>>, %arg8: memref<120x4xbf16, #tpu.memory_space<vmem>>, %arg9: memref<128x128xbf16, #tpu.memory_space<vmem>>, %arg10: memref<128x128xbf16, #tpu.memory_space<vmem>>) attributes {dimension_semantics = [#tpu.dimension_semantics<parallel>], iteration_bounds = array<i64: 1>, scalar_prefetch = 0 : i64, scratch_operands = 3 : i64, tpu.core_type = #tpu.core_type<tc>, window_params = [{transform_indices = @transform_0, window_bounds = array<i64: 8, 64, 4>}, {pipeline_mode = #tpu.pipeline_mode<synchronous>, transform_indices = @transform_1, window_bounds = array<i64: 4, 4, 128>}, {pipeline_mode = #tpu.pipeline_mode<synchronous>, transform_indices = @transform_2, window_bounds = array<i64: 9, 128, 128>}, {pipeline_mode = #tpu.pipeline_mode<synchronous>, transform_indices = @transform_3, window_bounds = array<i64: 9, 128, 128>}, {pipeline_mode = #tpu.pipeline_mode<synchronous>, transform_indices = @transform_4, window_bounds = array<i64: 8, 128>}, {pipeline_mode = #tpu.pipeline_mode<synchronous>, transform_indices = @transform_5, window_bounds = array<i64: 104, 1>}, {transform_indices = @transform_6, window_bounds = array<i64: 208, 128>}]} {
    %c0 = arith.constant 0 : index
    %c0_0 = arith.constant 0 : index
    %0 = vector.load %arg5[%c0, %c0_0] : memref<8x128xf32, #tpu.memory_space<vmem>>, vector<1x128xf32>
    %c1 = arith.constant 1 : index
    %c0_1 = arith.constant 0 : index
    %1 = vector.load %arg5[%c1, %c0_1] : memref<8x128xf32, #tpu.memory_space<vmem>>, vector<1x128xf32>
    %c2 = arith.constant 2 : index
    %c0_2 = arith.constant 0 : index
    %2 = vector.load %arg5[%c2, %c0_2] : memref<8x128xf32, #tpu.memory_space<vmem>>, vector<1x128xf32>
    %c3 = arith.constant 3 : index
    %c0_3 = arith.constant 0 : index
    %3 = vector.load %arg5[%c3, %c0_3] : memref<8x128xf32, #tpu.memory_space<vmem>>, vector<1x128xf32>
    %c4 = arith.constant 4 : index
    %c0_4 = arith.constant 0 : index
    %4 = vector.load %arg5[%c4, %c0_4] : memref<8x128xf32, #tpu.memory_space<vmem>>, vector<1x128xf32>
    %c5 = arith.constant 5 : index
    %c0_5 = arith.constant 0 : index
    %5 = vector.load %arg5[%c5, %c0_5] : memref<8x128xf32, #tpu.memory_space<vmem>>, vector<1x128xf32>
    %c6 = arith.constant 6 : index
    %c0_6 = arith.constant 0 : index
    %6 = vector.load %arg5[%c6, %c0_6] : memref<8x128xf32, #tpu.memory_space<vmem>>, vector<1x128xf32>
    %cst = arith.constant 0.000000e+00 : bf16
    %7 = vector.broadcast %cst : bf16 to vector<120x4xbf16>
    %c0_7 = arith.constant 0 : index
    %c0_8 = arith.constant 0 : index
    %8 = vector.load %arg8[%c0_7, %c0_8] : memref<120x4xbf16, #tpu.memory_space<vmem>>, vector<120x4xbf16>
    tpu.vector_store %arg8[%c0_7, %c0_8], %7 {strides = array<i32>} : memref<120x4xbf16, #tpu.memory_space<vmem>>, vector<120x4xbf16>,
    %cst_9 = arith.constant 0.000000e+00 : bf16
    %9 = vector.broadcast %cst_9 : bf16 to vector<12x128xbf16>
    %c0_10 = arith.constant 0 : index
    %c0_11 = arith.constant 0 : index
    %10 = vector.load %arg9[%c0_10, %c0_11] : memref<128x128xbf16, #tpu.memory_space<vmem>>, vector<12x128xbf16>
    tpu.vector_store %arg9[%c0_10, %c0_11], %9 {strides = array<i32>} : memref<128x128xbf16, #tpu.memory_space<vmem>>, vector<12x128xbf16>,
    %cst_12 = arith.constant 0.000000e+00 : bf16
    %11 = vector.broadcast %cst_12 : bf16 to vector<12x128xbf16>
    %c116 = arith.constant 116 : index
    %c0_13 = arith.constant 0 : index
    %12 = vector.load %arg9[%c116, %c0_13] : memref<128x128xbf16, #tpu.memory_space<vmem>>, vector<12x128xbf16>
    tpu.vector_store %arg9[%c116, %c0_13], %11 {strides = array<i32>} : memref<128x128xbf16, #tpu.memory_space<vmem>>, vector<12x128xbf16>,
    %cst_14 = arith.constant 0.000000e+00 : bf16
    %13 = vector.broadcast %cst_14 : bf16 to vector<12x128xbf16>
    %c0_15 = arith.constant 0 : index
    %c0_16 = arith.constant 0 : index
    %14 = vector.load %arg10[%c0_15, %c0_16] : memref<128x128xbf16, #tpu.memory_space<vmem>>, vector<12x128xbf16>
    tpu.vector_store %arg10[%c0_15, %c0_16], %13 {strides = array<i32>} : memref<128x128xbf16, #tpu.memory_space<vmem>>, vector<12x128xbf16>,
    %cst_17 = arith.constant 0.000000e+00 : bf16
    %15 = vector.broadcast %cst_17 : bf16 to vector<12x128xbf16>
    %c116_18 = arith.constant 116 : index
    %c0_19 = arith.constant 0 : index
    %16 = vector.load %arg10[%c116_18, %c0_19] : memref<128x128xbf16, #tpu.memory_space<vmem>>, vector<12x128xbf16>
    tpu.vector_store %arg10[%c116_18, %c0_19], %15 {strides = array<i32>} : memref<128x128xbf16, #tpu.memory_space<vmem>>, vector<12x128xbf16>,
    %c0_20 = arith.constant 0 : index
    %c0_21 = arith.constant 0 : index
    %c0_22 = arith.constant 0 : index
    %17 = vector.load %arg1[%c0_20, %c0_21, %c0_22] : memref<8x64x4xbf16, #tpu.memory_space<vmem>>, vector<1x64x4xbf16>
    %18 = vector.shape_cast %17 : vector<1x64x4xbf16> to vector<64x4xbf16>
    %c1_23 = arith.constant 1 : index
    %c0_24 = arith.constant 0 : index
    %c0_25 = arith.constant 0 : index
    %19 = vector.load %arg1[%c1_23, %c0_24, %c0_25] : memref<8x64x4xbf16, #tpu.memory_space<vmem>>, vector<1x64x4xbf16>
    %20 = vector.shape_cast %19 : vector<1x64x4xbf16> to vector<64x4xbf16>
    %21 = arith.maximumf %18, %20 : vector<64x4xbf16>
    %c2_26 = arith.constant 2 : index
    %c0_27 = arith.constant 0 : index
    %c0_28 = arith.constant 0 : index
    %22 = vector.load %arg1[%c2_26, %c0_27, %c0_28] : memref<8x64x4xbf16, #tpu.memory_space<vmem>>, vector<1x64x4xbf16>
    %23 = vector.shape_cast %22 : vector<1x64x4xbf16> to vector<64x4xbf16>
    %c3_29 = arith.constant 3 : index
    %c0_30 = arith.constant 0 : index
    %c0_31 = arith.constant 0 : index
    %24 = vector.load %arg1[%c3_29, %c0_30, %c0_31] : memref<8x64x4xbf16, #tpu.memory_space<vmem>>, vector<1x64x4xbf16>
    %25 = vector.shape_cast %24 : vector<1x64x4xbf16> to vector<64x4xbf16>
    %26 = arith.maximumf %23, %25 : vector<64x4xbf16>
    %27 = arith.maximumf %21, %26 : vector<64x4xbf16>
    %28 = vector.extract_strided_slice %27 {offsets = [0, 0], sizes = [8, 4], strides = [1, 1]} : vector<64x4xbf16> to vector<8x4xbf16>
    %c12 = arith.constant 12 : index
    %c0_32 = arith.constant 0 : index
    %29 = vector.load %arg8[%c12, %c0_32] : memref<120x4xbf16, #tpu.memory_space<vmem>>, vector<8x4xbf16>
    tpu.vector_store %arg8[%c12, %c0_32], %28 {strides = array<i32>} : memref<120x4xbf16, #tpu.memory_space<vmem>>, vector<8x4xbf16>,
    %30 = vector.extract_strided_slice %27 {offsets = [8, 0], sizes = [8, 4], strides = [1, 1]} : vector<64x4xbf16> to vector<8x4xbf16>
    %c23 = arith.constant 23 : index
    %c0_33 = arith.constant 0 : index
    %31 = vector.load %arg8[%c23, %c0_33] : memref<120x4xbf16, #tpu.memory_space<vmem>>, vector<8x4xbf16>
    tpu.vector_store %arg8[%c23, %c0_33], %30 {strides = array<i32>} : memref<120x4xbf16, #tpu.memory_space<vmem>>, vector<8x4xbf16>,
    %32 = vector.extract_strided_slice %27 {offsets = [16, 0], sizes = [8, 4], strides = [1, 1]} : vector<64x4xbf16> to vector<8x4xbf16>
    %c34 = arith.constant 34 : index
    %c0_34 = arith.constant 0 : index
    %33 = vector.load %arg8[%c34, %c0_34] : memref<120x4xbf16, #tpu.memory_space<vmem>>, vector<8x4xbf16>
    tpu.vector_store %arg8[%c34, %c0_34], %32 {strides = array<i32>} : memref<120x4xbf16, #tpu.memory_space<vmem>>, vector<8x4xbf16>,
    %34 = vector.extract_strided_slice %27 {offsets = [24, 0], sizes = [8, 4], strides = [1, 1]} : vector<64x4xbf16> to vector<8x4xbf16>
    %c45 = arith.constant 45 : index
    %c0_35 = arith.constant 0 : index
    %35 = vector.load %arg8[%c45, %c0_35] : memref<120x4xbf16, #tpu.memory_space<vmem>>, vector<8x4xbf16>
    tpu.vector_store %arg8[%c45, %c0_35], %34 {strides = array<i32>} : memref<120x4xbf16, #tpu.memory_space<vmem>>, vector<8x4xbf16>,
    %36 = vector.extract_strided_slice %27 {offsets = [32, 0], sizes = [8, 4], strides = [1, 1]} : vector<64x4xbf16> to vector<8x4xbf16>
    %c56 = arith.constant 56 : index
    %c0_36 = arith.constant 0 : index
    %37 = vector.load %arg8[%c56, %c0_36] : memref<120x4xbf16, #tpu.memory_space<vmem>>, vector<8x4xbf16>
    tpu.vector_store %arg8[%c56, %c0_36], %36 {strides = array<i32>} : memref<120x4xbf16, #tpu.memory_space<vmem>>, vector<8x4xbf16>,
    %38 = vector.extract_strided_slice %27 {offsets = [40, 0], sizes = [8, 4], strides = [1, 1]} : vector<64x4xbf16> to vector<8x4xbf16>
    %c67 = arith.constant 67 : index
    %c0_37 = arith.constant 0 : index
    %39 = vector.load %arg8[%c67, %c0_37] : memref<120x4xbf16, #tpu.memory_space<vmem>>, vector<8x4xbf16>
    tpu.vector_store %arg8[%c67, %c0_37], %38 {strides = array<i32>} : memref<120x4xbf16, #tpu.memory_space<vmem>>, vector<8x4xbf16>,
    %40 = vector.extract_strided_slice %27 {offsets = [48, 0], sizes = [8, 4], strides = [1, 1]} : vector<64x4xbf16> to vector<8x4xbf16>
    %c78 = arith.constant 78 : index
    %c0_38 = arith.constant 0 : index
    %41 = vector.load %arg8[%c78, %c0_38] : memref<120x4xbf16, #tpu.memory_space<vmem>>, vector<8x4xbf16>
    tpu.vector_store %arg8[%c78, %c0_38], %40 {strides = array<i32>} : memref<120x4xbf16, #tpu.memory_space<vmem>>, vector<8x4xbf16>,
    %42 = vector.extract_strided_slice %27 {offsets = [56, 0], sizes = [8, 4], strides = [1, 1]} : vector<64x4xbf16> to vector<8x4xbf16>
    %c89 = arith.constant 89 : index
    %c0_39 = arith.constant 0 : index
    %43 = vector.load %arg8[%c89, %c0_39] : memref<120x4xbf16, #tpu.memory_space<vmem>>, vector<8x4xbf16>
    tpu.vector_store %arg8[%c89, %c0_39], %42 {strides = array<i32>} : memref<120x4xbf16, #tpu.memory_space<vmem>>, vector<8x4xbf16>,
    %cst_40 = arith.constant 0.000000e+00 : f32
    %44 = vector.broadcast %cst_40 : f32 to vector<104x128xf32>
    %c0_41 = arith.constant 0 : index
    %c0_42 = arith.constant 0 : index
    %45 = vector.load %arg8[%c0_41, %c0_42] : memref<120x4xbf16, #tpu.memory_space<vmem>>, vector<104x4xbf16>
    %c0_43 = arith.constant 0 : index
    %c0_44 = arith.constant 0 : index
    %c0_45 = arith.constant 0 : index
    %46 = vector.load %arg2[%c0_43, %c0_44, %c0_45] : memref<4x4x128xbf16, #tpu.memory_space<vmem>>, vector<1x4x128xbf16>
    %47 = vector.shape_cast %46 : vector<1x4x128xbf16> to vector<4x128xbf16>
    %cst_46 = arith.constant dense<0.000000e+00> : vector<104x128xf32>
    %48 = tpu.matmul %45, %47, %cst_46 {dimension_numbers = #tpu.dot_dimension_numbers<[1], [0], [0], [1], [0, 0, 1, 1], [], []>} : vector<104x4xbf16>, vector<4x128xbf16>, vector<104x128xf32> -> vector<104x128xf32>
    %49 = arith.addf %44, %48 : vector<104x128xf32>
    %c1_47 = arith.constant 1 : index
    %c0_48 = arith.constant 0 : index
    %50 = vector.load %arg8[%c1_47, %c0_48] : memref<120x4xbf16, #tpu.memory_space<vmem>>, vector<104x4xbf16>
    %c1_49 = arith.constant 1 : index
    %c0_50 = arith.constant 0 : index
    %c0_51 = arith.constant 0 : index
    %51 = vector.load %arg2[%c1_49, %c0_50, %c0_51] : memref<4x4x128xbf16, #tpu.memory_space<vmem>>, vector<1x4x128xbf16>
    %52 = vector.shape_cast %51 : vector<1x4x128xbf16> to vector<4x128xbf16>
    %cst_52 = arith.constant dense<0.000000e+00> : vector<104x128xf32>
    %53 = tpu.matmul %50, %52, %cst_52 {dimension_numbers = #tpu.dot_dimension_numbers<[1], [0], [0], [1], [0, 0, 1, 1], [], []>} : vector<104x4xbf16>, vector<4x128xbf16>, vector<104x128xf32> -> vector<104x128xf32>
    %54 = arith.addf %49, %53 : vector<104x128xf32>
    %c11 = arith.constant 11 : index
    %c0_53 = arith.constant 0 : index
    %55 = vector.load %arg8[%c11, %c0_53] : memref<120x4xbf16, #tpu.memory_space<vmem>>, vector<104x4xbf16>
    %c2_54 = arith.constant 2 : index
    %c0_55 = arith.constant 0 : index
    %c0_56 = arith.constant 0 : index
    %56 = vector.load %arg2[%c2_54, %c0_55, %c0_56] : memref<4x4x128xbf16, #tpu.memory_space<vmem>>, vector<1x4x128xbf16>
    %57 = vector.shape_cast %56 : vector<1x4x128xbf16> to vector<4x128xbf16>
    %cst_57 = arith.constant dense<0.000000e+00> : vector<104x128xf32>
    %58 = tpu.matmul %55, %57, %cst_57 {dimension_numbers = #tpu.dot_dimension_numbers<[1], [0], [0], [1], [0, 0, 1, 1], [], []>} : vector<104x4xbf16>, vector<4x128xbf16>, vector<104x128xf32> -> vector<104x128xf32>
    %59 = arith.addf %54, %58 : vector<104x128xf32>
    %c12_58 = arith.constant 12 : index
    %c0_59 = arith.constant 0 : index
    %60 = vector.load %arg8[%c12_58, %c0_59] : memref<120x4xbf16, #tpu.memory_space<vmem>>, vector<104x4xbf16>
    %c3_60 = arith.constant 3 : index
    %c0_61 = arith.constant 0 : index
    %c0_62 = arith.constant 0 : index
    %61 = vector.load %arg2[%c3_60, %c0_61, %c0_62] : memref<4x4x128xbf16, #tpu.memory_space<vmem>>, vector<1x4x128xbf16>
    %62 = vector.shape_cast %61 : vector<1x4x128xbf16> to vector<4x128xbf16>
    %cst_63 = arith.constant dense<0.000000e+00> : vector<104x128xf32>
    %63 = tpu.matmul %60, %62, %cst_63 {dimension_numbers = #tpu.dot_dimension_numbers<[1], [0], [0], [1], [0, 0, 1, 1], [], []>} : vector<104x4xbf16>, vector<4x128xbf16>, vector<104x128xf32> -> vector<104x128xf32>
    %64 = arith.addf %59, %63 : vector<104x128xf32>
    %c0_64 = arith.constant 0 : index
    %c0_65 = arith.constant 0 : index
    %65 = vector.load %arg6[%c0_64, %c0_65] : memref<104x1xf32, #tpu.memory_space<vmem>>, vector<104x1xf32>
    %66 = vector.broadcast %0 : vector<1x128xf32> to vector<104x128xf32>
    %67 = arith.addf %64, %66 : vector<104x128xf32>
    %c0_66 = arith.constant 0 : index
    %c0_67 = arith.constant 0 : index
    %68 = vector.load %arg7[%c0_66, %c0_67] : memref<208x128xf32, #tpu.memory_space<vmem>>, vector<104x128xf32>
    tpu.vector_store %arg7[%c0_66, %c0_67], %67 {strides = array<i32>} : memref<208x128xf32, #tpu.memory_space<vmem>>, vector<104x128xf32>,
    %69 = vector.broadcast %65 : vector<104x1xf32> to vector<104x128xf32>
    %70 = arith.mulf %67, %69 : vector<104x128xf32>
    %71 = arith.truncf %70 : vector<104x128xf32> to vector<104x128xbf16>
    %c12_68 = arith.constant 12 : index
    %c0_69 = arith.constant 0 : index
    %72 = vector.load %arg9[%c12_68, %c0_69] : memref<128x128xbf16, #tpu.memory_space<vmem>>, vector<104x128xbf16>
    tpu.vector_store %arg9[%c12_68, %c0_69], %71 {strides = array<i32>} : memref<128x128xbf16, #tpu.memory_space<vmem>>, vector<104x128xbf16>,
    %cst_70 = arith.constant 0.000000e+00 : f32
    %73 = vector.broadcast %cst_70 : f32 to vector<104x128xf32>
    %c0_71 = arith.constant 0 : index
    %c0_72 = arith.constant 0 : index
    %74 = vector.load %arg9[%c0_71, %c0_72] : memref<128x128xbf16, #tpu.memory_space<vmem>>, vector<104x128xbf16>
    %c0_73 = arith.constant 0 : index
    %c0_74 = arith.constant 0 : index
    %c0_75 = arith.constant 0 : index
    %75 = vector.load %arg3[%c0_73, %c0_74, %c0_75] : memref<9x128x128xbf16, #tpu.memory_space<vmem>>, vector<1x128x128xbf16>
    %76 = vector.shape_cast %75 : vector<1x128x128xbf16> to vector<128x128xbf16>
    %cst_76 = arith.constant dense<0.000000e+00> : vector<104x128xf32>
    %77 = tpu.matmul %74, %76, %cst_76 {dimension_numbers = #tpu.dot_dimension_numbers<[1], [0], [0], [1], [0, 0, 1, 1], [], []>} : vector<104x128xbf16>, vector<128x128xbf16>, vector<104x128xf32> -> vector<104x128xf32>
    %78 = arith.addf %73, %77 : vector<104x128xf32>
    %c1_77 = arith.constant 1 : index
    %c0_78 = arith.constant 0 : index
    %79 = vector.load %arg9[%c1_77, %c0_78] : memref<128x128xbf16, #tpu.memory_space<vmem>>, vector<104x128xbf16>
    %c1_79 = arith.constant 1 : index
    %c0_80 = arith.constant 0 : index
    %c0_81 = arith.constant 0 : index
    %80 = vector.load %arg3[%c1_79, %c0_80, %c0_81] : memref<9x128x128xbf16, #tpu.memory_space<vmem>>, vector<1x128x128xbf16>
    %81 = vector.shape_cast %80 : vector<1x128x128xbf16> to vector<128x128xbf16>
    %cst_82 = arith.constant dense<0.000000e+00> : vector<104x128xf32>
    %82 = tpu.matmul %79, %81, %cst_82 {dimension_numbers = #tpu.dot_dimension_numbers<[1], [0], [0], [1], [0, 0, 1, 1], [], []>} : vector<104x128xbf16>, vector<128x128xbf16>, vector<104x128xf32> -> vector<104x128xf32>
    %83 = arith.addf %78, %82 : vector<104x128xf32>
    %c2_83 = arith.constant 2 : index
    %c0_84 = arith.constant 0 : index
    %84 = vector.load %arg9[%c2_83, %c0_84] : memref<128x128xbf16, #tpu.memory_space<vmem>>, vector<104x128xbf16>
    %c2_85 = arith.constant 2 : index
    %c0_86 = arith.constant 0 : index
    %c0_87 = arith.constant 0 : index
    %85 = vector.load %arg3[%c2_85, %c0_86, %c0_87] : memref<9x128x128xbf16, #tpu.memory_space<vmem>>, vector<1x128x128xbf16>
    %86 = vector.shape_cast %85 : vector<1x128x128xbf16> to vector<128x128xbf16>
    %cst_88 = arith.constant dense<0.000000e+00> : vector<104x128xf32>
    %87 = tpu.matmul %84, %86, %cst_88 {dimension_numbers = #tpu.dot_dimension_numbers<[1], [0], [0], [1], [0, 0, 1, 1], [], []>} : vector<104x128xbf16>, vector<128x128xbf16>, vector<104x128xf32> -> vector<104x128xf32>
    %88 = arith.addf %83, %87 : vector<104x128xf32>
    %c11_89 = arith.constant 11 : index
    %c0_90 = arith.constant 0 : index
    %89 = vector.load %arg9[%c11_89, %c0_90] : memref<128x128xbf16, #tpu.memory_space<vmem>>, vector<104x128xbf16>
    %c3_91 = arith.constant 3 : index
    %c0_92 = arith.constant 0 : index
    %c0_93 = arith.constant 0 : index
    %90 = vector.load %arg3[%c3_91, %c0_92, %c0_93] : memref<9x128x128xbf16, #tpu.memory_space<vmem>>, vector<1x128x128xbf16>
    %91 = vector.shape_cast %90 : vector<1x128x128xbf16> to vector<128x128xbf16>
    %cst_94 = arith.constant dense<0.000000e+00> : vector<104x128xf32>
    %92 = tpu.matmul %89, %91, %cst_94 {dimension_numbers = #tpu.dot_dimension_numbers<[1], [0], [0], [1], [0, 0, 1, 1], [], []>} : vector<104x128xbf16>, vector<128x128xbf16>, vector<104x128xf32> -> vector<104x128xf32>
    %93 = arith.addf %88, %92 : vector<104x128xf32>
    %c12_95 = arith.constant 12 : index
    %c0_96 = arith.constant 0 : index
    %94 = vector.load %arg9[%c12_95, %c0_96] : memref<128x128xbf16, #tpu.memory_space<vmem>>, vector<104x128xbf16>
    %c4_97 = arith.constant 4 : index
    %c0_98 = arith.constant 0 : index
    %c0_99 = arith.constant 0 : index
    %95 = vector.load %arg3[%c4_97, %c0_98, %c0_99] : memref<9x128x128xbf16, #tpu.memory_space<vmem>>, vector<1x128x128xbf16>
    %96 = vector.shape_cast %95 : vector<1x128x128xbf16> to vector<128x128xbf16>
    %cst_100 = arith.constant dense<0.000000e+00> : vector<104x128xf32>
    %97 = tpu.matmul %94, %96, %cst_100 {dimension_numbers = #tpu.dot_dimension_numbers<[1], [0], [0], [1], [0, 0, 1, 1], [], []>} : vector<104x128xbf16>, vector<128x128xbf16>, vector<104x128xf32> -> vector<104x128xf32>
    %98 = arith.addf %93, %97 : vector<104x128xf32>
    %c13 = arith.constant 13 : index
    %c0_101 = arith.constant 0 : index
    %99 = vector.load %arg9[%c13, %c0_101] : memref<128x128xbf16, #tpu.memory_space<vmem>>, vector<104x128xbf16>
    %c5_102 = arith.constant 5 : index
    %c0_103 = arith.constant 0 : index
    %c0_104 = arith.constant 0 : index
    %100 = vector.load %arg3[%c5_102, %c0_103, %c0_104] : memref<9x128x128xbf16, #tpu.memory_space<vmem>>, vector<1x128x128xbf16>
    %101 = vector.shape_cast %100 : vector<1x128x128xbf16> to vector<128x128xbf16>
    %cst_105 = arith.constant dense<0.000000e+00> : vector<104x128xf32>
    %102 = tpu.matmul %99, %101, %cst_105 {dimension_numbers = #tpu.dot_dimension_numbers<[1], [0], [0], [1], [0, 0, 1, 1], [], []>} : vector<104x128xbf16>, vector<128x128xbf16>, vector<104x128xf32> -> vector<104x128xf32>
    %103 = arith.addf %98, %102 : vector<104x128xf32>
    %c22 = arith.constant 22 : index
    %c0_106 = arith.constant 0 : index
    %104 = vector.load %arg9[%c22, %c0_106] : memref<128x128xbf16, #tpu.memory_space<vmem>>, vector<104x128xbf16>
    %c6_107 = arith.constant 6 : index
    %c0_108 = arith.constant 0 : index
    %c0_109 = arith.constant 0 : index
    %105 = vector.load %arg3[%c6_107, %c0_108, %c0_109] : memref<9x128x128xbf16, #tpu.memory_space<vmem>>, vector<1x128x128xbf16>
    %106 = vector.shape_cast %105 : vector<1x128x128xbf16> to vector<128x128xbf16>
    %cst_110 = arith.constant dense<0.000000e+00> : vector<104x128xf32>
    %107 = tpu.matmul %104, %106, %cst_110 {dimension_numbers = #tpu.dot_dimension_numbers<[1], [0], [0], [1], [0, 0, 1, 1], [], []>} : vector<104x128xbf16>, vector<128x128xbf16>, vector<104x128xf32> -> vector<104x128xf32>
    %108 = arith.addf %103, %107 : vector<104x128xf32>
    %c23_111 = arith.constant 23 : index
    %c0_112 = arith.constant 0 : index
    %109 = vector.load %arg9[%c23_111, %c0_112] : memref<128x128xbf16, #tpu.memory_space<vmem>>, vector<104x128xbf16>
    %c7 = arith.constant 7 : index
    %c0_113 = arith.constant 0 : index
    %c0_114 = arith.constant 0 : index
    %110 = vector.load %arg3[%c7, %c0_113, %c0_114] : memref<9x128x128xbf16, #tpu.memory_space<vmem>>, vector<1x128x128xbf16>
    %111 = vector.shape_cast %110 : vector<1x128x128xbf16> to vector<128x128xbf16>
    %cst_115 = arith.constant dense<0.000000e+00> : vector<104x128xf32>
    %112 = tpu.matmul %109, %111, %cst_115 {dimension_numbers = #tpu.dot_dimension_numbers<[1], [0], [0], [1], [0, 0, 1, 1], [], []>} : vector<104x128xbf16>, vector<128x128xbf16>, vector<104x128xf32> -> vector<104x128xf32>
    %113 = arith.addf %108, %112 : vector<104x128xf32>
    %c24 = arith.constant 24 : index
    %c0_116 = arith.constant 0 : index
    %114 = vector.load %arg9[%c24, %c0_116] : memref<128x128xbf16, #tpu.memory_space<vmem>>, vector<104x128xbf16>
    %c8 = arith.constant 8 : index
    %c0_117 = arith.constant 0 : index
    %c0_118 = arith.constant 0 : index
    %115 = vector.load %arg3[%c8, %c0_117, %c0_118] : memref<9x128x128xbf16, #tpu.memory_space<vmem>>, vector<1x128x128xbf16>
    %116 = vector.shape_cast %115 : vector<1x128x128xbf16> to vector<128x128xbf16>
    %cst_119 = arith.constant dense<0.000000e+00> : vector<104x128xf32>
    %117 = tpu.matmul %114, %116, %cst_119 {dimension_numbers = #tpu.dot_dimension_numbers<[1], [0], [0], [1], [0, 0, 1, 1], [], []>} : vector<104x128xbf16>, vector<128x128xbf16>, vector<104x128xf32> -> vector<104x128xf32>
    %118 = arith.addf %113, %117 : vector<104x128xf32>
    %c0_120 = arith.constant 0 : index
    %c0_121 = arith.constant 0 : index
    %119 = vector.load %arg6[%c0_120, %c0_121] : memref<104x1xf32, #tpu.memory_space<vmem>>, vector<104x1xf32>
    %120 = vector.broadcast %1 : vector<1x128xf32> to vector<104x128xf32>
    %121 = arith.addf %118, %120 : vector<104x128xf32>
    %cst_122 = arith.constant 0.000000e+00 : f32
    %122 = vector.broadcast %cst_122 : f32 to vector<104x128xf32>
    %123 = arith.maximumf %121, %122 : vector<104x128xf32>
    %124 = vector.broadcast %2 : vector<1x128xf32> to vector<104x128xf32>
    %125 = arith.mulf %123, %124 : vector<104x128xf32>
    %126 = vector.broadcast %3 : vector<1x128xf32> to vector<104x128xf32>
    %127 = arith.addf %125, %126 : vector<104x128xf32>
    %128 = vector.broadcast %119 : vector<104x1xf32> to vector<104x128xf32>
    %129 = arith.mulf %127, %128 : vector<104x128xf32>
    %130 = arith.truncf %129 : vector<104x128xf32> to vector<104x128xbf16>
    %c12_123 = arith.constant 12 : index
    %c0_124 = arith.constant 0 : index
    %131 = vector.load %arg10[%c12_123, %c0_124] : memref<128x128xbf16, #tpu.memory_space<vmem>>, vector<104x128xbf16>
    tpu.vector_store %arg10[%c12_123, %c0_124], %130 {strides = array<i32>} : memref<128x128xbf16, #tpu.memory_space<vmem>>, vector<104x128xbf16>,
    %cst_125 = arith.constant 0.000000e+00 : f32
    %132 = vector.broadcast %cst_125 : f32 to vector<104x128xf32>
    %c0_126 = arith.constant 0 : index
    %c0_127 = arith.constant 0 : index
    %133 = vector.load %arg10[%c0_126, %c0_127] : memref<128x128xbf16, #tpu.memory_space<vmem>>, vector<104x128xbf16>
    %c0_128 = arith.constant 0 : index
    %c0_129 = arith.constant 0 : index
    %c0_130 = arith.constant 0 : index
    %134 = vector.load %arg4[%c0_128, %c0_129, %c0_130] : memref<9x128x128xbf16, #tpu.memory_space<vmem>>, vector<1x128x128xbf16>
    %135 = vector.shape_cast %134 : vector<1x128x128xbf16> to vector<128x128xbf16>
    %cst_131 = arith.constant dense<0.000000e+00> : vector<104x128xf32>
    %136 = tpu.matmul %133, %135, %cst_131 {dimension_numbers = #tpu.dot_dimension_numbers<[1], [0], [0], [1], [0, 0, 1, 1], [], []>} : vector<104x128xbf16>, vector<128x128xbf16>, vector<104x128xf32> -> vector<104x128xf32>
    %137 = arith.addf %132, %136 : vector<104x128xf32>
    %c1_132 = arith.constant 1 : index
    %c0_133 = arith.constant 0 : index
    %138 = vector.load %arg10[%c1_132, %c0_133] : memref<128x128xbf16, #tpu.memory_space<vmem>>, vector<104x128xbf16>
    %c1_134 = arith.constant 1 : index
    %c0_135 = arith.constant 0 : index
    %c0_136 = arith.constant 0 : index
    %139 = vector.load %arg4[%c1_134, %c0_135, %c0_136] : memref<9x128x128xbf16, #tpu.memory_space<vmem>>, vector<1x128x128xbf16>
    %140 = vector.shape_cast %139 : vector<1x128x128xbf16> to vector<128x128xbf16>
    %cst_137 = arith.constant dense<0.000000e+00> : vector<104x128xf32>
    %141 = tpu.matmul %138, %140, %cst_137 {dimension_numbers = #tpu.dot_dimension_numbers<[1], [0], [0], [1], [0, 0, 1, 1], [], []>} : vector<104x128xbf16>, vector<128x128xbf16>, vector<104x128xf32> -> vector<104x128xf32>
    %142 = arith.addf %137, %141 : vector<104x128xf32>
    %c2_138 = arith.constant 2 : index
    %c0_139 = arith.constant 0 : index
    %143 = vector.load %arg10[%c2_138, %c0_139] : memref<128x128xbf16, #tpu.memory_space<vmem>>, vector<104x128xbf16>
    %c2_140 = arith.constant 2 : index
    %c0_141 = arith.constant 0 : index
    %c0_142 = arith.constant 0 : index
    %144 = vector.load %arg4[%c2_140, %c0_141, %c0_142] : memref<9x128x128xbf16, #tpu.memory_space<vmem>>, vector<1x128x128xbf16>
    %145 = vector.shape_cast %144 : vector<1x128x128xbf16> to vector<128x128xbf16>
    %cst_143 = arith.constant dense<0.000000e+00> : vector<104x128xf32>
    %146 = tpu.matmul %143, %145, %cst_143 {dimension_numbers = #tpu.dot_dimension_numbers<[1], [0], [0], [1], [0, 0, 1, 1], [], []>} : vector<104x128xbf16>, vector<128x128xbf16>, vector<104x128xf32> -> vector<104x128xf32>
    %147 = arith.addf %142, %146 : vector<104x128xf32>
    %c11_144 = arith.constant 11 : index
    %c0_145 = arith.constant 0 : index
    %148 = vector.load %arg10[%c11_144, %c0_145] : memref<128x128xbf16, #tpu.memory_space<vmem>>, vector<104x128xbf16>
    %c3_146 = arith.constant 3 : index
    %c0_147 = arith.constant 0 : index
    %c0_148 = arith.constant 0 : index
    %149 = vector.load %arg4[%c3_146, %c0_147, %c0_148] : memref<9x128x128xbf16, #tpu.memory_space<vmem>>, vector<1x128x128xbf16>
    %150 = vector.shape_cast %149 : vector<1x128x128xbf16> to vector<128x128xbf16>
    %cst_149 = arith.constant dense<0.000000e+00> : vector<104x128xf32>
    %151 = tpu.matmul %148, %150, %cst_149 {dimension_numbers = #tpu.dot_dimension_numbers<[1], [0], [0], [1], [0, 0, 1, 1], [], []>} : vector<104x128xbf16>, vector<128x128xbf16>, vector<104x128xf32> -> vector<104x128xf32>
    %152 = arith.addf %147, %151 : vector<104x128xf32>
    %c12_150 = arith.constant 12 : index
    %c0_151 = arith.constant 0 : index
    %153 = vector.load %arg10[%c12_150, %c0_151] : memref<128x128xbf16, #tpu.memory_space<vmem>>, vector<104x128xbf16>
    %c4_152 = arith.constant 4 : index
    %c0_153 = arith.constant 0 : index
    %c0_154 = arith.constant 0 : index
    %154 = vector.load %arg4[%c4_152, %c0_153, %c0_154] : memref<9x128x128xbf16, #tpu.memory_space<vmem>>, vector<1x128x128xbf16>
    %155 = vector.shape_cast %154 : vector<1x128x128xbf16> to vector<128x128xbf16>
    %cst_155 = arith.constant dense<0.000000e+00> : vector<104x128xf32>
    %156 = tpu.matmul %153, %155, %cst_155 {dimension_numbers = #tpu.dot_dimension_numbers<[1], [0], [0], [1], [0, 0, 1, 1], [], []>} : vector<104x128xbf16>, vector<128x128xbf16>, vector<104x128xf32> -> vector<104x128xf32>
    %157 = arith.addf %152, %156 : vector<104x128xf32>
    %c13_156 = arith.constant 13 : index
    %c0_157 = arith.constant 0 : index
    %158 = vector.load %arg10[%c13_156, %c0_157] : memref<128x128xbf16, #tpu.memory_space<vmem>>, vector<104x128xbf16>
    %c5_158 = arith.constant 5 : index
    %c0_159 = arith.constant 0 : index
    %c0_160 = arith.constant 0 : index
    %159 = vector.load %arg4[%c5_158, %c0_159, %c0_160] : memref<9x128x128xbf16, #tpu.memory_space<vmem>>, vector<1x128x128xbf16>
    %160 = vector.shape_cast %159 : vector<1x128x128xbf16> to vector<128x128xbf16>
    %cst_161 = arith.constant dense<0.000000e+00> : vector<104x128xf32>
    %161 = tpu.matmul %158, %160, %cst_161 {dimension_numbers = #tpu.dot_dimension_numbers<[1], [0], [0], [1], [0, 0, 1, 1], [], []>} : vector<104x128xbf16>, vector<128x128xbf16>, vector<104x128xf32> -> vector<104x128xf32>
    %162 = arith.addf %157, %161 : vector<104x128xf32>
    %c22_162 = arith.constant 22 : index
    %c0_163 = arith.constant 0 : index
    %163 = vector.load %arg10[%c22_162, %c0_163] : memref<128x128xbf16, #tpu.memory_space<vmem>>, vector<104x128xbf16>
    %c6_164 = arith.constant 6 : index
    %c0_165 = arith.constant 0 : index
    %c0_166 = arith.constant 0 : index
    %164 = vector.load %arg4[%c6_164, %c0_165, %c0_166] : memref<9x128x128xbf16, #tpu.memory_space<vmem>>, vector<1x128x128xbf16>
    %165 = vector.shape_cast %164 : vector<1x128x128xbf16> to vector<128x128xbf16>
    %cst_167 = arith.constant dense<0.000000e+00> : vector<104x128xf32>
    %166 = tpu.matmul %163, %165, %cst_167 {dimension_numbers = #tpu.dot_dimension_numbers<[1], [0], [0], [1], [0, 0, 1, 1], [], []>} : vector<104x128xbf16>, vector<128x128xbf16>, vector<104x128xf32> -> vector<104x128xf32>
    %167 = arith.addf %162, %166 : vector<104x128xf32>
    %c23_168 = arith.constant 23 : index
    %c0_169 = arith.constant 0 : index
    %168 = vector.load %arg10[%c23_168, %c0_169] : memref<128x128xbf16, #tpu.memory_space<vmem>>, vector<104x128xbf16>
    %c7_170 = arith.constant 7 : index
    %c0_171 = arith.constant 0 : index
    %c0_172 = arith.constant 0 : index
    %169 = vector.load %arg4[%c7_170, %c0_171, %c0_172] : memref<9x128x128xbf16, #tpu.memory_space<vmem>>, vector<1x128x128xbf16>
    %170 = vector.shape_cast %169 : vector<1x128x128xbf16> to vector<128x128xbf16>
    %cst_173 = arith.constant dense<0.000000e+00> : vector<104x128xf32>
    %171 = tpu.matmul %168, %170, %cst_173 {dimension_numbers = #tpu.dot_dimension_numbers<[1], [0], [0], [1], [0, 0, 1, 1], [], []>} : vector<104x128xbf16>, vector<128x128xbf16>, vector<104x128xf32> -> vector<104x128xf32>
    %172 = arith.addf %167, %171 : vector<104x128xf32>
    %c24_174 = arith.constant 24 : index
    %c0_175 = arith.constant 0 : index
    %173 = vector.load %arg10[%c24_174, %c0_175] : memref<128x128xbf16, #tpu.memory_space<vmem>>, vector<104x128xbf16>
    %c8_176 = arith.constant 8 : index
    %c0_177 = arith.constant 0 : index
    %c0_178 = arith.constant 0 : index
    %174 = vector.load %arg4[%c8_176, %c0_177, %c0_178] : memref<9x128x128xbf16, #tpu.memory_space<vmem>>, vector<1x128x128xbf16>
    %175 = vector.shape_cast %174 : vector<1x128x128xbf16> to vector<128x128xbf16>
    %cst_179 = arith.constant dense<0.000000e+00> : vector<104x128xf32>
    %176 = tpu.matmul %173, %175, %cst_179 {dimension_numbers = #tpu.dot_dimension_numbers<[1], [0], [0], [1], [0, 0, 1, 1], [], []>} : vector<104x128xbf16>, vector<128x128xbf16>, vector<104x128xf32> -> vector<104x128xf32>
    %177 = arith.addf %172, %176 : vector<104x128xf32>
    %178 = vector.broadcast %4 : vector<1x128xf32> to vector<104x128xf32>
    %179 = arith.addf %177, %178 : vector<104x128xf32>
    %cst_180 = arith.constant 0.000000e+00 : f32
    %180 = vector.broadcast %cst_180 : f32 to vector<104x128xf32>
    %181 = arith.maximumf %179, %180 : vector<104x128xf32>
    %182 = vector.broadcast %5 : vector<1x128xf32> to vector<104x128xf32>
    %183 = arith.mulf %181, %182 : vector<104x128xf32>
    %184 = vector.broadcast %6 : vector<1x128xf32> to vector<104x128xf32>
    %185 = arith.addf %183, %184 : vector<104x128xf32>
    %c0_181 = arith.constant 0 : index
    %c0_182 = arith.constant 0 : index
    %186 = vector.load %arg7[%c0_181, %c0_182] : memref<208x128xf32, #tpu.memory_space<vmem>>, vector<104x128xf32>
    %187 = arith.addf %186, %185 : vector<104x128xf32>
    %c0_183 = arith.constant 0 : index
    %c0_184 = arith.constant 0 : index
    %188 = vector.load %arg7[%c0_183, %c0_184] : memref<208x128xf32, #tpu.memory_space<vmem>>, vector<104x128xf32>
    tpu.vector_store %arg7[%c0_183, %c0_184], %187 {strides = array<i32>} : memref<208x128xf32, #tpu.memory_space<vmem>>, vector<104x128xf32>,
    %c4_185 = arith.constant 4 : index
    %c0_186 = arith.constant 0 : index
    %c0_187 = arith.constant 0 : index
    %189 = vector.load %arg1[%c4_185, %c0_186, %c0_187] : memref<8x64x4xbf16, #tpu.memory_space<vmem>>, vector<1x64x4xbf16>
    %190 = vector.shape_cast %189 : vector<1x64x4xbf16> to vector<64x4xbf16>
    %c5_188 = arith.constant 5 : index
    %c0_189 = arith.constant 0 : index
    %c0_190 = arith.constant 0 : index
    %191 = vector.load %arg1[%c5_188, %c0_189, %c0_190] : memref<8x64x4xbf16, #tpu.memory_space<vmem>>, vector<1x64x4xbf16>
    %192 = vector.shape_cast %191 : vector<1x64x4xbf16> to vector<64x4xbf16>
    %193 = arith.maximumf %190, %192 : vector<64x4xbf16>
    %c6_191 = arith.constant 6 : index
    %c0_192 = arith.constant 0 : index
    %c0_193 = arith.constant 0 : index
    %194 = vector.load %arg1[%c6_191, %c0_192, %c0_193] : memref<8x64x4xbf16, #tpu.memory_space<vmem>>, vector<1x64x4xbf16>
    %195 = vector.shape_cast %194 : vector<1x64x4xbf16> to vector<64x4xbf16>
    %c7_194 = arith.constant 7 : index
    %c0_195 = arith.constant 0 : index
    %c0_196 = arith.constant 0 : index
    %196 = vector.load %arg1[%c7_194, %c0_195, %c0_196] : memref<8x64x4xbf16, #tpu.memory_space<vmem>>, vector<1x64x4xbf16>
    %197 = vector.shape_cast %196 : vector<1x64x4xbf16> to vector<64x4xbf16>
    %198 = arith.maximumf %195, %197 : vector<64x4xbf16>
    %199 = arith.maximumf %193, %198 : vector<64x4xbf16>
    %200 = vector.extract_strided_slice %199 {offsets = [0, 0], sizes = [8, 4], strides = [1, 1]} : vector<64x4xbf16> to vector<8x4xbf16>
    %c12_197 = arith.constant 12 : index
    %c0_198 = arith.constant 0 : index
    %201 = vector.load %arg8[%c12_197, %c0_198] : memref<120x4xbf16, #tpu.memory_space<vmem>>, vector<8x4xbf16>
    tpu.vector_store %arg8[%c12_197, %c0_198], %200 {strides = array<i32>} : memref<120x4xbf16, #tpu.memory_space<vmem>>, vector<8x4xbf16>,
    %202 = vector.extract_strided_slice %199 {offsets = [8, 0], sizes = [8, 4], strides = [1, 1]} : vector<64x4xbf16> to vector<8x4xbf16>
    %c23_199 = arith.constant 23 : index
    %c0_200 = arith.constant 0 : index
    %203 = vector.load %arg8[%c23_199, %c0_200] : memref<120x4xbf16, #tpu.memory_space<vmem>>, vector<8x4xbf16>
    tpu.vector_store %arg8[%c23_199, %c0_200], %202 {strides = array<i32>} : memref<120x4xbf16, #tpu.memory_space<vmem>>, vector<8x4xbf16>,
    %204 = vector.extract_strided_slice %199 {offsets = [16, 0], sizes = [8, 4], strides = [1, 1]} : vector<64x4xbf16> to vector<8x4xbf16>
    %c34_201 = arith.constant 34 : index
    %c0_202 = arith.constant 0 : index
    %205 = vector.load %arg8[%c34_201, %c0_202] : memref<120x4xbf16, #tpu.memory_space<vmem>>, vector<8x4xbf16>
    tpu.vector_store %arg8[%c34_201, %c0_202], %204 {strides = array<i32>} : memref<120x4xbf16, #tpu.memory_space<vmem>>, vector<8x4xbf16>,
    %206 = vector.extract_strided_slice %199 {offsets = [24, 0], sizes = [8, 4], strides = [1, 1]} : vector<64x4xbf16> to vector<8x4xbf16>
    %c45_203 = arith.constant 45 : index
    %c0_204 = arith.constant 0 : index
    %207 = vector.load %arg8[%c45_203, %c0_204] : memref<120x4xbf16, #tpu.memory_space<vmem>>, vector<8x4xbf16>
    tpu.vector_store %arg8[%c45_203, %c0_204], %206 {strides = array<i32>} : memref<120x4xbf16, #tpu.memory_space<vmem>>, vector<8x4xbf16>,
    %208 = vector.extract_strided_slice %199 {offsets = [32, 0], sizes = [8, 4], strides = [1, 1]} : vector<64x4xbf16> to vector<8x4xbf16>
    %c56_205 = arith.constant 56 : index
    %c0_206 = arith.constant 0 : index
    %209 = vector.load %arg8[%c56_205, %c0_206] : memref<120x4xbf16, #tpu.memory_space<vmem>>, vector<8x4xbf16>
    tpu.vector_store %arg8[%c56_205, %c0_206], %208 {strides = array<i32>} : memref<120x4xbf16, #tpu.memory_space<vmem>>, vector<8x4xbf16>,
    %210 = vector.extract_strided_slice %199 {offsets = [40, 0], sizes = [8, 4], strides = [1, 1]} : vector<64x4xbf16> to vector<8x4xbf16>
    %c67_207 = arith.constant 67 : index
    %c0_208 = arith.constant 0 : index
    %211 = vector.load %arg8[%c67_207, %c0_208] : memref<120x4xbf16, #tpu.memory_space<vmem>>, vector<8x4xbf16>
    tpu.vector_store %arg8[%c67_207, %c0_208], %210 {strides = array<i32>} : memref<120x4xbf16, #tpu.memory_space<vmem>>, vector<8x4xbf16>,
    %212 = vector.extract_strided_slice %199 {offsets = [48, 0], sizes = [8, 4], strides = [1, 1]} : vector<64x4xbf16> to vector<8x4xbf16>
    %c78_209 = arith.constant 78 : index
    %c0_210 = arith.constant 0 : index
    %213 = vector.load %arg8[%c78_209, %c0_210] : memref<120x4xbf16, #tpu.memory_space<vmem>>, vector<8x4xbf16>
    tpu.vector_store %arg8[%c78_209, %c0_210], %212 {strides = array<i32>} : memref<120x4xbf16, #tpu.memory_space<vmem>>, vector<8x4xbf16>,
    %214 = vector.extract_strided_slice %199 {offsets = [56, 0], sizes = [8, 4], strides = [1, 1]} : vector<64x4xbf16> to vector<8x4xbf16>
    %c89_211 = arith.constant 89 : index
    %c0_212 = arith.constant 0 : index
    %215 = vector.load %arg8[%c89_211, %c0_212] : memref<120x4xbf16, #tpu.memory_space<vmem>>, vector<8x4xbf16>
    tpu.vector_store %arg8[%c89_211, %c0_212], %214 {strides = array<i32>} : memref<120x4xbf16, #tpu.memory_space<vmem>>, vector<8x4xbf16>,
    %cst_213 = arith.constant 0.000000e+00 : f32
    %216 = vector.broadcast %cst_213 : f32 to vector<104x128xf32>
    %c0_214 = arith.constant 0 : index
    %c0_215 = arith.constant 0 : index
    %217 = vector.load %arg8[%c0_214, %c0_215] : memref<120x4xbf16, #tpu.memory_space<vmem>>, vector<104x4xbf16>
    %c0_216 = arith.constant 0 : index
    %c0_217 = arith.constant 0 : index
    %c0_218 = arith.constant 0 : index
    %218 = vector.load %arg2[%c0_216, %c0_217, %c0_218] : memref<4x4x128xbf16, #tpu.memory_space<vmem>>, vector<1x4x128xbf16>
    %219 = vector.shape_cast %218 : vector<1x4x128xbf16> to vector<4x128xbf16>
    %cst_219 = arith.constant dense<0.000000e+00> : vector<104x128xf32>
    %220 = tpu.matmul %217, %219, %cst_219 {dimension_numbers = #tpu.dot_dimension_numbers<[1], [0], [0], [1], [0, 0, 1, 1], [], []>} : vector<104x4xbf16>, vector<4x128xbf16>, vector<104x128xf32> -> vector<104x128xf32>
    %221 = arith.addf %216, %220 : vector<104x128xf32>
    %c1_220 = arith.constant 1 : index
    %c0_221 = arith.constant 0 : index
    %222 = vector.load %arg8[%c1_220, %c0_221] : memref<120x4xbf16, #tpu.memory_space<vmem>>, vector<104x4xbf16>
    %c1_222 = arith.constant 1 : index
    %c0_223 = arith.constant 0 : index
    %c0_224 = arith.constant 0 : index
    %223 = vector.load %arg2[%c1_222, %c0_223, %c0_224] : memref<4x4x128xbf16, #tpu.memory_space<vmem>>, vector<1x4x128xbf16>
    %224 = vector.shape_cast %223 : vector<1x4x128xbf16> to vector<4x128xbf16>
    %cst_225 = arith.constant dense<0.000000e+00> : vector<104x128xf32>
    %225 = tpu.matmul %222, %224, %cst_225 {dimension_numbers = #tpu.dot_dimension_numbers<[1], [0], [0], [1], [0, 0, 1, 1], [], []>} : vector<104x4xbf16>, vector<4x128xbf16>, vector<104x128xf32> -> vector<104x128xf32>
    %226 = arith.addf %221, %225 : vector<104x128xf32>
    %c11_226 = arith.constant 11 : index
    %c0_227 = arith.constant 0 : index
    %227 = vector.load %arg8[%c11_226, %c0_227] : memref<120x4xbf16, #tpu.memory_space<vmem>>, vector<104x4xbf16>
    %c2_228 = arith.constant 2 : index
    %c0_229 = arith.constant 0 : index
    %c0_230 = arith.constant 0 : index
    %228 = vector.load %arg2[%c2_228, %c0_229, %c0_230] : memref<4x4x128xbf16, #tpu.memory_space<vmem>>, vector<1x4x128xbf16>
    %229 = vector.shape_cast %228 : vector<1x4x128xbf16> to vector<4x128xbf16>
    %cst_231 = arith.constant dense<0.000000e+00> : vector<104x128xf32>
    %230 = tpu.matmul %227, %229, %cst_231 {dimension_numbers = #tpu.dot_dimension_numbers<[1], [0], [0], [1], [0, 0, 1, 1], [], []>} : vector<104x4xbf16>, vector<4x128xbf16>, vector<104x128xf32> -> vector<104x128xf32>
    %231 = arith.addf %226, %230 : vector<104x128xf32>
    %c12_232 = arith.constant 12 : index
    %c0_233 = arith.constant 0 : index
    %232 = vector.load %arg8[%c12_232, %c0_233] : memref<120x4xbf16, #tpu.memory_space<vmem>>, vector<104x4xbf16>
    %c3_234 = arith.constant 3 : index
    %c0_235 = arith.constant 0 : index
    %c0_236 = arith.constant 0 : index
    %233 = vector.load %arg2[%c3_234, %c0_235, %c0_236] : memref<4x4x128xbf16, #tpu.memory_space<vmem>>, vector<1x4x128xbf16>
    %234 = vector.shape_cast %233 : vector<1x4x128xbf16> to vector<4x128xbf16>
    %cst_237 = arith.constant dense<0.000000e+00> : vector<104x128xf32>
    %235 = tpu.matmul %232, %234, %cst_237 {dimension_numbers = #tpu.dot_dimension_numbers<[1], [0], [0], [1], [0, 0, 1, 1], [], []>} : vector<104x4xbf16>, vector<4x128xbf16>, vector<104x128xf32> -> vector<104x128xf32>
    %236 = arith.addf %231, %235 : vector<104x128xf32>
    %c0_238 = arith.constant 0 : index
    %c0_239 = arith.constant 0 : index
    %237 = vector.load %arg6[%c0_238, %c0_239] : memref<104x1xf32, #tpu.memory_space<vmem>>, vector<104x1xf32>
    %238 = vector.broadcast %0 : vector<1x128xf32> to vector<104x128xf32>
    %239 = arith.addf %236, %238 : vector<104x128xf32>
    %c104 = arith.constant 104 : index
    %c0_240 = arith.constant 0 : index
    %240 = vector.load %arg7[%c104, %c0_240] : memref<208x128xf32, #tpu.memory_space<vmem>>, vector<104x128xf32>
    tpu.vector_store %arg7[%c104, %c0_240], %239 {strides = array<i32>} : memref<208x128xf32, #tpu.memory_space<vmem>>, vector<104x128xf32>,
    %241 = vector.broadcast %237 : vector<104x1xf32> to vector<104x128xf32>
    %242 = arith.mulf %239, %241 : vector<104x128xf32>
    %243 = arith.truncf %242 : vector<104x128xf32> to vector<104x128xbf16>
    %c12_241 = arith.constant 12 : index
    %c0_242 = arith.constant 0 : index
    %244 = vector.load %arg9[%c12_241, %c0_242] : memref<128x128xbf16, #tpu.memory_space<vmem>>, vector<104x128xbf16>
    tpu.vector_store %arg9[%c12_241, %c0_242], %243 {strides = array<i32>} : memref<128x128xbf16, #tpu.memory_space<vmem>>, vector<104x128xbf16>,
    %cst_243 = arith.constant 0.000000e+00 : f32
    %245 = vector.broadcast %cst_243 : f32 to vector<104x128xf32>
    %c0_244 = arith.constant 0 : index
    %c0_245 = arith.constant 0 : index
    %246 = vector.load %arg9[%c0_244, %c0_245] : memref<128x128xbf16, #tpu.memory_space<vmem>>, vector<104x128xbf16>
    %c0_246 = arith.constant 0 : index
    %c0_247 = arith.constant 0 : index
    %c0_248 = arith.constant 0 : index
    %247 = vector.load %arg3[%c0_246, %c0_247, %c0_248] : memref<9x128x128xbf16, #tpu.memory_space<vmem>>, vector<1x128x128xbf16>
    %248 = vector.shape_cast %247 : vector<1x128x128xbf16> to vector<128x128xbf16>
    %cst_249 = arith.constant dense<0.000000e+00> : vector<104x128xf32>
    %249 = tpu.matmul %246, %248, %cst_249 {dimension_numbers = #tpu.dot_dimension_numbers<[1], [0], [0], [1], [0, 0, 1, 1], [], []>} : vector<104x128xbf16>, vector<128x128xbf16>, vector<104x128xf32> -> vector<104x128xf32>
    %250 = arith.addf %245, %249 : vector<104x128xf32>
    %c1_250 = arith.constant 1 : index
    %c0_251 = arith.constant 0 : index
    %251 = vector.load %arg9[%c1_250, %c0_251] : memref<128x128xbf16, #tpu.memory_space<vmem>>, vector<104x128xbf16>
    %c1_252 = arith.constant 1 : index
    %c0_253 = arith.constant 0 : index
    %c0_254 = arith.constant 0 : index
    %252 = vector.load %arg3[%c1_252, %c0_253, %c0_254] : memref<9x128x128xbf16, #tpu.memory_space<vmem>>, vector<1x128x128xbf16>
    %253 = vector.shape_cast %252 : vector<1x128x128xbf16> to vector<128x128xbf16>
    %cst_255 = arith.constant dense<0.000000e+00> : vector<104x128xf32>
    %254 = tpu.matmul %251, %253, %cst_255 {dimension_numbers = #tpu.dot_dimension_numbers<[1], [0], [0], [1], [0, 0, 1, 1], [], []>} : vector<104x128xbf16>, vector<128x128xbf16>, vector<104x128xf32> -> vector<104x128xf32>
    %255 = arith.addf %250, %254 : vector<104x128xf32>
    %c2_256 = arith.constant 2 : index
    %c0_257 = arith.constant 0 : index
    %256 = vector.load %arg9[%c2_256, %c0_257] : memref<128x128xbf16, #tpu.memory_space<vmem>>, vector<104x128xbf16>
    %c2_258 = arith.constant 2 : index
    %c0_259 = arith.constant 0 : index
    %c0_260 = arith.constant 0 : index
    %257 = vector.load %arg3[%c2_258, %c0_259, %c0_260] : memref<9x128x128xbf16, #tpu.memory_space<vmem>>, vector<1x128x128xbf16>
    %258 = vector.shape_cast %257 : vector<1x128x128xbf16> to vector<128x128xbf16>
    %cst_261 = arith.constant dense<0.000000e+00> : vector<104x128xf32>
    %259 = tpu.matmul %256, %258, %cst_261 {dimension_numbers = #tpu.dot_dimension_numbers<[1], [0], [0], [1], [0, 0, 1, 1], [], []>} : vector<104x128xbf16>, vector<128x128xbf16>, vector<104x128xf32> -> vector<104x128xf32>
    %260 = arith.addf %255, %259 : vector<104x128xf32>
    %c11_262 = arith.constant 11 : index
    %c0_263 = arith.constant 0 : index
    %261 = vector.load %arg9[%c11_262, %c0_263] : memref<128x128xbf16, #tpu.memory_space<vmem>>, vector<104x128xbf16>
    %c3_264 = arith.constant 3 : index
    %c0_265 = arith.constant 0 : index
    %c0_266 = arith.constant 0 : index
    %262 = vector.load %arg3[%c3_264, %c0_265, %c0_266] : memref<9x128x128xbf16, #tpu.memory_space<vmem>>, vector<1x128x128xbf16>
    %263 = vector.shape_cast %262 : vector<1x128x128xbf16> to vector<128x128xbf16>
    %cst_267 = arith.constant dense<0.000000e+00> : vector<104x128xf32>
    %264 = tpu.matmul %261, %263, %cst_267 {dimension_numbers = #tpu.dot_dimension_numbers<[1], [0], [0], [1], [0, 0, 1, 1], [], []>} : vector<104x128xbf16>, vector<128x128xbf16>, vector<104x128xf32> -> vector<104x128xf32>
    %265 = arith.addf %260, %264 : vector<104x128xf32>
    %c12_268 = arith.constant 12 : index
    %c0_269 = arith.constant 0 : index
    %266 = vector.load %arg9[%c12_268, %c0_269] : memref<128x128xbf16, #tpu.memory_space<vmem>>, vector<104x128xbf16>
    %c4_270 = arith.constant 4 : index
    %c0_271 = arith.constant 0 : index
    %c0_272 = arith.constant 0 : index
    %267 = vector.load %arg3[%c4_270, %c0_271, %c0_272] : memref<9x128x128xbf16, #tpu.memory_space<vmem>>, vector<1x128x128xbf16>
    %268 = vector.shape_cast %267 : vector<1x128x128xbf16> to vector<128x128xbf16>
    %cst_273 = arith.constant dense<0.000000e+00> : vector<104x128xf32>
    %269 = tpu.matmul %266, %268, %cst_273 {dimension_numbers = #tpu.dot_dimension_numbers<[1], [0], [0], [1], [0, 0, 1, 1], [], []>} : vector<104x128xbf16>, vector<128x128xbf16>, vector<104x128xf32> -> vector<104x128xf32>
    %270 = arith.addf %265, %269 : vector<104x128xf32>
    %c13_274 = arith.constant 13 : index
    %c0_275 = arith.constant 0 : index
    %271 = vector.load %arg9[%c13_274, %c0_275] : memref<128x128xbf16, #tpu.memory_space<vmem>>, vector<104x128xbf16>
    %c5_276 = arith.constant 5 : index
    %c0_277 = arith.constant 0 : index
    %c0_278 = arith.constant 0 : index
    %272 = vector.load %arg3[%c5_276, %c0_277, %c0_278] : memref<9x128x128xbf16, #tpu.memory_space<vmem>>, vector<1x128x128xbf16>
    %273 = vector.shape_cast %272 : vector<1x128x128xbf16> to vector<128x128xbf16>
    %cst_279 = arith.constant dense<0.000000e+00> : vector<104x128xf32>
    %274 = tpu.matmul %271, %273, %cst_279 {dimension_numbers = #tpu.dot_dimension_numbers<[1], [0], [0], [1], [0, 0, 1, 1], [], []>} : vector<104x128xbf16>, vector<128x128xbf16>, vector<104x128xf32> -> vector<104x128xf32>
    %275 = arith.addf %270, %274 : vector<104x128xf32>
    %c22_280 = arith.constant 22 : index
    %c0_281 = arith.constant 0 : index
    %276 = vector.load %arg9[%c22_280, %c0_281] : memref<128x128xbf16, #tpu.memory_space<vmem>>, vector<104x128xbf16>
    %c6_282 = arith.constant 6 : index
    %c0_283 = arith.constant 0 : index
    %c0_284 = arith.constant 0 : index
    %277 = vector.load %arg3[%c6_282, %c0_283, %c0_284] : memref<9x128x128xbf16, #tpu.memory_space<vmem>>, vector<1x128x128xbf16>
    %278 = vector.shape_cast %277 : vector<1x128x128xbf16> to vector<128x128xbf16>
    %cst_285 = arith.constant dense<0.000000e+00> : vector<104x128xf32>
    %279 = tpu.matmul %276, %278, %cst_285 {dimension_numbers = #tpu.dot_dimension_numbers<[1], [0], [0], [1], [0, 0, 1, 1], [], []>} : vector<104x128xbf16>, vector<128x128xbf16>, vector<104x128xf32> -> vector<104x128xf32>
    %280 = arith.addf %275, %279 : vector<104x128xf32>
    %c23_286 = arith.constant 23 : index
    %c0_287 = arith.constant 0 : index
    %281 = vector.load %arg9[%c23_286, %c0_287] : memref<128x128xbf16, #tpu.memory_space<vmem>>, vector<104x128xbf16>
    %c7_288 = arith.constant 7 : index
    %c0_289 = arith.constant 0 : index
    %c0_290 = arith.constant 0 : index
    %282 = vector.load %arg3[%c7_288, %c0_289, %c0_290] : memref<9x128x128xbf16, #tpu.memory_space<vmem>>, vector<1x128x128xbf16>
    %283 = vector.shape_cast %282 : vector<1x128x128xbf16> to vector<128x128xbf16>
    %cst_291 = arith.constant dense<0.000000e+00> : vector<104x128xf32>
    %284 = tpu.matmul %281, %283, %cst_291 {dimension_numbers = #tpu.dot_dimension_numbers<[1], [0], [0], [1], [0, 0, 1, 1], [], []>} : vector<104x128xbf16>, vector<128x128xbf16>, vector<104x128xf32> -> vector<104x128xf32>
    %285 = arith.addf %280, %284 : vector<104x128xf32>
    %c24_292 = arith.constant 24 : index
    %c0_293 = arith.constant 0 : index
    %286 = vector.load %arg9[%c24_292, %c0_293] : memref<128x128xbf16, #tpu.memory_space<vmem>>, vector<104x128xbf16>
    %c8_294 = arith.constant 8 : index
    %c0_295 = arith.constant 0 : index
    %c0_296 = arith.constant 0 : index
    %287 = vector.load %arg3[%c8_294, %c0_295, %c0_296] : memref<9x128x128xbf16, #tpu.memory_space<vmem>>, vector<1x128x128xbf16>
    %288 = vector.shape_cast %287 : vector<1x128x128xbf16> to vector<128x128xbf16>
    %cst_297 = arith.constant dense<0.000000e+00> : vector<104x128xf32>
    %289 = tpu.matmul %286, %288, %cst_297 {dimension_numbers = #tpu.dot_dimension_numbers<[1], [0], [0], [1], [0, 0, 1, 1], [], []>} : vector<104x128xbf16>, vector<128x128xbf16>, vector<104x128xf32> -> vector<104x128xf32>
    %290 = arith.addf %285, %289 : vector<104x128xf32>
    %c0_298 = arith.constant 0 : index
    %c0_299 = arith.constant 0 : index
    %291 = vector.load %arg6[%c0_298, %c0_299] : memref<104x1xf32, #tpu.memory_space<vmem>>, vector<104x1xf32>
    %292 = vector.broadcast %1 : vector<1x128xf32> to vector<104x128xf32>
    %293 = arith.addf %290, %292 : vector<104x128xf32>
    %cst_300 = arith.constant 0.000000e+00 : f32
    %294 = vector.broadcast %cst_300 : f32 to vector<104x128xf32>
    %295 = arith.maximumf %293, %294 : vector<104x128xf32>
    %296 = vector.broadcast %2 : vector<1x128xf32> to vector<104x128xf32>
    %297 = arith.mulf %295, %296 : vector<104x128xf32>
    %298 = vector.broadcast %3 : vector<1x128xf32> to vector<104x128xf32>
    %299 = arith.addf %297, %298 : vector<104x128xf32>
    %300 = vector.broadcast %291 : vector<104x1xf32> to vector<104x128xf32>
    %301 = arith.mulf %299, %300 : vector<104x128xf32>
    %302 = arith.truncf %301 : vector<104x128xf32> to vector<104x128xbf16>
    %c12_301 = arith.constant 12 : index
    %c0_302 = arith.constant 0 : index
    %303 = vector.load %arg10[%c12_301, %c0_302] : memref<128x128xbf16, #tpu.memory_space<vmem>>, vector<104x128xbf16>
    tpu.vector_store %arg10[%c12_301, %c0_302], %302 {strides = array<i32>} : memref<128x128xbf16, #tpu.memory_space<vmem>>, vector<104x128xbf16>,
    %cst_303 = arith.constant 0.000000e+00 : f32
    %304 = vector.broadcast %cst_303 : f32 to vector<104x128xf32>
    %c0_304 = arith.constant 0 : index
    %c0_305 = arith.constant 0 : index
    %305 = vector.load %arg10[%c0_304, %c0_305] : memref<128x128xbf16, #tpu.memory_space<vmem>>, vector<104x128xbf16>
    %c0_306 = arith.constant 0 : index
    %c0_307 = arith.constant 0 : index
    %c0_308 = arith.constant 0 : index
    %306 = vector.load %arg4[%c0_306, %c0_307, %c0_308] : memref<9x128x128xbf16, #tpu.memory_space<vmem>>, vector<1x128x128xbf16>
    %307 = vector.shape_cast %306 : vector<1x128x128xbf16> to vector<128x128xbf16>
    %cst_309 = arith.constant dense<0.000000e+00> : vector<104x128xf32>
    %308 = tpu.matmul %305, %307, %cst_309 {dimension_numbers = #tpu.dot_dimension_numbers<[1], [0], [0], [1], [0, 0, 1, 1], [], []>} : vector<104x128xbf16>, vector<128x128xbf16>, vector<104x128xf32> -> vector<104x128xf32>
    %309 = arith.addf %304, %308 : vector<104x128xf32>
    %c1_310 = arith.constant 1 : index
    %c0_311 = arith.constant 0 : index
    %310 = vector.load %arg10[%c1_310, %c0_311] : memref<128x128xbf16, #tpu.memory_space<vmem>>, vector<104x128xbf16>
    %c1_312 = arith.constant 1 : index
    %c0_313 = arith.constant 0 : index
    %c0_314 = arith.constant 0 : index
    %311 = vector.load %arg4[%c1_312, %c0_313, %c0_314] : memref<9x128x128xbf16, #tpu.memory_space<vmem>>, vector<1x128x128xbf16>
    %312 = vector.shape_cast %311 : vector<1x128x128xbf16> to vector<128x128xbf16>
    %cst_315 = arith.constant dense<0.000000e+00> : vector<104x128xf32>
    %313 = tpu.matmul %310, %312, %cst_315 {dimension_numbers = #tpu.dot_dimension_numbers<[1], [0], [0], [1], [0, 0, 1, 1], [], []>} : vector<104x128xbf16>, vector<128x128xbf16>, vector<104x128xf32> -> vector<104x128xf32>
    %314 = arith.addf %309, %313 : vector<104x128xf32>
    %c2_316 = arith.constant 2 : index
    %c0_317 = arith.constant 0 : index
    %315 = vector.load %arg10[%c2_316, %c0_317] : memref<128x128xbf16, #tpu.memory_space<vmem>>, vector<104x128xbf16>
    %c2_318 = arith.constant 2 : index
    %c0_319 = arith.constant 0 : index
    %c0_320 = arith.constant 0 : index
    %316 = vector.load %arg4[%c2_318, %c0_319, %c0_320] : memref<9x128x128xbf16, #tpu.memory_space<vmem>>, vector<1x128x128xbf16>
    %317 = vector.shape_cast %316 : vector<1x128x128xbf16> to vector<128x128xbf16>
    %cst_321 = arith.constant dense<0.000000e+00> : vector<104x128xf32>
    %318 = tpu.matmul %315, %317, %cst_321 {dimension_numbers = #tpu.dot_dimension_numbers<[1], [0], [0], [1], [0, 0, 1, 1], [], []>} : vector<104x128xbf16>, vector<128x128xbf16>, vector<104x128xf32> -> vector<104x128xf32>
    %319 = arith.addf %314, %318 : vector<104x128xf32>
    %c11_322 = arith.constant 11 : index
    %c0_323 = arith.constant 0 : index
    %320 = vector.load %arg10[%c11_322, %c0_323] : memref<128x128xbf16, #tpu.memory_space<vmem>>, vector<104x128xbf16>
    %c3_324 = arith.constant 3 : index
    %c0_325 = arith.constant 0 : index
    %c0_326 = arith.constant 0 : index
    %321 = vector.load %arg4[%c3_324, %c0_325, %c0_326] : memref<9x128x128xbf16, #tpu.memory_space<vmem>>, vector<1x128x128xbf16>
    %322 = vector.shape_cast %321 : vector<1x128x128xbf16> to vector<128x128xbf16>
    %cst_327 = arith.constant dense<0.000000e+00> : vector<104x128xf32>
    %323 = tpu.matmul %320, %322, %cst_327 {dimension_numbers = #tpu.dot_dimension_numbers<[1], [0], [0], [1], [0, 0, 1, 1], [], []>} : vector<104x128xbf16>, vector<128x128xbf16>, vector<104x128xf32> -> vector<104x128xf32>
    %324 = arith.addf %319, %323 : vector<104x128xf32>
    %c12_328 = arith.constant 12 : index
    %c0_329 = arith.constant 0 : index
    %325 = vector.load %arg10[%c12_328, %c0_329] : memref<128x128xbf16, #tpu.memory_space<vmem>>, vector<104x128xbf16>
    %c4_330 = arith.constant 4 : index
    %c0_331 = arith.constant 0 : index
    %c0_332 = arith.constant 0 : index
    %326 = vector.load %arg4[%c4_330, %c0_331, %c0_332] : memref<9x128x128xbf16, #tpu.memory_space<vmem>>, vector<1x128x128xbf16>
    %327 = vector.shape_cast %326 : vector<1x128x128xbf16> to vector<128x128xbf16>
    %cst_333 = arith.constant dense<0.000000e+00> : vector<104x128xf32>
    %328 = tpu.matmul %325, %327, %cst_333 {dimension_numbers = #tpu.dot_dimension_numbers<[1], [0], [0], [1], [0, 0, 1, 1], [], []>} : vector<104x128xbf16>, vector<128x128xbf16>, vector<104x128xf32> -> vector<104x128xf32>
    %329 = arith.addf %324, %328 : vector<104x128xf32>
    %c13_334 = arith.constant 13 : index
    %c0_335 = arith.constant 0 : index
    %330 = vector.load %arg10[%c13_334, %c0_335] : memref<128x128xbf16, #tpu.memory_space<vmem>>, vector<104x128xbf16>
    %c5_336 = arith.constant 5 : index
    %c0_337 = arith.constant 0 : index
    %c0_338 = arith.constant 0 : index
    %331 = vector.load %arg4[%c5_336, %c0_337, %c0_338] : memref<9x128x128xbf16, #tpu.memory_space<vmem>>, vector<1x128x128xbf16>
    %332 = vector.shape_cast %331 : vector<1x128x128xbf16> to vector<128x128xbf16>
    %cst_339 = arith.constant dense<0.000000e+00> : vector<104x128xf32>
    %333 = tpu.matmul %330, %332, %cst_339 {dimension_numbers = #tpu.dot_dimension_numbers<[1], [0], [0], [1], [0, 0, 1, 1], [], []>} : vector<104x128xbf16>, vector<128x128xbf16>, vector<104x128xf32> -> vector<104x128xf32>
    %334 = arith.addf %329, %333 : vector<104x128xf32>
    %c22_340 = arith.constant 22 : index
    %c0_341 = arith.constant 0 : index
    %335 = vector.load %arg10[%c22_340, %c0_341] : memref<128x128xbf16, #tpu.memory_space<vmem>>, vector<104x128xbf16>
    %c6_342 = arith.constant 6 : index
    %c0_343 = arith.constant 0 : index
    %c0_344 = arith.constant 0 : index
    %336 = vector.load %arg4[%c6_342, %c0_343, %c0_344] : memref<9x128x128xbf16, #tpu.memory_space<vmem>>, vector<1x128x128xbf16>
    %337 = vector.shape_cast %336 : vector<1x128x128xbf16> to vector<128x128xbf16>
    %cst_345 = arith.constant dense<0.000000e+00> : vector<104x128xf32>
    %338 = tpu.matmul %335, %337, %cst_345 {dimension_numbers = #tpu.dot_dimension_numbers<[1], [0], [0], [1], [0, 0, 1, 1], [], []>} : vector<104x128xbf16>, vector<128x128xbf16>, vector<104x128xf32> -> vector<104x128xf32>
    %339 = arith.addf %334, %338 : vector<104x128xf32>
    %c23_346 = arith.constant 23 : index
    %c0_347 = arith.constant 0 : index
    %340 = vector.load %arg10[%c23_346, %c0_347] : memref<128x128xbf16, #tpu.memory_space<vmem>>, vector<104x128xbf16>
    %c7_348 = arith.constant 7 : index
    %c0_349 = arith.constant 0 : index
    %c0_350 = arith.constant 0 : index
    %341 = vector.load %arg4[%c7_348, %c0_349, %c0_350] : memref<9x128x128xbf16, #tpu.memory_space<vmem>>, vector<1x128x128xbf16>
    %342 = vector.shape_cast %341 : vector<1x128x128xbf16> to vector<128x128xbf16>
    %cst_351 = arith.constant dense<0.000000e+00> : vector<104x128xf32>
    %343 = tpu.matmul %340, %342, %cst_351 {dimension_numbers = #tpu.dot_dimension_numbers<[1], [0], [0], [1], [0, 0, 1, 1], [], []>} : vector<104x128xbf16>, vector<128x128xbf16>, vector<104x128xf32> -> vector<104x128xf32>
    %344 = arith.addf %339, %343 : vector<104x128xf32>
    %c24_352 = arith.constant 24 : index
    %c0_353 = arith.constant 0 : index
    %345 = vector.load %arg10[%c24_352, %c0_353] : memref<128x128xbf16, #tpu.memory_space<vmem>>, vector<104x128xbf16>
    %c8_354 = arith.constant 8 : index
    %c0_355 = arith.constant 0 : index
    %c0_356 = arith.constant 0 : index
    %346 = vector.load %arg4[%c8_354, %c0_355, %c0_356] : memref<9x128x128xbf16, #tpu.memory_space<vmem>>, vector<1x128x128xbf16>
    %347 = vector.shape_cast %346 : vector<1x128x128xbf16> to vector<128x128xbf16>
    %cst_357 = arith.constant dense<0.000000e+00> : vector<104x128xf32>
    %348 = tpu.matmul %345, %347, %cst_357 {dimension_numbers = #tpu.dot_dimension_numbers<[1], [0], [0], [1], [0, 0, 1, 1], [], []>} : vector<104x128xbf16>, vector<128x128xbf16>, vector<104x128xf32> -> vector<104x128xf32>
    %349 = arith.addf %344, %348 : vector<104x128xf32>
    %350 = vector.broadcast %4 : vector<1x128xf32> to vector<104x128xf32>
    %351 = arith.addf %349, %350 : vector<104x128xf32>
    %cst_358 = arith.constant 0.000000e+00 : f32
    %352 = vector.broadcast %cst_358 : f32 to vector<104x128xf32>
    %353 = arith.maximumf %351, %352 : vector<104x128xf32>
    %354 = vector.broadcast %5 : vector<1x128xf32> to vector<104x128xf32>
    %355 = arith.mulf %353, %354 : vector<104x128xf32>
    %356 = vector.broadcast %6 : vector<1x128xf32> to vector<104x128xf32>
    %357 = arith.addf %355, %356 : vector<104x128xf32>
    %c104_359 = arith.constant 104 : index
    %c0_360 = arith.constant 0 : index
    %358 = vector.load %arg7[%c104_359, %c0_360] : memref<208x128xf32, #tpu.memory_space<vmem>>, vector<104x128xf32>
    %359 = arith.addf %358, %357 : vector<104x128xf32>
    %c104_361 = arith.constant 104 : index
    %c0_362 = arith.constant 0 : index
    %360 = vector.load %arg7[%c104_361, %c0_362] : memref<208x128xf32, #tpu.memory_space<vmem>>, vector<104x128xf32>
    tpu.vector_store %arg7[%c104_361, %c0_362], %359 {strides = array<i32>} : memref<208x128xf32, #tpu.memory_space<vmem>>, vector<104x128xf32>,
    return
  }
  func.func @transform_0(%arg0: i32) -> (i32, i32, i32) {
    %c0_i32 = arith.constant 0 : i32
    %c0_i32_0 = arith.constant 0 : i32
    %c0_i32_1 = arith.constant 0 : i32
    return %arg0, %c0_i32, %c0_i32_0 : i32, i32, i32
  }
  func.func @transform_1(%arg0: i32) -> (i32, i32, i32) {
    %c0_i32 = arith.constant 0 : i32
    %c0_i32_0 = arith.constant 0 : i32
    %c0_i32_1 = arith.constant 0 : i32
    %c0_i32_2 = arith.constant 0 : i32
    return %c0_i32, %c0_i32_0, %c0_i32_1 : i32, i32, i32
  }
  func.func @transform_2(%arg0: i32) -> (i32, i32, i32) {
    %c0_i32 = arith.constant 0 : i32
    %c0_i32_0 = arith.constant 0 : i32
    %c0_i32_1 = arith.constant 0 : i32
    %c0_i32_2 = arith.constant 0 : i32
    return %c0_i32, %c0_i32_0, %c0_i32_1 : i32, i32, i32
  }
  func.func @transform_3(%arg0: i32) -> (i32, i32, i32) {
    %c0_i32 = arith.constant 0 : i32
    %c0_i32_0 = arith.constant 0 : i32
    %c0_i32_1 = arith.constant 0 : i32
    %c0_i32_2 = arith.constant 0 : i32
    return %c0_i32, %c0_i32_0, %c0_i32_1 : i32, i32, i32
  }
  func.func @transform_4(%arg0: i32) -> (i32, i32) {
    %c0_i32 = arith.constant 0 : i32
    %c0_i32_0 = arith.constant 0 : i32
    %c0_i32_1 = arith.constant 0 : i32
    return %c0_i32, %c0_i32_0 : i32, i32
  }
  func.func @transform_5(%arg0: i32) -> (i32, i32) {
    %c0_i32 = arith.constant 0 : i32
    %c0_i32_0 = arith.constant 0 : i32
    %c0_i32_1 = arith.constant 0 : i32
    return %c0_i32, %c0_i32_0 : i32, i32
  }
  func.func @transform_6(%arg0: i32) -> (i32, i32) {
    %c0_i32 = arith.constant 0 : i32
    %c0_i32_0 = arith.constant 0 : i32
    return %arg0, %c0_i32 : i32, i32
  }
}

</mosaic_0001>

<llo_original>
// kernel: down_forward.1
$region0: #{down_forward.1}
  #allocation0 [shape = 'u32[]', space=smem, size = 0x4, offset = 0x4, fixed_abs, tag = 'smem constant byte address 0x4 - core index']
  #allocation1 [shape = 'u32[144,128]{1,0:T(1,128)}', space=vmem, size = 0x12000, scoped, tag = 'internal scratch']
  #allocation2 [shape = 'bf16[120,4]{1,0:T(8,128)(2,1)}', space=vmem, size = 0x7800, scoped, tag = 'scratch operand']
  #allocation3 [shape = 'bf16[128,128]{1,0:T(16,128)(2,1)}', space=vmem, size = 0x8000, scoped, tag = 'scratch operand']
  #allocation4 [shape = 'bf16[128,128]{1,0:T(16,128)(2,1)}', space=vmem, size = 0x8000, scoped, tag = 'scratch operand']
  %s0 = inlined_call_operand.vmem [shape: bf16[8,64,4], index: 0, kind: input, shape index: {}]
  %s1 = inlined_call_operand.vmem [shape: bf16[4,4,128], index: 1, kind: input, shape index: {}]
  %s2 = inlined_call_operand.vmem [shape: bf16[9,128,128], index: 2, kind: input, shape index: {}]
  %s3 = inlined_call_operand.vmem [shape: bf16[9,128,128], index: 3, kind: input, shape index: {}]
  %s4 = inlined_call_operand.vmem [shape: f32[8,128], index: 4, kind: input, shape index: {}]
  %s5 = inlined_call_operand.vmem [shape: f32[104,1], index: 5, kind: input, shape index: {}]
  %s6 = inlined_call_operand.vmem [shape: f32[208,128], index: 6, kind: output, shape index: {}]
  %s7 = sld [smem:[#allocation0]]
  $region34: #{down_forward.1} parent=0
    _
  %s9 = ssub.s32 1, %s7
  %s10 = scalar_select 0, %s9, %s7
  // Predicated region
  $region2: #{down_forward.1} parent=0 // pred_check
    _
  $region3: #{down_forward.1} parent=0 // pred_check_branch
    %12 = sbr.rel (0) target = $region5
  $region4: #{down_forward.1} parent=0 // pred_region
    _
  $region5: #{down_forward.1} parent=0 // pred_fallthru
    _
  // Predicated region
  $region6: #{down_forward.1} parent=0 // pred_check
    _
  $region7: #{down_forward.1} parent=0 // pred_check_branch
    %14 = sbr.rel (0) target = $region9
  $region8: #{down_forward.1} parent=0 // pred_region
    _
  $region9: #{down_forward.1} parent=0 // pred_fallthru
    _
  // Predicated region
  $region10: #{down_forward.1} parent=0 // pred_check
    _
  $region11: #{down_forward.1} parent=0 // pred_check_branch
    %16 = sbr.rel (0) target = $region13
  $region12: #{down_forward.1} parent=0 // pred_region
    _
  $region13: #{down_forward.1} parent=0 // pred_fallthru
    _
  // Predicated region
  $region14: #{down_forward.1} parent=0 // pred_check
    _
  $region15: #{down_forward.1} parent=0 // pred_check_branch
    %18 = sbr.rel (0) target = $region17
  $region16: #{down_forward.1} parent=0 // pred_region
    _
  $region17: #{down_forward.1} parent=0 // pred_fallthru
    _
  // Predicated region
  $region18: #{down_forward.1} parent=0 // pred_check
    _
  $region19: #{down_forward.1} parent=0 // pred_check_branch
    %20 = sbr.rel (0) target = $region21
  $region20: #{down_forward.1} parent=0 // pred_region
    _
  $region21: #{down_forward.1} parent=0 // pred_fallthru
    _
  // Predicated region
  $region22: #{down_forward.1} parent=0 // pred_check
    _
  $region23: #{down_forward.1} parent=0 // pred_check_branch
    %22 = sbr.rel (0) target = $region25
  $region24: #{down_forward.1} parent=0 // pred_region
    _
  $region25: #{down_forward.1} parent=0 // pred_fallthru
    _
  %v24 = vld [vmem:[%s4] sm:$0x1]
  %v25 = vld [vmem:[%s4 + $0x1] sm:$0x1]
  %v26 = vld [vmem:[%s4 + $0x2] sm:$0x1]
  %v27 = vld [vmem:[%s4 + $0x3] sm:$0x1]
  %v28 = vld [vmem:[%s4 + $0x4] sm:$0x1]
  %v29 = vld [vmem:[%s4 + $0x5] sm:$0x1]
  %v30 = vld [vmem:[%s4 + $0x6] sm:$0x1]
  %vm31 = vcmask 27648
  %32 = vst.msk [vmem:[#allocation2] sm:$0xf] %vm31, 0
  %33 = vst.msk [vmem:[#allocation2 + $0x4] sm:$0xf] %vm31, 0
  %34 = vst.msk [vmem:[#allocation2 + $0x8] sm:$0xf] %vm31, 0
  %35 = vst.msk [vmem:[#allocation2 + $0xc] sm:$0xf] %vm31, 0
  %36 = vst.msk [vmem:[#allocation2 + $0x10] sm:$0xf] %vm31, 0
  %37 = vst.msk [vmem:[#allocation2 + $0x14] sm:$0xf] %vm31, 0
  %38 = vst.msk [vmem:[#allocation2 + $0x18] sm:$0xf] %vm31, 0
  %39 = vst.msk [vmem:[#allocation2 + $0x1c] sm:$0xf] %vm31, 0
  %40 = vst.msk [vmem:[#allocation2 + $0x20] sm:$0xf] %vm31, 0
  %41 = vst.msk [vmem:[#allocation2 + $0x24] sm:$0xf] %vm31, 0
  %42 = vst.msk [vmem:[#allocation2 + $0x28] sm:$0xf] %vm31, 0
  %43 = vst.msk [vmem:[#allocation2 + $0x2c] sm:$0xf] %vm31, 0
  %44 = vst.msk [vmem:[#allocation2 + $0x30] sm:$0xf] %vm31, 0
  %45 = vst.msk [vmem:[#allocation2 + $0x34] sm:$0xf] %vm31, 0
  %46 = vst.msk [vmem:[#allocation2 + $0x38] sm:$0xf] %vm31, 0
  %47 = vst [vmem:[#allocation3] sm:$0x3f] 0
  %48 = vst [vmem:[#allocation3 + $0x38] sm:$0xfc] 0
  %49 = vst [vmem:[#allocation4] sm:$0x3f] 0
  %50 = vst [vmem:[#allocation4 + $0x38] sm:$0xfc] 0
  %v51 = vld [vmem:[%s0] sm:$0xf]
  %v52 = vld [vmem:[%s0 + $0x4] sm:$0xf]
  %v53 = vld [vmem:[%s0 + $0x8] sm:$0xf]
  %v54 = vld [vmem:[%s0 + $0xc] sm:$0xf]
  %v55 = vld [vmem:[%s0 + $0x10] sm:$0xf]
  %v56 = vld [vmem:[%s0 + $0x14] sm:$0xf]
  %v57 = vld [vmem:[%s0 + $0x18] sm:$0xf]
  %v58 = vld [vmem:[%s0 + $0x1c] sm:$0xf]
  %s59 = scalar_lea.vmem %s0, 32
  %v60 = vld [vmem:[%s59] sm:$0xf]
  %v61 = vld [vmem:[%s59 + $0x4] sm:$0xf]
  %v62 = vld [vmem:[%s59 + $0x8] sm:$0xf]
  %v63 = vld [vmem:[%s59 + $0xc] sm:$0xf]
  %v64 = vld [vmem:[%s59 + $0x10] sm:$0xf]
  %v65 = vld [vmem:[%s59 + $0x14] sm:$0xf]
  %v66 = vld [vmem:[%s59 + $0x18] sm:$0xf]
  %v67 = vld [vmem:[%s59 + $0x1c] sm:$0xf]
  %v68 = vmax.bf16 %v51, %v60
  %v69 = vmax.bf16 %v52, %v61
  %v70 = vmax.bf16 %v53, %v62
  %v71 = vmax.bf16 %v54, %v63
  %v72 = vmax.bf16 %v55, %v64
  %v73 = vmax.bf16 %v56, %v65
  %v74 = vmax.bf16 %v57, %v66
  %v75 = vmax.bf16 %v58, %v67
  %s76 = scalar_lea.vmem %s0, 64
  %v77 = vld [vmem:[%s76] sm:$0xf]
  %v78 = vld [vmem:[%s76 + $0x4] sm:$0xf]
  %v79 = vld [vmem:[%s76 + $0x8] sm:$0xf]
  %v80 = vld [vmem:[%s76 + $0xc] sm:$0xf]
  %v81 = vld [vmem:[%s76 + $0x10] sm:$0xf]
  %v82 = vld [vmem:[%s76 + $0x14] sm:$0xf]
  %v83 = vld [vmem:[%s76 + $0x18] sm:$0xf]
  %v84 = vld [vmem:[%s76 + $0x1c] sm:$0xf]
  %s85 = scalar_lea.vmem %s0, 96
  %v86 = vld [vmem:[%s85] sm:$0xf]
  %v87 = vld [vmem:[%s85 + $0x4] sm:$0xf]
  %v88 = vld [vmem:[%s85 + $0x8] sm:$0xf]
  %v89 = vld [vmem:[%s85 + $0xc] sm:$0xf]
  %v90 = vld [vmem:[%s85 + $0x10] sm:$0xf]
  %v91 = vld [vmem:[%s85 + $0x14] sm:$0xf]
  %v92 = vld [vmem:[%s85 + $0x18] sm:$0xf]
  %v93 = vld [vmem:[%s85 + $0x1c] sm:$0xf]
  %v94 = vmax.bf16 %v77, %v86
  %v95 = vmax.bf16 %v78, %v87
  %v96 = vmax.bf16 %v79, %v88
  %v97 = vmax.bf16 %v80, %v89
  %v98 = vmax.bf16 %v81, %v90
  %v99 = vmax.bf16 %v82, %v91
  %v100 = vmax.bf16 %v83, %v92
  %v101 = vmax.bf16 %v84, %v93
  %v102 = vmax.bf16 %v68, %v94
  %v103 = vmax.bf16 %v69, %v95
  %v104 = vmax.bf16 %v70, %v96
  %v105 = vmax.bf16 %v71, %v97
  %v106 = vmax.bf16 %v72, %v98
  %v107 = vmax.bf16 %v73, %v99
  %v108 = vmax.bf16 %v74, %v100
  %v109 = vmax.bf16 %v75, %v101
  %v111 = vrot.slane %v102, 6
  %v112 = vrot.slane %v111, 4
  %vm115 = vcmask 27650
  %116 = vst.msk [vmem:[#allocation2 + $0x4] sm:$0xc] %vm115, %v111
  %vm117 = vcmask 25600
  %118 = vst.msk [vmem:[#allocation2 + $0x8] sm:$0x3] %vm117, %v112
  %v120 = vshll.u32 %v103, 16
  %v122 = vrot.slane %v120, 5
  %v123 = vshrl.u32 %v103, 16
  %v125 = vrot.slane %v123, 4
  %v126 = vor.u32 %v125, %v122
  %v127 = vrot.slane %v126, 4
  %vm130 = vcmask 27651
  %vm131 = vsmask.f32 7950
  %vm132 = vmand %vm130, %vm131
  %v133 = vld [vmem:[#allocation2 + $0x8] sm:$0x8]
  %v134 = vsel %vm132, %v122, %v133
  %135 = vst [vmem:[#allocation2 + $0x8] sm:$0x8] %v134
  %vm136 = vcmask 27648
  %vm137 = vsmask.f32 3328
  %vm138 = vmand %vm136, %vm137
  %v139 = vld [vmem:[#allocation2 + $0xc] sm:$0xf]
  %v140 = vsel %vm138, %v127, %v139
  %141 = vst [vmem:[#allocation2 + $0xc] sm:$0xf] %v140
  %v143 = vrot.slane %v104, 7
  %v144 = vrot.slane %v143, 4
  %vm147 = vcmask 27649
  %148 = vst.msk [vmem:[#allocation2 + $0x10] sm:$0xe] %vm147, %v143
  %vm149 = vcmask 24576
  %150 = vst.msk [vmem:[#allocation2 + $0x14] sm:$0x1] %vm149, %v144
  %v152 = vshrl.u32 %v105, 16
  %v154 = vrot.slane %v152, 5
  %v155 = vshll.u32 %v105, 16
  %v157 = vrot.slane %v155, 6
  %v158 = vor.u32 %v154, %v157
  %v159 = vrot.slane %v158, 4
  %vm162 = vcmask 27650
  %vm163 = vsmask.f32 7946
  %vm164 = vmand %vm162, %vm163
  %v165 = vld [vmem:[#allocation2 + $0x14] sm:$0xc]
  %v166 = vsel %vm164, %v158, %v165
  %167 = vst [vmem:[#allocation2 + $0x14] sm:$0xc] %v166
  %vm168 = vcmask 26624
  %vm169 = vsmask.f32 2304
  %vm170 = vmand %vm168, %vm169
  %v171 = vld [vmem:[#allocation2 + $0x18] sm:$0x7]
  %v172 = vsel %vm170, %v159, %v171
  %173 = vst [vmem:[#allocation2 + $0x18] sm:$0x7] %v172
  %174 = vst.msk [vmem:[#allocation2 + $0x1c] sm:$0xf] %vm31, %v106
  %v176 = vshrl.u32 %v107, 16
  %v178 = vrot.slane %v176, 6
  %v179 = vshll.u32 %v107, 16
  %v181 = vrot.slane %v179, 7
  %v182 = vor.u32 %v178, %v181
  %v183 = vrot.slane %v182, 4
  %vm186 = vcmask 27649
  %vm187 = vsmask.f32 7942
  %vm188 = vmand %vm186, %vm187
  %v189 = vld [vmem:[#allocation2 + $0x20] sm:$0xe]
  %v190 = vsel %vm188, %v182, %v189
  %191 = vst [vmem:[#allocation2 + $0x20] sm:$0xe] %v190
  %vm192 = vcmask 25600
  %vm193 = vsmask.f32 1280
  %vm194 = vmand %vm192, %vm193
  %v195 = vld [vmem:[#allocation2 + $0x24] sm:$0x3]
  %v196 = vsel %vm194, %v183, %v195
  %197 = vst [vmem:[#allocation2 + $0x24] sm:$0x3] %v196
  %v199 = vrot.slane %v108, 5
  %v200 = vrot.slane %v199, 4
  %vm203 = vcmask 27651
  %204 = vst.msk [vmem:[#allocation2 + $0x24] sm:$0x8] %vm203, %v199
  %vm205 = vcmask 26624
  %206 = vst.msk [vmem:[#allocation2 + $0x28] sm:$0x7] %vm205, %v200
  %v208 = vshrl.u32 %v109, 16
  %v210 = vrot.slane %v208, 7
  %v211 = vshll.u32 %v109, 16
  %v213 = vor.u32 %v210, %v211
  %v214 = vrot.slane %v210, 4
  %vm217 = vsmask.f32 7938
  %vm218 = vmand %vm136, %vm217
  %v219 = vld [vmem:[#allocation2 + $0x2c] sm:$0xf]
  %v220 = vsel %vm218, %v213, %v219
  %221 = vst [vmem:[#allocation2 + $0x2c] sm:$0xf] %v220
  %vm222 = vcmask 24576
  %vm223 = vsmask.f32 256
  %vm224 = vmand %vm222, %vm223
  %v225 = vld [vmem:[#allocation2 + $0x30] sm:$0x1]
  %v226 = vsel %vm224, %v214, %v225
  %227 = vst [vmem:[#allocation2 + $0x30] sm:$0x1] %v226
  %v228 = vld [vmem:[#allocation2] sm:$0xf]
  %v229 = vld [vmem:[#allocation2 + $0x4] sm:$0xf]
  %v230 = vld [vmem:[#allocation2 + $0x8] sm:$0xf]
  %v231 = vld [vmem:[#allocation2 + $0xc] sm:$0xf]
  %v232 = vld [vmem:[#allocation2 + $0x10] sm:$0xf]
  %v233 = vld [vmem:[#allocation2 + $0x14] sm:$0xf]
  %v234 = vld [vmem:[#allocation2 + $0x18] sm:$0xf]
  %v235 = vld [vmem:[#allocation2 + $0x1c] sm:$0xf]
  %v236 = vld [vmem:[#allocation2 + $0x20] sm:$0xf]
  %v237 = vld [vmem:[#allocation2 + $0x24] sm:$0xf]
  %v238 = vld [vmem:[#allocation2 + $0x28] sm:$0xf]
  %v239 = vld [vmem:[#allocation2 + $0x2c] sm:$0xf]
  %v240 = vld [vmem:[#allocation2 + $0x30] sm:$0xf]
  %v241 = vld [vmem:[%s1] sm:$0x3]
  %v242 = vld [vmem:[#allocation2 + $0x34] sm:$0x1]
  %s243 = scalar_lea.vmem %s1, 2
  %v244 = vld [vmem:[%s243] sm:$0x3]
  %v259 = vunpack.c.l.b16 %v228
  %v260 = vunpack.c.l.b16 %v229
  %v261 = vunpack.c.l.b16 %v230
  %v262 = vunpack.c.l.b16 %v231
  %v263 = vunpack.c.l.b16 %v232
  %v264 = vunpack.c.l.b16 %v233
  %v265 = vunpack.c.l.b16 %v234
  %v266 = vunpack.c.l.b16 %v235
  %v267 = vunpack.c.l.b16 %v236
  %v268 = vunpack.c.l.b16 %v237
  %v269 = vunpack.c.l.b16 %v238
  %v270 = vunpack.c.l.b16 %v239
  %v271 = vunpack.c.l.b16 %v240
  %v272 = vunpack.c.l.b16 %v242
  %v273 = vpack.c.b16 %v260, %v259
  %v274 = vpack.c.b16 %v262, %v261
  %v275 = vpack.c.b16 %v264, %v263
  %v276 = vpack.c.b16 %v266, %v265
  %v277 = vpack.c.b16 %v268, %v267
  %v278 = vpack.c.b16 %v270, %v269
  %v279 = vpack.c.b16 %v272, %v271
  %vm280 = vsmask.f32 7424
  %v282 = vshrl.u32 %v273, 16
  %v284 = vshll.u32 %v273, 16
  %v286 = vrot.slane %v284, 1
  %v287 = vor.u32 %v282, %v286
  %v289 = vshll.u32 %v274, 16
  %v291 = vrot.slane %v289, 1
  %v292 = vsel %vm280, %v287, %v291
  %v293 = vshrl.u32 %v274, 16
  %v295 = vor.u32 %v293, %v291
  %v297 = vshll.u32 %v275, 16
  %v299 = vrot.slane %v297, 1
  %v300 = vsel %vm280, %v295, %v299
  %v301 = vshrl.u32 %v275, 16
  %v303 = vor.u32 %v301, %v299
  %v305 = vshll.u32 %v276, 16
  %v307 = vrot.slane %v305, 1
  %v308 = vsel %vm280, %v303, %v307
  %v309 = vshrl.u32 %v276, 16
  %v311 = vor.u32 %v309, %v307
  %v313 = vshll.u32 %v277, 16
  %v315 = vrot.slane %v313, 1
  %v316 = vsel %vm280, %v311, %v315
  %v317 = vshrl.u32 %v277, 16
  %v319 = vor.u32 %v317, %v315
  %v321 = vshll.u32 %v278, 16
  %v323 = vrot.slane %v321, 1
  %v324 = vsel %vm280, %v319, %v323
  %v325 = vshrl.u32 %v278, 16
  %v327 = vor.u32 %v325, %v323
  %v329 = vshll.u32 %v279, 16
  %v331 = vrot.slane %v329, 1
  %v332 = vsel %vm280, %v327, %v331
  %v333 = vshrl.u32 %v279, 16
  %v335 = vor.u32 %v333, %v331
  %vm336 = vcmask 31744
  %v338 = vsel %vm336, %v292, 0
  %v341 = vsel %vm336, %v300, 0
  %v344 = vsel %vm336, %v308, 0
  %v347 = vsel %vm336, %v316, 0
  %v350 = vsel %vm336, %v324, 0
  %v353 = vsel %vm336, %v332, 0
  %v356 = vsel %vm336, %v335, 0
  %vm358 = vcmask 1041408
  %v360 = vsel %vm358, %v244, 0
  %362 = vmatprep.subr.bf16.mxu0 0
  %363 = vmatpush1.bf16.msra.mxu0 %v360
  %364 = vmatprep.subr.bf16.mxu0 0
  %365 = vmatpush1.bf16.msra.mxu0 0
  %366 = vmatprep.subr.bf16.mxu0 0
  %367 = vmatpush1.bf16.msra.mxu0 0
  %368 = vmatprep.subr.bf16.mxu0 0
  %369 = vmatpush1.bf16.msra.mxu0 0
  %370 = vmatprep.subr.bf16.mxu0 0
  %371 = vmatpush1.bf16.msra.mxu0 0
  %372 = vmatprep.subr.bf16.mxu0 0
  %373 = vmatpush1.bf16.msra.mxu0 0
  %374 = vmatprep.subr.bf16.mxu0 0
  %375 = vmatpush1.bf16.msra.mxu0 0
  %376 = vmatprep.subr.bf16.mxu0 0
  %377 = vmatpush1.bf16.msra.mxu0 0
  %378 = vmatprep.subr.bf16.mxu0 0
  %379 = vmatpush1.bf16.msra.mxu0 0
  %380 = vmatprep.subr.bf16.mxu0 0
  %381 = vmatpush1.bf16.msra.mxu0 0
  %382 = vmatprep.subr.bf16.mxu0 0
  %383 = vmatpush1.bf16.msra.mxu0 0
  %384 = vmatprep.subr.bf16.mxu0 0
  %385 = vmatpush1.bf16.msra.mxu0 0
  %386 = vmatprep.subr.bf16.mxu0 0
  %387 = vmatpush1.bf16.msra.mxu0 0
  %388 = vmatprep.subr.bf16.mxu0 0
  %389 = vmatpush1.bf16.msra.mxu0 0
  %390 = vmatprep.subr.bf16.mxu0 0
  %391 = vmatpush1.bf16.msra.mxu0 0
  %392 = vmatprep.subr.bf16.mxu0 0
  %393 = vmatpush1.bf16.msra.mxu0 0
  %394 = vmatprep.mubr.bf16.mxu0 0
  %395 = vmatmul.mubr.bf16.gmra.mrb[0].mxu0 %v338
  %v396 = vpop.f32.mrb[0].mxu0
  %v397 = vadd.f32 0.0, %v396
  %v398 = vpop.f32.mrb[0].mxu0
  %v399 = vpop.f32.mrb[0].mxu0
  %v400 = vadd.f32 0.0, %v399
  %v401 = vpop.f32.mrb[0].mxu0
  %402 = vmatprep.mubr.bf16.mxu0 0
  %403 = vmatmul.mubr.bf16.gmra.mrb[0].mxu0 %v341
  %v404 = vpop.f32.mrb[0].mxu0
  %v405 = vadd.f32 0.0, %v404
  %v406 = vpop.f32.mrb[0].mxu0
  %v407 = vpop.f32.mrb[0].mxu0
  %v408 = vadd.f32 0.0, %v407
  %v409 = vpop.f32.mrb[0].mxu0
  %410 = vmatprep.mubr.bf16.mxu0 0
  %411 = vmatmul.mubr.bf16.gmra.mrb[0].mxu0 %v344
  %v412 = vpop.f32.mrb[0].mxu0
  %v413 = vadd.f32 0.0, %v412
  %v414 = vpop.f32.mrb[0].mxu0
  %v415 = vpop.f32.mrb[0].mxu0
  %v416 = vadd.f32 0.0, %v415
  %v417 = vpop.f32.mrb[0].mxu0
  %418 = vmatprep.mubr.bf16.mxu0 0
  %419 = vmatmul.mubr.bf16.gmra.mrb[0].mxu0 %v347
  %v420 = vpop.f32.mrb[0].mxu0
  %v421 = vadd.f32 0.0, %v420
  %v422 = vpop.f32.mrb[0].mxu0
  %v423 = vpop.f32.mrb[0].mxu0
  %v424 = vadd.f32 0.0, %v423
  %v425 = vpop.f32.mrb[0].mxu0
  %426 = vmatprep.mubr.bf16.mxu0 0
  %427 = vmatmul.mubr.bf16.gmra.mrb[0].mxu0 %v350
  %v428 = vpop.f32.mrb[0].mxu0
  %v429 = vadd.f32 0.0, %v428
  %v430 = vpop.f32.mrb[0].mxu0
  %v431 = vpop.f32.mrb[0].mxu0
  %v432 = vadd.f32 0.0, %v431
  %v433 = vpop.f32.mrb[0].mxu0
  %434 = vmatprep.mubr.bf16.mxu0 0
  %435 = vmatmul.mubr.bf16.gmra.mrb[0].mxu0 %v353
  %v436 = vpop.f32.mrb[0].mxu0
  %v437 = vadd.f32 0.0, %v436
  %v438 = vpop.f32.mrb[0].mxu0
  %v439 = vpop.f32.mrb[0].mxu0
  %v440 = vadd.f32 0.0, %v439
  %v441 = vpop.f32.mrb[0].mxu0
  %442 = vmatprep.mubr.bf16.mxu0 0
  %443 = vmatmul.mubr.bf16.gmra.mrb[0].mxu0 %v356
  %v444 = vpop.f32.mrb[0].mxu0
  %v445 = vadd.f32 0.0, %v444
  %v446 = vpop.f32.mrb[0].mxu0
  %v447 = vpop.f32.mrb[0].mxu0
  %v448 = vpop.f32.mrb[0].mxu0
  %449 = vdwg.mxu0
  %v450 = vpack.c.b16 %v271, %v271
  %v451 = vsel %vm336, %v273, 0
  %v453 = vsel %vm336, %v274, 0
  %v455 = vsel %vm336, %v275, 0
  %v457 = vsel %vm336, %v276, 0
  %v459 = vsel %vm336, %v277, 0
  %v461 = vsel %vm336, %v278, 0
  %v464 = vsel %vm336, %v450, 0
  %v467 = vsel %vm358, %v241, 0
  %469 = vmatprep.subr.bf16.mxu0 0
  %470 = vmatpush1.bf16.msra.mxu0 %v467
  %471 = vmatprep.subr.bf16.mxu0 0
  %472 = vmatpush1.bf16.msra.mxu0 0
  %473 = vmatprep.subr.bf16.mxu0 0
  %474 = vmatpush1.bf16.msra.mxu0 0
  %475 = vmatprep.subr.bf16.mxu0 0
  %476 = vmatpush1.bf16.msra.mxu0 0
  %477 = vmatprep.subr.bf16.mxu0 0
  %478 = vmatpush1.bf16.msra.mxu0 0
  %479 = vmatprep.subr.bf16.mxu0 0
  %480 = vmatpush1.bf16.msra.mxu0 0
  %481 = vmatprep.subr.bf16.mxu0 0
  %482 = vmatpush1.bf16.msra.mxu0 0
  %483 = vmatprep.subr.bf16.mxu0 0
  %484 = vmatpush1.bf16.msra.mxu0 0
  %485 = vmatprep.subr.bf16.mxu0 0
  %486 = vmatpush1.bf16.msra.mxu0 0
  %487 = vmatprep.subr.bf16.mxu0 0
  %488 = vmatpush1.bf16.msra.mxu0 0
  %489 = vmatprep.subr.bf16.mxu0 0
  %490 = vmatpush1.bf16.msra.mxu0 0
  %491 = vmatprep.subr.bf16.mxu0 0
  %492 = vmatpush1.bf16.msra.mxu0 0
  %493 = vmatprep.subr.bf16.mxu0 0
  %494 = vmatpush1.bf16.msra.mxu0 0
  %495 = vmatprep.subr.bf16.mxu0 0
  %496 = vmatpush1.bf16.msra.mxu0 0
  %497 = vmatprep.subr.bf16.mxu0 0
  %498 = vmatpush1.bf16.msra.mxu0 0
  %499 = vmatprep.subr.bf16.mxu0 0
  %500 = vmatpush1.bf16.msra.mxu0 0
  %501 = vmatprep.mubr.bf16.mxu0 0
  %502 = vmatmul.mubr.bf16.gmra.mrb[0].mxu0 %v451
  %v503 = vpop.f32.mrb[0].mxu0
  %v504 = vadd.f32 %v397, %v503
  %v505 = vpop.f32.mrb[0].mxu0
  %v506 = vpop.f32.mrb[0].mxu0
  %v507 = vadd.f32 %v400, %v506
  %v508 = vpop.f32.mrb[0].mxu0
  %509 = vmatprep.mubr.bf16.mxu0 0
  %510 = vmatmul.mubr.bf16.gmra.mrb[0].mxu0 %v453
  %v511 = vpop.f32.mrb[0].mxu0
  %v512 = vadd.f32 %v405, %v511
  %v513 = vpop.f32.mrb[0].mxu0
  %v514 = vpop.f32.mrb[0].mxu0
  %v515 = vadd.f32 %v408, %v514
  %v516 = vpop.f32.mrb[0].mxu0
  %517 = vmatprep.mubr.bf16.mxu0 0
  %518 = vmatmul.mubr.bf16.gmra.mrb[0].mxu0 %v455
  %v519 = vpop.f32.mrb[0].mxu0
  %v520 = vadd.f32 %v413, %v519
  %v521 = vpop.f32.mrb[0].mxu0
  %v522 = vpop.f32.mrb[0].mxu0
  %v523 = vadd.f32 %v416, %v522
  %v524 = vpop.f32.mrb[0].mxu0
  %525 = vmatprep.mubr.bf16.mxu0 0
  %526 = vmatmul.mubr.bf16.gmra.mrb[0].mxu0 %v457
  %v527 = vpop.f32.mrb[0].mxu0
  %v528 = vadd.f32 %v421, %v527
  %v529 = vpop.f32.mrb[0].mxu0
  %v530 = vpop.f32.mrb[0].mxu0
  %v531 = vadd.f32 %v424, %v530
  %v532 = vpop.f32.mrb[0].mxu0
  %533 = vmatprep.mubr.bf16.mxu0 0
  %534 = vmatmul.mubr.bf16.gmra.mrb[0].mxu0 %v459
  %v535 = vpop.f32.mrb[0].mxu0
  %v536 = vadd.f32 %v429, %v535
  %v537 = vpop.f32.mrb[0].mxu0
  %v538 = vpop.f32.mrb[0].mxu0
  %v539 = vadd.f32 %v432, %v538
  %v540 = vpop.f32.mrb[0].mxu0
  %541 = vmatprep.mubr.bf16.mxu0 0
  %542 = vmatmul.mubr.bf16.gmra.mrb[0].mxu0 %v461
  %v543 = vpop.f32.mrb[0].mxu0
  %v544 = vadd.f32 %v437, %v543
  %v545 = vpop.f32.mrb[0].mxu0
  %v546 = vpop.f32.mrb[0].mxu0
  %v547 = vadd.f32 %v440, %v546
  %v548 = vpop.f32.mrb[0].mxu0
  %549 = vmatprep.mubr.bf16.mxu0 0
  %550 = vmatmul.mubr.bf16.gmra.mrb[0].mxu0 %v464
  %v551 = vpop.f32.mrb[0].mxu0
  %v552 = vadd.f32 %v445, %v551
  %v553 = vpop.f32.mrb[0].mxu0
  %v554 = vpop.f32.mrb[0].mxu0
  %v555 = vpop.f32.mrb[0].mxu0
  %556 = vdwg.mxu0
  %v557 = vld [vmem:[#allocation2 + $0x4] sm:$0xe]
  %v558 = vld [vmem:[#allocation2 + $0x8] sm:$0xf]
  %v559 = vld [vmem:[#allocation2 + $0xc] sm:$0xf]
  %v560 = vld [vmem:[#allocation2 + $0x10] sm:$0xf]
  %v561 = vld [vmem:[#allocation2 + $0x14] sm:$0xf]
  %v562 = vld [vmem:[#allocation2 + $0x18] sm:$0xf]
  %v563 = vld [vmem:[#allocation2 + $0x1c] sm:$0xf]
  %v564 = vld [vmem:[#allocation2 + $0x20] sm:$0xf]
  %v565 = vld [vmem:[#allocation2 + $0x24] sm:$0xf]
  %v566 = vld [vmem:[#allocation2 + $0x28] sm:$0xf]
  %v567 = vld [vmem:[#allocation2 + $0x2c] sm:$0xf]
  %v568 = vld [vmem:[#allocation2 + $0x30] sm:$0xf]
  %v569 = vld [vmem:[#allocation2 + $0x34] sm:$0xf]
  %v570 = vld [vmem:[#allocation2 + $0x38] sm:$0x3]
  %s571 = scalar_lea.vmem %s1, 4
  %v572 = vld [vmem:[%s571] sm:$0x3]
  %v587 = vunpack.c.l.b16 %v557
  %v588 = vunpack.c.l.b16 %v558
  %v589 = vunpack.c.l.b16 %v559
  %v590 = vunpack.c.l.b16 %v560
  %v591 = vunpack.c.l.b16 %v561
  %v592 = vunpack.c.l.b16 %v562
  %v593 = vunpack.c.l.b16 %v563
  %v594 = vunpack.c.l.b16 %v564
  %v595 = vunpack.c.l.b16 %v565
  %v596 = vunpack.c.l.b16 %v566
  %v597 = vunpack.c.l.b16 %v567
  %v598 = vunpack.c.l.b16 %v568
  %v599 = vunpack.c.l.b16 %v569
  %v600 = vunpack.c.l.b16 %v570
  %v601 = vpack.c.b16 %v588, %v587
  %v602 = vpack.c.b16 %v590, %v589
  %v603 = vpack.c.b16 %v592, %v591
  %v604 = vpack.c.b16 %v594, %v593
  %v605 = vpack.c.b16 %v596, %v595
  %v606 = vpack.c.b16 %v598, %v597
  %v607 = vpack.c.b16 %v600, %v599
  %vm608 = vsmask.f32 6400
  %v610 = vshrl.u32 %v601, 16
  %v612 = vrot.slane %v610, 1
  %v613 = vshll.u32 %v601, 16
  %v615 = vrot.slane %v613, 2
  %v616 = vor.u32 %v612, %v615
  %v618 = vshrl.u32 %v602, 16
  %v620 = vrot.slane %v618, 1
  %v621 = vshll.u32 %v602, 16
  %v623 = vrot.slane %v621, 2
  %v624 = vor.u32 %v620, %v623
  %v625 = vsel %vm608, %v616, %v624
  %v627 = vshrl.u32 %v603, 16
  %v629 = vrot.slane %v627, 1
  %v630 = vshll.u32 %v603, 16
  %v632 = vrot.slane %v630, 2
  %v633 = vor.u32 %v629, %v632
  %v634 = vsel %vm608, %v624, %v633
  %v636 = vshrl.u32 %v604, 16
  %v638 = vrot.slane %v636, 1
  %v639 = vshll.u32 %v604, 16
  %v641 = vrot.slane %v639, 2
  %v642 = vor.u32 %v638, %v641
  %v643 = vsel %vm608, %v633, %v642
  %v645 = vshrl.u32 %v605, 16
  %v647 = vrot.slane %v645, 1
  %v648 = vshll.u32 %v605, 16
  %v650 = vrot.slane %v648, 2
  %v651 = vor.u32 %v647, %v650
  %v652 = vsel %vm608, %v642, %v651
  %v654 = vshrl.u32 %v606, 16
  %v656 = vrot.slane %v654, 1
  %v657 = vshll.u32 %v606, 16
  %v659 = vrot.slane %v657, 2
  %v660 = vor.u32 %v656, %v659
  %v661 = vsel %vm608, %v651, %v660
  %v663 = vshrl.u32 %v607, 16
  %v665 = vrot.slane %v663, 1
  %v666 = vshll.u32 %v607, 16
  %v668 = vrot.slane %v666, 2
  %v669 = vor.u32 %v665, %v668
  %v670 = vsel %vm608, %v660, %v669
  %v672 = vsel %vm336, %v625, 0
  %v675 = vsel %vm336, %v634, 0
  %v678 = vsel %vm336, %v643, 0
  %v681 = vsel %vm336, %v652, 0
  %v684 = vsel %vm336, %v661, 0
  %v687 = vsel %vm336, %v670, 0
  %v690 = vsel %vm336, %v669, 0
  %v693 = vsel %vm358, %v572, 0
  %695 = vmatprep.subr.bf16.mxu0 0
  %696 = vmatpush1.bf16.msra.mxu0 %v693
  %697 = vmatprep.subr.bf16.mxu0 0
  %698 = vmatpush1.bf16.msra.mxu0 0
  %699 = vmatprep.subr.bf16.mxu0 0
  %700 = vmatpush1.bf16.msra.mxu0 0
  %701 = vmatprep.subr.bf16.mxu0 0
  %702 = vmatpush1.bf16.msra.mxu0 0
  %703 = vmatprep.subr.bf16.mxu0 0
  %704 = vmatpush1.bf16.msra.mxu0 0
  %705 = vmatprep.subr.bf16.mxu0 0
  %706 = vmatpush1.bf16.msra.mxu0 0
  %707 = vmatprep.subr.bf16.mxu0 0
  %708 = vmatpush1.bf16.msra.mxu0 0
  %709 = vmatprep.subr.bf16.mxu0 0
  %710 = vmatpush1.bf16.msra.mxu0 0
  %711 = vmatprep.subr.bf16.mxu0 0
  %712 = vmatpush1.bf16.msra.mxu0 0
  %713 = vmatprep.subr.bf16.mxu0 0
  %714 = vmatpush1.bf16.msra.mxu0 0
  %715 = vmatprep.subr.bf16.mxu0 0
  %716 = vmatpush1.bf16.msra.mxu0 0
  %717 = vmatprep.subr.bf16.mxu0 0
  %718 = vmatpush1.bf16.msra.mxu0 0
  %719 = vmatprep.subr.bf16.mxu0 0
  %720 = vmatpush1.bf16.msra.mxu0 0
  %721 = vmatprep.subr.bf16.mxu0 0
  %722 = vmatpush1.bf16.msra.mxu0 0
  %723 = vmatprep.subr.bf16.mxu0 0
  %724 = vmatpush1.bf16.msra.mxu0 0
  %725 = vmatprep.subr.bf16.mxu0 0
  %726 = vmatpush1.bf16.msra.mxu0 0
  %727 = vmatprep.mubr.bf16.mxu0 0
  %728 = vmatmul.mubr.bf16.gmra.mrb[0].mxu0 %v672
  %v729 = vpop.f32.mrb[0].mxu0
  %v730 = vadd.f32 0.0, %v729
  %v731 = vpop.f32.mrb[0].mxu0
  %v732 = vpop.f32.mrb[0].mxu0
  %v733 = vadd.f32 0.0, %v732
  %v734 = vpop.f32.mrb[0].mxu0
  %735 = vmatprep.mubr.bf16.mxu0 0
  %736 = vmatmul.mubr.bf16.gmra.mrb[0].mxu0 %v675
  %v737 = vpop.f32.mrb[0].mxu0
  %v738 = vadd.f32 0.0, %v737
  %v739 = vpop.f32.mrb[0].mxu0
  %v740 = vpop.f32.mrb[0].mxu0
  %v741 = vadd.f32 0.0, %v740
  %v742 = vpop.f32.mrb[0].mxu0
  %743 = vmatprep.mubr.bf16.mxu0 0
  %744 = vmatmul.mubr.bf16.gmra.mrb[0].mxu0 %v678
  %v745 = vpop.f32.mrb[0].mxu0
  %v746 = vadd.f32 0.0, %v745
  %v747 = vpop.f32.mrb[0].mxu0
  %v748 = vpop.f32.mrb[0].mxu0
  %v749 = vadd.f32 0.0, %v748
  %v750 = vpop.f32.mrb[0].mxu0
  %751 = vmatprep.mubr.bf16.mxu0 0
  %752 = vmatmul.mubr.bf16.gmra.mrb[0].mxu0 %v681
  %v753 = vpop.f32.mrb[0].mxu0
  %v754 = vadd.f32 0.0, %v753
  %v755 = vpop.f32.mrb[0].mxu0
  %v756 = vpop.f32.mrb[0].mxu0
  %v757 = vadd.f32 0.0, %v756
  %v758 = vpop.f32.mrb[0].mxu0
  %759 = vmatprep.mubr.bf16.mxu0 0
  %760 = vmatmul.mubr.bf16.gmra.mrb[0].mxu0 %v684
  %v761 = vpop.f32.mrb[0].mxu0
  %v762 = vadd.f32 0.0, %v761
  %v763 = vpop.f32.mrb[0].mxu0
  %v764 = vpop.f32.mrb[0].mxu0
  %v765 = vadd.f32 0.0, %v764
  %v766 = vpop.f32.mrb[0].mxu0
  %767 = vmatprep.mubr.bf16.mxu0 0
  %768 = vmatmul.mubr.bf16.gmra.mrb[0].mxu0 %v687
  %v769 = vpop.f32.mrb[0].mxu0
  %v770 = vadd.f32 0.0, %v769
  %v771 = vpop.f32.mrb[0].mxu0
  %v772 = vpop.f32.mrb[0].mxu0
  %v773 = vadd.f32 0.0, %v772
  %v774 = vpop.f32.mrb[0].mxu0
  %775 = vmatprep.mubr.bf16.mxu0 0
  %776 = vmatmul.mubr.bf16.gmra.mrb[0].mxu0 %v690
  %v777 = vpop.f32.mrb[0].mxu0
  %v778 = vadd.f32 0.0, %v777
  %v779 = vpop.f32.mrb[0].mxu0
  %v780 = vpop.f32.mrb[0].mxu0
  %v781 = vpop.f32.mrb[0].mxu0
  %782 = vdwg.mxu0
  %v783 = vadd.f32 %v504, %v730
  %v784 = vadd.f32 %v507, %v733
  %v785 = vadd.f32 %v512, %v738
  %v786 = vadd.f32 %v515, %v741
  %v787 = vadd.f32 %v520, %v746
  %v788 = vadd.f32 %v523, %v749
  %v789 = vadd.f32 %v528, %v754
  %v790 = vadd.f32 %v531, %v757
  %v791 = vadd.f32 %v536, %v762
  %v792 = vadd.f32 %v539, %v765
  %v793 = vadd.f32 %v544, %v770
  %v794 = vadd.f32 %v547, %v773
  %v795 = vadd.f32 %v552, %v778
  %v796 = vld [vmem:[#allocation2 + $0x4] sm:$0xc]
  %s797 = scalar_lea.vmem %s1, 6
  %v798 = vld [vmem:[%s797] sm:$0x3]
  %v800 = vunpack.c.l.b16 %v796
  %v801 = vpack.c.b16 %v588, %v800
  %vm802 = vcmask 1045504
  %v803 = vrot.slane %v801, 2
  %v804 = vrot.slane %v602, 2
  %v805 = vsel %vm802, %v803, %v804
  %v806 = vrot.slane %v603, 2
  %v807 = vsel %vm802, %v804, %v806
  %v808 = vrot.slane %v604, 2
  %v809 = vsel %vm802, %v806, %v808
  %v810 = vrot.slane %v605, 2
  %v811 = vsel %vm802, %v808, %v810
  %v812 = vrot.slane %v606, 2
  %v813 = vsel %vm802, %v810, %v812
  %v814 = vrot.slane %v607, 2
  %v815 = vsel %vm802, %v812, %v814
  %v817 = vsel %vm336, %v805, 0
  %v820 = vsel %vm336, %v807, 0
  %v823 = vsel %vm336, %v809, 0
  %v826 = vsel %vm336, %v811, 0
  %v829 = vsel %vm336, %v813, 0
  %v832 = vsel %vm336, %v815, 0
  %v835 = vsel %vm336, %v814, 0
  %v838 = vsel %vm358, %v798, 0
  %840 = vmatprep.subr.bf16.mxu0 0
  %841 = vmatpush1.bf16.msra.mxu0 %v838
  %842 = vmatprep.subr.bf16.mxu0 0
  %843 = vmatpush1.bf16.msra.mxu0 0
  %844 = vmatprep.subr.bf16.mxu0 0
  %845 = vmatpush1.bf16.msra.mxu0 0
  %846 = vmatprep.subr.bf16.mxu0 0
  %847 = vmatpush1.bf16.msra.mxu0 0
  %848 = vmatprep.subr.bf16.mxu0 0
  %849 = vmatpush1.bf16.msra.mxu0 0
  %850 = vmatprep.subr.bf16.mxu0 0
  %851 = vmatpush1.bf16.msra.mxu0 0
  %852 = vmatprep.subr.bf16.mxu0 0
  %853 = vmatpush1.bf16.msra.mxu0 0
  %854 = vmatprep.subr.bf16.mxu0 0
  %855 = vmatpush1.bf16.msra.mxu0 0
  %856 = vmatprep.subr.bf16.mxu0 0
  %857 = vmatpush1.bf16.msra.mxu0 0
  %858 = vmatprep.subr.bf16.mxu0 0
  %859 = vmatpush1.bf16.msra.mxu0 0
  %860 = vmatprep.subr.bf16.mxu0 0
  %861 = vmatpush1.bf16.msra.mxu0 0
  %862 = vmatprep.subr.bf16.mxu0 0
  %863 = vmatpush1.bf16.msra.mxu0 0
  %864 = vmatprep.subr.bf16.mxu0 0
  %865 = vmatpush1.bf16.msra.mxu0 0
  %866 = vmatprep.subr.bf16.mxu0 0
  %867 = vmatpush1.bf16.msra.mxu0 0
  %868 = vmatprep.subr.bf16.mxu0 0
  %869 = vmatpush1.bf16.msra.mxu0 0
  %870 = vmatprep.subr.bf16.mxu0 0
  %871 = vmatpush1.bf16.msra.mxu0 0
  %872 = vmatprep.mubr.bf16.mxu0 0
  %873 = vmatmul.mubr.bf16.gmra.mrb[0].mxu0 %v817
  %v874 = vpop.f32.mrb[0].mxu0
  %v875 = vadd.f32 0.0, %v874
  %v876 = vpop.f32.mrb[0].mxu0
  %v877 = vpop.f32.mrb[0].mxu0
  %v878 = vadd.f32 0.0, %v877
  %v879 = vpop.f32.mrb[0].mxu0
  %880 = vmatprep.mubr.bf16.mxu0 0
  %881 = vmatmul.mubr.bf16.gmra.mrb[0].mxu0 %v820
  %v882 = vpop.f32.mrb[0].mxu0
  %v883 = vadd.f32 0.0, %v882
  %v884 = vpop.f32.mrb[0].mxu0
  %v885 = vpop.f32.mrb[0].mxu0
  %v886 = vadd.f32 0.0, %v885
  %v887 = vpop.f32.mrb[0].mxu0
  %888 = vmatprep.mubr.bf16.mxu0 0
  %889 = vmatmul.mubr.bf16.gmra.mrb[0].mxu0 %v823
  %v890 = vpop.f32.mrb[0].mxu0
  %v891 = vadd.f32 0.0, %v890
  %v892 = vpop.f32.mrb[0].mxu0
  %v893 = vpop.f32.mrb[0].mxu0
  %v894 = vadd.f32 0.0, %v893
  %v895 = vpop.f32.mrb[0].mxu0
  %896 = vmatprep.mubr.bf16.mxu0 0
  %897 = vmatmul.mubr.bf16.gmra.mrb[0].mxu0 %v826
  %v898 = vpop.f32.mrb[0].mxu0
  %v899 = vadd.f32 0.0, %v898
  %v900 = vpop.f32.mrb[0].mxu0
  %v901 = vpop.f32.mrb[0].mxu0
  %v902 = vadd.f32 0.0, %v901
  %v903 = vpop.f32.mrb[0].mxu0
  %904 = vmatprep.mubr.bf16.mxu0 0
  %905 = vmatmul.mubr.bf16.gmra.mrb[0].mxu0 %v829
  %v906 = vpop.f32.mrb[0].mxu0
  %v907 = vadd.f32 0.0, %v906
  %v908 = vpop.f32.mrb[0].mxu0
  %v909 = vpop.f32.mrb[0].mxu0
  %v910 = vadd.f32 0.0, %v909
  %v911 = vpop.f32.mrb[0].mxu0
  %912 = vmatprep.mubr.bf16.mxu0 0
  %913 = vmatmul.mubr.bf16.gmra.mrb[0].mxu0 %v832
  %v914 = vpop.f32.mrb[0].mxu0
  %v915 = vadd.f32 0.0, %v914
  %v916 = vpop.f32.mrb[0].mxu0
  %v917 = vpop.f32.mrb[0].mxu0
  %v918 = vadd.f32 0.0, %v917
  %v919 = vpop.f32.mrb[0].mxu0
  %920 = vmatprep.mubr.bf16.mxu0 0
  %921 = vmatmul.mubr.bf16.gmra.mrb[0].mxu0 %v835
  %v922 = vpop.f32.mrb[0].mxu0
  %v923 = vadd.f32 0.0, %v922
  %v924 = vpop.f32.mrb[0].mxu0
  %v925 = vpop.f32.mrb[0].mxu0
  %v926 = vpop.f32.mrb[0].mxu0
  %927 = vdwg.mxu0
  %v928 = vadd.f32 %v783, %v875
  %v929 = vadd.f32 %v784, %v878
  %v930 = vadd.f32 %v785, %v883
  %v931 = vadd.f32 %v786, %v886
  %v932 = vadd.f32 %v787, %v891
  %v933 = vadd.f32 %v788, %v894
  %v934 = vadd.f32 %v789, %v899
  %v935 = vadd.f32 %v790, %v902
  %v936 = vadd.f32 %v791, %v907
  %v937 = vadd.f32 %v792, %v910
  %v938 = vadd.f32 %v793, %v915
  %v939 = vadd.f32 %v794, %v918
  %v940 = vadd.f32 %v795, %v923
  %v941 = vld [vmem:[%s5] sm:$0xff]
  %v942 = vld [vmem:[%s5 + $0x8] sm:$0xff]
  %v943 = vld [vmem:[%s5 + $0x10] sm:$0xff]
  %v944 = vld [vmem:[%s5 + $0x18] sm:$0xff]
  %v945 = vld [vmem:[%s5 + $0x20] sm:$0xff]
  %v946 = vld [vmem:[%s5 + $0x28] sm:$0xff]
  %v947 = vld [vmem:[%s5 + $0x30] sm:$0xff]
  %v948 = vld [vmem:[%s5 + $0x38] sm:$0xff]
  %v949 = vld [vmem:[%s5 + $0x40] sm:$0xff]
  %v950 = vld [vmem:[%s5 + $0x48] sm:$0xff]
  %v951 = vld [vmem:[%s5 + $0x50] sm:$0xff]
  %v952 = vld [vmem:[%s5 + $0x58] sm:$0xff]
  %v953 = vld [vmem:[%s5 + $0x60] sm:$0xff]
  %v954 = vlaneseq
  %v955 = vshrl.u32 %v954, 7
  %v956 = vsub.s32 0, %v955
  %v957 = vrot.slane %v24, %v956
  %v958 = vadd.f32 %v928, %v957
  %v959 = vadd.f32 %v929, %v957
  %v960 = vadd.f32 %v930, %v957
  %v961 = vadd.f32 %v931, %v957
  %v962 = vadd.f32 %v932, %v957
  %v963 = vadd.f32 %v933, %v957
  %v964 = vadd.f32 %v934, %v957
  %v965 = vadd.f32 %v935, %v957
  %v966 = vadd.f32 %v936, %v957
  %v967 = vadd.f32 %v937, %v957
  %v968 = vadd.f32 %v938, %v957
  %v969 = vadd.f32 %v939, %v957
  %v970 = vadd.f32 %v940, %v957
  %971 = vst [vmem:[%s6] sm:$0xff] %v958
  %972 = vst [vmem:[%s6 + $0x8] sm:$0xff] %v959
  %973 = vst [vmem:[%s6 + $0x10] sm:$0xff] %v960
  %974 = vst [vmem:[%s6 + $0x18] sm:$0xff] %v961
  %975 = vst [vmem:[%s6 + $0x20] sm:$0xff] %v962
  %976 = vst [vmem:[%s6 + $0x28] sm:$0xff] %v963
  %977 = vst [vmem:[%s6 + $0x30] sm:$0xff] %v964
  %978 = vst [vmem:[%s6 + $0x38] sm:$0xff] %v965
  %979 = vst [vmem:[%s6 + $0x40] sm:$0xff] %v966
  %980 = vst [vmem:[%s6 + $0x48] sm:$0xff] %v967
  %981 = vst [vmem:[%s6 + $0x50] sm:$0xff] %v968
  %982 = vst [vmem:[%s6 + $0x58] sm:$0xff] %v969
  %983 = vst [vmem:[%s6 + $0x60] sm:$0xff] %v970
  %985 = vset.pattern.permute.xlu0 0
  %986 = vperm.xlu0 %985, %v941
  %v987 = vpop.permute.xlu0 %986
  %990 = vset.pattern.permute.xlu0 0
  %991 = vperm.xlu0 %990, %v942
  %v992 = vpop.permute.xlu0 %991
  %995 = vset.pattern.permute.xlu0 0
  %996 = vperm.xlu0 %995, %v943
  %v997 = vpop.permute.xlu0 %996
  %1000 = vset.pattern.permute.xlu0 0
  %1001 = vperm.xlu0 %1000, %v944
  %v1002 = vpop.permute.xlu0 %1001
  %1005 = vset.pattern.permute.xlu0 0
  %1006 = vperm.xlu0 %1005, %v945
  %v1007 = vpop.permute.xlu0 %1006
  %1010 = vset.pattern.permute.xlu0 0
  %1011 = vperm.xlu0 %1010, %v946
  %v1012 = vpop.permute.xlu0 %1011
  %1015 = vset.pattern.permute.xlu0 0
  %1016 = vperm.xlu0 %1015, %v947
  %v1017 = vpop.permute.xlu0 %1016
  %1020 = vset.pattern.permute.xlu0 0
  %1021 = vperm.xlu0 %1020, %v948
  %v1022 = vpop.permute.xlu0 %1021
  %1025 = vset.pattern.permute.xlu0 0
  %1026 = vperm.xlu0 %1025, %v949
  %v1027 = vpop.permute.xlu0 %1026
  %1030 = vset.pattern.permute.xlu0 0
  %1031 = vperm.xlu0 %1030, %v950
  %v1032 = vpop.permute.xlu0 %1031
  %1035 = vset.pattern.permute.xlu0 0
  %1036 = vperm.xlu0 %1035, %v951
  %v1037 = vpop.permute.xlu0 %1036
  %1040 = vset.pattern.permute.xlu0 0
  %1041 = vperm.xlu0 %1040, %v952
  %v1042 = vpop.permute.xlu0 %1041
  %1045 = vset.pattern.permute.xlu0 0
  %1046 = vperm.xlu0 %1045, %v953
  %v1047 = vpop.permute.xlu0 %1046
  %v1049 = vmul.f32 %v958, %v987
  %v1050 = vmul.f32 %v959, %v992
  %v1051 = vmul.f32 %v960, %v997
  %v1052 = vmul.f32 %v961, %v1002
  %v1053 = vmul.f32 %v962, %v1007
  %v1054 = vmul.f32 %v963, %v1012
  %v1055 = vmul.f32 %v964, %v1017
  %v1056 = vmul.f32 %v965, %v1022
  %v1057 = vmul.f32 %v966, %v1027
  %v1058 = vmul.f32 %v967, %v1032
  %v1059 = vmul.f32 %v968, %v1037
  %v1060 = vmul.f32 %v969, %v1042
  %v1061 = vmul.f32 %v970, %v1047
  %v1062 = vpack.c.bf16 %v1050, %v1049
  %v1063 = vpack.c.bf16 %v1052, %v1051
  %v1064 = vpack.c.bf16 %v1054, %v1053
  %v1065 = vpack.c.bf16 %v1056, %v1055
  %v1066 = vpack.c.bf16 %v1058, %v1057
  %v1067 = vpack.c.bf16 %v1060, %v1059
  %v1068 = vpack.c.bf16 %v1061, %v1061
  %v1076 = vrot.slane %v1062, 2
  %v1077 = vrot.slane %v1063, 2
  %v1078 = vsel %vm802, %v1076, %v1077
  %v1079 = vrot.slane %v1064, 2
  %v1080 = vsel %vm802, %v1077, %v1079
  %v1081 = vrot.slane %v1065, 2
  %v1082 = vsel %vm802, %v1079, %v1081
  %v1083 = vrot.slane %v1066, 2
  %v1084 = vsel %vm802, %v1081, %v1083
  %v1085 = vrot.slane %v1067, 2
  %v1086 = vsel %vm802, %v1083, %v1085
  %v1087 = vrot.slane %v1068, 2
  %v1088 = vsel %vm802, %v1085, %v1087
  %1097 = vst [vmem:[#allocation3] sm:$0xc0] %v1076
  %1098 = vst [vmem:[#allocation3 + $0x8] sm:$0xff] %v1078
  %1099 = vst [vmem:[#allocation3 + $0x10] sm:$0xff] %v1080
  %1100 = vst [vmem:[#allocation3 + $0x18] sm:$0xff] %v1082
  %1101 = vst [vmem:[#allocation3 + $0x20] sm:$0xff] %v1084
  %1102 = vst [vmem:[#allocation3 + $0x28] sm:$0xff] %v1086
  %1103 = vst [vmem:[#allocation3 + $0x30] sm:$0xff] %v1088
  %1104 = vst [vmem:[#allocation3 + $0x38] sm:$0x3] %v1087
  %v1105 = vld [vmem:[#allocation3] sm:$0xff]
  %v1106 = vld [vmem:[#allocation3 + $0x8] sm:$0xff]
  %v1107 = vld [vmem:[#allocation3 + $0x10] sm:$0xff]
  %v1108 = vld [vmem:[#allocation3 + $0x18] sm:$0xff]
  %v1109 = vld [vmem:[#allocation3 + $0x20] sm:$0xff]
  %v1110 = vld [vmem:[#allocation3 + $0x28] sm:$0xff]
  %v1111 = vld [vmem:[#allocation3 + $0x30] sm:$0xf]
  %v1112 = vld [vmem:[%s2] sm:$0xf]
  %v1113 = vld [vmem:[%s2 + $0x4] sm:$0xf]
  %v1114 = vld [vmem:[%s2 + $0x8] sm:$0xf]
  %v1115 = vld [vmem:[%s2 + $0xc] sm:$0xf]
  %v1116 = vld [vmem:[%s2 + $0x10] sm:$0xf]
  %v1117 = vld [vmem:[%s2 + $0x14] sm:$0xf]
  %v1118 = vld [vmem:[%s2 + $0x18] sm:$0xf]
  %v1119 = vld [vmem:[%s2 + $0x1c] sm:$0xf]
  %v1120 = vld [vmem:[%s2 + $0x20] sm:$0xf]
  %v1121 = vld [vmem:[%s2 + $0x24] sm:$0xf]
  %v1122 = vld [vmem:[%s2 + $0x28] sm:$0xf]
  %v1123 = vld [vmem:[%s2 + $0x2c] sm:$0xf]
  %v1124 = vld [vmem:[%s2 + $0x30] sm:$0xf]
  %v1125 = vld [vmem:[%s2 + $0x34] sm:$0xf]
  %v1126 = vld [vmem:[%s2 + $0x38] sm:$0xf]
  %v1127 = vld [vmem:[%s2 + $0x3c] sm:$0xf]
  %v1128 = vld [vmem:[#allocation3 + $0x30] sm:$0x1f]
  %s1129 = scalar_lea.vmem %s2, 64
  %v1130 = vld [vmem:[%s1129] sm:$0xf]
  %v1131 = vld [vmem:[%s1129 + $0x4] sm:$0xf]
  %v1132 = vld [vmem:[%s1129 + $0x8] sm:$0xf]
  %v1133 = vld [vmem:[%s1129 + $0xc] sm:$0xf]
  %v1134 = vld [vmem:[%s1129 + $0x10] sm:$0xf]
  %v1135 = vld [vmem:[%s1129 + $0x14] sm:$0xf]
  %v1136 = vld [vmem:[%s1129 + $0x18] sm:$0xf]
  %v1137 = vld [vmem:[%s1129 + $0x1c] sm:$0xf]
  %v1138 = vld [vmem:[%s1129 + $0x20] sm:$0xf]
  %v1139 = vld [vmem:[%s1129 + $0x24] sm:$0xf]
  %v1140 = vld [vmem:[%s1129 + $0x28] sm:$0xf]
  %v1141 = vld [vmem:[%s1129 + $0x2c] sm:$0xf]
  %v1142 = vld [vmem:[%s1129 + $0x30] sm:$0xf]
  %v1143 = vld [vmem:[%s1129 + $0x34] sm:$0xf]
  %v1144 = vld [vmem:[%s1129 + $0x38] sm:$0xf]
  %v1145 = vld [vmem:[%s1129 + $0x3c] sm:$0xf]
  %v1147 = vshrl.u32 %v1105, 16
  %v1149 = vshll.u32 %v1105, 16
  %v1151 = vrot.slane %v1149, 1
  %v1152 = vor.u32 %v1147, %v1151
  %v1154 = vshll.u32 %v1106, 16
  %v1156 = vrot.slane %v1154, 1
  %v1157 = vsel %vm280, %v1152, %v1156
  %v1158 = vshrl.u32 %v1106, 16
  %v1160 = vor.u32 %v1158, %v1156
  %v1162 = vshll.u32 %v1107, 16
  %v1164 = vrot.slane %v1162, 1
  %v1165 = vsel %vm280, %v1160, %v1164
  %v1166 = vshrl.u32 %v1107, 16
  %v1168 = vor.u32 %v1166, %v1164
  %v1170 = vshll.u32 %v1108, 16
  %v1172 = vrot.slane %v1170, 1
  %v1173 = vsel %vm280, %v1168, %v1172
  %v1174 = vshrl.u32 %v1108, 16
  %v1176 = vor.u32 %v1174, %v1172
  %v1178 = vshll.u32 %v1109, 16
  %v1180 = vrot.slane %v1178, 1
  %v1181 = vsel %vm280, %v1176, %v1180
  %v1182 = vshrl.u32 %v1109, 16
  %v1184 = vor.u32 %v1182, %v1180
  %v1186 = vshll.u32 %v1110, 16
  %v1188 = vrot.slane %v1186, 1
  %v1189 = vsel %vm280, %v1184, %v1188
  %v1190 = vshrl.u32 %v1110, 16
  %v1192 = vor.u32 %v1190, %v1188
  %v1194 = vshll.u32 %v1128, 16
  %v1196 = vrot.slane %v1194, 1
  %v1197 = vsel %vm280, %v1192, %v1196
  %v1198 = vshrl.u32 %v1128, 16
  %v1200 = vor.u32 %v1198, %v1196
  %v1224 = vunpack.c.l.b16 %v1130
  %v1225 = vunpack.c.l.b16 %v1131
  %v1226 = vunpack.c.l.b16 %v1132
  %v1227 = vunpack.c.l.b16 %v1133
  %v1228 = vunpack.c.l.b16 %v1134
  %v1229 = vunpack.c.l.b16 %v1135
  %v1230 = vunpack.c.l.b16 %v1136
  %v1231 = vunpack.c.l.b16 %v1137
  %v1232 = vunpack.c.l.b16 %v1138
  %v1233 = vunpack.c.l.b16 %v1139
  %v1234 = vunpack.c.l.b16 %v1140
  %v1235 = vunpack.c.l.b16 %v1141
  %v1236 = vunpack.c.l.b16 %v1142
  %v1237 = vunpack.c.l.b16 %v1143
  %v1238 = vunpack.c.l.b16 %v1144
  %v1239 = vunpack.c.l.b16 %v1145
  %v1240 = vpack.c.b16 %v1225, %v1224
  %v1241 = vpack.c.b16 %v1227, %v1226
  %v1242 = vpack.c.b16 %v1229, %v1228
  %v1243 = vpack.c.b16 %v1231, %v1230
  %v1244 = vpack.c.b16 %v1233, %v1232
  %v1245 = vpack.c.b16 %v1235, %v1234
  %v1246 = vpack.c.b16 %v1237, %v1236
  %v1247 = vpack.c.b16 %v1239, %v1238
  %1256 = vmatprep.subr.bf16.mxu0 0
  %1257 = vmatpush1.bf16.msra.mxu0 %v1240
  %1258 = vmatprep.subr.bf16.mxu0 0
  %1259 = vmatpush1.bf16.msra.mxu0 %v1241
  %1260 = vmatprep.subr.bf16.mxu0 0
  %1261 = vmatpush1.bf16.msra.mxu0 %v1242
  %1262 = vmatprep.subr.bf16.mxu0 0
  %1263 = vmatpush1.bf16.msra.mxu0 %v1243
  %1264 = vmatprep.subr.bf16.mxu0 0
  %1265 = vmatpush1.bf16.msra.mxu0 %v1244
  %1266 = vmatprep.subr.bf16.mxu0 0
  %1267 = vmatpush1.bf16.msra.mxu0 %v1245
  %1268 = vmatprep.subr.bf16.mxu0 0
  %1269 = vmatpush1.bf16.msra.mxu0 %v1246
  %1270 = vmatprep.subr.bf16.mxu0 0
  %1271 = vmatpush1.bf16.msra.mxu0 %v1247
  %1272 = vmatprep.subr.bf16.mxu0 0
  %1273 = vmatpush1.bf16.msra.mxu0 0
  %1274 = vmatprep.subr.bf16.mxu0 0
  %1275 = vmatpush1.bf16.msra.mxu0 0
  %1276 = vmatprep.subr.bf16.mxu0 0
  %1277 = vmatpush1.bf16.msra.mxu0 0
  %1278 = vmatprep.subr.bf16.mxu0 0
  %1279 = vmatpush1.bf16.msra.mxu0 0
  %1280 = vmatprep.subr.bf16.mxu0 0
  %1281 = vmatpush1.bf16.msra.mxu0 0
  %1282 = vmatprep.subr.bf16.mxu0 0
  %1283 = vmatpush1.bf16.msra.mxu0 0
  %1284 = vmatprep.subr.bf16.mxu0 0
  %1285 = vmatpush1.bf16.msra.mxu0 0
  %1286 = vmatprep.subr.bf16.mxu0 0
  %1287 = vmatpush1.bf16.msra.mxu0 0
  %1288 = vmatprep.mubr.bf16.mxu0 0
  %1289 = vmatmul.mubr.bf16.gmra.mrb[0].mxu0 %v1157
  %v1290 = vpop.f32.mrb[0].mxu0
  %v1291 = vadd.f32 0.0, %v1290
  %v1292 = vpop.f32.mrb[0].mxu0
  %v1293 = vpop.f32.mrb[0].mxu0
  %v1294 = vadd.f32 0.0, %v1293
  %v1295 = vpop.f32.mrb[0].mxu0
  %1296 = vmatprep.mubr.bf16.mxu0 0
  %1297 = vmatmul.mubr.bf16.gmra.mrb[0].mxu0 %v1165
  %v1298 = vpop.f32.mrb[0].mxu0
  %v1299 = vadd.f32 0.0, %v1298
  %v1300 = vpop.f32.mrb[0].mxu0
  %v1301 = vpop.f32.mrb[0].mxu0
  %v1302 = vadd.f32 0.0, %v1301
  %v1303 = vpop.f32.mrb[0].mxu0
  %1304 = vmatprep.mubr.bf16.mxu0 0
  %1305 = vmatmul.mubr.bf16.gmra.mrb[0].mxu0 %v1173
  %v1306 = vpop.f32.mrb[0].mxu0
  %v1307 = vadd.f32 0.0, %v1306
  %v1308 = vpop.f32.mrb[0].mxu0
  %v1309 = vpop.f32.mrb[0].mxu0
  %v1310 = vadd.f32 0.0, %v1309
  %v1311 = vpop.f32.mrb[0].mxu0
  %1312 = vmatprep.mubr.bf16.mxu0 0
  %1313 = vmatmul.mubr.bf16.gmra.mrb[0].mxu0 %v1181
  %v1314 = vpop.f32.mrb[0].mxu0
  %v1315 = vadd.f32 0.0, %v1314
  %v1316 = vpop.f32.mrb[0].mxu0
  %v1317 = vpop.f32.mrb[0].mxu0
  %v1318 = vadd.f32 0.0, %v1317
  %v1319 = vpop.f32.mrb[0].mxu0
  %1320 = vmatprep.mubr.bf16.mxu0 0
  %1321 = vmatmul.mubr.bf16.gmra.mrb[0].mxu0 %v1189
  %v1322 = vpop.f32.mrb[0].mxu0
  %v1323 = vadd.f32 0.0, %v1322
  %v1324 = vpop.f32.mrb[0].mxu0
  %v1325 = vpop.f32.mrb[0].mxu0
  %v1326 = vadd.f32 0.0, %v1325
  %v1327 = vpop.f32.mrb[0].mxu0
  %1328 = vmatprep.mubr.bf16.mxu0 0
  %1329 = vmatmul.mubr.bf16.gmra.mrb[0].mxu0 %v1197
  %v1330 = vpop.f32.mrb[0].mxu0
  %v1331 = vadd.f32 0.0, %v1330
  %v1332 = vpop.f32.mrb[0].mxu0
  %v1333 = vpop.f32.mrb[0].mxu0
  %v1334 = vadd.f32 0.0, %v1333
  %v1335 = vpop.f32.mrb[0].mxu0
  %1336 = vmatprep.mubr.bf16.mxu0 0
  %1337 = vmatmul.mubr.bf16.gmra.mrb[0].mxu0 %v1200
  %v1338 = vpop.f32.mrb[0].mxu0
  %v1339 = vadd.f32 0.0, %v1338
  %v1340 = vpop.f32.mrb[0].mxu0
  %v1341 = vpop.f32.mrb[0].mxu0
  %v1342 = vpop.f32.mrb[0].mxu0
  %1343 = vdwg.mxu0
  %v1360 = vunpack.c.l.b16 %v1112
  %v1361 = vunpack.c.l.b16 %v1113
  %v1362 = vunpack.c.l.b16 %v1114
  %v1363 = vunpack.c.l.b16 %v1115
  %v1364 = vunpack.c.l.b16 %v1116
  %v1365 = vunpack.c.l.b16 %v1117
  %v1366 = vunpack.c.l.b16 %v1118
  %v1367 = vunpack.c.l.b16 %v1119
  %v1368 = vunpack.c.l.b16 %v1120
  %v1369 = vunpack.c.l.b16 %v1121
  %v1370 = vunpack.c.l.b16 %v1122
  %v1371 = vunpack.c.l.b16 %v1123
  %v1372 = vunpack.c.l.b16 %v1124
  %v1373 = vunpack.c.l.b16 %v1125
  %v1374 = vunpack.c.l.b16 %v1126
  %v1375 = vunpack.c.l.b16 %v1127
  %v1376 = vpack.c.b16 %v1361, %v1360
  %v1377 = vpack.c.b16 %v1363, %v1362
  %v1378 = vpack.c.b16 %v1365, %v1364
  %v1379 = vpack.c.b16 %v1367, %v1366
  %v1380 = vpack.c.b16 %v1369, %v1368
  %v1381 = vpack.c.b16 %v1371, %v1370
  %v1382 = vpack.c.b16 %v1373, %v1372
  %v1383 = vpack.c.b16 %v1375, %v1374
  %1392 = vmatprep.subr.bf16.mxu0 0
  %1393 = vmatpush1.bf16.msra.mxu0 %v1376
  %1394 = vmatprep.subr.bf16.mxu0 0
  %1395 = vmatpush1.bf16.msra.mxu0 %v1377
  %1396 = vmatprep.subr.bf16.mxu0 0
  %1397 = vmatpush1.bf16.msra.mxu0 %v1378
  %1398 = vmatprep.subr.bf16.mxu0 0
  %1399 = vmatpush1.bf16.msra.mxu0 %v1379
  %1400 = vmatprep.subr.bf16.mxu0 0
  %1401 = vmatpush1.bf16.msra.mxu0 %v1380
  %1402 = vmatprep.subr.bf16.mxu0 0
  %1403 = vmatpush1.bf16.msra.mxu0 %v1381
  %1404 = vmatprep.subr.bf16.mxu0 0
  %1405 = vmatpush1.bf16.msra.mxu0 %v1382
  %1406 = vmatprep.subr.bf16.mxu0 0
  %1407 = vmatpush1.bf16.msra.mxu0 %v1383
  %1408 = vmatprep.subr.bf16.mxu0 0
  %1409 = vmatpush1.bf16.msra.mxu0 0
  %1410 = vmatprep.subr.bf16.mxu0 0
  %1411 = vmatpush1.bf16.msra.mxu0 0
  %1412 = vmatprep.subr.bf16.mxu0 0
  %1413 = vmatpush1.bf16.msra.mxu0 0
  %1414 = vmatprep.subr.bf16.mxu0 0
  %1415 = vmatpush1.bf16.msra.mxu0 0
  %1416 = vmatprep.subr.bf16.mxu0 0
  %1417 = vmatpush1.bf16.msra.mxu0 0
  %1418 = vmatprep.subr.bf16.mxu0 0
  %1419 = vmatpush1.bf16.msra.mxu0 0
  %1420 = vmatprep.subr.bf16.mxu0 0
  %1421 = vmatpush1.bf16.msra.mxu0 0
  %1422 = vmatprep.subr.bf16.mxu0 0
  %1423 = vmatpush1.bf16.msra.mxu0 0
  %1424 = vmatprep.mubr.bf16.mxu0 0
  %1425 = vmatmul.mubr.bf16.gmra.mrb[0].mxu0 %v1105
  %v1426 = vpop.f32.mrb[0].mxu0
  %v1427 = vadd.f32 %v1291, %v1426
  %v1428 = vpop.f32.mrb[0].mxu0
  %v1429 = vpop.f32.mrb[0].mxu0
  %v1430 = vadd.f32 %v1294, %v1429
  %v1431 = vpop.f32.mrb[0].mxu0
  %1432 = vmatprep.mubr.bf16.mxu0 0
  %1433 = vmatmul.mubr.bf16.gmra.mrb[0].mxu0 %v1106
  %v1434 = vpop.f32.mrb[0].mxu0
  %v1435 = vadd.f32 %v1299, %v1434
  %v1436 = vpop.f32.mrb[0].mxu0
  %v1437 = vpop.f32.mrb[0].mxu0
  %v1438 = vadd.f32 %v1302, %v1437
  %v1439 = vpop.f32.mrb[0].mxu0
  %1440 = vmatprep.mubr.bf16.mxu0 0
  %1441 = vmatmul.mubr.bf16.gmra.mrb[0].mxu0 %v1107
  %v1442 = vpop.f32.mrb[0].mxu0
  %v1443 = vadd.f32 %v1307, %v1442
  %v1444 = vpop.f32.mrb[0].mxu0
  %v1445 = vpop.f32.mrb[0].mxu0
  %v1446 = vadd.f32 %v1310, %v1445
  %v1447 = vpop.f32.mrb[0].mxu0
  %1448 = vmatprep.mubr.bf16.mxu0 0
  %1449 = vmatmul.mubr.bf16.gmra.mrb[0].mxu0 %v1108
  %v1450 = vpop.f32.mrb[0].mxu0
  %v1451 = vadd.f32 %v1315, %v1450
  %v1452 = vpop.f32.mrb[0].mxu0
  %v1453 = vpop.f32.mrb[0].mxu0
  %v1454 = vadd.f32 %v1318, %v1453
  %v1455 = vpop.f32.mrb[0].mxu0
  %1456 = vmatprep.mubr.bf16.mxu0 0
  %1457 = vmatmul.mubr.bf16.gmra.mrb[0].mxu0 %v1109
  %v1458 = vpop.f32.mrb[0].mxu0
  %v1459 = vadd.f32 %v1323, %v1458
  %v1460 = vpop.f32.mrb[0].mxu0
  %v1461 = vpop.f32.mrb[0].mxu0
  %v1462 = vadd.f32 %v1326, %v1461
  %v1463 = vpop.f32.mrb[0].mxu0
  %1464 = vmatprep.mubr.bf16.mxu0 0
  %1465 = vmatmul.mubr.bf16.gmra.mrb[0].mxu0 %v1110
  %v1466 = vpop.f32.mrb[0].mxu0
  %v1467 = vadd.f32 %v1331, %v1466
  %v1468 = vpop.f32.mrb[0].mxu0
  %v1469 = vpop.f32.mrb[0].mxu0
  %v1470 = vadd.f32 %v1334, %v1469
  %v1471 = vpop.f32.mrb[0].mxu0
  %1472 = vmatprep.mubr.bf16.mxu0 0
  %1473 = vmatmul.mubr.bf16.gmra.mrb[0].mxu0 %v1111
  %v1474 = vpop.f32.mrb[0].mxu0
  %v1475 = vadd.f32 %v1339, %v1474
  %v1476 = vpop.f32.mrb[0].mxu0
  %v1477 = vpop.f32.mrb[0].mxu0
  %v1478 = vpop.f32.mrb[0].mxu0
  %1479 = vdwg.mxu0
  %v1480 = vld [vmem:[#allocation3] sm:$0xfe]
  %s1481 = scalar_lea.vmem %s2, 128
  %v1482 = vld [vmem:[%s1481] sm:$0xf]
  %v1483 = vld [vmem:[%s1481 + $0x4] sm:$0xf]
  %v1484 = vld [vmem:[%s1481 + $0x8] sm:$0xf]
  %v1485 = vld [vmem:[%s1481 + $0xc] sm:$0xf]
  %v1486 = vld [vmem:[%s1481 + $0x10] sm:$0xf]
  %v1487 = vld [vmem:[%s1481 + $0x14] sm:$0xf]
  %v1488 = vld [vmem:[%s1481 + $0x18] sm:$0xf]
  %v1489 = vld [vmem:[%s1481 + $0x1c] sm:$0xf]
  %v1490 = vld [vmem:[%s1481 + $0x20] sm:$0xf]
  %v1491 = vld [vmem:[%s1481 + $0x24] sm:$0xf]
  %v1492 = vld [vmem:[%s1481 + $0x28] sm:$0xf]
  %v1493 = vld [vmem:[%s1481 + $0x2c] sm:$0xf]
  %v1494 = vld [vmem:[%s1481 + $0x30] sm:$0xf]
  %v1495 = vld [vmem:[%s1481 + $0x34] sm:$0xf]
  %v1496 = vld [vmem:[%s1481 + $0x38] sm:$0xf]
  %v1497 = vld [vmem:[%s1481 + $0x3c] sm:$0xf]
  %vm1505 = vcmask 1046528
  %v1506 = vrot.slane %v1480, 1
  %v1507 = vrot.slane %v1106, 1
  %v1508 = vsel %vm1505, %v1506, %v1507
  %v1509 = vrot.slane %v1107, 1
  %v1510 = vsel %vm1505, %v1507, %v1509
  %v1511 = vrot.slane %v1108, 1
  %v1512 = vsel %vm1505, %v1509, %v1511
  %v1513 = vrot.slane %v1109, 1
  %v1514 = vsel %vm1505, %v1511, %v1513
  %v1515 = vrot.slane %v1110, 1
  %v1516 = vsel %vm1505, %v1513, %v1515
  %v1517 = vrot.slane %v1128, 1
  %v1518 = vsel %vm1505, %v1515, %v1517
  %v1542 = vunpack.c.l.b16 %v1482
  %v1543 = vunpack.c.l.b16 %v1483
  %v1544 = vunpack.c.l.b16 %v1484
  %v1545 = vunpack.c.l.b16 %v1485
  %v1546 = vunpack.c.l.b16 %v1486
  %v1547 = vunpack.c.l.b16 %v1487
  %v1548 = vunpack.c.l.b16 %v1488
  %v1549 = vunpack.c.l.b16 %v1489
  %v1550 = vunpack.c.l.b16 %v1490
  %v1551 = vunpack.c.l.b16 %v1491
  %v1552 = vunpack.c.l.b16 %v1492
  %v1553 = vunpack.c.l.b16 %v1493
  %v1554 = vunpack.c.l.b16 %v1494
  %v1555 = vunpack.c.l.b16 %v1495
  %v1556 = vunpack.c.l.b16 %v1496
  %v1557 = vunpack.c.l.b16 %v1497
  %v1558 = vpack.c.b16 %v1543, %v1542
  %v1559 = vpack.c.b16 %v1545, %v1544
  %v1560 = vpack.c.b16 %v1547, %v1546
  %v1561 = vpack.c.b16 %v1549, %v1548
  %v1562 = vpack.c.b16 %v1551, %v1550
  %v1563 = vpack.c.b16 %v1553, %v1552
  %v1564 = vpack.c.b16 %v1555, %v1554
  %v1565 = vpack.c.b16 %v1557, %v1556
  %1574 = vmatprep.subr.bf16.mxu0 0
  %1575 = vmatpush1.bf16.msra.mxu0 %v1558
  %1576 = vmatprep.subr.bf16.mxu0 0
  %1577 = vmatpush1.bf16.msra.mxu0 %v1559
  %1578 = vmatprep.subr.bf16.mxu0 0
  %1579 = vmatpush1.bf16.msra.mxu0 %v1560
  %1580 = vmatprep.subr.bf16.mxu0 0
  %1581 = vmatpush1.bf16.msra.mxu0 %v1561
  %1582 = vmatprep.subr.bf16.mxu0 0
  %1583 = vmatpush1.bf16.msra.mxu0 %v1562
  %1584 = vmatprep.subr.bf16.mxu0 0
  %1585 = vmatpush1.bf16.msra.mxu0 %v1563
  %1586 = vmatprep.subr.bf16.mxu0 0
  %1587 = vmatpush1.bf16.msra.mxu0 %v1564
  %1588 = vmatprep.subr.bf16.mxu0 0
  %1589 = vmatpush1.bf16.msra.mxu0 %v1565
  %1590 = vmatprep.subr.bf16.mxu0 0
  %1591 = vmatpush1.bf16.msra.mxu0 0
  %1592 = vmatprep.subr.bf16.mxu0 0
  %1593 = vmatpush1.bf16.msra.mxu0 0
  %1594 = vmatprep.subr.bf16.mxu0 0
  %1595 = vmatpush1.bf16.msra.mxu0 0
  %1596 = vmatprep.subr.bf16.mxu0 0
  %1597 = vmatpush1.bf16.msra.mxu0 0
  %1598 = vmatprep.subr.bf16.mxu0 0
  %1599 = vmatpush1.bf16.msra.mxu0 0
  %1600 = vmatprep.subr.bf16.mxu0 0
  %1601 = vmatpush1.bf16.msra.mxu0 0
  %1602 = vmatprep.subr.bf16.mxu0 0
  %1603 = vmatpush1.bf16.msra.mxu0 0
  %1604 = vmatprep.subr.bf16.mxu0 0
  %1605 = vmatpush1.bf16.msra.mxu0 0
  %1606 = vmatprep.mubr.bf16.mxu0 0
  %1607 = vmatmul.mubr.bf16.gmra.mrb[0].mxu0 %v1508
  %v1608 = vpop.f32.mrb[0].mxu0
  %v1609 = vadd.f32 0.0, %v1608
  %v1610 = vpop.f32.mrb[0].mxu0
  %v1611 = vpop.f32.mrb[0].mxu0
  %v1612 = vadd.f32 0.0, %v1611
  %v1613 = vpop.f32.mrb[0].mxu0
  %1614 = vmatprep.mubr.bf16.mxu0 0
  %1615 = vmatmul.mubr.bf16.gmra.mrb[0].mxu0 %v1510
  %v1616 = vpop.f32.mrb[0].mxu0
  %v1617 = vadd.f32 0.0, %v1616
  %v1618 = vpop.f32.mrb[0].mxu0
  %v1619 = vpop.f32.mrb[0].mxu0
  %v1620 = vadd.f32 0.0, %v1619
  %v1621 = vpop.f32.mrb[0].mxu0
  %1622 = vmatprep.mubr.bf16.mxu0 0
  %1623 = vmatmul.mubr.bf16.gmra.mrb[0].mxu0 %v1512
  %v1624 = vpop.f32.mrb[0].mxu0
  %v1625 = vadd.f32 0.0, %v1624
  %v1626 = vpop.f32.mrb[0].mxu0
  %v1627 = vpop.f32.mrb[0].mxu0
  %v1628 = vadd.f32 0.0, %v1627
  %v1629 = vpop.f32.mrb[0].mxu0
  %1630 = vmatprep.mubr.bf16.mxu0 0
  %1631 = vmatmul.mubr.bf16.gmra.mrb[0].mxu0 %v1514
  %v1632 = vpop.f32.mrb[0].mxu0
  %v1633 = vadd.f32 0.0, %v1632
  %v1634 = vpop.f32.mrb[0].mxu0
  %v1635 = vpop.f32.mrb[0].mxu0
  %v1636 = vadd.f32 0.0, %v1635
  %v1637 = vpop.f32.mrb[0].mxu0
  %1638 = vmatprep.mubr.bf16.mxu0 0
  %1639 = vmatmul.mubr.bf16.gmra.mrb[0].mxu0 %v1516
  %v1640 = vpop.f32.mrb[0].mxu0
  %v1641 = vadd.f32 0.0, %v1640
  %v1642 = vpop.f32.mrb[0].mxu0
  %v1643 = vpop.f32.mrb[0].mxu0
  %v1644 = vadd.f32 0.0, %v1643
  %v1645 = vpop.f32.mrb[0].mxu0
  %1646 = vmatprep.mubr.bf16.mxu0 0
  %1647 = vmatmul.mubr.bf16.gmra.mrb[0].mxu0 %v1518
  %v1648 = vpop.f32.mrb[0].mxu0
  %v1649 = vadd.f32 0.0, %v1648
  %v1650 = vpop.f32.mrb[0].mxu0
  %v1651 = vpop.f32.mrb[0].mxu0
  %v1652 = vadd.f32 0.0, %v1651
  %v1653 = vpop.f32.mrb[0].mxu0
  %1654 = vmatprep.mubr.bf16.mxu0 0
  %1655 = vmatmul.mubr.bf16.gmra.mrb[0].mxu0 %v1517
  %v1656 = vpop.f32.mrb[0].mxu0
  %v1657 = vadd.f32 0.0, %v1656
  %v1658 = vpop.f32.mrb[0].mxu0
  %v1659 = vpop.f32.mrb[0].mxu0
  %v1660 = vpop.f32.mrb[0].mxu0
  %1661 = vdwg.mxu0
  %v1662 = vadd.f32 %v1427, %v1609
  %v1663 = vadd.f32 %v1430, %v1612
  %v1664 = vadd.f32 %v1435, %v1617
  %v1665 = vadd.f32 %v1438, %v1620
  %v1666 = vadd.f32 %v1443, %v1625
  %v1667 = vadd.f32 %v1446, %v1628
  %v1668 = vadd.f32 %v1451, %v1633
  %v1669 = vadd.f32 %v1454, %v1636
  %v1670 = vadd.f32 %v1459, %v1641
  %v1671 = vadd.f32 %v1462, %v1644
  %v1672 = vadd.f32 %v1467, %v1649
  %v1673 = vadd.f32 %v1470, %v1652
  %v1674 = vadd.f32 %v1475, %v1657
  %v1675 = vld [vmem:[#allocation3] sm:$0xe0]
  %v1676 = vld [vmem:[#allocation3 + $0x8] sm:$0xff]
  %v1677 = vld [vmem:[#allocation3 + $0x10] sm:$0xff]
  %v1678 = vld [vmem:[#allocation3 + $0x18] sm:$0xff]
  %v1679 = vld [vmem:[#allocation3 + $0x20] sm:$0xff]
  %v1680 = vld [vmem:[#allocation3 + $0x28] sm:$0xff]
  %v1681 = vld [vmem:[#allocation3 + $0x30] sm:$0xff]
  %v1682 = vld [vmem:[#allocation3 + $0x38] sm:$0x3]
  %s1683 = scalar_lea.vmem %s2, 192
  %v1684 = vld [vmem:[%s1683] sm:$0xf]
  %v1685 = vld [vmem:[%s1683 + $0x4] sm:$0xf]
  %v1686 = vld [vmem:[%s1683 + $0x8] sm:$0xf]
  %v1687 = vld [vmem:[%s1683 + $0xc] sm:$0xf]
  %v1688 = vld [vmem:[%s1683 + $0x10] sm:$0xf]
  %v1689 = vld [vmem:[%s1683 + $0x14] sm:$0xf]
  %v1690 = vld [vmem:[%s1683 + $0x18] sm:$0xf]
  %v1691 = vld [vmem:[%s1683 + $0x1c] sm:$0xf]
  %v1692 = vld [vmem:[%s1683 + $0x20] sm:$0xf]
  %v1693 = vld [vmem:[%s1683 + $0x24] sm:$0xf]
  %v1694 = vld [vmem:[%s1683 + $0x28] sm:$0xf]
  %v1695 = vld [vmem:[%s1683 + $0x2c] sm:$0xf]
  %v1696 = vld [vmem:[%s1683 + $0x30] sm:$0xf]
  %v1697 = vld [vmem:[%s1683 + $0x34] sm:$0xf]
  %v1698 = vld [vmem:[%s1683 + $0x38] sm:$0xf]
  %v1699 = vld [vmem:[%s1683 + $0x3c] sm:$0xf]
  %v1701 = vshrl.u32 %v1675, 16
  %v1703 = vrot.slane %v1701, 5
  %v1704 = vshll.u32 %v1675, 16
  %v1706 = vrot.slane %v1704, 6
  %v1707 = vor.u32 %v1703, %v1706
  %v1709 = vshrl.u32 %v1676, 16
  %v1711 = vrot.slane %v1709, 5
  %v1712 = vshll.u32 %v1676, 16
  %v1714 = vrot.slane %v1712, 6
  %v1715 = vor.u32 %v1711, %v1714
  %v1716 = vsel %vm169, %v1707, %v1715
  %v1718 = vshrl.u32 %v1677, 16
  %v1720 = vrot.slane %v1718, 5
  %v1721 = vshll.u32 %v1677, 16
  %v1723 = vrot.slane %v1721, 6
  %v1724 = vor.u32 %v1720, %v1723
  %v1725 = vsel %vm169, %v1715, %v1724
  %v1727 = vshrl.u32 %v1678, 16
  %v1729 = vrot.slane %v1727, 5
  %v1730 = vshll.u32 %v1678, 16
  %v1732 = vrot.slane %v1730, 6
  %v1733 = vor.u32 %v1729, %v1732
  %v1734 = vsel %vm169, %v1724, %v1733
  %v1736 = vshrl.u32 %v1679, 16
  %v1738 = vrot.slane %v1736, 5
  %v1739 = vshll.u32 %v1679, 16
  %v1741 = vrot.slane %v1739, 6
  %v1742 = vor.u32 %v1738, %v1741
  %v1743 = vsel %vm169, %v1733, %v1742
  %v1745 = vshrl.u32 %v1680, 16
  %v1747 = vrot.slane %v1745, 5
  %v1748 = vshll.u32 %v1680, 16
  %v1750 = vrot.slane %v1748, 6
  %v1751 = vor.u32 %v1747, %v1750
  %v1752 = vsel %vm169, %v1742, %v1751
  %v1754 = vshrl.u32 %v1681, 16
  %v1756 = vrot.slane %v1754, 5
  %v1757 = vshll.u32 %v1681, 16
  %v1759 = vrot.slane %v1757, 6
  %v1760 = vor.u32 %v1756, %v1759
  %v1761 = vsel %vm169, %v1751, %v1760
  %v1763 = vshrl.u32 %v1682, 16
  %v1765 = vrot.slane %v1763, 5
  %v1766 = vshll.u32 %v1682, 16
  %v1768 = vrot.slane %v1766, 6
  %v1769 = vor.u32 %v1765, %v1768
  %v1770 = vsel %vm169, %v1760, %v1769
  %v1794 = vunpack.c.l.b16 %v1684
  %v1795 = vunpack.c.l.b16 %v1685
  %v1796 = vunpack.c.l.b16 %v1686
  %v1797 = vunpack.c.l.b16 %v1687
  %v1798 = vunpack.c.l.b16 %v1688
  %v1799 = vunpack.c.l.b16 %v1689
  %v1800 = vunpack.c.l.b16 %v1690
  %v1801 = vunpack.c.l.b16 %v1691
  %v1802 = vunpack.c.l.b16 %v1692
  %v1803 = vunpack.c.l.b16 %v1693
  %v1804 = vunpack.c.l.b16 %v1694
  %v1805 = vunpack.c.l.b16 %v1695
  %v1806 = vunpack.c.l.b16 %v1696
  %v1807 = vunpack.c.l.b16 %v1697
  %v1808 = vunpack.c.l.b16 %v1698
  %v1809 = vunpack.c.l.b16 %v1699
  %v1810 = vpack.c.b16 %v1795, %v1794
  %v1811 = vpack.c.b16 %v1797, %v1796
  %v1812 = vpack.c.b16 %v1799, %v1798
  %v1813 = vpack.c.b16 %v1801, %v1800
  %v1814 = vpack.c.b16 %v1803, %v1802
  %v1815 = vpack.c.b16 %v1805, %v1804
  %v1816 = vpack.c.b16 %v1807, %v1806
  %v1817 = vpack.c.b16 %v1809, %v1808
  %1826 = vmatprep.subr.bf16.mxu0 0
  %1827 = vmatpush1.bf16.msra.mxu0 %v1810
  %1828 = vmatprep.subr.bf16.mxu0 0
  %1829 = vmatpush1.bf16.msra.mxu0 %v1811
  %1830 = vmatprep.subr.bf16.mxu0 0
  %1831 = vmatpush1.bf16.msra.mxu0 %v1812
  %1832 = vmatprep.subr.bf16.mxu0 0
  %1833 = vmatpush1.bf16.msra.mxu0 %v1813
  %1834 = vmatprep.subr.bf16.mxu0 0
  %1835 = vmatpush1.bf16.msra.mxu0 %v1814
  %1836 = vmatprep.subr.bf16.mxu0 0
  %1837 = vmatpush1.bf16.msra.mxu0 %v1815
  %1838 = vmatprep.subr.bf16.mxu0 0
  %1839 = vmatpush1.bf16.msra.mxu0 %v1816
  %1840 = vmatprep.subr.bf16.mxu0 0
  %1841 = vmatpush1.bf16.msra.mxu0 %v1817
  %1842 = vmatprep.subr.bf16.mxu0 0
  %1843 = vmatpush1.bf16.msra.mxu0 0
  %1844 = vmatprep.subr.bf16.mxu0 0
  %1845 = vmatpush1.bf16.msra.mxu0 0
  %1846 = vmatprep.subr.bf16.mxu0 0
  %1847 = vmatpush1.bf16.msra.mxu0 0
  %1848 = vmatprep.subr.bf16.mxu0 0
  %1849 = vmatpush1.bf16.msra.mxu0 0
  %1850 = vmatprep.subr.bf16.mxu0 0
  %1851 = vmatpush1.bf16.msra.mxu0 0
  %1852 = vmatprep.subr.bf16.mxu0 0
  %1853 = vmatpush1.bf16.msra.mxu0 0
  %1854 = vmatprep.subr.bf16.mxu0 0
  %1855 = vmatpush1.bf16.msra.mxu0 0
  %1856 = vmatprep.subr.bf16.mxu0 0
  %1857 = vmatpush1.bf16.msra.mxu0 0
  %1858 = vmatprep.mubr.bf16.mxu0 0
  %1859 = vmatmul.mubr.bf16.gmra.mrb[0].mxu0 %v1716
  %v1860 = vpop.f32.mrb[0].mxu0
  %v1861 = vadd.f32 0.0, %v1860
  %v1862 = vpop.f32.mrb[0].mxu0
  %v1863 = vpop.f32.mrb[0].mxu0
  %v1864 = vadd.f32 0.0, %v1863
  %v1865 = vpop.f32.mrb[0].mxu0
  %1866 = vmatprep.mubr.bf16.mxu0 0
  %1867 = vmatmul.mubr.bf16.gmra.mrb[0].mxu0 %v1725
  %v1868 = vpop.f32.mrb[0].mxu0
  %v1869 = vadd.f32 0.0, %v1868
  %v1870 = vpop.f32.mrb[0].mxu0
  %v1871 = vpop.f32.mrb[0].mxu0
  %v1872 = vadd.f32 0.0, %v1871
  %v1873 = vpop.f32.mrb[0].mxu0
  %1874 = vmatprep.mubr.bf16.mxu0 0
  %1875 = vmatmul.mubr.bf16.gmra.mrb[0].mxu0 %v1734
  %v1876 = vpop.f32.mrb[0].mxu0
  %v1877 = vadd.f32 0.0, %v1876
  %v1878 = vpop.f32.mrb[0].mxu0
  %v1879 = vpop.f32.mrb[0].mxu0
  %v1880 = vadd.f32 0.0, %v1879
  %v1881 = vpop.f32.mrb[0].mxu0
  %1882 = vmatprep.mubr.bf16.mxu0 0
  %1883 = vmatmul.mubr.bf16.gmra.mrb[0].mxu0 %v1743
  %v1884 = vpop.f32.mrb[0].mxu0
  %v1885 = vadd.f32 0.0, %v1884
  %v1886 = vpop.f32.mrb[0].mxu0
  %v1887 = vpop.f32.mrb[0].mxu0
  %v1888 = vadd.f32 0.0, %v1887
  %v1889 = vpop.f32.mrb[0].mxu0
  %1890 = vmatprep.mubr.bf16.mxu0 0
  %1891 = vmatmul.mubr.bf16.gmra.mrb[0].mxu0 %v1752
  %v1892 = vpop.f32.mrb[0].mxu0
  %v1893 = vadd.f32 0.0, %v1892
  %v1894 = vpop.f32.mrb[0].mxu0
  %v1895 = vpop.f32.mrb[0].mxu0
  %v1896 = vadd.f32 0.0, %v1895
  %v1897 = vpop.f32.mrb[0].mxu0
  %1898 = vmatprep.mubr.bf16.mxu0 0
  %1899 = vmatmul.mubr.bf16.gmra.mrb[0].mxu0 %v1761
  %v1900 = vpop.f32.mrb[0].mxu0
  %v1901 = vadd.f32 0.0, %v1900
  %v1902 = vpop.f32.mrb[0].mxu0
  %v1903 = vpop.f32.mrb[0].mxu0
  %v1904 = vadd.f32 0.0, %v1903
  %v1905 = vpop.f32.mrb[0].mxu0
  %1906 = vmatprep.mubr.bf16.mxu0 0
  %1907 = vmatmul.mubr.bf16.gmra.mrb[0].mxu0 %v1770
  %v1908 = vpop.f32.mrb[0].mxu0
  %v1909 = vadd.f32 0.0, %v1908
  %v1910 = vpop.f32.mrb[0].mxu0
  %v1911 = vpop.f32.mrb[0].mxu0
  %v1912 = vpop.f32.mrb[0].mxu0
  %1913 = vdwg.mxu0
  %v1914 = vadd.f32 %v1662, %v1861
  %v1915 = vadd.f32 %v1663, %v1864
  %v1916 = vadd.f32 %v1664, %v1869
  %v1917 = vadd.f32 %v1665, %v1872
  %v1918 = vadd.f32 %v1666, %v1877
  %v1919 = vadd.f32 %v1667, %v1880
  %v1920 = vadd.f32 %v1668, %v1885
  %v1921 = vadd.f32 %v1669, %v1888
  %v1922 = vadd.f32 %v1670, %v1893
  %v1923 = vadd.f32 %v1671, %v1896
  %v1924 = vadd.f32 %v1672, %v1901
  %v1925 = vadd.f32 %v1673, %v1904
  %v1926 = vadd.f32 %v1674, %v1909
  %v1927 = vld [vmem:[#allocation3] sm:$0xc0]
  %s1928 = scalar_lea.vmem %s2, 256
  %v1929 = vld [vmem:[%s1928] sm:$0xf]
  %v1930 = vld [vmem:[%s1928 + $0x4] sm:$0xf]
  %v1931 = vld [vmem:[%s1928 + $0x8] sm:$0xf]
  %v1932 = vld [vmem:[%s1928 + $0xc] sm:$0xf]
  %v1933 = vld [vmem:[%s1928 + $0x10] sm:$0xf]
  %v1934 = vld [vmem:[%s1928 + $0x14] sm:$0xf]
  %v1935 = vld [vmem:[%s1928 + $0x18] sm:$0xf]
  %v1936 = vld [vmem:[%s1928 + $0x1c] sm:$0xf]
  %v1937 = vld [vmem:[%s1928 + $0x20] sm:$0xf]
  %v1938 = vld [vmem:[%s1928 + $0x24] sm:$0xf]
  %v1939 = vld [vmem:[%s1928 + $0x28] sm:$0xf]
  %v1940 = vld [vmem:[%s1928 + $0x2c] sm:$0xf]
  %v1941 = vld [vmem:[%s1928 + $0x30] sm:$0xf]
  %v1942 = vld [vmem:[%s1928 + $0x34] sm:$0xf]
  %v1943 = vld [vmem:[%s1928 + $0x38] sm:$0xf]
  %v1944 = vld [vmem:[%s1928 + $0x3c] sm:$0xf]
  %vm1953 = vcmask 1041408
  %v1954 = vrot.slane %v1927, 6
  %v1955 = vrot.slane %v1676, 6
  %v1956 = vsel %vm1953, %v1954, %v1955
  %v1957 = vrot.slane %v1677, 6
  %v1958 = vsel %vm1953, %v1955, %v1957
  %v1959 = vrot.slane %v1678, 6
  %v1960 = vsel %vm1953, %v1957, %v1959
  %v1961 = vrot.slane %v1679, 6
  %v1962 = vsel %vm1953, %v1959, %v1961
  %v1963 = vrot.slane %v1680, 6
  %v1964 = vsel %vm1953, %v1961, %v1963
  %v1965 = vrot.slane %v1681, 6
  %v1966 = vsel %vm1953, %v1963, %v1965
  %v1967 = vrot.slane %v1682, 6
  %v1968 = vsel %vm1953, %v1965, %v1967
  %v1992 = vunpack.c.l.b16 %v1929
  %v1993 = vunpack.c.l.b16 %v1930
  %v1994 = vunpack.c.l.b16 %v1931
  %v1995 = vunpack.c.l.b16 %v1932
  %v1996 = vunpack.c.l.b16 %v1933
  %v1997 = vunpack.c.l.b16 %v1934
  %v1998 = vunpack.c.l.b16 %v1935
  %v1999 = vunpack.c.l.b16 %v1936
  %v2000 = vunpack.c.l.b16 %v1937
  %v2001 = vunpack.c.l.b16 %v1938
  %v2002 = vunpack.c.l.b16 %v1939
  %v2003 = vunpack.c.l.b16 %v1940
  %v2004 = vunpack.c.l.b16 %v1941
  %v2005 = vunpack.c.l.b16 %v1942
  %v2006 = vunpack.c.l.b16 %v1943
  %v2007 = vunpack.c.l.b16 %v1944
  %v2008 = vpack.c.b16 %v1993, %v1992
  %v2009 = vpack.c.b16 %v1995, %v1994
  %v2010 = vpack.c.b16 %v1997, %v1996
  %v2011 = vpack.c.b16 %v1999, %v1998
  %v2012 = vpack.c.b16 %v2001, %v2000
  %v2013 = vpack.c.b16 %v2003, %v2002
  %v2014 = vpack.c.b16 %v2005, %v2004
  %v2015 = vpack.c.b16 %v2007, %v2006
  %2024 = vmatprep.subr.bf16.mxu0 0
  %2025 = vmatpush1.bf16.msra.mxu0 %v2008
  %2026 = vmatprep.subr.bf16.mxu0 0
  %2027 = vmatpush1.bf16.msra.mxu0 %v2009
  %2028 = vmatprep.subr.bf16.mxu0 0
  %2029 = vmatpush1.bf16.msra.mxu0 %v2010
  %2030 = vmatprep.subr.bf16.mxu0 0
  %2031 = vmatpush1.bf16.msra.mxu0 %v2011
  %2032 = vmatprep.subr.bf16.mxu0 0
  %2033 = vmatpush1.bf16.msra.mxu0 %v2012
  %2034 = vmatprep.subr.bf16.mxu0 0
  %2035 = vmatpush1.bf16.msra.mxu0 %v2013
  %2036 = vmatprep.subr.bf16.mxu0 0
  %2037 = vmatpush1.bf16.msra.mxu0 %v2014
  %2038 = vmatprep.subr.bf16.mxu0 0
  %2039 = vmatpush1.bf16.msra.mxu0 %v2015
  %2040 = vmatprep.subr.bf16.mxu0 0
  %2041 = vmatpush1.bf16.msra.mxu0 0
  %2042 = vmatprep.subr.bf16.mxu0 0
  %2043 = vmatpush1.bf16.msra.mxu0 0
  %2044 = vmatprep.subr.bf16.mxu0 0
  %2045 = vmatpush1.bf16.msra.mxu0 0
  %2046 = vmatprep.subr.bf16.mxu0 0
  %2047 = vmatpush1.bf16.msra.mxu0 0
  %2048 = vmatprep.subr.bf16.mxu0 0
  %2049 = vmatpush1.bf16.msra.mxu0 0
  %2050 = vmatprep.subr.bf16.mxu0 0
  %2051 = vmatpush1.bf16.msra.mxu0 0
  %2052 = vmatprep.subr.bf16.mxu0 0
  %2053 = vmatpush1.bf16.msra.mxu0 0
  %2054 = vmatprep.subr.bf16.mxu0 0
  %2055 = vmatpush1.bf16.msra.mxu0 0
  %2056 = vmatprep.mubr.bf16.mxu0 0
  %2057 = vmatmul.mubr.bf16.gmra.mrb[0].mxu0 %v1956
  %v2058 = vpop.f32.mrb[0].mxu0
  %v2059 = vadd.f32 0.0, %v2058
  %v2060 = vpop.f32.mrb[0].mxu0
  %v2061 = vpop.f32.mrb[0].mxu0
  %v2062 = vadd.f32 0.0, %v2061
  %v2063 = vpop.f32.mrb[0].mxu0
  %2064 = vmatprep.mubr.bf16.mxu0 0
  %2065 = vmatmul.mubr.bf16.gmra.mrb[0].mxu0 %v1958
  %v2066 = vpop.f32.mrb[0].mxu0
  %v2067 = vadd.f32 0.0, %v2066
  %v2068 = vpop.f32.mrb[0].mxu0
  %v2069 = vpop.f32.mrb[0].mxu0
  %v2070 = vadd.f32 0.0, %v2069
  %v2071 = vpop.f32.mrb[0].mxu0
  %2072 = vmatprep.mubr.bf16.mxu0 0
  %2073 = vmatmul.mubr.bf16.gmra.mrb[0].mxu0 %v1960
  %v2074 = vpop.f32.mrb[0].mxu0
  %v2075 = vadd.f32 0.0, %v2074
  %v2076 = vpop.f32.mrb[0].mxu0
  %v2077 = vpop.f32.mrb[0].mxu0
  %v2078 = vadd.f32 0.0, %v2077
  %v2079 = vpop.f32.mrb[0].mxu0
  %2080 = vmatprep.mubr.bf16.mxu0 0
  %2081 = vmatmul.mubr.bf16.gmra.mrb[0].mxu0 %v1962
  %v2082 = vpop.f32.mrb[0].mxu0
  %v2083 = vadd.f32 0.0, %v2082
  %v2084 = vpop.f32.mrb[0].mxu0
  %v2085 = vpop.f32.mrb[0].mxu0
  %v2086 = vadd.f32 0.0, %v2085
  %v2087 = vpop.f32.mrb[0].mxu0
  %2088 = vmatprep.mubr.bf16.mxu0 0
  %2089 = vmatmul.mubr.bf16.gmra.mrb[0].mxu0 %v1964
  %v2090 = vpop.f32.mrb[0].mxu0
  %v2091 = vadd.f32 0.0, %v2090
  %v2092 = vpop.f32.mrb[0].mxu0
  %v2093 = vpop.f32.mrb[0].mxu0
  %v2094 = vadd.f32 0.0, %v2093
  %v2095 = vpop.f32.mrb[0].mxu0
  %2096 = vmatprep.mubr.bf16.mxu0 0
  %2097 = vmatmul.mubr.bf16.gmra.mrb[0].mxu0 %v1966
  %v2098 = vpop.f32.mrb[0].mxu0
  %v2099 = vadd.f32 0.0, %v2098
  %v2100 = vpop.f32.mrb[0].mxu0
  %v2101 = vpop.f32.mrb[0].mxu0
  %v2102 = vadd.f32 0.0, %v2101
  %v2103 = vpop.f32.mrb[0].mxu0
  %2104 = vmatprep.mubr.bf16.mxu0 0
  %2105 = vmatmul.mubr.bf16.gmra.mrb[0].mxu0 %v1968
  %v2106 = vpop.f32.mrb[0].mxu0
  %v2107 = vadd.f32 0.0, %v2106
  %v2108 = vpop.f32.mrb[0].mxu0
  %v2109 = vpop.f32.mrb[0].mxu0
  %v2110 = vpop.f32.mrb[0].mxu0
  %2111 = vdwg.mxu0
  %v2112 = vadd.f32 %v1914, %v2059
  %v2113 = vadd.f32 %v1915, %v2062
  %v2114 = vadd.f32 %v1916, %v2067
  %v2115 = vadd.f32 %v1917, %v2070
  %v2116 = vadd.f32 %v1918, %v2075
  %v2117 = vadd.f32 %v1919, %v2078
  %v2118 = vadd.f32 %v1920, %v2083
  %v2119 = vadd.f32 %v1921, %v2086
  %v2120 = vadd.f32 %v1922, %v2091
  %v2121 = vadd.f32 %v1923, %v2094
  %v2122 = vadd.f32 %v1924, %v2099
  %v2123 = vadd.f32 %v1925, %v2102
  %v2124 = vadd.f32 %v1926, %v2107
  %v2125 = vld [vmem:[#allocation3 + $0x38] sm:$0x7]
  %s2126 = scalar_lea.vmem %s2, 320
  %v2127 = vld [vmem:[%s2126] sm:$0xf]
  %v2128 = vld [vmem:[%s2126 + $0x4] sm:$0xf]
  %v2129 = vld [vmem:[%s2126 + $0x8] sm:$0xf]
  %v2130 = vld [vmem:[%s2126 + $0xc] sm:$0xf]
  %v2131 = vld [vmem:[%s2126 + $0x10] sm:$0xf]
  %v2132 = vld [vmem:[%s2126 + $0x14] sm:$0xf]
  %v2133 = vld [vmem:[%s2126 + $0x18] sm:$0xf]
  %v2134 = vld [vmem:[%s2126 + $0x1c] sm:$0xf]
  %v2135 = vld [vmem:[%s2126 + $0x20] sm:$0xf]
  %v2136 = vld [vmem:[%s2126 + $0x24] sm:$0xf]
  %v2137 = vld [vmem:[%s2126 + $0x28] sm:$0xf]
  %v2138 = vld [vmem:[%s2126 + $0x2c] sm:$0xf]
  %v2139 = vld [vmem:[%s2126 + $0x30] sm:$0xf]
  %v2140 = vld [vmem:[%s2126 + $0x34] sm:$0xf]
  %v2141 = vld [vmem:[%s2126 + $0x38] sm:$0xf]
  %v2142 = vld [vmem:[%s2126 + $0x3c] sm:$0xf]
  %v2144 = vshrl.u32 %v1927, 16
  %v2146 = vrot.slane %v2144, 6
  %v2147 = vshll.u32 %v1927, 16
  %v2149 = vrot.slane %v2147, 7
  %v2150 = vor.u32 %v2146, %v2149
  %v2151 = vrot.slane %v1709, 6
  %v2152 = vrot.slane %v1712, 7
  %v2153 = vor.u32 %v2151, %v2152
  %v2154 = vsel %vm193, %v2150, %v2153
  %v2155 = vrot.slane %v1718, 6
  %v2156 = vrot.slane %v1721, 7
  %v2157 = vor.u32 %v2155, %v2156
  %v2158 = vsel %vm193, %v2153, %v2157
  %v2159 = vrot.slane %v1727, 6
  %v2160 = vrot.slane %v1730, 7
  %v2161 = vor.u32 %v2159, %v2160
  %v2162 = vsel %vm193, %v2157, %v2161
  %v2163 = vrot.slane %v1736, 6
  %v2164 = vrot.slane %v1739, 7
  %v2165 = vor.u32 %v2163, %v2164
  %v2166 = vsel %vm193, %v2161, %v2165
  %v2167 = vrot.slane %v1745, 6
  %v2168 = vrot.slane %v1748, 7
  %v2169 = vor.u32 %v2167, %v2168
  %v2170 = vsel %vm193, %v2165, %v2169
  %v2171 = vrot.slane %v1754, 6
  %v2172 = vrot.slane %v1757, 7
  %v2173 = vor.u32 %v2171, %v2172
  %v2174 = vsel %vm193, %v2169, %v2173
  %v2176 = vshrl.u32 %v2125, 16
  %v2178 = vrot.slane %v2176, 6
  %v2179 = vshll.u32 %v2125, 16
  %v2181 = vrot.slane %v2179, 7
  %v2182 = vor.u32 %v2178, %v2181
  %v2183 = vsel %vm193, %v2173, %v2182
  %v2207 = vunpack.c.l.b16 %v2127
  %v2208 = vunpack.c.l.b16 %v2128
  %v2209 = vunpack.c.l.b16 %v2129
  %v2210 = vunpack.c.l.b16 %v2130
  %v2211 = vunpack.c.l.b16 %v2131
  %v2212 = vunpack.c.l.b16 %v2132
  %v2213 = vunpack.c.l.b16 %v2133
  %v2214 = vunpack.c.l.b16 %v2134
  %v2215 = vunpack.c.l.b16 %v2135
  %v2216 = vunpack.c.l.b16 %v2136
  %v2217 = vunpack.c.l.b16 %v2137
  %v2218 = vunpack.c.l.b16 %v2138
  %v2219 = vunpack.c.l.b16 %v2139
  %v2220 = vunpack.c.l.b16 %v2140
  %v2221 = vunpack.c.l.b16 %v2141
  %v2222 = vunpack.c.l.b16 %v2142
  %v2223 = vpack.c.b16 %v2208, %v2207
  %v2224 = vpack.c.b16 %v2210, %v2209
  %v2225 = vpack.c.b16 %v2212, %v2211
  %v2226 = vpack.c.b16 %v2214, %v2213
  %v2227 = vpack.c.b16 %v2216, %v2215
  %v2228 = vpack.c.b16 %v2218, %v2217
  %v2229 = vpack.c.b16 %v2220, %v2219
  %v2230 = vpack.c.b16 %v2222, %v2221
  %2239 = vmatprep.subr.bf16.mxu0 0
  %2240 = vmatpush1.bf16.msra.mxu0 %v2223
  %2241 = vmatprep.subr.bf16.mxu0 0
  %2242 = vmatpush1.bf16.msra.mxu0 %v2224
  %2243 = vmatprep.subr.bf16.mxu0 0
  %2244 = vmatpush1.bf16.msra.mxu0 %v2225
  %2245 = vmatprep.subr.bf16.mxu0 0
  %2246 = vmatpush1.bf16.msra.mxu0 %v2226
  %2247 = vmatprep.subr.bf16.mxu0 0
  %2248 = vmatpush1.bf16.msra.mxu0 %v2227
  %2249 = vmatprep.subr.bf16.mxu0 0
  %2250 = vmatpush1.bf16.msra.mxu0 %v2228
  %2251 = vmatprep.subr.bf16.mxu0 0
  %2252 = vmatpush1.bf16.msra.mxu0 %v2229
  %2253 = vmatprep.subr.bf16.mxu0 0
  %2254 = vmatpush1.bf16.msra.mxu0 %v2230
  %2255 = vmatprep.subr.bf16.mxu0 0
  %2256 = vmatpush1.bf16.msra.mxu0 0
  %2257 = vmatprep.subr.bf16.mxu0 0
  %2258 = vmatpush1.bf16.msra.mxu0 0
  %2259 = vmatprep.subr.bf16.mxu0 0
  %2260 = vmatpush1.bf16.msra.mxu0 0
  %2261 = vmatprep.subr.bf16.mxu0 0
  %2262 = vmatpush1.bf16.msra.mxu0 0
  %2263 = vmatprep.subr.bf16.mxu0 0
  %2264 = vmatpush1.bf16.msra.mxu0 0
  %2265 = vmatprep.subr.bf16.mxu0 0
  %2266 = vmatpush1.bf16.msra.mxu0 0
  %2267 = vmatprep.subr.bf16.mxu0 0
  %2268 = vmatpush1.bf16.msra.mxu0 0
  %2269 = vmatprep.subr.bf16.mxu0 0
  %2270 = vmatpush1.bf16.msra.mxu0 0
  %2271 = vmatprep.mubr.bf16.mxu0 0
  %2272 = vmatmul.mubr.bf16.gmra.mrb[0].mxu0 %v2154
  %v2273 = vpop.f32.mrb[0].mxu0
  %v2274 = vadd.f32 0.0, %v2273
  %v2275 = vpop.f32.mrb[0].mxu0
  %v2276 = vpop.f32.mrb[0].mxu0
  %v2277 = vadd.f32 0.0, %v2276
  %v2278 = vpop.f32.mrb[0].mxu0
  %2279 = vmatprep.mubr.bf16.mxu0 0
  %2280 = vmatmul.mubr.bf16.gmra.mrb[0].mxu0 %v2158
  %v2281 = vpop.f32.mrb[0].mxu0
  %v2282 = vadd.f32 0.0, %v2281
  %v2283 = vpop.f32.mrb[0].mxu0
  %v2284 = vpop.f32.mrb[0].mxu0
  %v2285 = vadd.f32 0.0, %v2284
  %v2286 = vpop.f32.mrb[0].mxu0
  %2287 = vmatprep.mubr.bf16.mxu0 0
  %2288 = vmatmul.mubr.bf16.gmra.mrb[0].mxu0 %v2162
  %v2289 = vpop.f32.mrb[0].mxu0
  %v2290 = vadd.f32 0.0, %v2289
  %v2291 = vpop.f32.mrb[0].mxu0
  %v2292 = vpop.f32.mrb[0].mxu0
  %v2293 = vadd.f32 0.0, %v2292
  %v2294 = vpop.f32.mrb[0].mxu0
  %2295 = vmatprep.mubr.bf16.mxu0 0
  %2296 = vmatmul.mubr.bf16.gmra.mrb[0].mxu0 %v2166
  %v2297 = vpop.f32.mrb[0].mxu0
  %v2298 = vadd.f32 0.0, %v2297
  %v2299 = vpop.f32.mrb[0].mxu0
  %v2300 = vpop.f32.mrb[0].mxu0
  %v2301 = vadd.f32 0.0, %v2300
  %v2302 = vpop.f32.mrb[0].mxu0
  %2303 = vmatprep.mubr.bf16.mxu0 0
  %2304 = vmatmul.mubr.bf16.gmra.mrb[0].mxu0 %v2170
  %v2305 = vpop.f32.mrb[0].mxu0
  %v2306 = vadd.f32 0.0, %v2305
  %v2307 = vpop.f32.mrb[0].mxu0
  %v2308 = vpop.f32.mrb[0].mxu0
  %v2309 = vadd.f32 0.0, %v2308
  %v2310 = vpop.f32.mrb[0].mxu0
  %2311 = vmatprep.mubr.bf16.mxu0 0
  %2312 = vmatmul.mubr.bf16.gmra.mrb[0].mxu0 %v2174
  %v2313 = vpop.f32.mrb[0].mxu0
  %v2314 = vadd.f32 0.0, %v2313
  %v2315 = vpop.f32.mrb[0].mxu0
  %v2316 = vpop.f32.mrb[0].mxu0
  %v2317 = vadd.f32 0.0, %v2316
  %v2318 = vpop.f32.mrb[0].mxu0
  %2319 = vmatprep.mubr.bf16.mxu0 0
  %2320 = vmatmul.mubr.bf16.gmra.mrb[0].mxu0 %v2183
  %v2321 = vpop.f32.mrb[0].mxu0
  %v2322 = vadd.f32 0.0, %v2321
  %v2323 = vpop.f32.mrb[0].mxu0
  %v2324 = vpop.f32.mrb[0].mxu0
  %v2325 = vpop.f32.mrb[0].mxu0
  %2326 = vdwg.mxu0
  %v2327 = vadd.f32 %v2112, %v2274
  %v2328 = vadd.f32 %v2113, %v2277
  %v2329 = vadd.f32 %v2114, %v2282
  %v2330 = vadd.f32 %v2115, %v2285
  %v2331 = vadd.f32 %v2116, %v2290
  %v2332 = vadd.f32 %v2117, %v2293
  %v2333 = vadd.f32 %v2118, %v2298
  %v2334 = vadd.f32 %v2119, %v2301
  %v2335 = vadd.f32 %v2120, %v2306
  %v2336 = vadd.f32 %v2121, %v2309
  %v2337 = vadd.f32 %v2122, %v2314
  %v2338 = vadd.f32 %v2123, %v2317
  %v2339 = vadd.f32 %v2124, %v2322
  %v2340 = vld [vmem:[#allocation3 + $0x8] sm:$0xf8]
  %v2341 = vld [vmem:[#allocation3 + $0x38] sm:$0x7f]
  %s2342 = scalar_lea.vmem %s2, 384
  %v2343 = vld [vmem:[%s2342] sm:$0xf]
  %v2344 = vld [vmem:[%s2342 + $0x4] sm:$0xf]
  %v2345 = vld [vmem:[%s2342 + $0x8] sm:$0xf]
  %v2346 = vld [vmem:[%s2342 + $0xc] sm:$0xf]
  %v2347 = vld [vmem:[%s2342 + $0x10] sm:$0xf]
  %v2348 = vld [vmem:[%s2342 + $0x14] sm:$0xf]
  %v2349 = vld [vmem:[%s2342 + $0x18] sm:$0xf]
  %v2350 = vld [vmem:[%s2342 + $0x1c] sm:$0xf]
  %v2351 = vld [vmem:[%s2342 + $0x20] sm:$0xf]
  %v2352 = vld [vmem:[%s2342 + $0x24] sm:$0xf]
  %v2353 = vld [vmem:[%s2342 + $0x28] sm:$0xf]
  %v2354 = vld [vmem:[%s2342 + $0x2c] sm:$0xf]
  %v2355 = vld [vmem:[%s2342 + $0x30] sm:$0xf]
  %v2356 = vld [vmem:[%s2342 + $0x34] sm:$0xf]
  %v2357 = vld [vmem:[%s2342 + $0x38] sm:$0xf]
  %v2358 = vld [vmem:[%s2342 + $0x3c] sm:$0xf]
  %vm2361 = vcmask 1044480
  %v2362 = vrot.slane %v2340, 3
  %v2363 = vrot.slane %v1677, 3
  %v2364 = vsel %vm2361, %v2362, %v2363
  %v2365 = vrot.slane %v1678, 3
  %v2366 = vsel %vm2361, %v2363, %v2365
  %v2367 = vrot.slane %v1679, 3
  %v2368 = vsel %vm2361, %v2365, %v2367
  %v2369 = vrot.slane %v1680, 3
  %v2370 = vsel %vm2361, %v2367, %v2369
  %v2371 = vrot.slane %v1681, 3
  %v2372 = vsel %vm2361, %v2369, %v2371
  %v2373 = vrot.slane %v2341, 3
  %v2374 = vsel %vm2361, %v2371, %v2373
  %v2398 = vunpack.c.l.b16 %v2343
  %v2399 = vunpack.c.l.b16 %v2344
  %v2400 = vunpack.c.l.b16 %v2345
  %v2401 = vunpack.c.l.b16 %v2346
  %v2402 = vunpack.c.l.b16 %v2347
  %v2403 = vunpack.c.l.b16 %v2348
  %v2404 = vunpack.c.l.b16 %v2349
  %v2405 = vunpack.c.l.b16 %v2350
  %v2406 = vunpack.c.l.b16 %v2351
  %v2407 = vunpack.c.l.b16 %v2352
  %v2408 = vunpack.c.l.b16 %v2353
  %v2409 = vunpack.c.l.b16 %v2354
  %v2410 = vunpack.c.l.b16 %v2355
  %v2411 = vunpack.c.l.b16 %v2356
  %v2412 = vunpack.c.l.b16 %v2357
  %v2413 = vunpack.c.l.b16 %v2358
  %v2414 = vpack.c.b16 %v2399, %v2398
  %v2415 = vpack.c.b16 %v2401, %v2400
  %v2416 = vpack.c.b16 %v2403, %v2402
  %v2417 = vpack.c.b16 %v2405, %v2404
  %v2418 = vpack.c.b16 %v2407, %v2406
  %v2419 = vpack.c.b16 %v2409, %v2408
  %v2420 = vpack.c.b16 %v2411, %v2410
  %v2421 = vpack.c.b16 %v2413, %v2412
  %2430 = vmatprep.subr.bf16.mxu0 0
  %2431 = vmatpush1.bf16.msra.mxu0 %v2414
  %2432 = vmatprep.subr.bf16.mxu0 0
  %2433 = vmatpush1.bf16.msra.mxu0 %v2415
  %2434 = vmatprep.subr.bf16.mxu0 0
  %2435 = vmatpush1.bf16.msra.mxu0 %v2416
  %2436 = vmatprep.subr.bf16.mxu0 0
  %2437 = vmatpush1.bf16.msra.mxu0 %v2417
  %2438 = vmatprep.subr.bf16.mxu0 0
  %2439 = vmatpush1.bf16.msra.mxu0 %v2418
  %2440 = vmatprep.subr.bf16.mxu0 0
  %2441 = vmatpush1.bf16.msra.mxu0 %v2419
  %2442 = vmatprep.subr.bf16.mxu0 0
  %2443 = vmatpush1.bf16.msra.mxu0 %v2420
  %2444 = vmatprep.subr.bf16.mxu0 0
  %2445 = vmatpush1.bf16.msra.mxu0 %v2421
  %2446 = vmatprep.subr.bf16.mxu0 0
  %2447 = vmatpush1.bf16.msra.mxu0 0
  %2448 = vmatprep.subr.bf16.mxu0 0
  %2449 = vmatpush1.bf16.msra.mxu0 0
  %2450 = vmatprep.subr.bf16.mxu0 0
  %2451 = vmatpush1.bf16.msra.mxu0 0
  %2452 = vmatprep.subr.bf16.mxu0 0
  %2453 = vmatpush1.bf16.msra.mxu0 0
  %2454 = vmatprep.subr.bf16.mxu0 0
  %2455 = vmatpush1.bf16.msra.mxu0 0
  %2456 = vmatprep.subr.bf16.mxu0 0
  %2457 = vmatpush1.bf16.msra.mxu0 0
  %2458 = vmatprep.subr.bf16.mxu0 0
  %2459 = vmatpush1.bf16.msra.mxu0 0
  %2460 = vmatprep.subr.bf16.mxu0 0
  %2461 = vmatpush1.bf16.msra.mxu0 0
  %2462 = vmatprep.mubr.bf16.mxu0 0
  %2463 = vmatmul.mubr.bf16.gmra.mrb[0].mxu0 %v2364
  %v2464 = vpop.f32.mrb[0].mxu0
  %v2465 = vadd.f32 0.0, %v2464
  %v2466 = vpop.f32.mrb[0].mxu0
  %v2467 = vpop.f32.mrb[0].mxu0
  %v2468 = vadd.f32 0.0, %v2467
  %v2469 = vpop.f32.mrb[0].mxu0
  %2470 = vmatprep.mubr.bf16.mxu0 0
  %2471 = vmatmul.mubr.bf16.gmra.mrb[0].mxu0 %v2366
  %v2472 = vpop.f32.mrb[0].mxu0
  %v2473 = vadd.f32 0.0, %v2472
  %v2474 = vpop.f32.mrb[0].mxu0
  %v2475 = vpop.f32.mrb[0].mxu0
  %v2476 = vadd.f32 0.0, %v2475
  %v2477 = vpop.f32.mrb[0].mxu0
  %2478 = vmatprep.mubr.bf16.mxu0 0
  %2479 = vmatmul.mubr.bf16.gmra.mrb[0].mxu0 %v2368
  %v2480 = vpop.f32.mrb[0].mxu0
  %v2481 = vadd.f32 0.0, %v2480
  %v2482 = vpop.f32.mrb[0].mxu0
  %v2483 = vpop.f32.mrb[0].mxu0
  %v2484 = vadd.f32 0.0, %v2483
  %v2485 = vpop.f32.mrb[0].mxu0
  %2486 = vmatprep.mubr.bf16.mxu0 0
  %2487 = vmatmul.mubr.bf16.gmra.mrb[0].mxu0 %v2370
  %v2488 = vpop.f32.mrb[0].mxu0
  %v2489 = vadd.f32 0.0, %v2488
  %v2490 = vpop.f32.mrb[0].mxu0
  %v2491 = vpop.f32.mrb[0].mxu0
  %v2492 = vadd.f32 0.0, %v2491
  %v2493 = vpop.f32.mrb[0].mxu0
  %2494 = vmatprep.mubr.bf16.mxu0 0
  %2495 = vmatmul.mubr.bf16.gmra.mrb[0].mxu0 %v2372
  %v2496 = vpop.f32.mrb[0].mxu0
  %v2497 = vadd.f32 0.0, %v2496
  %v2498 = vpop.f32.mrb[0].mxu0
  %v2499 = vpop.f32.mrb[0].mxu0
  %v2500 = vadd.f32 0.0, %v2499
  %v2501 = vpop.f32.mrb[0].mxu0
  %2502 = vmatprep.mubr.bf16.mxu0 0
  %2503 = vmatmul.mubr.bf16.gmra.mrb[0].mxu0 %v2374
  %v2504 = vpop.f32.mrb[0].mxu0
  %v2505 = vadd.f32 0.0, %v2504
  %v2506 = vpop.f32.mrb[0].mxu0
  %v2507 = vpop.f32.mrb[0].mxu0
  %v2508 = vadd.f32 0.0, %v2507
  %v2509 = vpop.f32.mrb[0].mxu0
  %2510 = vmatprep.mubr.bf16.mxu0 0
  %2511 = vmatmul.mubr.bf16.gmra.mrb[0].mxu0 %v2373
  %v2512 = vpop.f32.mrb[0].mxu0
  %v2513 = vadd.f32 0.0, %v2512
  %v2514 = vpop.f32.mrb[0].mxu0
  %v2515 = vpop.f32.mrb[0].mxu0
  %v2516 = vpop.f32.mrb[0].mxu0
  %2517 = vdwg.mxu0
  %v2518 = vadd.f32 %v2327, %v2465
  %v2519 = vadd.f32 %v2328, %v2468
  %v2520 = vadd.f32 %v2329, %v2473
  %v2521 = vadd.f32 %v2330, %v2476
  %v2522 = vadd.f32 %v2331, %v2481
  %v2523 = vadd.f32 %v2332, %v2484
  %v2524 = vadd.f32 %v2333, %v2489
  %v2525 = vadd.f32 %v2334, %v2492
  %v2526 = vadd.f32 %v2335, %v2497
  %v2527 = vadd.f32 %v2336, %v2500
  %v2528 = vadd.f32 %v2337, %v2505
  %v2529 = vadd.f32 %v2338, %v2508
  %v2530 = vadd.f32 %v2339, %v2513
  %v2531 = vld [vmem:[#allocation3 + $0x38] sm:$0xff]
  %s2532 = scalar_lea.vmem %s2, 448
  %v2533 = vld [vmem:[%s2532] sm:$0xf]
  %v2534 = vld [vmem:[%s2532 + $0x4] sm:$0xf]
  %v2535 = vld [vmem:[%s2532 + $0x8] sm:$0xf]
  %v2536 = vld [vmem:[%s2532 + $0xc] sm:$0xf]
  %v2537 = vld [vmem:[%s2532 + $0x10] sm:$0xf]
  %v2538 = vld [vmem:[%s2532 + $0x14] sm:$0xf]
  %v2539 = vld [vmem:[%s2532 + $0x18] sm:$0xf]
  %v2540 = vld [vmem:[%s2532 + $0x1c] sm:$0xf]
  %v2541 = vld [vmem:[%s2532 + $0x20] sm:$0xf]
  %v2542 = vld [vmem:[%s2532 + $0x24] sm:$0xf]
  %v2543 = vld [vmem:[%s2532 + $0x28] sm:$0xf]
  %v2544 = vld [vmem:[%s2532 + $0x2c] sm:$0xf]
  %v2545 = vld [vmem:[%s2532 + $0x30] sm:$0xf]
  %v2546 = vld [vmem:[%s2532 + $0x34] sm:$0xf]
  %v2547 = vld [vmem:[%s2532 + $0x38] sm:$0xf]
  %v2548 = vld [vmem:[%s2532 + $0x3c] sm:$0xf]
  %vm2549 = vsmask.f32 4352
  %v2551 = vshrl.u32 %v2340, 16
  %v2553 = vrot.slane %v2551, 3
  %v2554 = vshll.u32 %v2340, 16
  %v2556 = vrot.slane %v2554, 4
  %v2557 = vor.u32 %v2553, %v2556
  %v2558 = vrot.slane %v1718, 3
  %v2559 = vrot.slane %v1721, 4
  %v2560 = vor.u32 %v2558, %v2559
  %v2561 = vsel %vm2549, %v2557, %v2560
  %v2562 = vrot.slane %v1727, 3
  %v2563 = vrot.slane %v1730, 4
  %v2564 = vor.u32 %v2562, %v2563
  %v2565 = vsel %vm2549, %v2560, %v2564
  %v2566 = vrot.slane %v1736, 3
  %v2567 = vrot.slane %v1739, 4
  %v2568 = vor.u32 %v2566, %v2567
  %v2569 = vsel %vm2549, %v2564, %v2568
  %v2570 = vrot.slane %v1745, 3
  %v2571 = vrot.slane %v1748, 4
  %v2572 = vor.u32 %v2570, %v2571
  %v2573 = vsel %vm2549, %v2568, %v2572
  %v2574 = vrot.slane %v1754, 3
  %v2575 = vrot.slane %v1757, 4
  %v2576 = vor.u32 %v2574, %v2575
  %v2577 = vsel %vm2549, %v2572, %v2576
  %v2579 = vshrl.u32 %v2531, 16
  %v2581 = vrot.slane %v2579, 3
  %v2582 = vshll.u32 %v2531, 16
  %v2584 = vrot.slane %v2582, 4
  %v2585 = vor.u32 %v2581, %v2584
  %v2586 = vsel %vm2549, %v2576, %v2585
  %v2610 = vunpack.c.l.b16 %v2533
  %v2611 = vunpack.c.l.b16 %v2534
  %v2612 = vunpack.c.l.b16 %v2535
  %v2613 = vunpack.c.l.b16 %v2536
  %v2614 = vunpack.c.l.b16 %v2537
  %v2615 = vunpack.c.l.b16 %v2538
  %v2616 = vunpack.c.l.b16 %v2539
  %v2617 = vunpack.c.l.b16 %v2540
  %v2618 = vunpack.c.l.b16 %v2541
  %v2619 = vunpack.c.l.b16 %v2542
  %v2620 = vunpack.c.l.b16 %v2543
  %v2621 = vunpack.c.l.b16 %v2544
  %v2622 = vunpack.c.l.b16 %v2545
  %v2623 = vunpack.c.l.b16 %v2546
  %v2624 = vunpack.c.l.b16 %v2547
  %v2625 = vunpack.c.l.b16 %v2548
  %v2626 = vpack.c.b16 %v2611, %v2610
  %v2627 = vpack.c.b16 %v2613, %v2612
  %v2628 = vpack.c.b16 %v2615, %v2614
  %v2629 = vpack.c.b16 %v2617, %v2616
  %v2630 = vpack.c.b16 %v2619, %v2618
  %v2631 = vpack.c.b16 %v2621, %v2620
  %v2632 = vpack.c.b16 %v2623, %v2622
  %v2633 = vpack.c.b16 %v2625, %v2624
  %2642 = vmatprep.subr.bf16.mxu0 0
  %2643 = vmatpush1.bf16.msra.mxu0 %v2626
  %2644 = vmatprep.subr.bf16.mxu0 0
  %2645 = vmatpush1.bf16.msra.mxu0 %v2627
  %2646 = vmatprep.subr.bf16.mxu0 0
  %2647 = vmatpush1.bf16.msra.mxu0 %v2628
  %2648 = vmatprep.subr.bf16.mxu0 0
  %2649 = vmatpush1.bf16.msra.mxu0 %v2629
  %2650 = vmatprep.subr.bf16.mxu0 0
  %2651 = vmatpush1.bf16.msra.mxu0 %v2630
  %2652 = vmatprep.subr.bf16.mxu0 0
  %2653 = vmatpush1.bf16.msra.mxu0 %v2631
  %2654 = vmatprep.subr.bf16.mxu0 0
  %2655 = vmatpush1.bf16.msra.mxu0 %v2632
  %2656 = vmatprep.subr.bf16.mxu0 0
  %2657 = vmatpush1.bf16.msra.mxu0 %v2633
  %2658 = vmatprep.subr.bf16.mxu0 0
  %2659 = vmatpush1.bf16.msra.mxu0 0
  %2660 = vmatprep.subr.bf16.mxu0 0
  %2661 = vmatpush1.bf16.msra.mxu0 0
  %2662 = vmatprep.subr.bf16.mxu0 0
  %2663 = vmatpush1.bf16.msra.mxu0 0
  %2664 = vmatprep.subr.bf16.mxu0 0
  %2665 = vmatpush1.bf16.msra.mxu0 0
  %2666 = vmatprep.subr.bf16.mxu0 0
  %2667 = vmatpush1.bf16.msra.mxu0 0
  %2668 = vmatprep.subr.bf16.mxu0 0
  %2669 = vmatpush1.bf16.msra.mxu0 0
  %2670 = vmatprep.subr.bf16.mxu0 0
  %2671 = vmatpush1.bf16.msra.mxu0 0
  %2672 = vmatprep.subr.bf16.mxu0 0
  %2673 = vmatpush1.bf16.msra.mxu0 0
  %2674 = vmatprep.mubr.bf16.mxu0 0
  %2675 = vmatmul.mubr.bf16.gmra.mrb[0].mxu0 %v2561
  %v2676 = vpop.f32.mrb[0].mxu0
  %v2677 = vadd.f32 0.0, %v2676
  %v2678 = vpop.f32.mrb[0].mxu0
  %v2679 = vpop.f32.mrb[0].mxu0
  %v2680 = vadd.f32 0.0, %v2679
  %v2681 = vpop.f32.mrb[0].mxu0
  %2682 = vmatprep.mubr.bf16.mxu0 0
  %2683 = vmatmul.mubr.bf16.gmra.mrb[0].mxu0 %v2565
  %v2684 = vpop.f32.mrb[0].mxu0
  %v2685 = vadd.f32 0.0, %v2684
  %v2686 = vpop.f32.mrb[0].mxu0
  %v2687 = vpop.f32.mrb[0].mxu0
  %v2688 = vadd.f32 0.0, %v2687
  %v2689 = vpop.f32.mrb[0].mxu0
  %2690 = vmatprep.mubr.bf16.mxu0 0
  %2691 = vmatmul.mubr.bf16.gmra.mrb[0].mxu0 %v2569
  %v2692 = vpop.f32.mrb[0].mxu0
  %v2693 = vadd.f32 0.0, %v2692
  %v2694 = vpop.f32.mrb[0].mxu0
  %v2695 = vpop.f32.mrb[0].mxu0
  %v2696 = vadd.f32 0.0, %v2695
  %v2697 = vpop.f32.mrb[0].mxu0
  %2698 = vmatprep.mubr.bf16.mxu0 0
  %2699 = vmatmul.mubr.bf16.gmra.mrb[0].mxu0 %v2573
  %v2700 = vpop.f32.mrb[0].mxu0
  %v2701 = vadd.f32 0.0, %v2700
  %v2702 = vpop.f32.mrb[0].mxu0
  %v2703 = vpop.f32.mrb[0].mxu0
  %v2704 = vadd.f32 0.0, %v2703
  %v2705 = vpop.f32.mrb[0].mxu0
  %2706 = vmatprep.mubr.bf16.mxu0 0
  %2707 = vmatmul.mubr.bf16.gmra.mrb[0].mxu0 %v2577
  %v2708 = vpop.f32.mrb[0].mxu0
  %v2709 = vadd.f32 0.0, %v2708
  %v2710 = vpop.f32.mrb[0].mxu0
  %v2711 = vpop.f32.mrb[0].mxu0
  %v2712 = vadd.f32 0.0, %v2711
  %v2713 = vpop.f32.mrb[0].mxu0
  %2714 = vmatprep.mubr.bf16.mxu0 0
  %2715 = vmatmul.mubr.bf16.gmra.mrb[0].mxu0 %v2586
  %v2716 = vpop.f32.mrb[0].mxu0
  %v2717 = vadd.f32 0.0, %v2716
  %v2718 = vpop.f32.mrb[0].mxu0
  %v2719 = vpop.f32.mrb[0].mxu0
  %v2720 = vadd.f32 0.0, %v2719
  %v2721 = vpop.f32.mrb[0].mxu0
  %2722 = vmatprep.mubr.bf16.mxu0 0
  %2723 = vmatmul.mubr.bf16.gmra.mrb[0].mxu0 %v2585
  %v2724 = vpop.f32.mrb[0].mxu0
  %v2725 = vadd.f32 0.0, %v2724
  %v2726 = vpop.f32.mrb[0].mxu0
  %v2727 = vpop.f32.mrb[0].mxu0
  %v2728 = vpop.f32.mrb[0].mxu0
  %2729 = vdwg.mxu0
  %v2730 = vadd.f32 %v2518, %v2677
  %v2731 = vadd.f32 %v2519, %v2680
  %v2732 = vadd.f32 %v2520, %v2685
  %v2733 = vadd.f32 %v2521, %v2688
  %v2734 = vadd.f32 %v2522, %v2693
  %v2735 = vadd.f32 %v2523, %v2696
  %v2736 = vadd.f32 %v2524, %v2701
  %v2737 = vadd.f32 %v2525, %v2704
  %v2738 = vadd.f32 %v2526, %v2709
  %v2739 = vadd.f32 %v2527, %v2712
  %v2740 = vadd.f32 %v2528, %v2717
  %v2741 = vadd.f32 %v2529, %v2720
  %v2742 = vadd.f32 %v2530, %v2725
  %v2743 = vld [vmem:[#allocation3 + $0x8] sm:$0xf0]
  %s2744 = scalar_lea.vmem %s2, 512
  %v2745 = vld [vmem:[%s2744] sm:$0xf]
  %v2746 = vld [vmem:[%s2744 + $0x4] sm:$0xf]
  %v2747 = vld [vmem:[%s2744 + $0x8] sm:$0xf]
  %v2748 = vld [vmem:[%s2744 + $0xc] sm:$0xf]
  %v2749 = vld [vmem:[%s2744 + $0x10] sm:$0xf]
  %v2750 = vld [vmem:[%s2744 + $0x14] sm:$0xf]
  %v2751 = vld [vmem:[%s2744 + $0x18] sm:$0xf]
  %v2752 = vld [vmem:[%s2744 + $0x1c] sm:$0xf]
  %v2753 = vld [vmem:[%s2744 + $0x20] sm:$0xf]
  %v2754 = vld [vmem:[%s2744 + $0x24] sm:$0xf]
  %v2755 = vld [vmem:[%s2744 + $0x28] sm:$0xf]
  %v2756 = vld [vmem:[%s2744 + $0x2c] sm:$0xf]
  %v2757 = vld [vmem:[%s2744 + $0x30] sm:$0xf]
  %v2758 = vld [vmem:[%s2744 + $0x34] sm:$0xf]
  %v2759 = vld [vmem:[%s2744 + $0x38] sm:$0xf]
  %v2760 = vld [vmem:[%s2744 + $0x3c] sm:$0xf]
  %vm2763 = vcmask 1043456
  %v2764 = vrot.slane %v2743, 4
  %v2765 = vrot.slane %v1677, 4
  %v2766 = vsel %vm2763, %v2764, %v2765
  %v2767 = vrot.slane %v1678, 4
  %v2768 = vsel %vm2763, %v2765, %v2767
  %v2769 = vrot.slane %v1679, 4
  %v2770 = vsel %vm2763, %v2767, %v2769
  %v2771 = vrot.slane %v1680, 4
  %v2772 = vsel %vm2763, %v2769, %v2771
  %v2773 = vrot.slane %v1681, 4
  %v2774 = vsel %vm2763, %v2771, %v2773
  %v2775 = vrot.slane %v2531, 4
  %v2776 = vsel %vm2763, %v2773, %v2775
  %v2800 = vunpack.c.l.b16 %v2745
  %v2801 = vunpack.c.l.b16 %v2746
  %v2802 = vunpack.c.l.b16 %v2747
  %v2803 = vunpack.c.l.b16 %v2748
  %v2804 = vunpack.c.l.b16 %v2749
  %v2805 = vunpack.c.l.b16 %v2750
  %v2806 = vunpack.c.l.b16 %v2751
  %v2807 = vunpack.c.l.b16 %v2752
  %v2808 = vunpack.c.l.b16 %v2753
  %v2809 = vunpack.c.l.b16 %v2754
  %v2810 = vunpack.c.l.b16 %v2755
  %v2811 = vunpack.c.l.b16 %v2756
  %v2812 = vunpack.c.l.b16 %v2757
  %v2813 = vunpack.c.l.b16 %v2758
  %v2814 = vunpack.c.l.b16 %v2759
  %v2815 = vunpack.c.l.b16 %v2760
  %v2816 = vpack.c.b16 %v2801, %v2800
  %v2817 = vpack.c.b16 %v2803, %v2802
  %v2818 = vpack.c.b16 %v2805, %v2804
  %v2819 = vpack.c.b16 %v2807, %v2806
  %v2820 = vpack.c.b16 %v2809, %v2808
  %v2821 = vpack.c.b16 %v2811, %v2810
  %v2822 = vpack.c.b16 %v2813, %v2812
  %v2823 = vpack.c.b16 %v2815, %v2814
  %2832 = vmatprep.subr.bf16.mxu0 0
  %2833 = vmatpush1.bf16.msra.mxu0 %v2816
  %2834 = vmatprep.subr.bf16.mxu0 0
  %2835 = vmatpush1.bf16.msra.mxu0 %v2817
  %2836 = vmatprep.subr.bf16.mxu0 0
  %2837 = vmatpush1.bf16.msra.mxu0 %v2818
  %2838 = vmatprep.subr.bf16.mxu0 0
  %2839 = vmatpush1.bf16.msra.mxu0 %v2819
  %2840 = vmatprep.subr.bf16.mxu0 0
  %2841 = vmatpush1.bf16.msra.mxu0 %v2820
  %2842 = vmatprep.subr.bf16.mxu0 0
  %2843 = vmatpush1.bf16.msra.mxu0 %v2821
  %2844 = vmatprep.subr.bf16.mxu0 0
  %2845 = vmatpush1.bf16.msra.mxu0 %v2822
  %2846 = vmatprep.subr.bf16.mxu0 0
  %2847 = vmatpush1.bf16.msra.mxu0 %v2823
  %2848 = vmatprep.subr.bf16.mxu0 0
  %2849 = vmatpush1.bf16.msra.mxu0 0
  %2850 = vmatprep.subr.bf16.mxu0 0
  %2851 = vmatpush1.bf16.msra.mxu0 0
  %2852 = vmatprep.subr.bf16.mxu0 0
  %2853 = vmatpush1.bf16.msra.mxu0 0
  %2854 = vmatprep.subr.bf16.mxu0 0
  %2855 = vmatpush1.bf16.msra.mxu0 0
  %2856 = vmatprep.subr.bf16.mxu0 0
  %2857 = vmatpush1.bf16.msra.mxu0 0
  %2858 = vmatprep.subr.bf16.mxu0 0
  %2859 = vmatpush1.bf16.msra.mxu0 0
  %2860 = vmatprep.subr.bf16.mxu0 0
  %2861 = vmatpush1.bf16.msra.mxu0 0
  %2862 = vmatprep.subr.bf16.mxu0 0
  %2863 = vmatpush1.bf16.msra.mxu0 0
  %2864 = vmatprep.mubr.bf16.mxu0 0
  %2865 = vmatmul.mubr.bf16.gmra.mrb[0].mxu0 %v2766
  %v2866 = vpop.f32.mrb[0].mxu0
  %v2867 = vadd.f32 0.0, %v2866
  %v2868 = vpop.f32.mrb[0].mxu0
  %v2869 = vpop.f32.mrb[0].mxu0
  %v2870 = vadd.f32 0.0, %v2869
  %v2871 = vpop.f32.mrb[0].mxu0
  %2872 = vmatprep.mubr.bf16.mxu0 0
  %2873 = vmatmul.mubr.bf16.gmra.mrb[0].mxu0 %v2768
  %v2874 = vpop.f32.mrb[0].mxu0
  %v2875 = vadd.f32 0.0, %v2874
  %v2876 = vpop.f32.mrb[0].mxu0
  %v2877 = vpop.f32.mrb[0].mxu0
  %v2878 = vadd.f32 0.0, %v2877
  %v2879 = vpop.f32.mrb[0].mxu0
  %2880 = vmatprep.mubr.bf16.mxu0 0
  %2881 = vmatmul.mubr.bf16.gmra.mrb[0].mxu0 %v2770
  %v2882 = vpop.f32.mrb[0].mxu0
  %v2883 = vadd.f32 0.0, %v2882
  %v2884 = vpop.f32.mrb[0].mxu0
  %v2885 = vpop.f32.mrb[0].mxu0
  %v2886 = vadd.f32 0.0, %v2885
  %v2887 = vpop.f32.mrb[0].mxu0
  %2888 = vmatprep.mubr.bf16.mxu0 0
  %2889 = vmatmul.mubr.bf16.gmra.mrb[0].mxu0 %v2772
  %v2890 = vpop.f32.mrb[0].mxu0
  %v2891 = vadd.f32 0.0, %v2890
  %v2892 = vpop.f32.mrb[0].mxu0
  %v2893 = vpop.f32.mrb[0].mxu0
  %v2894 = vadd.f32 0.0, %v2893
  %v2895 = vpop.f32.mrb[0].mxu0
  %2896 = vmatprep.mubr.bf16.mxu0 0
  %2897 = vmatmul.mubr.bf16.gmra.mrb[0].mxu0 %v2774
  %v2898 = vpop.f32.mrb[0].mxu0
  %v2899 = vadd.f32 0.0, %v2898
  %v2900 = vpop.f32.mrb[0].mxu0
  %v2901 = vpop.f32.mrb[0].mxu0
  %v2902 = vadd.f32 0.0, %v2901
  %v2903 = vpop.f32.mrb[0].mxu0
  %2904 = vmatprep.mubr.bf16.mxu0 0
  %2905 = vmatmul.mubr.bf16.gmra.mrb[0].mxu0 %v2776
  %v2906 = vpop.f32.mrb[0].mxu0
  %v2907 = vadd.f32 0.0, %v2906
  %v2908 = vpop.f32.mrb[0].mxu0
  %v2909 = vpop.f32.mrb[0].mxu0
  %v2910 = vadd.f32 0.0, %v2909
  %v2911 = vpop.f32.mrb[0].mxu0
  %2912 = vmatprep.mubr.bf16.mxu0 0
  %2913 = vmatmul.mubr.bf16.gmra.mrb[0].mxu0 %v2775
  %v2914 = vpop.f32.mrb[0].mxu0
  %v2915 = vadd.f32 0.0, %v2914
  %v2916 = vpop.f32.mrb[0].mxu0
  %v2917 = vpop.f32.mrb[0].mxu0
  %v2918 = vpop.f32.mrb[0].mxu0
  %2919 = vdwg.mxu0
  %v2920 = vadd.f32 %v2730, %v2867
  %v2921 = vadd.f32 %v2731, %v2870
  %v2922 = vadd.f32 %v2732, %v2875
  %v2923 = vadd.f32 %v2733, %v2878
  %v2924 = vadd.f32 %v2734, %v2883
  %v2925 = vadd.f32 %v2735, %v2886
  %v2926 = vadd.f32 %v2736, %v2891
  %v2927 = vadd.f32 %v2737, %v2894
  %v2928 = vadd.f32 %v2738, %v2899
  %v2929 = vadd.f32 %v2739, %v2902
  %v2930 = vadd.f32 %v2740, %v2907
  %v2931 = vadd.f32 %v2741, %v2910
  %v2932 = vadd.f32 %v2742, %v2915
  %v2933 = vld [vmem:[%s5] sm:$0xff]
  %v2934 = vld [vmem:[%s5 + $0x8] sm:$0xff]
  %v2935 = vld [vmem:[%s5 + $0x10] sm:$0xff]
  %v2936 = vld [vmem:[%s5 + $0x18] sm:$0xff]
  %v2937 = vld [vmem:[%s5 + $0x20] sm:$0xff]
  %v2938 = vld [vmem:[%s5 + $0x28] sm:$0xff]
  %v2939 = vld [vmem:[%s5 + $0x30] sm:$0xff]
  %v2940 = vld [vmem:[%s5 + $0x38] sm:$0xff]
  %v2941 = vld [vmem:[%s5 + $0x40] sm:$0xff]
  %v2942 = vld [vmem:[%s5 + $0x48] sm:$0xff]
  %v2943 = vld [vmem:[%s5 + $0x50] sm:$0xff]
  %v2944 = vld [vmem:[%s5 + $0x58] sm:$0xff]
  %v2945 = vld [vmem:[%s5 + $0x60] sm:$0xff]
  %v2946 = vlaneseq
  %v2947 = vshrl.u32 %v2946, 7
  %v2948 = vsub.s32 0, %v2947
  %v2949 = vrot.slane %v25, %v2948
  %v2950 = vadd.f32 %v2920, %v2949
  %v2951 = vadd.f32 %v2921, %v2949
  %v2952 = vadd.f32 %v2922, %v2949
  %v2953 = vadd.f32 %v2923, %v2949
  %v2954 = vadd.f32 %v2924, %v2949
  %v2955 = vadd.f32 %v2925, %v2949
  %v2956 = vadd.f32 %v2926, %v2949
  %v2957 = vadd.f32 %v2927, %v2949
  %v2958 = vadd.f32 %v2928, %v2949
  %v2959 = vadd.f32 %v2929, %v2949
  %v2960 = vadd.f32 %v2930, %v2949
  %v2961 = vadd.f32 %v2931, %v2949
  %v2962 = vadd.f32 %v2932, %v2949
  %v2963 = vmax.f32 %v2950, 0.0
  %v2964 = vmax.f32 %v2951, 0.0
  %v2965 = vmax.f32 %v2952, 0.0
  %v2966 = vmax.f32 %v2953, 0.0
  %v2967 = vmax.f32 %v2954, 0.0
  %v2968 = vmax.f32 %v2955, 0.0
  %v2969 = vmax.f32 %v2956, 0.0
  %v2970 = vmax.f32 %v2957, 0.0
  %v2971 = vmax.f32 %v2958, 0.0
  %v2972 = vmax.f32 %v2959, 0.0
  %v2973 = vmax.f32 %v2960, 0.0
  %v2974 = vmax.f32 %v2961, 0.0
  %v2975 = vmax.f32 %v2962, 0.0
  %v2976 = vlaneseq
  %v2977 = vshrl.u32 %v2976, 7
  %v2978 = vsub.s32 0, %v2977
  %v2979 = vrot.slane %v26, %v2978
  %v2980 = vmul.f32 %v2963, %v2979
  %v2981 = vmul.f32 %v2964, %v2979
  %v2982 = vmul.f32 %v2965, %v2979
  %v2983 = vmul.f32 %v2966, %v2979
  %v2984 = vmul.f32 %v2967, %v2979
  %v2985 = vmul.f32 %v2968, %v2979
  %v2986 = vmul.f32 %v2969, %v2979
  %v2987 = vmul.f32 %v2970, %v2979
  %v2988 = vmul.f32 %v2971, %v2979
  %v2989 = vmul.f32 %v2972, %v2979
  %v2990 = vmul.f32 %v2973, %v2979
  %v2991 = vmul.f32 %v2974, %v2979
  %v2992 = vmul.f32 %v2975, %v2979
  %v2993 = vlaneseq
  %v2994 = vshrl.u32 %v2993, 7
  %v2995 = vsub.s32 0, %v2994
  %v2996 = vrot.slane %v27, %v2995
  %v2997 = vadd.f32 %v2980, %v2996
  %v2998 = vadd.f32 %v2981, %v2996
  %v2999 = vadd.f32 %v2982, %v2996
  %v3000 = vadd.f32 %v2983, %v2996
  %v3001 = vadd.f32 %v2984, %v2996
  %v3002 = vadd.f32 %v2985, %v2996
  %v3003 = vadd.f32 %v2986, %v2996
  %v3004 = vadd.f32 %v2987, %v2996
  %v3005 = vadd.f32 %v2988, %v2996
  %v3006 = vadd.f32 %v2989, %v2996
  %v3007 = vadd.f32 %v2990, %v2996
  %v3008 = vadd.f32 %v2991, %v2996
  %v3009 = vadd.f32 %v2992, %v2996
  %3011 = vset.pattern.permute.xlu0 0
  %3012 = vperm.xlu0 %3011, %v2933
  %v3013 = vpop.permute.xlu0 %3012
  %3016 = vset.pattern.permute.xlu0 0
  %3017 = vperm.xlu0 %3016, %v2934
  %v3018 = vpop.permute.xlu0 %3017
  %3021 = vset.pattern.permute.xlu0 0
  %3022 = vperm.xlu0 %3021, %v2935
  %v3023 = vpop.permute.xlu0 %3022
  %3026 = vset.pattern.permute.xlu0 0
  %3027 = vperm.xlu0 %3026, %v2936
  %v3028 = vpop.permute.xlu0 %3027
  %3031 = vset.pattern.permute.xlu0 0
  %3032 = vperm.xlu0 %3031, %v2937
  %v3033 = vpop.permute.xlu0 %3032
  %3036 = vset.pattern.permute.xlu0 0
  %3037 = vperm.xlu0 %3036, %v2938
  %v3038 = vpop.permute.xlu0 %3037
  %3041 = vset.pattern.permute.xlu0 0
  %3042 = vperm.xlu0 %3041, %v2939
  %v3043 = vpop.permute.xlu0 %3042
  %3046 = vset.pattern.permute.xlu0 0
  %3047 = vperm.xlu0 %3046, %v2940
  %v3048 = vpop.permute.xlu0 %3047
  %3051 = vset.pattern.permute.xlu0 0
  %3052 = vperm.xlu0 %3051, %v2941
  %v3053 = vpop.permute.xlu0 %3052
  %3056 = vset.pattern.permute.xlu0 0
  %3057 = vperm.xlu0 %3056, %v2942
  %v3058 = vpop.permute.xlu0 %3057
  %3061 = vset.pattern.permute.xlu0 0
  %3062 = vperm.xlu0 %3061, %v2943
  %v3063 = vpop.permute.xlu0 %3062
  %3066 = vset.pattern.permute.xlu0 0
  %3067 = vperm.xlu0 %3066, %v2944
  %v3068 = vpop.permute.xlu0 %3067
  %3071 = vset.pattern.permute.xlu0 0
  %3072 = vperm.xlu0 %3071, %v2945
  %v3073 = vpop.permute.xlu0 %3072
  %v3075 = vmul.f32 %v2997, %v3013
  %v3076 = vmul.f32 %v2998, %v3018
  %v3077 = vmul.f32 %v2999, %v3023
  %v3078 = vmul.f32 %v3000, %v3028
  %v3079 = vmul.f32 %v3001, %v3033
  %v3080 = vmul.f32 %v3002, %v3038
  %v3081 = vmul.f32 %v3003, %v3043
  %v3082 = vmul.f32 %v3004, %v3048
  %v3083 = vmul.f32 %v3005, %v3053
  %v3084 = vmul.f32 %v3006, %v3058
  %v3085 = vmul.f32 %v3007, %v3063
  %v3086 = vmul.f32 %v3008, %v3068
  %v3087 = vmul.f32 %v3009, %v3073
  %v3088 = vpack.c.bf16 %v3076, %v3075
  %v3089 = vpack.c.bf16 %v3078, %v3077
  %v3090 = vpack.c.bf16 %v3080, %v3079
  %v3091 = vpack.c.bf16 %v3082, %v3081
  %v3092 = vpack.c.bf16 %v3084, %v3083
  %v3093 = vpack.c.bf16 %v3086, %v3085
  %v3094 = vpack.c.bf16 %v3087, %v3087
  %v3102 = vrot.slane %v3088, 2
  %v3103 = vrot.slane %v3089, 2
  %v3104 = vsel %vm802, %v3102, %v3103
  %v3105 = vrot.slane %v3090, 2
  %v3106 = vsel %vm802, %v3103, %v3105
  %v3107 = vrot.slane %v3091, 2
  %v3108 = vsel %vm802, %v3105, %v3107
  %v3109 = vrot.slane %v3092, 2
  %v3110 = vsel %vm802, %v3107, %v3109
  %v3111 = vrot.slane %v3093, 2
  %v3112 = vsel %vm802, %v3109, %v3111
  %v3113 = vrot.slane %v3094, 2
  %v3114 = vsel %vm802, %v3111, %v3113
  %3123 = vst [vmem:[#allocation4] sm:$0xc0] %v3102
  %3124 = vst [vmem:[#allocation4 + $0x8] sm:$0xff] %v3104
  %3125 = vst [vmem:[#allocation4 + $0x10] sm:$0xff] %v3106
  %3126 = vst [vmem:[#allocation4 + $0x18] sm:$0xff] %v3108
  %3127 = vst [vmem:[#allocation4 + $0x20] sm:$0xff] %v3110
  %3128 = vst [vmem:[#allocation4 + $0x28] sm:$0xff] %v3112
  %3129 = vst [vmem:[#allocation4 + $0x30] sm:$0xff] %v3114
  %3130 = vst [vmem:[#allocation4 + $0x38] sm:$0x3] %v3113
  %v3131 = vld [vmem:[#allocation4] sm:$0xff]
  %v3132 = vld [vmem:[#allocation4 + $0x8] sm:$0xff]
  %v3133 = vld [vmem:[#allocation4 + $0x10] sm:$0xff]
  %v3134 = vld [vmem:[#allocation4 + $0x18] sm:$0xff]
  %v3135 = vld [vmem:[#allocation4 + $0x20] sm:$0xff]
  %v3136 = vld [vmem:[#allocation4 + $0x28] sm:$0xff]
  %v3137 = vld [vmem:[#allocation4 + $0x30] sm:$0xf]
  %v3138 = vld [vmem:[%s3] sm:$0xf]
  %v3139 = vld [vmem:[%s3 + $0x4] sm:$0xf]
  %v3140 = vld [vmem:[%s3 + $0x8] sm:$0xf]
  %v3141 = vld [vmem:[%s3 + $0xc] sm:$0xf]
  %v3142 = vld [vmem:[%s3 + $0x10] sm:$0xf]
  %v3143 = vld [vmem:[%s3 + $0x14] sm:$0xf]
  %v3144 = vld [vmem:[%s3 + $0x18] sm:$0xf]
  %v3145 = vld [vmem:[%s3 + $0x1c] sm:$0xf]
  %v3146 = vld [vmem:[%s3 + $0x20] sm:$0xf]
  %v3147 = vld [vmem:[%s3 + $0x24] sm:$0xf]
  %v3148 = vld [vmem:[%s3 + $0x28] sm:$0xf]
  %v3149 = vld [vmem:[%s3 + $0x2c] sm:$0xf]
  %v3150 = vld [vmem:[%s3 + $0x30] sm:$0xf]
  %v3151 = vld [vmem:[%s3 + $0x34] sm:$0xf]
  %v3152 = vld [vmem:[%s3 + $0x38] sm:$0xf]
  %v3153 = vld [vmem:[%s3 + $0x3c] sm:$0xf]
  %v3154 = vld [vmem:[#allocation4 + $0x30] sm:$0x1f]
  %s3155 = scalar_lea.vmem %s3, 64
  %v3156 = vld [vmem:[%s3155] sm:$0xf]
  %v3157 = vld [vmem:[%s3155 + $0x4] sm:$0xf]
  %v3158 = vld [vmem:[%s3155 + $0x8] sm:$0xf]
  %v3159 = vld [vmem:[%s3155 + $0xc] sm:$0xf]
  %v3160 = vld [vmem:[%s3155 + $0x10] sm:$0xf]
  %v3161 = vld [vmem:[%s3155 + $0x14] sm:$0xf]
  %v3162 = vld [vmem:[%s3155 + $0x18] sm:$0xf]
  %v3163 = vld [vmem:[%s3155 + $0x1c] sm:$0xf]
  %v3164 = vld [vmem:[%s3155 + $0x20] sm:$0xf]
  %v3165 = vld [vmem:[%s3155 + $0x24] sm:$0xf]
  %v3166 = vld [vmem:[%s3155 + $0x28] sm:$0xf]
  %v3167 = vld [vmem:[%s3155 + $0x2c] sm:$0xf]
  %v3168 = vld [vmem:[%s3155 + $0x30] sm:$0xf]
  %v3169 = vld [vmem:[%s3155 + $0x34] sm:$0xf]
  %v3170 = vld [vmem:[%s3155 + $0x38] sm:$0xf]
  %v3171 = vld [vmem:[%s3155 + $0x3c] sm:$0xf]
  %v3173 = vshrl.u32 %v3131, 16
  %v3175 = vshll.u32 %v3131, 16
  %v3177 = vrot.slane %v3175, 1
  %v3178 = vor.u32 %v3173, %v3177
  %v3180 = vshll.u32 %v3132, 16
  %v3182 = vrot.slane %v3180, 1
  %v3183 = vsel %vm280, %v3178, %v3182
  %v3184 = vshrl.u32 %v3132, 16
  %v3186 = vor.u32 %v3184, %v3182
  %v3188 = vshll.u32 %v3133, 16
  %v3190 = vrot.slane %v3188, 1
  %v3191 = vsel %vm280, %v3186, %v3190
  %v3192 = vshrl.u32 %v3133, 16
  %v3194 = vor.u32 %v3192, %v3190
  %v3196 = vshll.u32 %v3134, 16
  %v3198 = vrot.slane %v3196, 1
  %v3199 = vsel %vm280, %v3194, %v3198
  %v3200 = vshrl.u32 %v3134, 16
  %v3202 = vor.u32 %v3200, %v3198
  %v3204 = vshll.u32 %v3135, 16
  %v3206 = vrot.slane %v3204, 1
  %v3207 = vsel %vm280, %v3202, %v3206
  %v3208 = vshrl.u32 %v3135, 16
  %v3210 = vor.u32 %v3208, %v3206
  %v3212 = vshll.u32 %v3136, 16
  %v3214 = vrot.slane %v3212, 1
  %v3215 = vsel %vm280, %v3210, %v3214
  %v3216 = vshrl.u32 %v3136, 16
  %v3218 = vor.u32 %v3216, %v3214
  %v3220 = vshll.u32 %v3154, 16
  %v3222 = vrot.slane %v3220, 1
  %v3223 = vsel %vm280, %v3218, %v3222
  %v3224 = vshrl.u32 %v3154, 16
  %v3226 = vor.u32 %v3224, %v3222
  %v3250 = vunpack.c.l.b16 %v3156
  %v3251 = vunpack.c.l.b16 %v3157
  %v3252 = vunpack.c.l.b16 %v3158
  %v3253 = vunpack.c.l.b16 %v3159
  %v3254 = vunpack.c.l.b16 %v3160
  %v3255 = vunpack.c.l.b16 %v3161
  %v3256 = vunpack.c.l.b16 %v3162
  %v3257 = vunpack.c.l.b16 %v3163
  %v3258 = vunpack.c.l.b16 %v3164
  %v3259 = vunpack.c.l.b16 %v3165
  %v3260 = vunpack.c.l.b16 %v3166
  %v3261 = vunpack.c.l.b16 %v3167
  %v3262 = vunpack.c.l.b16 %v3168
  %v3263 = vunpack.c.l.b16 %v3169
  %v3264 = vunpack.c.l.b16 %v3170
  %v3265 = vunpack.c.l.b16 %v3171
  %v3266 = vpack.c.b16 %v3251, %v3250
  %v3267 = vpack.c.b16 %v3253, %v3252
  %v3268 = vpack.c.b16 %v3255, %v3254
  %v3269 = vpack.c.b16 %v3257, %v3256
  %v3270 = vpack.c.b16 %v3259, %v3258
  %v3271 = vpack.c.b16 %v3261, %v3260
  %v3272 = vpack.c.b16 %v3263, %v3262
  %v3273 = vpack.c.b16 %v3265, %v3264
  %3282 = vmatprep.subr.bf16.mxu0 0
  %3283 = vmatpush1.bf16.msra.mxu0 %v3266
  %3284 = vmatprep.subr.bf16.mxu0 0
  %3285 = vmatpush1.bf16.msra.mxu0 %v3267
  %3286 = vmatprep.subr.bf16.mxu0 0
  %3287 = vmatpush1.bf16.msra.mxu0 %v3268
  %3288 = vmatprep.subr.bf16.mxu0 0
  %3289 = vmatpush1.bf16.msra.mxu0 %v3269
  %3290 = vmatprep.subr.bf16.mxu0 0
  %3291 = vmatpush1.bf16.msra.mxu0 %v3270
  %3292 = vmatprep.subr.bf16.mxu0 0
  %3293 = vmatpush1.bf16.msra.mxu0 %v3271
  %3294 = vmatprep.subr.bf16.mxu0 0
  %3295 = vmatpush1.bf16.msra.mxu0 %v3272
  %3296 = vmatprep.subr.bf16.mxu0 0
  %3297 = vmatpush1.bf16.msra.mxu0 %v3273
  %3298 = vmatprep.subr.bf16.mxu0 0
  %3299 = vmatpush1.bf16.msra.mxu0 0
  %3300 = vmatprep.subr.bf16.mxu0 0
  %3301 = vmatpush1.bf16.msra.mxu0 0
  %3302 = vmatprep.subr.bf16.mxu0 0
  %3303 = vmatpush1.bf16.msra.mxu0 0
  %3304 = vmatprep.subr.bf16.mxu0 0
  %3305 = vmatpush1.bf16.msra.mxu0 0
  %3306 = vmatprep.subr.bf16.mxu0 0
  %3307 = vmatpush1.bf16.msra.mxu0 0
  %3308 = vmatprep.subr.bf16.mxu0 0
  %3309 = vmatpush1.bf16.msra.mxu0 0
  %3310 = vmatprep.subr.bf16.mxu0 0
  %3311 = vmatpush1.bf16.msra.mxu0 0
  %3312 = vmatprep.subr.bf16.mxu0 0
  %3313 = vmatpush1.bf16.msra.mxu0 0
  %3314 = vmatprep.mubr.bf16.mxu0 0
  %3315 = vmatmul.mubr.bf16.gmra.mrb[0].mxu0 %v3183
  %v3316 = vpop.f32.mrb[0].mxu0
  %v3317 = vadd.f32 0.0, %v3316
  %v3318 = vpop.f32.mrb[0].mxu0
  %v3319 = vpop.f32.mrb[0].mxu0
  %v3320 = vadd.f32 0.0, %v3319
  %v3321 = vpop.f32.mrb[0].mxu0
  %3322 = vmatprep.mubr.bf16.mxu0 0
  %3323 = vmatmul.mubr.bf16.gmra.mrb[0].mxu0 %v3191
  %v3324 = vpop.f32.mrb[0].mxu0
  %v3325 = vadd.f32 0.0, %v3324
  %v3326 = vpop.f32.mrb[0].mxu0
  %v3327 = vpop.f32.mrb[0].mxu0
  %v3328 = vadd.f32 0.0, %v3327
  %v3329 = vpop.f32.mrb[0].mxu0
  %3330 = vmatprep.mubr.bf16.mxu0 0
  %3331 = vmatmul.mubr.bf16.gmra.mrb[0].mxu0 %v3199
  %v3332 = vpop.f32.mrb[0].mxu0
  %v3333 = vadd.f32 0.0, %v3332
  %v3334 = vpop.f32.mrb[0].mxu0
  %v3335 = vpop.f32.mrb[0].mxu0
  %v3336 = vadd.f32 0.0, %v3335
  %v3337 = vpop.f32.mrb[0].mxu0
  %3338 = vmatprep.mubr.bf16.mxu0 0
  %3339 = vmatmul.mubr.bf16.gmra.mrb[0].mxu0 %v3207
  %v3340 = vpop.f32.mrb[0].mxu0
  %v3341 = vadd.f32 0.0, %v3340
  %v3342 = vpop.f32.mrb[0].mxu0
  %v3343 = vpop.f32.mrb[0].mxu0
  %v3344 = vadd.f32 0.0, %v3343
  %v3345 = vpop.f32.mrb[0].mxu0
  %3346 = vmatprep.mubr.bf16.mxu0 0
  %3347 = vmatmul.mubr.bf16.gmra.mrb[0].mxu0 %v3215
  %v3348 = vpop.f32.mrb[0].mxu0
  %v3349 = vadd.f32 0.0, %v3348
  %v3350 = vpop.f32.mrb[0].mxu0
  %v3351 = vpop.f32.mrb[0].mxu0
  %v3352 = vadd.f32 0.0, %v3351
  %v3353 = vpop.f32.mrb[0].mxu0
  %3354 = vmatprep.mubr.bf16.mxu0 0
  %3355 = vmatmul.mubr.bf16.gmra.mrb[0].mxu0 %v3223
  %v3356 = vpop.f32.mrb[0].mxu0
  %v3357 = vadd.f32 0.0, %v3356
  %v3358 = vpop.f32.mrb[0].mxu0
  %v3359 = vpop.f32.mrb[0].mxu0
  %v3360 = vadd.f32 0.0, %v3359
  %v3361 = vpop.f32.mrb[0].mxu0
  %3362 = vmatprep.mubr.bf16.mxu0 0
  %3363 = vmatmul.mubr.bf16.gmra.mrb[0].mxu0 %v3226
  %v3364 = vpop.f32.mrb[0].mxu0
  %v3365 = vadd.f32 0.0, %v3364
  %v3366 = vpop.f32.mrb[0].mxu0
  %v3367 = vpop.f32.mrb[0].mxu0
  %v3368 = vpop.f32.mrb[0].mxu0
  %3369 = vdwg.mxu0
  %v3386 = vunpack.c.l.b16 %v3138
  %v3387 = vunpack.c.l.b16 %v3139
  %v3388 = vunpack.c.l.b16 %v3140
  %v3389 = vunpack.c.l.b16 %v3141
  %v3390 = vunpack.c.l.b16 %v3142
  %v3391 = vunpack.c.l.b16 %v3143
  %v3392 = vunpack.c.l.b16 %v3144
  %v3393 = vunpack.c.l.b16 %v3145
  %v3394 = vunpack.c.l.b16 %v3146
  %v3395 = vunpack.c.l.b16 %v3147
  %v3396 = vunpack.c.l.b16 %v3148
  %v3397 = vunpack.c.l.b16 %v3149
  %v3398 = vunpack.c.l.b16 %v3150
  %v3399 = vunpack.c.l.b16 %v3151
  %v3400 = vunpack.c.l.b16 %v3152
  %v3401 = vunpack.c.l.b16 %v3153
  %v3402 = vpack.c.b16 %v3387, %v3386
  %v3403 = vpack.c.b16 %v3389, %v3388
  %v3404 = vpack.c.b16 %v3391, %v3390
  %v3405 = vpack.c.b16 %v3393, %v3392
  %v3406 = vpack.c.b16 %v3395, %v3394
  %v3407 = vpack.c.b16 %v3397, %v3396
  %v3408 = vpack.c.b16 %v3399, %v3398
  %v3409 = vpack.c.b16 %v3401, %v3400
  %3418 = vmatprep.subr.bf16.mxu0 0
  %3419 = vmatpush1.bf16.msra.mxu0 %v3402
  %3420 = vmatprep.subr.bf16.mxu0 0
  %3421 = vmatpush1.bf16.msra.mxu0 %v3403
  %3422 = vmatprep.subr.bf16.mxu0 0
  %3423 = vmatpush1.bf16.msra.mxu0 %v3404
  %3424 = vmatprep.subr.bf16.mxu0 0
  %3425 = vmatpush1.bf16.msra.mxu0 %v3405
  %3426 = vmatprep.subr.bf16.mxu0 0
  %3427 = vmatpush1.bf16.msra.mxu0 %v3406
  %3428 = vmatprep.subr.bf16.mxu0 0
  %3429 = vmatpush1.bf16.msra.mxu0 %v3407
  %3430 = vmatprep.subr.bf16.mxu0 0
  %3431 = vmatpush1.bf16.msra.mxu0 %v3408
  %3432 = vmatprep.subr.bf16.mxu0 0
  %3433 = vmatpush1.bf16.msra.mxu0 %v3409
  %3434 = vmatprep.subr.bf16.mxu0 0
  %3435 = vmatpush1.bf16.msra.mxu0 0
  %3436 = vmatprep.subr.bf16.mxu0 0
  %3437 = vmatpush1.bf16.msra.mxu0 0
  %3438 = vmatprep.subr.bf16.mxu0 0
  %3439 = vmatpush1.bf16.msra.mxu0 0
  %3440 = vmatprep.subr.bf16.mxu0 0
  %3441 = vmatpush1.bf16.msra.mxu0 0
  %3442 = vmatprep.subr.bf16.mxu0 0
  %3443 = vmatpush1.bf16.msra.mxu0 0
  %3444 = vmatprep.subr.bf16.mxu0 0
  %3445 = vmatpush1.bf16.msra.mxu0 0
  %3446 = vmatprep.subr.bf16.mxu0 0
  %3447 = vmatpush1.bf16.msra.mxu0 0
  %3448 = vmatprep.subr.bf16.mxu0 0
  %3449 = vmatpush1.bf16.msra.mxu0 0
  %3450 = vmatprep.mubr.bf16.mxu0 0
  %3451 = vmatmul.mubr.bf16.gmra.mrb[0].mxu0 %v3131
  %v3452 = vpop.f32.mrb[0].mxu0
  %v3453 = vadd.f32 %v3317, %v3452
  %v3454 = vpop.f32.mrb[0].mxu0
  %v3455 = vpop.f32.mrb[0].mxu0
  %v3456 = vadd.f32 %v3320, %v3455
  %v3457 = vpop.f32.mrb[0].mxu0
  %3458 = vmatprep.mubr.bf16.mxu0 0
  %3459 = vmatmul.mubr.bf16.gmra.mrb[0].mxu0 %v3132
  %v3460 = vpop.f32.mrb[0].mxu0
  %v3461 = vadd.f32 %v3325, %v3460
  %v3462 = vpop.f32.mrb[0].mxu0
  %v3463 = vpop.f32.mrb[0].mxu0
  %v3464 = vadd.f32 %v3328, %v3463
  %v3465 = vpop.f32.mrb[0].mxu0
  %3466 = vmatprep.mubr.bf16.mxu0 0
  %3467 = vmatmul.mubr.bf16.gmra.mrb[0].mxu0 %v3133
  %v3468 = vpop.f32.mrb[0].mxu0
  %v3469 = vadd.f32 %v3333, %v3468
  %v3470 = vpop.f32.mrb[0].mxu0
  %v3471 = vpop.f32.mrb[0].mxu0
  %v3472 = vadd.f32 %v3336, %v3471
  %v3473 = vpop.f32.mrb[0].mxu0
  %3474 = vmatprep.mubr.bf16.mxu0 0
  %3475 = vmatmul.mubr.bf16.gmra.mrb[0].mxu0 %v3134
  %v3476 = vpop.f32.mrb[0].mxu0
  %v3477 = vadd.f32 %v3341, %v3476
  %v3478 = vpop.f32.mrb[0].mxu0
  %v3479 = vpop.f32.mrb[0].mxu0
  %v3480 = vadd.f32 %v3344, %v3479
  %v3481 = vpop.f32.mrb[0].mxu0
  %3482 = vmatprep.mubr.bf16.mxu0 0
  %3483 = vmatmul.mubr.bf16.gmra.mrb[0].mxu0 %v3135
  %v3484 = vpop.f32.mrb[0].mxu0
  %v3485 = vadd.f32 %v3349, %v3484
  %v3486 = vpop.f32.mrb[0].mxu0
  %v3487 = vpop.f32.mrb[0].mxu0
  %v3488 = vadd.f32 %v3352, %v3487
  %v3489 = vpop.f32.mrb[0].mxu0
  %3490 = vmatprep.mubr.bf16.mxu0 0
  %3491 = vmatmul.mubr.bf16.gmra.mrb[0].mxu0 %v3136
  %v3492 = vpop.f32.mrb[0].mxu0
  %v3493 = vadd.f32 %v3357, %v3492
  %v3494 = vpop.f32.mrb[0].mxu0
  %v3495 = vpop.f32.mrb[0].mxu0
  %v3496 = vadd.f32 %v3360, %v3495
  %v3497 = vpop.f32.mrb[0].mxu0
  %3498 = vmatprep.mubr.bf16.mxu0 0
  %3499 = vmatmul.mubr.bf16.gmra.mrb[0].mxu0 %v3137
  %v3500 = vpop.f32.mrb[0].mxu0
  %v3501 = vadd.f32 %v3365, %v3500
  %v3502 = vpop.f32.mrb[0].mxu0
  %v3503 = vpop.f32.mrb[0].mxu0
  %v3504 = vpop.f32.mrb[0].mxu0
  %3505 = vdwg.mxu0
  %v3506 = vld [vmem:[#allocation4] sm:$0xfe]
  %s3507 = scalar_lea.vmem %s3, 128
  %v3508 = vld [vmem:[%s3507] sm:$0xf]
  %v3509 = vld [vmem:[%s3507 + $0x4] sm:$0xf]
  %v3510 = vld [vmem:[%s3507 + $0x8] sm:$0xf]
  %v3511 = vld [vmem:[%s3507 + $0xc] sm:$0xf]
  %v3512 = vld [vmem:[%s3507 + $0x10] sm:$0xf]
  %v3513 = vld [vmem:[%s3507 + $0x14] sm:$0xf]
  %v3514 = vld [vmem:[%s3507 + $0x18] sm:$0xf]
  %v3515 = vld [vmem:[%s3507 + $0x1c] sm:$0xf]
  %v3516 = vld [vmem:[%s3507 + $0x20] sm:$0xf]
  %v3517 = vld [vmem:[%s3507 + $0x24] sm:$0xf]
  %v3518 = vld [vmem:[%s3507 + $0x28] sm:$0xf]
  %v3519 = vld [vmem:[%s3507 + $0x2c] sm:$0xf]
  %v3520 = vld [vmem:[%s3507 + $0x30] sm:$0xf]
  %v3521 = vld [vmem:[%s3507 + $0x34] sm:$0xf]
  %v3522 = vld [vmem:[%s3507 + $0x38] sm:$0xf]
  %v3523 = vld [vmem:[%s3507 + $0x3c] sm:$0xf]
  %v3531 = vrot.slane %v3506, 1
  %v3532 = vrot.slane %v3132, 1
  %v3533 = vsel %vm1505, %v3531, %v3532
  %v3534 = vrot.slane %v3133, 1
  %v3535 = vsel %vm1505, %v3532, %v3534
  %v3536 = vrot.slane %v3134, 1
  %v3537 = vsel %vm1505, %v3534, %v3536
  %v3538 = vrot.slane %v3135, 1
  %v3539 = vsel %vm1505, %v3536, %v3538
  %v3540 = vrot.slane %v3136, 1
  %v3541 = vsel %vm1505, %v3538, %v3540
  %v3542 = vrot.slane %v3154, 1
  %v3543 = vsel %vm1505, %v3540, %v3542
  %v3567 = vunpack.c.l.b16 %v3508
  %v3568 = vunpack.c.l.b16 %v3509
  %v3569 = vunpack.c.l.b16 %v3510
  %v3570 = vunpack.c.l.b16 %v3511
  %v3571 = vunpack.c.l.b16 %v3512
  %v3572 = vunpack.c.l.b16 %v3513
  %v3573 = vunpack.c.l.b16 %v3514
  %v3574 = vunpack.c.l.b16 %v3515
  %v3575 = vunpack.c.l.b16 %v3516
  %v3576 = vunpack.c.l.b16 %v3517
  %v3577 = vunpack.c.l.b16 %v3518
  %v3578 = vunpack.c.l.b16 %v3519
  %v3579 = vunpack.c.l.b16 %v3520
  %v3580 = vunpack.c.l.b16 %v3521
  %v3581 = vunpack.c.l.b16 %v3522
  %v3582 = vunpack.c.l.b16 %v3523
  %v3583 = vpack.c.b16 %v3568, %v3567
  %v3584 = vpack.c.b16 %v3570, %v3569
  %v3585 = vpack.c.b16 %v3572, %v3571
  %v3586 = vpack.c.b16 %v3574, %v3573
  %v3587 = vpack.c.b16 %v3576, %v3575
  %v3588 = vpack.c.b16 %v3578, %v3577
  %v3589 = vpack.c.b16 %v3580, %v3579
  %v3590 = vpack.c.b16 %v3582, %v3581
  %3599 = vmatprep.subr.bf16.mxu0 0
  %3600 = vmatpush1.bf16.msra.mxu0 %v3583
  %3601 = vmatprep.subr.bf16.mxu0 0
  %3602 = vmatpush1.bf16.msra.mxu0 %v3584
  %3603 = vmatprep.subr.bf16.mxu0 0
  %3604 = vmatpush1.bf16.msra.mxu0 %v3585
  %3605 = vmatprep.subr.bf16.mxu0 0
  %3606 = vmatpush1.bf16.msra.mxu0 %v3586
  %3607 = vmatprep.subr.bf16.mxu0 0
  %3608 = vmatpush1.bf16.msra.mxu0 %v3587
  %3609 = vmatprep.subr.bf16.mxu0 0
  %3610 = vmatpush1.bf16.msra.mxu0 %v3588
  %3611 = vmatprep.subr.bf16.mxu0 0
  %3612 = vmatpush1.bf16.msra.mxu0 %v3589
  %3613 = vmatprep.subr.bf16.mxu0 0
  %3614 = vmatpush1.bf16.msra.mxu0 %v3590
  %3615 = vmatprep.subr.bf16.mxu0 0
  %3616 = vmatpush1.bf16.msra.mxu0 0
  %3617 = vmatprep.subr.bf16.mxu0 0
  %3618 = vmatpush1.bf16.msra.mxu0 0
  %3619 = vmatprep.subr.bf16.mxu0 0
  %3620 = vmatpush1.bf16.msra.mxu0 0
  %3621 = vmatprep.subr.bf16.mxu0 0
  %3622 = vmatpush1.bf16.msra.mxu0 0
  %3623 = vmatprep.subr.bf16.mxu0 0
  %3624 = vmatpush1.bf16.msra.mxu0 0
  %3625 = vmatprep.subr.bf16.mxu0 0
  %3626 = vmatpush1.bf16.msra.mxu0 0
  %3627 = vmatprep.subr.bf16.mxu0 0
  %3628 = vmatpush1.bf16.msra.mxu0 0
  %3629 = vmatprep.subr.bf16.mxu0 0
  %3630 = vmatpush1.bf16.msra.mxu0 0
  %3631 = vmatprep.mubr.bf16.mxu0 0
  %3632 = vmatmul.mubr.bf16.gmra.mrb[0].mxu0 %v3533
  %v3633 = vpop.f32.mrb[0].mxu0
  %v3634 = vadd.f32 0.0, %v3633
  %v3635 = vpop.f32.mrb[0].mxu0
  %v3636 = vpop.f32.mrb[0].mxu0
  %v3637 = vadd.f32 0.0, %v3636
  %v3638 = vpop.f32.mrb[0].mxu0
  %3639 = vmatprep.mubr.bf16.mxu0 0
  %3640 = vmatmul.mubr.bf16.gmra.mrb[0].mxu0 %v3535
  %v3641 = vpop.f32.mrb[0].mxu0
  %v3642 = vadd.f32 0.0, %v3641
  %v3643 = vpop.f32.mrb[0].mxu0
  %v3644 = vpop.f32.mrb[0].mxu0
  %v3645 = vadd.f32 0.0, %v3644
  %v3646 = vpop.f32.mrb[0].mxu0
  %3647 = vmatprep.mubr.bf16.mxu0 0
  %3648 = vmatmul.mubr.bf16.gmra.mrb[0].mxu0 %v3537
  %v3649 = vpop.f32.mrb[0].mxu0
  %v3650 = vadd.f32 0.0, %v3649
  %v3651 = vpop.f32.mrb[0].mxu0
  %v3652 = vpop.f32.mrb[0].mxu0
  %v3653 = vadd.f32 0.0, %v3652
  %v3654 = vpop.f32.mrb[0].mxu0
  %3655 = vmatprep.mubr.bf16.mxu0 0
  %3656 = vmatmul.mubr.bf16.gmra.mrb[0].mxu0 %v3539
  %v3657 = vpop.f32.mrb[0].mxu0
  %v3658 = vadd.f32 0.0, %v3657
  %v3659 = vpop.f32.mrb[0].mxu0
  %v3660 = vpop.f32.mrb[0].mxu0
  %v3661 = vadd.f32 0.0, %v3660
  %v3662 = vpop.f32.mrb[0].mxu0
  %3663 = vmatprep.mubr.bf16.mxu0 0
  %3664 = vmatmul.mubr.bf16.gmra.mrb[0].mxu0 %v3541
  %v3665 = vpop.f32.mrb[0].mxu0
  %v3666 = vadd.f32 0.0, %v3665
  %v3667 = vpop.f32.mrb[0].mxu0
  %v3668 = vpop.f32.mrb[0].mxu0
  %v3669 = vadd.f32 0.0, %v3668
  %v3670 = vpop.f32.mrb[0].mxu0
  %3671 = vmatprep.mubr.bf16.mxu0 0
  %3672 = vmatmul.mubr.bf16.gmra.mrb[0].mxu0 %v3543
  %v3673 = vpop.f32.mrb[0].mxu0
  %v3674 = vadd.f32 0.0, %v3673
  %v3675 = vpop.f32.mrb[0].mxu0
  %v3676 = vpop.f32.mrb[0].mxu0
  %v3677 = vadd.f32 0.0, %v3676
  %v3678 = vpop.f32.mrb[0].mxu0
  %3679 = vmatprep.mubr.bf16.mxu0 0
  %3680 = vmatmul.mubr.bf16.gmra.mrb[0].mxu0 %v3542
  %v3681 = vpop.f32.mrb[0].mxu0
  %v3682 = vadd.f32 0.0, %v3681
  %v3683 = vpop.f32.mrb[0].mxu0
  %v3684 = vpop.f32.mrb[0].mxu0
  %v3685 = vpop.f32.mrb[0].mxu0
  %3686 = vdwg.mxu0
  %v3687 = vadd.f32 %v3453, %v3634
  %v3688 = vadd.f32 %v3456, %v3637
  %v3689 = vadd.f32 %v3461, %v3642
  %v3690 = vadd.f32 %v3464, %v3645
  %v3691 = vadd.f32 %v3469, %v3650
  %v3692 = vadd.f32 %v3472, %v3653
  %v3693 = vadd.f32 %v3477, %v3658
  %v3694 = vadd.f32 %v3480, %v3661
  %v3695 = vadd.f32 %v3485, %v3666
  %v3696 = vadd.f32 %v3488, %v3669
  %v3697 = vadd.f32 %v3493, %v3674
  %v3698 = vadd.f32 %v3496, %v3677
  %v3699 = vadd.f32 %v3501, %v3682
  %v3700 = vld [vmem:[#allocation4] sm:$0xe0]
  %v3701 = vld [vmem:[#allocation4 + $0x8] sm:$0xff]
  %v3702 = vld [vmem:[#allocation4 + $0x10] sm:$0xff]
  %v3703 = vld [vmem:[#allocation4 + $0x18] sm:$0xff]
  %v3704 = vld [vmem:[#allocation4 + $0x20] sm:$0xff]
  %v3705 = vld [vmem:[#allocation4 + $0x28] sm:$0xff]
  %v3706 = vld [vmem:[#allocation4 + $0x30] sm:$0xff]
  %v3707 = vld [vmem:[#allocation4 + $0x38] sm:$0x3]
  %s3708 = scalar_lea.vmem %s3, 192
  %v3709 = vld [vmem:[%s3708] sm:$0xf]
  %v3710 = vld [vmem:[%s3708 + $0x4] sm:$0xf]
  %v3711 = vld [vmem:[%s3708 + $0x8] sm:$0xf]
  %v3712 = vld [vmem:[%s3708 + $0xc] sm:$0xf]
  %v3713 = vld [vmem:[%s3708 + $0x10] sm:$0xf]
  %v3714 = vld [vmem:[%s3708 + $0x14] sm:$0xf]
  %v3715 = vld [vmem:[%s3708 + $0x18] sm:$0xf]
  %v3716 = vld [vmem:[%s3708 + $0x1c] sm:$0xf]
  %v3717 = vld [vmem:[%s3708 + $0x20] sm:$0xf]
  %v3718 = vld [vmem:[%s3708 + $0x24] sm:$0xf]
  %v3719 = vld [vmem:[%s3708 + $0x28] sm:$0xf]
  %v3720 = vld [vmem:[%s3708 + $0x2c] sm:$0xf]
  %v3721 = vld [vmem:[%s3708 + $0x30] sm:$0xf]
  %v3722 = vld [vmem:[%s3708 + $0x34] sm:$0xf]
  %v3723 = vld [vmem:[%s3708 + $0x38] sm:$0xf]
  %v3724 = vld [vmem:[%s3708 + $0x3c] sm:$0xf]
  %v3726 = vshrl.u32 %v3700, 16
  %v3728 = vrot.slane %v3726, 5
  %v3729 = vshll.u32 %v3700, 16
  %v3731 = vrot.slane %v3729, 6
  %v3732 = vor.u32 %v3728, %v3731
  %v3734 = vshrl.u32 %v3701, 16
  %v3736 = vrot.slane %v3734, 5
  %v3737 = vshll.u32 %v3701, 16
  %v3739 = vrot.slane %v3737, 6
  %v3740 = vor.u32 %v3736, %v3739
  %v3741 = vsel %vm169, %v3732, %v3740
  %v3743 = vshrl.u32 %v3702, 16
  %v3745 = vrot.slane %v3743, 5
  %v3746 = vshll.u32 %v3702, 16
  %v3748 = vrot.slane %v3746, 6
  %v3749 = vor.u32 %v3745, %v3748
  %v3750 = vsel %vm169, %v3740, %v3749
  %v3752 = vshrl.u32 %v3703, 16
  %v3754 = vrot.slane %v3752, 5
  %v3755 = vshll.u32 %v3703, 16
  %v3757 = vrot.slane %v3755, 6
  %v3758 = vor.u32 %v3754, %v3757
  %v3759 = vsel %vm169, %v3749, %v3758
  %v3761 = vshrl.u32 %v3704, 16
  %v3763 = vrot.slane %v3761, 5
  %v3764 = vshll.u32 %v3704, 16
  %v3766 = vrot.slane %v3764, 6
  %v3767 = vor.u32 %v3763, %v3766
  %v3768 = vsel %vm169, %v3758, %v3767
  %v3770 = vshrl.u32 %v3705, 16
  %v3772 = vrot.slane %v3770, 5
  %v3773 = vshll.u32 %v3705, 16
  %v3775 = vrot.slane %v3773, 6
  %v3776 = vor.u32 %v3772, %v3775
  %v3777 = vsel %vm169, %v3767, %v3776
  %v3779 = vshrl.u32 %v3706, 16
  %v3781 = vrot.slane %v3779, 5
  %v3782 = vshll.u32 %v3706, 16
  %v3784 = vrot.slane %v3782, 6
  %v3785 = vor.u32 %v3781, %v3784
  %v3786 = vsel %vm169, %v3776, %v3785
  %v3788 = vshrl.u32 %v3707, 16
  %v3790 = vrot.slane %v3788, 5
  %v3791 = vshll.u32 %v3707, 16
  %v3793 = vrot.slane %v3791, 6
  %v3794 = vor.u32 %v3790, %v3793
  %v3795 = vsel %vm169, %v3785, %v3794
  %v3819 = vunpack.c.l.b16 %v3709
  %v3820 = vunpack.c.l.b16 %v3710
  %v3821 = vunpack.c.l.b16 %v3711
  %v3822 = vunpack.c.l.b16 %v3712
  %v3823 = vunpack.c.l.b16 %v3713
  %v3824 = vunpack.c.l.b16 %v3714
  %v3825 = vunpack.c.l.b16 %v3715
  %v3826 = vunpack.c.l.b16 %v3716
  %v3827 = vunpack.c.l.b16 %v3717
  %v3828 = vunpack.c.l.b16 %v3718
  %v3829 = vunpack.c.l.b16 %v3719
  %v3830 = vunpack.c.l.b16 %v3720
  %v3831 = vunpack.c.l.b16 %v3721
  %v3832 = vunpack.c.l.b16 %v3722
  %v3833 = vunpack.c.l.b16 %v3723
  %v3834 = vunpack.c.l.b16 %v3724
  %v3835 = vpack.c.b16 %v3820, %v3819
  %v3836 = vpack.c.b16 %v3822, %v3821
  %v3837 = vpack.c.b16 %v3824, %v3823
  %v3838 = vpack.c.b16 %v3826, %v3825
  %v3839 = vpack.c.b16 %v3828, %v3827
  %v3840 = vpack.c.b16 %v3830, %v3829
  %v3841 = vpack.c.b16 %v3832, %v3831
  %v3842 = vpack.c.b16 %v3834, %v3833
  %3851 = vmatprep.subr.bf16.mxu0 0
  %3852 = vmatpush1.bf16.msra.mxu0 %v3835
  %3853 = vmatprep.subr.bf16.mxu0 0
  %3854 = vmatpush1.bf16.msra.mxu0 %v3836
  %3855 = vmatprep.subr.bf16.mxu0 0
  %3856 = vmatpush1.bf16.msra.mxu0 %v3837
  %3857 = vmatprep.subr.bf16.mxu0 0
  %3858 = vmatpush1.bf16.msra.mxu0 %v3838
  %3859 = vmatprep.subr.bf16.mxu0 0
  %3860 = vmatpush1.bf16.msra.mxu0 %v3839
  %3861 = vmatprep.subr.bf16.mxu0 0
  %3862 = vmatpush1.bf16.msra.mxu0 %v3840
  %3863 = vmatprep.subr.bf16.mxu0 0
  %3864 = vmatpush1.bf16.msra.mxu0 %v3841
  %3865 = vmatprep.subr.bf16.mxu0 0
  %3866 = vmatpush1.bf16.msra.mxu0 %v3842
  %3867 = vmatprep.subr.bf16.mxu0 0
  %3868 = vmatpush1.bf16.msra.mxu0 0
  %3869 = vmatprep.subr.bf16.mxu0 0
  %3870 = vmatpush1.bf16.msra.mxu0 0
  %3871 = vmatprep.subr.bf16.mxu0 0
  %3872 = vmatpush1.bf16.msra.mxu0 0
  %3873 = vmatprep.subr.bf16.mxu0 0
  %3874 = vmatpush1.bf16.msra.mxu0 0
  %3875 = vmatprep.subr.bf16.mxu0 0
  %3876 = vmatpush1.bf16.msra.mxu0 0
  %3877 = vmatprep.subr.bf16.mxu0 0
  %3878 = vmatpush1.bf16.msra.mxu0 0
  %3879 = vmatprep.subr.bf16.mxu0 0
  %3880 = vmatpush1.bf16.msra.mxu0 0
  %3881 = vmatprep.subr.bf16.mxu0 0
  %3882 = vmatpush1.bf16.msra.mxu0 0
  %3883 = vmatprep.mubr.bf16.mxu0 0
  %3884 = vmatmul.mubr.bf16.gmra.mrb[0].mxu0 %v3741
  %v3885 = vpop.f32.mrb[0].mxu0
  %v3886 = vadd.f32 0.0, %v3885
  %v3887 = vpop.f32.mrb[0].mxu0
  %v3888 = vpop.f32.mrb[0].mxu0
  %v3889 = vadd.f32 0.0, %v3888
  %v3890 = vpop.f32.mrb[0].mxu0
  %3891 = vmatprep.mubr.bf16.mxu0 0
  %3892 = vmatmul.mubr.bf16.gmra.mrb[0].mxu0 %v3750
  %v3893 = vpop.f32.mrb[0].mxu0
  %v3894 = vadd.f32 0.0, %v3893
  %v3895 = vpop.f32.mrb[0].mxu0
  %v3896 = vpop.f32.mrb[0].mxu0
  %v3897 = vadd.f32 0.0, %v3896
  %v3898 = vpop.f32.mrb[0].mxu0
  %3899 = vmatprep.mubr.bf16.mxu0 0
  %3900 = vmatmul.mubr.bf16.gmra.mrb[0].mxu0 %v3759
  %v3901 = vpop.f32.mrb[0].mxu0
  %v3902 = vadd.f32 0.0, %v3901
  %v3903 = vpop.f32.mrb[0].mxu0
  %v3904 = vpop.f32.mrb[0].mxu0
  %v3905 = vadd.f32 0.0, %v3904
  %v3906 = vpop.f32.mrb[0].mxu0
  %3907 = vmatprep.mubr.bf16.mxu0 0
  %3908 = vmatmul.mubr.bf16.gmra.mrb[0].mxu0 %v3768
  %v3909 = vpop.f32.mrb[0].mxu0
  %v3910 = vadd.f32 0.0, %v3909
  %v3911 = vpop.f32.mrb[0].mxu0
  %v3912 = vpop.f32.mrb[0].mxu0
  %v3913 = vadd.f32 0.0, %v3912
  %v3914 = vpop.f32.mrb[0].mxu0
  %3915 = vmatprep.mubr.bf16.mxu0 0
  %3916 = vmatmul.mubr.bf16.gmra.mrb[0].mxu0 %v3777
  %v3917 = vpop.f32.mrb[0].mxu0
  %v3918 = vadd.f32 0.0, %v3917
  %v3919 = vpop.f32.mrb[0].mxu0
  %v3920 = vpop.f32.mrb[0].mxu0
  %v3921 = vadd.f32 0.0, %v3920
  %v3922 = vpop.f32.mrb[0].mxu0
  %3923 = vmatprep.mubr.bf16.mxu0 0
  %3924 = vmatmul.mubr.bf16.gmra.mrb[0].mxu0 %v3786
  %v3925 = vpop.f32.mrb[0].mxu0
  %v3926 = vadd.f32 0.0, %v3925
  %v3927 = vpop.f32.mrb[0].mxu0
  %v3928 = vpop.f32.mrb[0].mxu0
  %v3929 = vadd.f32 0.0, %v3928
  %v3930 = vpop.f32.mrb[0].mxu0
  %3931 = vmatprep.mubr.bf16.mxu0 0
  %3932 = vmatmul.mubr.bf16.gmra.mrb[0].mxu0 %v3795
  %v3933 = vpop.f32.mrb[0].mxu0
  %v3934 = vadd.f32 0.0, %v3933
  %v3935 = vpop.f32.mrb[0].mxu0
  %v3936 = vpop.f32.mrb[0].mxu0
  %v3937 = vpop.f32.mrb[0].mxu0
  %3938 = vdwg.mxu0
  %v3939 = vadd.f32 %v3687, %v3886
  %v3940 = vadd.f32 %v3688, %v3889
  %v3941 = vadd.f32 %v3689, %v3894
  %v3942 = vadd.f32 %v3690, %v3897
  %v3943 = vadd.f32 %v3691, %v3902
  %v3944 = vadd.f32 %v3692, %v3905
  %v3945 = vadd.f32 %v3693, %v3910
  %v3946 = vadd.f32 %v3694, %v3913
  %v3947 = vadd.f32 %v3695, %v3918
  %v3948 = vadd.f32 %v3696, %v3921
  %v3949 = vadd.f32 %v3697, %v3926
  %v3950 = vadd.f32 %v3698, %v3929
  %v3951 = vadd.f32 %v3699, %v3934
  %v3952 = vld [vmem:[#allocation4] sm:$0xc0]
  %s3953 = scalar_lea.vmem %s3, 256
  %v3954 = vld [vmem:[%s3953] sm:$0xf]
  %v3955 = vld [vmem:[%s3953 + $0x4] sm:$0xf]
  %v3956 = vld [vmem:[%s3953 + $0x8] sm:$0xf]
  %v3957 = vld [vmem:[%s3953 + $0xc] sm:$0xf]
  %v3958 = vld [vmem:[%s3953 + $0x10] sm:$0xf]
  %v3959 = vld [vmem:[%s3953 + $0x14] sm:$0xf]
  %v3960 = vld [vmem:[%s3953 + $0x18] sm:$0xf]
  %v3961 = vld [vmem:[%s3953 + $0x1c] sm:$0xf]
  %v3962 = vld [vmem:[%s3953 + $0x20] sm:$0xf]
  %v3963 = vld [vmem:[%s3953 + $0x24] sm:$0xf]
  %v3964 = vld [vmem:[%s3953 + $0x28] sm:$0xf]
  %v3965 = vld [vmem:[%s3953 + $0x2c] sm:$0xf]
  %v3966 = vld [vmem:[%s3953 + $0x30] sm:$0xf]
  %v3967 = vld [vmem:[%s3953 + $0x34] sm:$0xf]
  %v3968 = vld [vmem:[%s3953 + $0x38] sm:$0xf]
  %v3969 = vld [vmem:[%s3953 + $0x3c] sm:$0xf]
  %v3978 = vrot.slane %v3952, 6
  %v3979 = vrot.slane %v3701, 6
  %v3980 = vsel %vm1953, %v3978, %v3979
  %v3981 = vrot.slane %v3702, 6
  %v3982 = vsel %vm1953, %v3979, %v3981
  %v3983 = vrot.slane %v3703, 6
  %v3984 = vsel %vm1953, %v3981, %v3983
  %v3985 = vrot.slane %v3704, 6
  %v3986 = vsel %vm1953, %v3983, %v3985
  %v3987 = vrot.slane %v3705, 6
  %v3988 = vsel %vm1953, %v3985, %v3987
  %v3989 = vrot.slane %v3706, 6
  %v3990 = vsel %vm1953, %v3987, %v3989
  %v3991 = vrot.slane %v3707, 6
  %v3992 = vsel %vm1953, %v3989, %v3991
  %v4016 = vunpack.c.l.b16 %v3954
  %v4017 = vunpack.c.l.b16 %v3955
  %v4018 = vunpack.c.l.b16 %v3956
  %v4019 = vunpack.c.l.b16 %v3957
  %v4020 = vunpack.c.l.b16 %v3958
  %v4021 = vunpack.c.l.b16 %v3959
  %v4022 = vunpack.c.l.b16 %v3960
  %v4023 = vunpack.c.l.b16 %v3961
  %v4024 = vunpack.c.l.b16 %v3962
  %v4025 = vunpack.c.l.b16 %v3963
  %v4026 = vunpack.c.l.b16 %v3964
  %v4027 = vunpack.c.l.b16 %v3965
  %v4028 = vunpack.c.l.b16 %v3966
  %v4029 = vunpack.c.l.b16 %v3967
  %v4030 = vunpack.c.l.b16 %v3968
  %v4031 = vunpack.c.l.b16 %v3969
  %v4032 = vpack.c.b16 %v4017, %v4016
  %v4033 = vpack.c.b16 %v4019, %v4018
  %v4034 = vpack.c.b16 %v4021, %v4020
  %v4035 = vpack.c.b16 %v4023, %v4022
  %v4036 = vpack.c.b16 %v4025, %v4024
  %v4037 = vpack.c.b16 %v4027, %v4026
  %v4038 = vpack.c.b16 %v4029, %v4028
  %v4039 = vpack.c.b16 %v4031, %v4030
  %4048 = vmatprep.subr.bf16.mxu0 0
  %4049 = vmatpush1.bf16.msra.mxu0 %v4032
  %4050 = vmatprep.subr.bf16.mxu0 0
  %4051 = vmatpush1.bf16.msra.mxu0 %v4033
  %4052 = vmatprep.subr.bf16.mxu0 0
  %4053 = vmatpush1.bf16.msra.mxu0 %v4034
  %4054 = vmatprep.subr.bf16.mxu0 0
  %4055 = vmatpush1.bf16.msra.mxu0 %v4035
  %4056 = vmatprep.subr.bf16.mxu0 0
  %4057 = vmatpush1.bf16.msra.mxu0 %v4036
  %4058 = vmatprep.subr.bf16.mxu0 0
  %4059 = vmatpush1.bf16.msra.mxu0 %v4037
  %4060 = vmatprep.subr.bf16.mxu0 0
  %4061 = vmatpush1.bf16.msra.mxu0 %v4038
  %4062 = vmatprep.subr.bf16.mxu0 0
  %4063 = vmatpush1.bf16.msra.mxu0 %v4039
  %4064 = vmatprep.subr.bf16.mxu0 0
  %4065 = vmatpush1.bf16.msra.mxu0 0
  %4066 = vmatprep.subr.bf16.mxu0 0
  %4067 = vmatpush1.bf16.msra.mxu0 0
  %4068 = vmatprep.subr.bf16.mxu0 0
  %4069 = vmatpush1.bf16.msra.mxu0 0
  %4070 = vmatprep.subr.bf16.mxu0 0
  %4071 = vmatpush1.bf16.msra.mxu0 0
  %4072 = vmatprep.subr.bf16.mxu0 0
  %4073 = vmatpush1.bf16.msra.mxu0 0
  %4074 = vmatprep.subr.bf16.mxu0 0
  %4075 = vmatpush1.bf16.msra.mxu0 0
  %4076 = vmatprep.subr.bf16.mxu0 0
  %4077 = vmatpush1.bf16.msra.mxu0 0
  %4078 = vmatprep.subr.bf16.mxu0 0
  %4079 = vmatpush1.bf16.msra.mxu0 0
  %4080 = vmatprep.mubr.bf16.mxu0 0
  %4081 = vmatmul.mubr.bf16.gmra.mrb[0].mxu0 %v3980
  %v4082 = vpop.f32.mrb[0].mxu0
  %v4083 = vadd.f32 0.0, %v4082
  %v4084 = vpop.f32.mrb[0].mxu0
  %v4085 = vpop.f32.mrb[0].mxu0
  %v4086 = vadd.f32 0.0, %v4085
  %v4087 = vpop.f32.mrb[0].mxu0
  %4088 = vmatprep.mubr.bf16.mxu0 0
  %4089 = vmatmul.mubr.bf16.gmra.mrb[0].mxu0 %v3982
  %v4090 = vpop.f32.mrb[0].mxu0
  %v4091 = vadd.f32 0.0, %v4090
  %v4092 = vpop.f32.mrb[0].mxu0
  %v4093 = vpop.f32.mrb[0].mxu0
  %v4094 = vadd.f32 0.0, %v4093
  %v4095 = vpop.f32.mrb[0].mxu0
  %4096 = vmatprep.mubr.bf16.mxu0 0
  %4097 = vmatmul.mubr.bf16.gmra.mrb[0].mxu0 %v3984
  %v4098 = vpop.f32.mrb[0].mxu0
  %v4099 = vadd.f32 0.0, %v4098
  %v4100 = vpop.f32.mrb[0].mxu0
  %v4101 = vpop.f32.mrb[0].mxu0
  %v4102 = vadd.f32 0.0, %v4101
  %v4103 = vpop.f32.mrb[0].mxu0
  %4104 = vmatprep.mubr.bf16.mxu0 0
  %4105 = vmatmul.mubr.bf16.gmra.mrb[0].mxu0 %v3986
  %v4106 = vpop.f32.mrb[0].mxu0
  %v4107 = vadd.f32 0.0, %v4106
  %v4108 = vpop.f32.mrb[0].mxu0
  %v4109 = vpop.f32.mrb[0].mxu0
  %v4110 = vadd.f32 0.0, %v4109
  %v4111 = vpop.f32.mrb[0].mxu0
  %4112 = vmatprep.mubr.bf16.mxu0 0
  %4113 = vmatmul.mubr.bf16.gmra.mrb[0].mxu0 %v3988
  %v4114 = vpop.f32.mrb[0].mxu0
  %v4115 = vadd.f32 0.0, %v4114
  %v4116 = vpop.f32.mrb[0].mxu0
  %v4117 = vpop.f32.mrb[0].mxu0
  %v4118 = vadd.f32 0.0, %v4117
  %v4119 = vpop.f32.mrb[0].mxu0
  %4120 = vmatprep.mubr.bf16.mxu0 0
  %4121 = vmatmul.mubr.bf16.gmra.mrb[0].mxu0 %v3990
  %v4122 = vpop.f32.mrb[0].mxu0
  %v4123 = vadd.f32 0.0, %v4122
  %v4124 = vpop.f32.mrb[0].mxu0
  %v4125 = vpop.f32.mrb[0].mxu0
  %v4126 = vadd.f32 0.0, %v4125
  %v4127 = vpop.f32.mrb[0].mxu0
  %4128 = vmatprep.mubr.bf16.mxu0 0
  %4129 = vmatmul.mubr.bf16.gmra.mrb[0].mxu0 %v3992
  %v4130 = vpop.f32.mrb[0].mxu0
  %v4131 = vadd.f32 0.0, %v4130
  %v4132 = vpop.f32.mrb[0].mxu0
  %v4133 = vpop.f32.mrb[0].mxu0
  %v4134 = vpop.f32.mrb[0].mxu0
  %4135 = vdwg.mxu0
  %v4136 = vadd.f32 %v3939, %v4083
  %v4137 = vadd.f32 %v3940, %v4086
  %v4138 = vadd.f32 %v3941, %v4091
  %v4139 = vadd.f32 %v3942, %v4094
  %v4140 = vadd.f32 %v3943, %v4099
  %v4141 = vadd.f32 %v3944, %v4102
  %v4142 = vadd.f32 %v3945, %v4107
  %v4143 = vadd.f32 %v3946, %v4110
  %v4144 = vadd.f32 %v3947, %v4115
  %v4145 = vadd.f32 %v3948, %v4118
  %v4146 = vadd.f32 %v3949, %v4123
  %v4147 = vadd.f32 %v3950, %v4126
  %v4148 = vadd.f32 %v3951, %v4131
  %v4149 = vld [vmem:[#allocation4 + $0x38] sm:$0x7]
  %s4150 = scalar_lea.vmem %s3, 320
  %v4151 = vld [vmem:[%s4150] sm:$0xf]
  %v4152 = vld [vmem:[%s4150 + $0x4] sm:$0xf]
  %v4153 = vld [vmem:[%s4150 + $0x8] sm:$0xf]
  %v4154 = vld [vmem:[%s4150 + $0xc] sm:$0xf]
  %v4155 = vld [vmem:[%s4150 + $0x10] sm:$0xf]
  %v4156 = vld [vmem:[%s4150 + $0x14] sm:$0xf]
  %v4157 = vld [vmem:[%s4150 + $0x18] sm:$0xf]
  %v4158 = vld [vmem:[%s4150 + $0x1c] sm:$0xf]
  %v4159 = vld [vmem:[%s4150 + $0x20] sm:$0xf]
  %v4160 = vld [vmem:[%s4150 + $0x24] sm:$0xf]
  %v4161 = vld [vmem:[%s4150 + $0x28] sm:$0xf]
  %v4162 = vld [vmem:[%s4150 + $0x2c] sm:$0xf]
  %v4163 = vld [vmem:[%s4150 + $0x30] sm:$0xf]
  %v4164 = vld [vmem:[%s4150 + $0x34] sm:$0xf]
  %v4165 = vld [vmem:[%s4150 + $0x38] sm:$0xf]
  %v4166 = vld [vmem:[%s4150 + $0x3c] sm:$0xf]
  %v4168 = vshrl.u32 %v3952, 16
  %v4170 = vrot.slane %v4168, 6
  %v4171 = vshll.u32 %v3952, 16
  %v4173 = vrot.slane %v4171, 7
  %v4174 = vor.u32 %v4170, %v4173
  %v4175 = vrot.slane %v3734, 6
  %v4176 = vrot.slane %v3737, 7
  %v4177 = vor.u32 %v4175, %v4176
  %v4178 = vsel %vm193, %v4174, %v4177
  %v4179 = vrot.slane %v3743, 6
  %v4180 = vrot.slane %v3746, 7
  %v4181 = vor.u32 %v4179, %v4180
  %v4182 = vsel %vm193, %v4177, %v4181
  %v4183 = vrot.slane %v3752, 6
  %v4184 = vrot.slane %v3755, 7
  %v4185 = vor.u32 %v4183, %v4184
  %v4186 = vsel %vm193, %v4181, %v4185
  %v4187 = vrot.slane %v3761, 6
  %v4188 = vrot.slane %v3764, 7
  %v4189 = vor.u32 %v4187, %v4188
  %v4190 = vsel %vm193, %v4185, %v4189
  %v4191 = vrot.slane %v3770, 6
  %v4192 = vrot.slane %v3773, 7
  %v4193 = vor.u32 %v4191, %v4192
  %v4194 = vsel %vm193, %v4189, %v4193
  %v4195 = vrot.slane %v3779, 6
  %v4196 = vrot.slane %v3782, 7
  %v4197 = vor.u32 %v4195, %v4196
  %v4198 = vsel %vm193, %v4193, %v4197
  %v4200 = vshrl.u32 %v4149, 16
  %v4202 = vrot.slane %v4200, 6
  %v4203 = vshll.u32 %v4149, 16
  %v4205 = vrot.slane %v4203, 7
  %v4206 = vor.u32 %v4202, %v4205
  %v4207 = vsel %vm193, %v4197, %v4206
  %v4231 = vunpack.c.l.b16 %v4151
  %v4232 = vunpack.c.l.b16 %v4152
  %v4233 = vunpack.c.l.b16 %v4153
  %v4234 = vunpack.c.l.b16 %v4154
  %v4235 = vunpack.c.l.b16 %v4155
  %v4236 = vunpack.c.l.b16 %v4156
  %v4237 = vunpack.c.l.b16 %v4157
  %v4238 = vunpack.c.l.b16 %v4158
  %v4239 = vunpack.c.l.b16 %v4159
  %v4240 = vunpack.c.l.b16 %v4160
  %v4241 = vunpack.c.l.b16 %v4161
  %v4242 = vunpack.c.l.b16 %v4162
  %v4243 = vunpack.c.l.b16 %v4163
  %v4244 = vunpack.c.l.b16 %v4164
  %v4245 = vunpack.c.l.b16 %v4165
  %v4246 = vunpack.c.l.b16 %v4166
  %v4247 = vpack.c.b16 %v4232, %v4231
  %v4248 = vpack.c.b16 %v4234, %v4233
  %v4249 = vpack.c.b16 %v4236, %v4235
  %v4250 = vpack.c.b16 %v4238, %v4237
  %v4251 = vpack.c.b16 %v4240, %v4239
  %v4252 = vpack.c.b16 %v4242, %v4241
  %v4253 = vpack.c.b16 %v4244, %v4243
  %v4254 = vpack.c.b16 %v4246, %v4245
  %4263 = vmatprep.subr.bf16.mxu0 0
  %4264 = vmatpush1.bf16.msra.mxu0 %v4247
  %4265 = vmatprep.subr.bf16.mxu0 0
  %4266 = vmatpush1.bf16.msra.mxu0 %v4248
  %4267 = vmatprep.subr.bf16.mxu0 0
  %4268 = vmatpush1.bf16.msra.mxu0 %v4249
  %4269 = vmatprep.subr.bf16.mxu0 0
  %4270 = vmatpush1.bf16.msra.mxu0 %v4250
  %4271 = vmatprep.subr.bf16.mxu0 0
  %4272 = vmatpush1.bf16.msra.mxu0 %v4251
  %4273 = vmatprep.subr.bf16.mxu0 0
  %4274 = vmatpush1.bf16.msra.mxu0 %v4252
  %4275 = vmatprep.subr.bf16.mxu0 0
  %4276 = vmatpush1.bf16.msra.mxu0 %v4253
  %4277 = vmatprep.subr.bf16.mxu0 0
  %4278 = vmatpush1.bf16.msra.mxu0 %v4254
  %4279 = vmatprep.subr.bf16.mxu0 0
  %4280 = vmatpush1.bf16.msra.mxu0 0
  %4281 = vmatprep.subr.bf16.mxu0 0
  %4282 = vmatpush1.bf16.msra.mxu0 0
  %4283 = vmatprep.subr.bf16.mxu0 0
  %4284 = vmatpush1.bf16.msra.mxu0 0
  %4285 = vmatprep.subr.bf16.mxu0 0
  %4286 = vmatpush1.bf16.msra.mxu0 0
  %4287 = vmatprep.subr.bf16.mxu0 0
  %4288 = vmatpush1.bf16.msra.mxu0 0
  %4289 = vmatprep.subr.bf16.mxu0 0
  %4290 = vmatpush1.bf16.msra.mxu0 0
  %4291 = vmatprep.subr.bf16.mxu0 0
  %4292 = vmatpush1.bf16.msra.mxu0 0
  %4293 = vmatprep.subr.bf16.mxu0 0
  %4294 = vmatpush1.bf16.msra.mxu0 0
  %4295 = vmatprep.mubr.bf16.mxu0 0
  %4296 = vmatmul.mubr.bf16.gmra.mrb[0].mxu0 %v4178
  %v4297 = vpop.f32.mrb[0].mxu0
  %v4298 = vadd.f32 0.0, %v4297
  %v4299 = vpop.f32.mrb[0].mxu0
  %v4300 = vpop.f32.mrb[0].mxu0
  %v4301 = vadd.f32 0.0, %v4300
  %v4302 = vpop.f32.mrb[0].mxu0
  %4303 = vmatprep.mubr.bf16.mxu0 0
  %4304 = vmatmul.mubr.bf16.gmra.mrb[0].mxu0 %v4182
  %v4305 = vpop.f32.mrb[0].mxu0
  %v4306 = vadd.f32 0.0, %v4305
  %v4307 = vpop.f32.mrb[0].mxu0
  %v4308 = vpop.f32.mrb[0].mxu0
  %v4309 = vadd.f32 0.0, %v4308
  %v4310 = vpop.f32.mrb[0].mxu0
  %4311 = vmatprep.mubr.bf16.mxu0 0
  %4312 = vmatmul.mubr.bf16.gmra.mrb[0].mxu0 %v4186
  %v4313 = vpop.f32.mrb[0].mxu0
  %v4314 = vadd.f32 0.0, %v4313
  %v4315 = vpop.f32.mrb[0].mxu0
  %v4316 = vpop.f32.mrb[0].mxu0
  %v4317 = vadd.f32 0.0, %v4316
  %v4318 = vpop.f32.mrb[0].mxu0
  %4319 = vmatprep.mubr.bf16.mxu0 0
  %4320 = vmatmul.mubr.bf16.gmra.mrb[0].mxu0 %v4190
  %v4321 = vpop.f32.mrb[0].mxu0
  %v4322 = vadd.f32 0.0, %v4321
  %v4323 = vpop.f32.mrb[0].mxu0
  %v4324 = vpop.f32.mrb[0].mxu0
  %v4325 = vadd.f32 0.0, %v4324
  %v4326 = vpop.f32.mrb[0].mxu0
  %4327 = vmatprep.mubr.bf16.mxu0 0
  %4328 = vmatmul.mubr.bf16.gmra.mrb[0].mxu0 %v4194
  %v4329 = vpop.f32.mrb[0].mxu0
  %v4330 = vadd.f32 0.0, %v4329
  %v4331 = vpop.f32.mrb[0].mxu0
  %v4332 = vpop.f32.mrb[0].mxu0
  %v4333 = vadd.f32 0.0, %v4332
  %v4334 = vpop.f32.mrb[0].mxu0
  %4335 = vmatprep.mubr.bf16.mxu0 0
  %4336 = vmatmul.mubr.bf16.gmra.mrb[0].mxu0 %v4198
  %v4337 = vpop.f32.mrb[0].mxu0
  %v4338 = vadd.f32 0.0, %v4337
  %v4339 = vpop.f32.mrb[0].mxu0
  %v4340 = vpop.f32.mrb[0].mxu0
  %v4341 = vadd.f32 0.0, %v4340
  %v4342 = vpop.f32.mrb[0].mxu0
  %4343 = vmatprep.mubr.bf16.mxu0 0
  %4344 = vmatmul.mubr.bf16.gmra.mrb[0].mxu0 %v4207
  %v4345 = vpop.f32.mrb[0].mxu0
  %v4346 = vadd.f32 0.0, %v4345
  %v4347 = vpop.f32.mrb[0].mxu0
  %v4348 = vpop.f32.mrb[0].mxu0
  %v4349 = vpop.f32.mrb[0].mxu0
  %4350 = vdwg.mxu0
  %v4351 = vadd.f32 %v4136, %v4298
  %v4352 = vadd.f32 %v4137, %v4301
  %v4353 = vadd.f32 %v4138, %v4306
  %v4354 = vadd.f32 %v4139, %v4309
  %v4355 = vadd.f32 %v4140, %v4314
  %v4356 = vadd.f32 %v4141, %v4317
  %v4357 = vadd.f32 %v4142, %v4322
  %v4358 = vadd.f32 %v4143, %v4325
  %v4359 = vadd.f32 %v4144, %v4330
  %v4360 = vadd.f32 %v4145, %v4333
  %v4361 = vadd.f32 %v4146, %v4338
  %v4362 = vadd.f32 %v4147, %v4341
  %v4363 = vadd.f32 %v4148, %v4346
  %v4364 = vld [vmem:[#allocation4 + $0x8] sm:$0xf8]
  %v4365 = vld [vmem:[#allocation4 + $0x38] sm:$0x7f]
  %s4366 = scalar_lea.vmem %s3, 384
  %v4367 = vld [vmem:[%s4366] sm:$0xf]
  %v4368 = vld [vmem:[%s4366 + $0x4] sm:$0xf]
  %v4369 = vld [vmem:[%s4366 + $0x8] sm:$0xf]
  %v4370 = vld [vmem:[%s4366 + $0xc] sm:$0xf]
  %v4371 = vld [vmem:[%s4366 + $0x10] sm:$0xf]
  %v4372 = vld [vmem:[%s4366 + $0x14] sm:$0xf]
  %v4373 = vld [vmem:[%s4366 + $0x18] sm:$0xf]
  %v4374 = vld [vmem:[%s4366 + $0x1c] sm:$0xf]
  %v4375 = vld [vmem:[%s4366 + $0x20] sm:$0xf]
  %v4376 = vld [vmem:[%s4366 + $0x24] sm:$0xf]
  %v4377 = vld [vmem:[%s4366 + $0x28] sm:$0xf]
  %v4378 = vld [vmem:[%s4366 + $0x2c] sm:$0xf]
  %v4379 = vld [vmem:[%s4366 + $0x30] sm:$0xf]
  %v4380 = vld [vmem:[%s4366 + $0x34] sm:$0xf]
  %v4381 = vld [vmem:[%s4366 + $0x38] sm:$0xf]
  %v4382 = vld [vmem:[%s4366 + $0x3c] sm:$0xf]
  %v4385 = vrot.slane %v4364, 3
  %v4386 = vrot.slane %v3702, 3
  %v4387 = vsel %vm2361, %v4385, %v4386
  %v4388 = vrot.slane %v3703, 3
  %v4389 = vsel %vm2361, %v4386, %v4388
  %v4390 = vrot.slane %v3704, 3
  %v4391 = vsel %vm2361, %v4388, %v4390
  %v4392 = vrot.slane %v3705, 3
  %v4393 = vsel %vm2361, %v4390, %v4392
  %v4394 = vrot.slane %v3706, 3
  %v4395 = vsel %vm2361, %v4392, %v4394
  %v4396 = vrot.slane %v4365, 3
  %v4397 = vsel %vm2361, %v4394, %v4396
  %v4421 = vunpack.c.l.b16 %v4367
  %v4422 = vunpack.c.l.b16 %v4368
  %v4423 = vunpack.c.l.b16 %v4369
  %v4424 = vunpack.c.l.b16 %v4370
  %v4425 = vunpack.c.l.b16 %v4371
  %v4426 = vunpack.c.l.b16 %v4372
  %v4427 = vunpack.c.l.b16 %v4373
  %v4428 = vunpack.c.l.b16 %v4374
  %v4429 = vunpack.c.l.b16 %v4375
  %v4430 = vunpack.c.l.b16 %v4376
  %v4431 = vunpack.c.l.b16 %v4377
  %v4432 = vunpack.c.l.b16 %v4378
  %v4433 = vunpack.c.l.b16 %v4379
  %v4434 = vunpack.c.l.b16 %v4380
  %v4435 = vunpack.c.l.b16 %v4381
  %v4436 = vunpack.c.l.b16 %v4382
  %v4437 = vpack.c.b16 %v4422, %v4421
  %v4438 = vpack.c.b16 %v4424, %v4423
  %v4439 = vpack.c.b16 %v4426, %v4425
  %v4440 = vpack.c.b16 %v4428, %v4427
  %v4441 = vpack.c.b16 %v4430, %v4429
  %v4442 = vpack.c.b16 %v4432, %v4431
  %v4443 = vpack.c.b16 %v4434, %v4433
  %v4444 = vpack.c.b16 %v4436, %v4435
  %4453 = vmatprep.subr.bf16.mxu0 0
  %4454 = vmatpush1.bf16.msra.mxu0 %v4437
  %4455 = vmatprep.subr.bf16.mxu0 0
  %4456 = vmatpush1.bf16.msra.mxu0 %v4438
  %4457 = vmatprep.subr.bf16.mxu0 0
  %4458 = vmatpush1.bf16.msra.mxu0 %v4439
  %4459 = vmatprep.subr.bf16.mxu0 0
  %4460 = vmatpush1.bf16.msra.mxu0 %v4440
  %4461 = vmatprep.subr.bf16.mxu0 0
  %4462 = vmatpush1.bf16.msra.mxu0 %v4441
  %4463 = vmatprep.subr.bf16.mxu0 0
  %4464 = vmatpush1.bf16.msra.mxu0 %v4442
  %4465 = vmatprep.subr.bf16.mxu0 0
  %4466 = vmatpush1.bf16.msra.mxu0 %v4443
  %4467 = vmatprep.subr.bf16.mxu0 0
  %4468 = vmatpush1.bf16.msra.mxu0 %v4444
  %4469 = vmatprep.subr.bf16.mxu0 0
  %4470 = vmatpush1.bf16.msra.mxu0 0
  %4471 = vmatprep.subr.bf16.mxu0 0
  %4472 = vmatpush1.bf16.msra.mxu0 0
  %4473 = vmatprep.subr.bf16.mxu0 0
  %4474 = vmatpush1.bf16.msra.mxu0 0
  %4475 = vmatprep.subr.bf16.mxu0 0
  %4476 = vmatpush1.bf16.msra.mxu0 0
  %4477 = vmatprep.subr.bf16.mxu0 0
  %4478 = vmatpush1.bf16.msra.mxu0 0
  %4479 = vmatprep.subr.bf16.mxu0 0
  %4480 = vmatpush1.bf16.msra.mxu0 0
  %4481 = vmatprep.subr.bf16.mxu0 0
  %4482 = vmatpush1.bf16.msra.mxu0 0
  %4483 = vmatprep.subr.bf16.mxu0 0
  %4484 = vmatpush1.bf16.msra.mxu0 0
  %4485 = vmatprep.mubr.bf16.mxu0 0
  %4486 = vmatmul.mubr.bf16.gmra.mrb[0].mxu0 %v4387
  %v4487 = vpop.f32.mrb[0].mxu0
  %v4488 = vadd.f32 0.0, %v4487
  %v4489 = vpop.f32.mrb[0].mxu0
  %v4490 = vpop.f32.mrb[0].mxu0
  %v4491 = vadd.f32 0.0, %v4490
  %v4492 = vpop.f32.mrb[0].mxu0
  %4493 = vmatprep.mubr.bf16.mxu0 0
  %4494 = vmatmul.mubr.bf16.gmra.mrb[0].mxu0 %v4389
  %v4495 = vpop.f32.mrb[0].mxu0
  %v4496 = vadd.f32 0.0, %v4495
  %v4497 = vpop.f32.mrb[0].mxu0
  %v4498 = vpop.f32.mrb[0].mxu0
  %v4499 = vadd.f32 0.0, %v4498
  %v4500 = vpop.f32.mrb[0].mxu0
  %4501 = vmatprep.mubr.bf16.mxu0 0
  %4502 = vmatmul.mubr.bf16.gmra.mrb[0].mxu0 %v4391
  %v4503 = vpop.f32.mrb[0].mxu0
  %v4504 = vadd.f32 0.0, %v4503
  %v4505 = vpop.f32.mrb[0].mxu0
  %v4506 = vpop.f32.mrb[0].mxu0
  %v4507 = vadd.f32 0.0, %v4506
  %v4508 = vpop.f32.mrb[0].mxu0
  %4509 = vmatprep.mubr.bf16.mxu0 0
  %4510 = vmatmul.mubr.bf16.gmra.mrb[0].mxu0 %v4393
  %v4511 = vpop.f32.mrb[0].mxu0
  %v4512 = vadd.f32 0.0, %v4511
  %v4513 = vpop.f32.mrb[0].mxu0
  %v4514 = vpop.f32.mrb[0].mxu0
  %v4515 = vadd.f32 0.0, %v4514
  %v4516 = vpop.f32.mrb[0].mxu0
  %4517 = vmatprep.mubr.bf16.mxu0 0
  %4518 = vmatmul.mubr.bf16.gmra.mrb[0].mxu0 %v4395
  %v4519 = vpop.f32.mrb[0].mxu0
  %v4520 = vadd.f32 0.0, %v4519
  %v4521 = vpop.f32.mrb[0].mxu0
  %v4522 = vpop.f32.mrb[0].mxu0
  %v4523 = vadd.f32 0.0, %v4522
  %v4524 = vpop.f32.mrb[0].mxu0
  %4525 = vmatprep.mubr.bf16.mxu0 0
  %4526 = vmatmul.mubr.bf16.gmra.mrb[0].mxu0 %v4397
  %v4527 = vpop.f32.mrb[0].mxu0
  %v4528 = vadd.f32 0.0, %v4527
  %v4529 = vpop.f32.mrb[0].mxu0
  %v4530 = vpop.f32.mrb[0].mxu0
  %v4531 = vadd.f32 0.0, %v4530
  %v4532 = vpop.f32.mrb[0].mxu0
  %4533 = vmatprep.mubr.bf16.mxu0 0
  %4534 = vmatmul.mubr.bf16.gmra.mrb[0].mxu0 %v4396
  %v4535 = vpop.f32.mrb[0].mxu0
  %v4536 = vadd.f32 0.0, %v4535
  %v4537 = vpop.f32.mrb[0].mxu0
  %v4538 = vpop.f32.mrb[0].mxu0
  %v4539 = vpop.f32.mrb[0].mxu0
  %4540 = vdwg.mxu0
  %v4541 = vadd.f32 %v4351, %v4488
  %v4542 = vadd.f32 %v4352, %v4491
  %v4543 = vadd.f32 %v4353, %v4496
  %v4544 = vadd.f32 %v4354, %v4499
  %v4545 = vadd.f32 %v4355, %v4504
  %v4546 = vadd.f32 %v4356, %v4507
  %v4547 = vadd.f32 %v4357, %v4512
  %v4548 = vadd.f32 %v4358, %v4515
  %v4549 = vadd.f32 %v4359, %v4520
  %v4550 = vadd.f32 %v4360, %v4523
  %v4551 = vadd.f32 %v4361, %v4528
  %v4552 = vadd.f32 %v4362, %v4531
  %v4553 = vadd.f32 %v4363, %v4536
  %v4554 = vld [vmem:[#allocation4 + $0x38] sm:$0xff]
  %s4555 = scalar_lea.vmem %s3, 448
  %v4556 = vld [vmem:[%s4555] sm:$0xf]
  %v4557 = vld [vmem:[%s4555 + $0x4] sm:$0xf]
  %v4558 = vld [vmem:[%s4555 + $0x8] sm:$0xf]
  %v4559 = vld [vmem:[%s4555 + $0xc] sm:$0xf]
  %v4560 = vld [vmem:[%s4555 + $0x10] sm:$0xf]
  %v4561 = vld [vmem:[%s4555 + $0x14] sm:$0xf]
  %v4562 = vld [vmem:[%s4555 + $0x18] sm:$0xf]
  %v4563 = vld [vmem:[%s4555 + $0x1c] sm:$0xf]
  %v4564 = vld [vmem:[%s4555 + $0x20] sm:$0xf]
  %v4565 = vld [vmem:[%s4555 + $0x24] sm:$0xf]
  %v4566 = vld [vmem:[%s4555 + $0x28] sm:$0xf]
  %v4567 = vld [vmem:[%s4555 + $0x2c] sm:$0xf]
  %v4568 = vld [vmem:[%s4555 + $0x30] sm:$0xf]
  %v4569 = vld [vmem:[%s4555 + $0x34] sm:$0xf]
  %v4570 = vld [vmem:[%s4555 + $0x38] sm:$0xf]
  %v4571 = vld [vmem:[%s4555 + $0x3c] sm:$0xf]
  %v4573 = vshrl.u32 %v4364, 16
  %v4575 = vrot.slane %v4573, 3
  %v4576 = vshll.u32 %v4364, 16
  %v4578 = vrot.slane %v4576, 4
  %v4579 = vor.u32 %v4575, %v4578
  %v4580 = vrot.slane %v3743, 3
  %v4581 = vrot.slane %v3746, 4
  %v4582 = vor.u32 %v4580, %v4581
  %v4583 = vsel %vm2549, %v4579, %v4582
  %v4584 = vrot.slane %v3752, 3
  %v4585 = vrot.slane %v3755, 4
  %v4586 = vor.u32 %v4584, %v4585
  %v4587 = vsel %vm2549, %v4582, %v4586
  %v4588 = vrot.slane %v3761, 3
  %v4589 = vrot.slane %v3764, 4
  %v4590 = vor.u32 %v4588, %v4589
  %v4591 = vsel %vm2549, %v4586, %v4590
  %v4592 = vrot.slane %v3770, 3
  %v4593 = vrot.slane %v3773, 4
  %v4594 = vor.u32 %v4592, %v4593
  %v4595 = vsel %vm2549, %v4590, %v4594
  %v4596 = vrot.slane %v3779, 3
  %v4597 = vrot.slane %v3782, 4
  %v4598 = vor.u32 %v4596, %v4597
  %v4599 = vsel %vm2549, %v4594, %v4598
  %v4601 = vshrl.u32 %v4554, 16
  %v4603 = vrot.slane %v4601, 3
  %v4604 = vshll.u32 %v4554, 16
  %v4606 = vrot.slane %v4604, 4
  %v4607 = vor.u32 %v4603, %v4606
  %v4608 = vsel %vm2549, %v4598, %v4607
  %v4632 = vunpack.c.l.b16 %v4556
  %v4633 = vunpack.c.l.b16 %v4557
  %v4634 = vunpack.c.l.b16 %v4558
  %v4635 = vunpack.c.l.b16 %v4559
  %v4636 = vunpack.c.l.b16 %v4560
  %v4637 = vunpack.c.l.b16 %v4561
  %v4638 = vunpack.c.l.b16 %v4562
  %v4639 = vunpack.c.l.b16 %v4563
  %v4640 = vunpack.c.l.b16 %v4564
  %v4641 = vunpack.c.l.b16 %v4565
  %v4642 = vunpack.c.l.b16 %v4566
  %v4643 = vunpack.c.l.b16 %v4567
  %v4644 = vunpack.c.l.b16 %v4568
  %v4645 = vunpack.c.l.b16 %v4569
  %v4646 = vunpack.c.l.b16 %v4570
  %v4647 = vunpack.c.l.b16 %v4571
  %v4648 = vpack.c.b16 %v4633, %v4632
  %v4649 = vpack.c.b16 %v4635, %v4634
  %v4650 = vpack.c.b16 %v4637, %v4636
  %v4651 = vpack.c.b16 %v4639, %v4638
  %v4652 = vpack.c.b16 %v4641, %v4640
  %v4653 = vpack.c.b16 %v4643, %v4642
  %v4654 = vpack.c.b16 %v4645, %v4644
  %v4655 = vpack.c.b16 %v4647, %v4646
  %4664 = vmatprep.subr.bf16.mxu0 0
  %4665 = vmatpush1.bf16.msra.mxu0 %v4648
  %4666 = vmatprep.subr.bf16.mxu0 0
  %4667 = vmatpush1.bf16.msra.mxu0 %v4649
  %4668 = vmatprep.subr.bf16.mxu0 0
  %4669 = vmatpush1.bf16.msra.mxu0 %v4650
  %4670 = vmatprep.subr.bf16.mxu0 0
  %4671 = vmatpush1.bf16.msra.mxu0 %v4651
  %4672 = vmatprep.subr.bf16.mxu0 0
  %4673 = vmatpush1.bf16.msra.mxu0 %v4652
  %4674 = vmatprep.subr.bf16.mxu0 0
  %4675 = vmatpush1.bf16.msra.mxu0 %v4653
  %4676 = vmatprep.subr.bf16.mxu0 0
  %4677 = vmatpush1.bf16.msra.mxu0 %v4654
  %4678 = vmatprep.subr.bf16.mxu0 0
  %4679 = vmatpush1.bf16.msra.mxu0 %v4655
  %4680 = vmatprep.subr.bf16.mxu0 0
  %4681 = vmatpush1.bf16.msra.mxu0 0
  %4682 = vmatprep.subr.bf16.mxu0 0
  %4683 = vmatpush1.bf16.msra.mxu0 0
  %4684 = vmatprep.subr.bf16.mxu0 0
  %4685 = vmatpush1.bf16.msra.mxu0 0
  %4686 = vmatprep.subr.bf16.mxu0 0
  %4687 = vmatpush1.bf16.msra.mxu0 0
  %4688 = vmatprep.subr.bf16.mxu0 0
  %4689 = vmatpush1.bf16.msra.mxu0 0
  %4690 = vmatprep.subr.bf16.mxu0 0
  %4691 = vmatpush1.bf16.msra.mxu0 0
  %4692 = vmatprep.subr.bf16.mxu0 0
  %4693 = vmatpush1.bf16.msra.mxu0 0
  %4694 = vmatprep.subr.bf16.mxu0 0
  %4695 = vmatpush1.bf16.msra.mxu0 0
  %4696 = vmatprep.mubr.bf16.mxu0 0
  %4697 = vmatmul.mubr.bf16.gmra.mrb[0].mxu0 %v4583
  %v4698 = vpop.f32.mrb[0].mxu0
  %v4699 = vadd.f32 0.0, %v4698
  %v4700 = vpop.f32.mrb[0].mxu0
  %v4701 = vpop.f32.mrb[0].mxu0
  %v4702 = vadd.f32 0.0, %v4701
  %v4703 = vpop.f32.mrb[0].mxu0
  %4704 = vmatprep.mubr.bf16.mxu0 0
  %4705 = vmatmul.mubr.bf16.gmra.mrb[0].mxu0 %v4587
  %v4706 = vpop.f32.mrb[0].mxu0
  %v4707 = vadd.f32 0.0, %v4706
  %v4708 = vpop.f32.mrb[0].mxu0
  %v4709 = vpop.f32.mrb[0].mxu0
  %v4710 = vadd.f32 0.0, %v4709
  %v4711 = vpop.f32.mrb[0].mxu0
  %4712 = vmatprep.mubr.bf16.mxu0 0
  %4713 = vmatmul.mubr.bf16.gmra.mrb[0].mxu0 %v4591
  %v4714 = vpop.f32.mrb[0].mxu0
  %v4715 = vadd.f32 0.0, %v4714
  %v4716 = vpop.f32.mrb[0].mxu0
  %v4717 = vpop.f32.mrb[0].mxu0
  %v4718 = vadd.f32 0.0, %v4717
  %v4719 = vpop.f32.mrb[0].mxu0
  %4720 = vmatprep.mubr.bf16.mxu0 0
  %4721 = vmatmul.mubr.bf16.gmra.mrb[0].mxu0 %v4595
  %v4722 = vpop.f32.mrb[0].mxu0
  %v4723 = vadd.f32 0.0, %v4722
  %v4724 = vpop.f32.mrb[0].mxu0
  %v4725 = vpop.f32.mrb[0].mxu0
  %v4726 = vadd.f32 0.0, %v4725
  %v4727 = vpop.f32.mrb[0].mxu0
  %4728 = vmatprep.mubr.bf16.mxu0 0
  %4729 = vmatmul.mubr.bf16.gmra.mrb[0].mxu0 %v4599
  %v4730 = vpop.f32.mrb[0].mxu0
  %v4731 = vadd.f32 0.0, %v4730
  %v4732 = vpop.f32.mrb[0].mxu0
  %v4733 = vpop.f32.mrb[0].mxu0
  %v4734 = vadd.f32 0.0, %v4733
  %v4735 = vpop.f32.mrb[0].mxu0
  %4736 = vmatprep.mubr.bf16.mxu0 0
  %4737 = vmatmul.mubr.bf16.gmra.mrb[0].mxu0 %v4608
  %v4738 = vpop.f32.mrb[0].mxu0
  %v4739 = vadd.f32 0.0, %v4738
  %v4740 = vpop.f32.mrb[0].mxu0
  %v4741 = vpop.f32.mrb[0].mxu0
  %v4742 = vadd.f32 0.0, %v4741
  %v4743 = vpop.f32.mrb[0].mxu0
  %4744 = vmatprep.mubr.bf16.mxu0 0
  %4745 = vmatmul.mubr.bf16.gmra.mrb[0].mxu0 %v4607
  %v4746 = vpop.f32.mrb[0].mxu0
  %v4747 = vadd.f32 0.0, %v4746
  %v4748 = vpop.f32.mrb[0].mxu0
  %v4749 = vpop.f32.mrb[0].mxu0
  %v4750 = vpop.f32.mrb[0].mxu0
  %4751 = vdwg.mxu0
  %v4752 = vadd.f32 %v4541, %v4699
  %v4753 = vadd.f32 %v4542, %v4702
  %v4754 = vadd.f32 %v4543, %v4707
  %v4755 = vadd.f32 %v4544, %v4710
  %v4756 = vadd.f32 %v4545, %v4715
  %v4757 = vadd.f32 %v4546, %v4718
  %v4758 = vadd.f32 %v4547, %v4723
  %v4759 = vadd.f32 %v4548, %v4726
  %v4760 = vadd.f32 %v4549, %v4731
  %v4761 = vadd.f32 %v4550, %v4734
  %v4762 = vadd.f32 %v4551, %v4739
  %v4763 = vadd.f32 %v4552, %v4742
  %v4764 = vadd.f32 %v4553, %v4747
  %v4765 = vld [vmem:[#allocation4 + $0x8] sm:$0xf0]
  %s4766 = scalar_lea.vmem %s3, 512
  %v4767 = vld [vmem:[%s4766] sm:$0xf]
  %v4768 = vld [vmem:[%s4766 + $0x4] sm:$0xf]
  %v4769 = vld [vmem:[%s4766 + $0x8] sm:$0xf]
  %v4770 = vld [vmem:[%s4766 + $0xc] sm:$0xf]
  %v4771 = vld [vmem:[%s4766 + $0x10] sm:$0xf]
  %v4772 = vld [vmem:[%s4766 + $0x14] sm:$0xf]
  %v4773 = vld [vmem:[%s4766 + $0x18] sm:$0xf]
  %v4774 = vld [vmem:[%s4766 + $0x1c] sm:$0xf]
  %v4775 = vld [vmem:[%s4766 + $0x20] sm:$0xf]
  %v4776 = vld [vmem:[%s4766 + $0x24] sm:$0xf]
  %v4777 = vld [vmem:[%s4766 + $0x28] sm:$0xf]
  %v4778 = vld [vmem:[%s4766 + $0x2c] sm:$0xf]
  %v4779 = vld [vmem:[%s4766 + $0x30] sm:$0xf]
  %v4780 = vld [vmem:[%s4766 + $0x34] sm:$0xf]
  %v4781 = vld [vmem:[%s4766 + $0x38] sm:$0xf]
  %v4782 = vld [vmem:[%s4766 + $0x3c] sm:$0xf]
  %v4785 = vrot.slane %v4765, 4
  %v4786 = vrot.slane %v3702, 4
  %v4787 = vsel %vm2763, %v4785, %v4786
  %v4788 = vrot.slane %v3703, 4
  %v4789 = vsel %vm2763, %v4786, %v4788
  %v4790 = vrot.slane %v3704, 4
  %v4791 = vsel %vm2763, %v4788, %v4790
  %v4792 = vrot.slane %v3705, 4
  %v4793 = vsel %vm2763, %v4790, %v4792
  %v4794 = vrot.slane %v3706, 4
  %v4795 = vsel %vm2763, %v4792, %v4794
  %v4796 = vrot.slane %v4554, 4
  %v4797 = vsel %vm2763, %v4794, %v4796
  %v4821 = vunpack.c.l.b16 %v4767
  %v4822 = vunpack.c.l.b16 %v4768
  %v4823 = vunpack.c.l.b16 %v4769
  %v4824 = vunpack.c.l.b16 %v4770
  %v4825 = vunpack.c.l.b16 %v4771
  %v4826 = vunpack.c.l.b16 %v4772
  %v4827 = vunpack.c.l.b16 %v4773
  %v4828 = vunpack.c.l.b16 %v4774
  %v4829 = vunpack.c.l.b16 %v4775
  %v4830 = vunpack.c.l.b16 %v4776
  %v4831 = vunpack.c.l.b16 %v4777
  %v4832 = vunpack.c.l.b16 %v4778
  %v4833 = vunpack.c.l.b16 %v4779
  %v4834 = vunpack.c.l.b16 %v4780
  %v4835 = vunpack.c.l.b16 %v4781
  %v4836 = vunpack.c.l.b16 %v4782
  %v4837 = vpack.c.b16 %v4822, %v4821
  %v4838 = vpack.c.b16 %v4824, %v4823
  %v4839 = vpack.c.b16 %v4826, %v4825
  %v4840 = vpack.c.b16 %v4828, %v4827
  %v4841 = vpack.c.b16 %v4830, %v4829
  %v4842 = vpack.c.b16 %v4832, %v4831
  %v4843 = vpack.c.b16 %v4834, %v4833
  %v4844 = vpack.c.b16 %v4836, %v4835
  %4853 = vmatprep.subr.bf16.mxu0 0
  %4854 = vmatpush1.bf16.msra.mxu0 %v4837
  %4855 = vmatprep.subr.bf16.mxu0 0
  %4856 = vmatpush1.bf16.msra.mxu0 %v4838
  %4857 = vmatprep.subr.bf16.mxu0 0
  %4858 = vmatpush1.bf16.msra.mxu0 %v4839
  %4859 = vmatprep.subr.bf16.mxu0 0
  %4860 = vmatpush1.bf16.msra.mxu0 %v4840
  %4861 = vmatprep.subr.bf16.mxu0 0
  %4862 = vmatpush1.bf16.msra.mxu0 %v4841
  %4863 = vmatprep.subr.bf16.mxu0 0
  %4864 = vmatpush1.bf16.msra.mxu0 %v4842
  %4865 = vmatprep.subr.bf16.mxu0 0
  %4866 = vmatpush1.bf16.msra.mxu0 %v4843
  %4867 = vmatprep.subr.bf16.mxu0 0
  %4868 = vmatpush1.bf16.msra.mxu0 %v4844
  %4869 = vmatprep.subr.bf16.mxu0 0
  %4870 = vmatpush1.bf16.msra.mxu0 0
  %4871 = vmatprep.subr.bf16.mxu0 0
  %4872 = vmatpush1.bf16.msra.mxu0 0
  %4873 = vmatprep.subr.bf16.mxu0 0
  %4874 = vmatpush1.bf16.msra.mxu0 0
  %4875 = vmatprep.subr.bf16.mxu0 0
  %4876 = vmatpush1.bf16.msra.mxu0 0
  %4877 = vmatprep.subr.bf16.mxu0 0
  %4878 = vmatpush1.bf16.msra.mxu0 0
  %4879 = vmatprep.subr.bf16.mxu0 0
  %4880 = vmatpush1.bf16.msra.mxu0 0
  %4881 = vmatprep.subr.bf16.mxu0 0
  %4882 = vmatpush1.bf16.msra.mxu0 0
  %4883 = vmatprep.subr.bf16.mxu0 0
  %4884 = vmatpush1.bf16.msra.mxu0 0
  %4885 = vmatprep.mubr.bf16.mxu0 0
  %4886 = vmatmul.mubr.bf16.gmra.mrb[0].mxu0 %v4787
  %v4887 = vpop.f32.mrb[0].mxu0
  %v4888 = vadd.f32 0.0, %v4887
  %v4889 = vpop.f32.mrb[0].mxu0
  %v4890 = vpop.f32.mrb[0].mxu0
  %v4891 = vadd.f32 0.0, %v4890
  %v4892 = vpop.f32.mrb[0].mxu0
  %4893 = vmatprep.mubr.bf16.mxu0 0
  %4894 = vmatmul.mubr.bf16.gmra.mrb[0].mxu0 %v4789
  %v4895 = vpop.f32.mrb[0].mxu0
  %v4896 = vadd.f32 0.0, %v4895
  %v4897 = vpop.f32.mrb[0].mxu0
  %v4898 = vpop.f32.mrb[0].mxu0
  %v4899 = vadd.f32 0.0, %v4898
  %v4900 = vpop.f32.mrb[0].mxu0
  %4901 = vmatprep.mubr.bf16.mxu0 0
  %4902 = vmatmul.mubr.bf16.gmra.mrb[0].mxu0 %v4791
  %v4903 = vpop.f32.mrb[0].mxu0
  %v4904 = vadd.f32 0.0, %v4903
  %v4905 = vpop.f32.mrb[0].mxu0
  %v4906 = vpop.f32.mrb[0].mxu0
  %v4907 = vadd.f32 0.0, %v4906
  %v4908 = vpop.f32.mrb[0].mxu0
  %4909 = vmatprep.mubr.bf16.mxu0 0
  %4910 = vmatmul.mubr.bf16.gmra.mrb[0].mxu0 %v4793
  %v4911 = vpop.f32.mrb[0].mxu0
  %v4912 = vadd.f32 0.0, %v4911
  %v4913 = vpop.f32.mrb[0].mxu0
  %v4914 = vpop.f32.mrb[0].mxu0
  %v4915 = vadd.f32 0.0, %v4914
  %v4916 = vpop.f32.mrb[0].mxu0
  %4917 = vmatprep.mubr.bf16.mxu0 0
  %4918 = vmatmul.mubr.bf16.gmra.mrb[0].mxu0 %v4795
  %v4919 = vpop.f32.mrb[0].mxu0
  %v4920 = vadd.f32 0.0, %v4919
  %v4921 = vpop.f32.mrb[0].mxu0
  %v4922 = vpop.f32.mrb[0].mxu0
  %v4923 = vadd.f32 0.0, %v4922
  %v4924 = vpop.f32.mrb[0].mxu0
  %4925 = vmatprep.mubr.bf16.mxu0 0
  %4926 = vmatmul.mubr.bf16.gmra.mrb[0].mxu0 %v4797
  %v4927 = vpop.f32.mrb[0].mxu0
  %v4928 = vadd.f32 0.0, %v4927
  %v4929 = vpop.f32.mrb[0].mxu0
  %v4930 = vpop.f32.mrb[0].mxu0
  %v4931 = vadd.f32 0.0, %v4930
  %v4932 = vpop.f32.mrb[0].mxu0
  %4933 = vmatprep.mubr.bf16.mxu0 0
  %4934 = vmatmul.mubr.bf16.gmra.mrb[0].mxu0 %v4796
  %v4935 = vpop.f32.mrb[0].mxu0
  %v4936 = vadd.f32 0.0, %v4935
  %v4937 = vpop.f32.mrb[0].mxu0
  %v4938 = vpop.f32.mrb[0].mxu0
  %v4939 = vpop.f32.mrb[0].mxu0
  %4940 = vdwg.mxu0
  %v4941 = vadd.f32 %v4752, %v4888
  %v4942 = vadd.f32 %v4753, %v4891
  %v4943 = vadd.f32 %v4754, %v4896
  %v4944 = vadd.f32 %v4755, %v4899
  %v4945 = vadd.f32 %v4756, %v4904
  %v4946 = vadd.f32 %v4757, %v4907
  %v4947 = vadd.f32 %v4758, %v4912
  %v4948 = vadd.f32 %v4759, %v4915
  %v4949 = vadd.f32 %v4760, %v4920
  %v4950 = vadd.f32 %v4761, %v4923
  %v4951 = vadd.f32 %v4762, %v4928
  %v4952 = vadd.f32 %v4763, %v4931
  %v4953 = vadd.f32 %v4764, %v4936
  %v4954 = vlaneseq
  %v4955 = vshrl.u32 %v4954, 7
  %v4956 = vsub.s32 0, %v4955
  %v4957 = vrot.slane %v28, %v4956
  %v4958 = vadd.f32 %v4941, %v4957
  %v4959 = vadd.f32 %v4942, %v4957
  %v4960 = vadd.f32 %v4943, %v4957
  %v4961 = vadd.f32 %v4944, %v4957
  %v4962 = vadd.f32 %v4945, %v4957
  %v4963 = vadd.f32 %v4946, %v4957
  %v4964 = vadd.f32 %v4947, %v4957
  %v4965 = vadd.f32 %v4948, %v4957
  %v4966 = vadd.f32 %v4949, %v4957
  %v4967 = vadd.f32 %v4950, %v4957
  %v4968 = vadd.f32 %v4951, %v4957
  %v4969 = vadd.f32 %v4952, %v4957
  %v4970 = vadd.f32 %v4953, %v4957
  %v4971 = vmax.f32 %v4958, 0.0
  %v4972 = vmax.f32 %v4959, 0.0
  %v4973 = vmax.f32 %v4960, 0.0
  %v4974 = vmax.f32 %v4961, 0.0
  %v4975 = vmax.f32 %v4962, 0.0
  %v4976 = vmax.f32 %v4963, 0.0
  %v4977 = vmax.f32 %v4964, 0.0
  %v4978 = vmax.f32 %v4965, 0.0
  %v4979 = vmax.f32 %v4966, 0.0
  %v4980 = vmax.f32 %v4967, 0.0
  %v4981 = vmax.f32 %v4968, 0.0
  %v4982 = vmax.f32 %v4969, 0.0
  %v4983 = vmax.f32 %v4970, 0.0
  %v4984 = vlaneseq
  %v4985 = vshrl.u32 %v4984, 7
  %v4986 = vsub.s32 0, %v4985
  %v4987 = vrot.slane %v29, %v4986
  %v4988 = vmul.f32 %v4971, %v4987
  %v4989 = vmul.f32 %v4972, %v4987
  %v4990 = vmul.f32 %v4973, %v4987
  %v4991 = vmul.f32 %v4974, %v4987
  %v4992 = vmul.f32 %v4975, %v4987
  %v4993 = vmul.f32 %v4976, %v4987
  %v4994 = vmul.f32 %v4977, %v4987
  %v4995 = vmul.f32 %v4978, %v4987
  %v4996 = vmul.f32 %v4979, %v4987
  %v4997 = vmul.f32 %v4980, %v4987
  %v4998 = vmul.f32 %v4981, %v4987
  %v4999 = vmul.f32 %v4982, %v4987
  %v5000 = vmul.f32 %v4983, %v4987
  %v5001 = vlaneseq
  %v5002 = vshrl.u32 %v5001, 7
  %v5003 = vsub.s32 0, %v5002
  %v5004 = vrot.slane %v30, %v5003
  %v5005 = vadd.f32 %v4988, %v5004
  %v5006 = vadd.f32 %v4989, %v5004
  %v5007 = vadd.f32 %v4990, %v5004
  %v5008 = vadd.f32 %v4991, %v5004
  %v5009 = vadd.f32 %v4992, %v5004
  %v5010 = vadd.f32 %v4993, %v5004
  %v5011 = vadd.f32 %v4994, %v5004
  %v5012 = vadd.f32 %v4995, %v5004
  %v5013 = vadd.f32 %v4996, %v5004
  %v5014 = vadd.f32 %v4997, %v5004
  %v5015 = vadd.f32 %v4998, %v5004
  %v5016 = vadd.f32 %v4999, %v5004
  %v5017 = vadd.f32 %v5000, %v5004
  %v5018 = vld [vmem:[%s6] sm:$0xff]
  %v5019 = vld [vmem:[%s6 + $0x8] sm:$0xff]
  %v5020 = vld [vmem:[%s6 + $0x10] sm:$0xff]
  %v5021 = vld [vmem:[%s6 + $0x18] sm:$0xff]
  %v5022 = vld [vmem:[%s6 + $0x20] sm:$0xff]
  %v5023 = vld [vmem:[%s6 + $0x28] sm:$0xff]
  %v5024 = vld [vmem:[%s6 + $0x30] sm:$0xff]
  %v5025 = vld [vmem:[%s6 + $0x38] sm:$0xff]
  %v5026 = vld [vmem:[%s6 + $0x40] sm:$0xff]
  %v5027 = vld [vmem:[%s6 + $0x48] sm:$0xff]
  %v5028 = vld [vmem:[%s6 + $0x50] sm:$0xff]
  %v5029 = vld [vmem:[%s6 + $0x58] sm:$0xff]
  %v5030 = vld [vmem:[%s6 + $0x60] sm:$0xff]
  %v5031 = vadd.f32 %v5018, %v5005
  %v5032 = vadd.f32 %v5019, %v5006
  %v5033 = vadd.f32 %v5020, %v5007
  %v5034 = vadd.f32 %v5021, %v5008
  %v5035 = vadd.f32 %v5022, %v5009
  %v5036 = vadd.f32 %v5023, %v5010
  %v5037 = vadd.f32 %v5024, %v5011
  %v5038 = vadd.f32 %v5025, %v5012
  %v5039 = vadd.f32 %v5026, %v5013
  %v5040 = vadd.f32 %v5027, %v5014
  %v5041 = vadd.f32 %v5028, %v5015
  %v5042 = vadd.f32 %v5029, %v5016
  %v5043 = vadd.f32 %v5030, %v5017
  %5044 = vst [vmem:[%s6] sm:$0xff] %v5031
  %5045 = vst [vmem:[%s6 + $0x8] sm:$0xff] %v5032
  %5046 = vst [vmem:[%s6 + $0x10] sm:$0xff] %v5033
  %5047 = vst [vmem:[%s6 + $0x18] sm:$0xff] %v5034
  %5048 = vst [vmem:[%s6 + $0x20] sm:$0xff] %v5035
  %5049 = vst [vmem:[%s6 + $0x28] sm:$0xff] %v5036
  %5050 = vst [vmem:[%s6 + $0x30] sm:$0xff] %v5037
  %5051 = vst [vmem:[%s6 + $0x38] sm:$0xff] %v5038
  %5052 = vst [vmem:[%s6 + $0x40] sm:$0xff] %v5039
  %5053 = vst [vmem:[%s6 + $0x48] sm:$0xff] %v5040
  %5054 = vst [vmem:[%s6 + $0x50] sm:$0xff] %v5041
  %5055 = vst [vmem:[%s6 + $0x58] sm:$0xff] %v5042
  %5056 = vst [vmem:[%s6 + $0x60] sm:$0xff] %v5043
  %s5057 = scalar_lea.vmem %s0, 128
  %v5058 = vld [vmem:[%s5057] sm:$0xf]
  %v5059 = vld [vmem:[%s5057 + $0x4] sm:$0xf]
  %v5060 = vld [vmem:[%s5057 + $0x8] sm:$0xf]
  %v5061 = vld [vmem:[%s5057 + $0xc] sm:$0xf]
  %v5062 = vld [vmem:[%s5057 + $0x10] sm:$0xf]
  %v5063 = vld [vmem:[%s5057 + $0x14] sm:$0xf]
  %v5064 = vld [vmem:[%s5057 + $0x18] sm:$0xf]
  %v5065 = vld [vmem:[%s5057 + $0x1c] sm:$0xf]
  %s5066 = scalar_lea.vmem %s0, 160
  %v5067 = vld [vmem:[%s5066] sm:$0xf]
  %v5068 = vld [vmem:[%s5066 + $0x4] sm:$0xf]
  %v5069 = vld [vmem:[%s5066 + $0x8] sm:$0xf]
  %v5070 = vld [vmem:[%s5066 + $0xc] sm:$0xf]
  %v5071 = vld [vmem:[%s5066 + $0x10] sm:$0xf]
  %v5072 = vld [vmem:[%s5066 + $0x14] sm:$0xf]
  %v5073 = vld [vmem:[%s5066 + $0x18] sm:$0xf]
  %v5074 = vld [vmem:[%s5066 + $0x1c] sm:$0xf]
  %v5075 = vmax.bf16 %v5058, %v5067
  %v5076 = vmax.bf16 %v5059, %v5068
  %v5077 = vmax.bf16 %v5060, %v5069
  %v5078 = vmax.bf16 %v5061, %v5070
  %v5079 = vmax.bf16 %v5062, %v5071
  %v5080 = vmax.bf16 %v5063, %v5072
  %v5081 = vmax.bf16 %v5064, %v5073
  %v5082 = vmax.bf16 %v5065, %v5074
  %s5083 = scalar_lea.vmem %s0, 192
  %v5084 = vld [vmem:[%s5083] sm:$0xf]
  %v5085 = vld [vmem:[%s5083 + $0x4] sm:$0xf]
  %v5086 = vld [vmem:[%s5083 + $0x8] sm:$0xf]
  %v5087 = vld [vmem:[%s5083 + $0xc] sm:$0xf]
  %v5088 = vld [vmem:[%s5083 + $0x10] sm:$0xf]
  %v5089 = vld [vmem:[%s5083 + $0x14] sm:$0xf]
  %v5090 = vld [vmem:[%s5083 + $0x18] sm:$0xf]
  %v5091 = vld [vmem:[%s5083 + $0x1c] sm:$0xf]
  %s5092 = scalar_lea.vmem %s0, 224
  %v5093 = vld [vmem:[%s5092] sm:$0xf]
  %v5094 = vld [vmem:[%s5092 + $0x4] sm:$0xf]
  %v5095 = vld [vmem:[%s5092 + $0x8] sm:$0xf]
  %v5096 = vld [vmem:[%s5092 + $0xc] sm:$0xf]
  %v5097 = vld [vmem:[%s5092 + $0x10] sm:$0xf]
  %v5098 = vld [vmem:[%s5092 + $0x14] sm:$0xf]
  %v5099 = vld [vmem:[%s5092 + $0x18] sm:$0xf]
  %v5100 = vld [vmem:[%s5092 + $0x1c] sm:$0xf]
  %v5101 = vmax.bf16 %v5084, %v5093
  %v5102 = vmax.bf16 %v5085, %v5094
  %v5103 = vmax.bf16 %v5086, %v5095
  %v5104 = vmax.bf16 %v5087, %v5096
  %v5105 = vmax.bf16 %v5088, %v5097
  %v5106 = vmax.bf16 %v5089, %v5098
  %v5107 = vmax.bf16 %v5090, %v5099
  %v5108 = vmax.bf16 %v5091, %v5100
  %v5109 = vmax.bf16 %v5075, %v5101
  %v5110 = vmax.bf16 %v5076, %v5102
  %v5111 = vmax.bf16 %v5077, %v5103
  %v5112 = vmax.bf16 %v5078, %v5104
  %v5113 = vmax.bf16 %v5079, %v5105
  %v5114 = vmax.bf16 %v5080, %v5106
  %v5115 = vmax.bf16 %v5081, %v5107
  %v5116 = vmax.bf16 %v5082, %v5108
  %v5118 = vrot.slane %v5109, 6
  %v5119 = vrot.slane %v5118, 4
  %5122 = vst.msk [vmem:[#allocation2 + $0x4] sm:$0xc] %vm115, %v5118
  %5123 = vst.msk [vmem:[#allocation2 + $0x8] sm:$0x3] %vm117, %v5119
  %v5125 = vshll.u32 %v5110, 16
  %v5127 = vrot.slane %v5125, 5
  %v5128 = vshrl.u32 %v5110, 16
  %v5130 = vrot.slane %v5128, 4
  %v5131 = vor.u32 %v5130, %v5127
  %v5132 = vrot.slane %v5131, 4
  %v5135 = vld [vmem:[#allocation2 + $0x8] sm:$0x8]
  %v5136 = vsel %vm132, %v5127, %v5135
  %5137 = vst [vmem:[#allocation2 + $0x8] sm:$0x8] %v5136
  %v5138 = vld [vmem:[#allocation2 + $0xc] sm:$0xf]
  %v5139 = vsel %vm138, %v5132, %v5138
  %5140 = vst [vmem:[#allocation2 + $0xc] sm:$0xf] %v5139
  %v5142 = vrot.slane %v5111, 7
  %v5143 = vrot.slane %v5142, 4
  %5146 = vst.msk [vmem:[#allocation2 + $0x10] sm:$0xe] %vm147, %v5142
  %5147 = vst.msk [vmem:[#allocation2 + $0x14] sm:$0x1] %vm149, %v5143
  %v5149 = vshrl.u32 %v5112, 16
  %v5151 = vrot.slane %v5149, 5
  %v5152 = vshll.u32 %v5112, 16
  %v5154 = vrot.slane %v5152, 6
  %v5155 = vor.u32 %v5151, %v5154
  %v5156 = vrot.slane %v5155, 4
  %v5159 = vld [vmem:[#allocation2 + $0x14] sm:$0xc]
  %v5160 = vsel %vm164, %v5155, %v5159
  %5161 = vst [vmem:[#allocation2 + $0x14] sm:$0xc] %v5160
  %v5162 = vld [vmem:[#allocation2 + $0x18] sm:$0x7]
  %v5163 = vsel %vm170, %v5156, %v5162
  %5164 = vst [vmem:[#allocation2 + $0x18] sm:$0x7] %v5163
  %5165 = vst.msk [vmem:[#allocation2 + $0x1c] sm:$0xf] %vm31, %v5113
  %v5167 = vshrl.u32 %v5114, 16
  %v5169 = vrot.slane %v5167, 6
  %v5170 = vshll.u32 %v5114, 16
  %v5172 = vrot.slane %v5170, 7
  %v5173 = vor.u32 %v5169, %v5172
  %v5174 = vrot.slane %v5173, 4
  %v5177 = vld [vmem:[#allocation2 + $0x20] sm:$0xe]
  %v5178 = vsel %vm188, %v5173, %v5177
  %5179 = vst [vmem:[#allocation2 + $0x20] sm:$0xe] %v5178
  %v5180 = vld [vmem:[#allocation2 + $0x24] sm:$0x3]
  %v5181 = vsel %vm194, %v5174, %v5180
  %5182 = vst [vmem:[#allocation2 + $0x24] sm:$0x3] %v5181
  %v5184 = vrot.slane %v5115, 5
  %v5185 = vrot.slane %v5184, 4
  %5188 = vst.msk [vmem:[#allocation2 + $0x24] sm:$0x8] %vm203, %v5184
  %5189 = vst.msk [vmem:[#allocation2 + $0x28] sm:$0x7] %vm205, %v5185
  %v5191 = vshrl.u32 %v5116, 16
  %v5193 = vrot.slane %v5191, 7
  %v5194 = vshll.u32 %v5116, 16
  %v5196 = vor.u32 %v5193, %v5194
  %v5197 = vrot.slane %v5193, 4
  %v5200 = vld [vmem:[#allocation2 + $0x2c] sm:$0xf]
  %v5201 = vsel %vm218, %v5196, %v5200
  %5202 = vst [vmem:[#allocation2 + $0x2c] sm:$0xf] %v5201
  %v5203 = vld [vmem:[#allocation2 + $0x30] sm:$0x1]
  %v5204 = vsel %vm224, %v5197, %v5203
  %5205 = vst [vmem:[#allocation2 + $0x30] sm:$0x1] %v5204
  %v5206 = vld [vmem:[#allocation2] sm:$0xf]
  %v5207 = vld [vmem:[#allocation2 + $0x4] sm:$0xf]
  %v5208 = vld [vmem:[#allocation2 + $0x8] sm:$0xf]
  %v5209 = vld [vmem:[#allocation2 + $0xc] sm:$0xf]
  %v5210 = vld [vmem:[#allocation2 + $0x10] sm:$0xf]
  %v5211 = vld [vmem:[#allocation2 + $0x14] sm:$0xf]
  %v5212 = vld [vmem:[#allocation2 + $0x18] sm:$0xf]
  %v5213 = vld [vmem:[#allocation2 + $0x1c] sm:$0xf]
  %v5214 = vld [vmem:[#allocation2 + $0x20] sm:$0xf]
  %v5215 = vld [vmem:[#allocation2 + $0x24] sm:$0xf]
  %v5216 = vld [vmem:[#allocation2 + $0x28] sm:$0xf]
  %v5217 = vld [vmem:[#allocation2 + $0x2c] sm:$0xf]
  %v5218 = vld [vmem:[#allocation2 + $0x30] sm:$0xf]
  %v5219 = vld [vmem:[%s1] sm:$0x3]
  %v5220 = vld [vmem:[#allocation2 + $0x34] sm:$0x1]
  %v5221 = vld [vmem:[%s243] sm:$0x3]
  %v5236 = vunpack.c.l.b16 %v5206
  %v5237 = vunpack.c.l.b16 %v5207
  %v5238 = vunpack.c.l.b16 %v5208
  %v5239 = vunpack.c.l.b16 %v5209
  %v5240 = vunpack.c.l.b16 %v5210
  %v5241 = vunpack.c.l.b16 %v5211
  %v5242 = vunpack.c.l.b16 %v5212
  %v5243 = vunpack.c.l.b16 %v5213
  %v5244 = vunpack.c.l.b16 %v5214
  %v5245 = vunpack.c.l.b16 %v5215
  %v5246 = vunpack.c.l.b16 %v5216
  %v5247 = vunpack.c.l.b16 %v5217
  %v5248 = vunpack.c.l.b16 %v5218
  %v5249 = vunpack.c.l.b16 %v5220
  %v5250 = vpack.c.b16 %v5237, %v5236
  %v5251 = vpack.c.b16 %v5239, %v5238
  %v5252 = vpack.c.b16 %v5241, %v5240
  %v5253 = vpack.c.b16 %v5243, %v5242
  %v5254 = vpack.c.b16 %v5245, %v5244
  %v5255 = vpack.c.b16 %v5247, %v5246
  %v5256 = vpack.c.b16 %v5249, %v5248
  %v5258 = vshrl.u32 %v5250, 16
  %v5260 = vshll.u32 %v5250, 16
  %v5262 = vrot.slane %v5260, 1
  %v5263 = vor.u32 %v5258, %v5262
  %v5265 = vshll.u32 %v5251, 16
  %v5267 = vrot.slane %v5265, 1
  %v5268 = vsel %vm280, %v5263, %v5267
  %v5269 = vshrl.u32 %v5251, 16
  %v5271 = vor.u32 %v5269, %v5267
  %v5273 = vshll.u32 %v5252, 16
  %v5275 = vrot.slane %v5273, 1
  %v5276 = vsel %vm280, %v5271, %v5275
  %v5277 = vshrl.u32 %v5252, 16
  %v5279 = vor.u32 %v5277, %v5275
  %v5281 = vshll.u32 %v5253, 16
  %v5283 = vrot.slane %v5281, 1
  %v5284 = vsel %vm280, %v5279, %v5283
  %v5285 = vshrl.u32 %v5253, 16
  %v5287 = vor.u32 %v5285, %v5283
  %v5289 = vshll.u32 %v5254, 16
  %v5291 = vrot.slane %v5289, 1
  %v5292 = vsel %vm280, %v5287, %v5291
  %v5293 = vshrl.u32 %v5254, 16
  %v5295 = vor.u32 %v5293, %v5291
  %v5297 = vshll.u32 %v5255, 16
  %v5299 = vrot.slane %v5297, 1
  %v5300 = vsel %vm280, %v5295, %v5299
  %v5301 = vshrl.u32 %v5255, 16
  %v5303 = vor.u32 %v5301, %v5299
  %v5305 = vshll.u32 %v5256, 16
  %v5307 = vrot.slane %v5305, 1
  %v5308 = vsel %vm280, %v5303, %v5307
  %v5309 = vshrl.u32 %v5256, 16
  %v5311 = vor.u32 %v5309, %v5307
  %v5313 = vsel %vm336, %v5268, 0
  %v5316 = vsel %vm336, %v5276, 0
  %v5319 = vsel %vm336, %v5284, 0
  %v5322 = vsel %vm336, %v5292, 0
  %v5325 = vsel %vm336, %v5300, 0
  %v5328 = vsel %vm336, %v5308, 0
  %v5331 = vsel %vm336, %v5311, 0
  %v5334 = vsel %vm358, %v5221, 0
  %5336 = vmatprep.subr.bf16.mxu0 0
  %5337 = vmatpush1.bf16.msra.mxu0 %v5334
  %5338 = vmatprep.subr.bf16.mxu0 0
  %5339 = vmatpush1.bf16.msra.mxu0 0
  %5340 = vmatprep.subr.bf16.mxu0 0
  %5341 = vmatpush1.bf16.msra.mxu0 0
  %5342 = vmatprep.subr.bf16.mxu0 0
  %5343 = vmatpush1.bf16.msra.mxu0 0
  %5344 = vmatprep.subr.bf16.mxu0 0
  %5345 = vmatpush1.bf16.msra.mxu0 0
  %5346 = vmatprep.subr.bf16.mxu0 0
  %5347 = vmatpush1.bf16.msra.mxu0 0
  %5348 = vmatprep.subr.bf16.mxu0 0
  %5349 = vmatpush1.bf16.msra.mxu0 0
  %5350 = vmatprep.subr.bf16.mxu0 0
  %5351 = vmatpush1.bf16.msra.mxu0 0
  %5352 = vmatprep.subr.bf16.mxu0 0
  %5353 = vmatpush1.bf16.msra.mxu0 0
  %5354 = vmatprep.subr.bf16.mxu0 0
  %5355 = vmatpush1.bf16.msra.mxu0 0
  %5356 = vmatprep.subr.bf16.mxu0 0
  %5357 = vmatpush1.bf16.msra.mxu0 0
  %5358 = vmatprep.subr.bf16.mxu0 0
  %5359 = vmatpush1.bf16.msra.mxu0 0
  %5360 = vmatprep.subr.bf16.mxu0 0
  %5361 = vmatpush1.bf16.msra.mxu0 0
  %5362 = vmatprep.subr.bf16.mxu0 0
  %5363 = vmatpush1.bf16.msra.mxu0 0
  %5364 = vmatprep.subr.bf16.mxu0 0
  %5365 = vmatpush1.bf16.msra.mxu0 0
  %5366 = vmatprep.subr.bf16.mxu0 0
  %5367 = vmatpush1.bf16.msra.mxu0 0
  %5368 = vmatprep.mubr.bf16.mxu0 0
  %5369 = vmatmul.mubr.bf16.gmra.mrb[0].mxu0 %v5313
  %v5370 = vpop.f32.mrb[0].mxu0
  %v5371 = vadd.f32 0.0, %v5370
  %v5372 = vpop.f32.mrb[0].mxu0
  %v5373 = vpop.f32.mrb[0].mxu0
  %v5374 = vadd.f32 0.0, %v5373
  %v5375 = vpop.f32.mrb[0].mxu0
  %5376 = vmatprep.mubr.bf16.mxu0 0
  %5377 = vmatmul.mubr.bf16.gmra.mrb[0].mxu0 %v5316
  %v5378 = vpop.f32.mrb[0].mxu0
  %v5379 = vadd.f32 0.0, %v5378
  %v5380 = vpop.f32.mrb[0].mxu0
  %v5381 = vpop.f32.mrb[0].mxu0
  %v5382 = vadd.f32 0.0, %v5381
  %v5383 = vpop.f32.mrb[0].mxu0
  %5384 = vmatprep.mubr.bf16.mxu0 0
  %5385 = vmatmul.mubr.bf16.gmra.mrb[0].mxu0 %v5319
  %v5386 = vpop.f32.mrb[0].mxu0
  %v5387 = vadd.f32 0.0, %v5386
  %v5388 = vpop.f32.mrb[0].mxu0
  %v5389 = vpop.f32.mrb[0].mxu0
  %v5390 = vadd.f32 0.0, %v5389
  %v5391 = vpop.f32.mrb[0].mxu0
  %5392 = vmatprep.mubr.bf16.mxu0 0
  %5393 = vmatmul.mubr.bf16.gmra.mrb[0].mxu0 %v5322
  %v5394 = vpop.f32.mrb[0].mxu0
  %v5395 = vadd.f32 0.0, %v5394
  %v5396 = vpop.f32.mrb[0].mxu0
  %v5397 = vpop.f32.mrb[0].mxu0
  %v5398 = vadd.f32 0.0, %v5397
  %v5399 = vpop.f32.mrb[0].mxu0
  %5400 = vmatprep.mubr.bf16.mxu0 0
  %5401 = vmatmul.mubr.bf16.gmra.mrb[0].mxu0 %v5325
  %v5402 = vpop.f32.mrb[0].mxu0
  %v5403 = vadd.f32 0.0, %v5402
  %v5404 = vpop.f32.mrb[0].mxu0
  %v5405 = vpop.f32.mrb[0].mxu0
  %v5406 = vadd.f32 0.0, %v5405
  %v5407 = vpop.f32.mrb[0].mxu0
  %5408 = vmatprep.mubr.bf16.mxu0 0
  %5409 = vmatmul.mubr.bf16.gmra.mrb[0].mxu0 %v5328
  %v5410 = vpop.f32.mrb[0].mxu0
  %v5411 = vadd.f32 0.0, %v5410
  %v5412 = vpop.f32.mrb[0].mxu0
  %v5413 = vpop.f32.mrb[0].mxu0
  %v5414 = vadd.f32 0.0, %v5413
  %v5415 = vpop.f32.mrb[0].mxu0
  %5416 = vmatprep.mubr.bf16.mxu0 0
  %5417 = vmatmul.mubr.bf16.gmra.mrb[0].mxu0 %v5331
  %v5418 = vpop.f32.mrb[0].mxu0
  %v5419 = vadd.f32 0.0, %v5418
  %v5420 = vpop.f32.mrb[0].mxu0
  %v5421 = vpop.f32.mrb[0].mxu0
  %v5422 = vpop.f32.mrb[0].mxu0
  %5423 = vdwg.mxu0
  %v5424 = vpack.c.b16 %v5248, %v5248
  %v5425 = vsel %vm336, %v5250, 0
  %v5427 = vsel %vm336, %v5251, 0
  %v5429 = vsel %vm336, %v5252, 0
  %v5431 = vsel %vm336, %v5253, 0
  %v5433 = vsel %vm336, %v5254, 0
  %v5435 = vsel %vm336, %v5255, 0
  %v5438 = vsel %vm336, %v5424, 0
  %v5441 = vsel %vm358, %v5219, 0
  %5443 = vmatprep.subr.bf16.mxu0 0
  %5444 = vmatpush1.bf16.msra.mxu0 %v5441
  %5445 = vmatprep.subr.bf16.mxu0 0
  %5446 = vmatpush1.bf16.msra.mxu0 0
  %5447 = vmatprep.subr.bf16.mxu0 0
  %5448 = vmatpush1.bf16.msra.mxu0 0
  %5449 = vmatprep.subr.bf16.mxu0 0
  %5450 = vmatpush1.bf16.msra.mxu0 0
  %5451 = vmatprep.subr.bf16.mxu0 0
  %5452 = vmatpush1.bf16.msra.mxu0 0
  %5453 = vmatprep.subr.bf16.mxu0 0
  %5454 = vmatpush1.bf16.msra.mxu0 0
  %5455 = vmatprep.subr.bf16.mxu0 0
  %5456 = vmatpush1.bf16.msra.mxu0 0
  %5457 = vmatprep.subr.bf16.mxu0 0
  %5458 = vmatpush1.bf16.msra.mxu0 0
  %5459 = vmatprep.subr.bf16.mxu0 0
  %5460 = vmatpush1.bf16.msra.mxu0 0
  %5461 = vmatprep.subr.bf16.mxu0 0
  %5462 = vmatpush1.bf16.msra.mxu0 0
  %5463 = vmatprep.subr.bf16.mxu0 0
  %5464 = vmatpush1.bf16.msra.mxu0 0
  %5465 = vmatprep.subr.bf16.mxu0 0
  %5466 = vmatpush1.bf16.msra.mxu0 0
  %5467 = vmatprep.subr.bf16.mxu0 0
  %5468 = vmatpush1.bf16.msra.mxu0 0
  %5469 = vmatprep.subr.bf16.mxu0 0
  %5470 = vmatpush1.bf16.msra.mxu0 0
  %5471 = vmatprep.subr.bf16.mxu0 0
  %5472 = vmatpush1.bf16.msra.mxu0 0
  %5473 = vmatprep.subr.bf16.mxu0 0
  %5474 = vmatpush1.bf16.msra.mxu0 0
  %5475 = vmatprep.mubr.bf16.mxu0 0
  %5476 = vmatmul.mubr.bf16.gmra.mrb[0].mxu0 %v5425
  %v5477 = vpop.f32.mrb[0].mxu0
  %v5478 = vadd.f32 %v5371, %v5477
  %v5479 = vpop.f32.mrb[0].mxu0
  %v5480 = vpop.f32.mrb[0].mxu0
  %v5481 = vadd.f32 %v5374, %v5480
  %v5482 = vpop.f32.mrb[0].mxu0
  %5483 = vmatprep.mubr.bf16.mxu0 0
  %5484 = vmatmul.mubr.bf16.gmra.mrb[0].mxu0 %v5427
  %v5485 = vpop.f32.mrb[0].mxu0
  %v5486 = vadd.f32 %v5379, %v5485
  %v5487 = vpop.f32.mrb[0].mxu0
  %v5488 = vpop.f32.mrb[0].mxu0
  %v5489 = vadd.f32 %v5382, %v5488
  %v5490 = vpop.f32.mrb[0].mxu0
  %5491 = vmatprep.mubr.bf16.mxu0 0
  %5492 = vmatmul.mubr.bf16.gmra.mrb[0].mxu0 %v5429
  %v5493 = vpop.f32.mrb[0].mxu0
  %v5494 = vadd.f32 %v5387, %v5493
  %v5495 = vpop.f32.mrb[0].mxu0
  %v5496 = vpop.f32.mrb[0].mxu0
  %v5497 = vadd.f32 %v5390, %v5496
  %v5498 = vpop.f32.mrb[0].mxu0
  %5499 = vmatprep.mubr.bf16.mxu0 0
  %5500 = vmatmul.mubr.bf16.gmra.mrb[0].mxu0 %v5431
  %v5501 = vpop.f32.mrb[0].mxu0
  %v5502 = vadd.f32 %v5395, %v5501
  %v5503 = vpop.f32.mrb[0].mxu0
  %v5504 = vpop.f32.mrb[0].mxu0
  %v5505 = vadd.f32 %v5398, %v5504
  %v5506 = vpop.f32.mrb[0].mxu0
  %5507 = vmatprep.mubr.bf16.mxu0 0
  %5508 = vmatmul.mubr.bf16.gmra.mrb[0].mxu0 %v5433
  %v5509 = vpop.f32.mrb[0].mxu0
  %v5510 = vadd.f32 %v5403, %v5509
  %v5511 = vpop.f32.mrb[0].mxu0
  %v5512 = vpop.f32.mrb[0].mxu0
  %v5513 = vadd.f32 %v5406, %v5512
  %v5514 = vpop.f32.mrb[0].mxu0
  %5515 = vmatprep.mubr.bf16.mxu0 0
  %5516 = vmatmul.mubr.bf16.gmra.mrb[0].mxu0 %v5435
  %v5517 = vpop.f32.mrb[0].mxu0
  %v5518 = vadd.f32 %v5411, %v5517
  %v5519 = vpop.f32.mrb[0].mxu0
  %v5520 = vpop.f32.mrb[0].mxu0
  %v5521 = vadd.f32 %v5414, %v5520
  %v5522 = vpop.f32.mrb[0].mxu0
  %5523 = vmatprep.mubr.bf16.mxu0 0
  %5524 = vmatmul.mubr.bf16.gmra.mrb[0].mxu0 %v5438
  %v5525 = vpop.f32.mrb[0].mxu0
  %v5526 = vadd.f32 %v5419, %v5525
  %v5527 = vpop.f32.mrb[0].mxu0
  %v5528 = vpop.f32.mrb[0].mxu0
  %v5529 = vpop.f32.mrb[0].mxu0
  %5530 = vdwg.mxu0
  %v5531 = vld [vmem:[#allocation2 + $0x4] sm:$0xe]
  %v5532 = vld [vmem:[#allocation2 + $0x8] sm:$0xf]
  %v5533 = vld [vmem:[#allocation2 + $0xc] sm:$0xf]
  %v5534 = vld [vmem:[#allocation2 + $0x10] sm:$0xf]
  %v5535 = vld [vmem:[#allocation2 + $0x14] sm:$0xf]
  %v5536 = vld [vmem:[#allocation2 + $0x18] sm:$0xf]
  %v5537 = vld [vmem:[#allocation2 + $0x1c] sm:$0xf]
  %v5538 = vld [vmem:[#allocation2 + $0x20] sm:$0xf]
  %v5539 = vld [vmem:[#allocation2 + $0x24] sm:$0xf]
  %v5540 = vld [vmem:[#allocation2 + $0x28] sm:$0xf]
  %v5541 = vld [vmem:[#allocation2 + $0x2c] sm:$0xf]
  %v5542 = vld [vmem:[#allocation2 + $0x30] sm:$0xf]
  %v5543 = vld [vmem:[#allocation2 + $0x34] sm:$0xf]
  %v5544 = vld [vmem:[#allocation2 + $0x38] sm:$0x3]
  %v5545 = vld [vmem:[%s571] sm:$0x3]
  %v5560 = vunpack.c.l.b16 %v5531
  %v5561 = vunpack.c.l.b16 %v5532
  %v5562 = vunpack.c.l.b16 %v5533
  %v5563 = vunpack.c.l.b16 %v5534
  %v5564 = vunpack.c.l.b16 %v5535
  %v5565 = vunpack.c.l.b16 %v5536
  %v5566 = vunpack.c.l.b16 %v5537
  %v5567 = vunpack.c.l.b16 %v5538
  %v5568 = vunpack.c.l.b16 %v5539
  %v5569 = vunpack.c.l.b16 %v5540
  %v5570 = vunpack.c.l.b16 %v5541
  %v5571 = vunpack.c.l.b16 %v5542
  %v5572 = vunpack.c.l.b16 %v5543
  %v5573 = vunpack.c.l.b16 %v5544
  %v5574 = vpack.c.b16 %v5561, %v5560
  %v5575 = vpack.c.b16 %v5563, %v5562
  %v5576 = vpack.c.b16 %v5565, %v5564
  %v5577 = vpack.c.b16 %v5567, %v5566
  %v5578 = vpack.c.b16 %v5569, %v5568
  %v5579 = vpack.c.b16 %v5571, %v5570
  %v5580 = vpack.c.b16 %v5573, %v5572
  %v5582 = vshrl.u32 %v5574, 16
  %v5584 = vrot.slane %v5582, 1
  %v5585 = vshll.u32 %v5574, 16
  %v5587 = vrot.slane %v5585, 2
  %v5588 = vor.u32 %v5584, %v5587
  %v5590 = vshrl.u32 %v5575, 16
  %v5592 = vrot.slane %v5590, 1
  %v5593 = vshll.u32 %v5575, 16
  %v5595 = vrot.slane %v5593, 2
  %v5596 = vor.u32 %v5592, %v5595
  %v5597 = vsel %vm608, %v5588, %v5596
  %v5599 = vshrl.u32 %v5576, 16
  %v5601 = vrot.slane %v5599, 1
  %v5602 = vshll.u32 %v5576, 16
  %v5604 = vrot.slane %v5602, 2
  %v5605 = vor.u32 %v5601, %v5604
  %v5606 = vsel %vm608, %v5596, %v5605
  %v5608 = vshrl.u32 %v5577, 16
  %v5610 = vrot.slane %v5608, 1
  %v5611 = vshll.u32 %v5577, 16
  %v5613 = vrot.slane %v5611, 2
  %v5614 = vor.u32 %v5610, %v5613
  %v5615 = vsel %vm608, %v5605, %v5614
  %v5617 = vshrl.u32 %v5578, 16
  %v5619 = vrot.slane %v5617, 1
  %v5620 = vshll.u32 %v5578, 16
  %v5622 = vrot.slane %v5620, 2
  %v5623 = vor.u32 %v5619, %v5622
  %v5624 = vsel %vm608, %v5614, %v5623
  %v5626 = vshrl.u32 %v5579, 16
  %v5628 = vrot.slane %v5626, 1
  %v5629 = vshll.u32 %v5579, 16
  %v5631 = vrot.slane %v5629, 2
  %v5632 = vor.u32 %v5628, %v5631
  %v5633 = vsel %vm608, %v5623, %v5632
  %v5635 = vshrl.u32 %v5580, 16
  %v5637 = vrot.slane %v5635, 1
  %v5638 = vshll.u32 %v5580, 16
  %v5640 = vrot.slane %v5638, 2
  %v5641 = vor.u32 %v5637, %v5640
  %v5642 = vsel %vm608, %v5632, %v5641
  %v5644 = vsel %vm336, %v5597, 0
  %v5647 = vsel %vm336, %v5606, 0
  %v5650 = vsel %vm336, %v5615, 0
  %v5653 = vsel %vm336, %v5624, 0
  %v5656 = vsel %vm336, %v5633, 0
  %v5659 = vsel %vm336, %v5642, 0
  %v5662 = vsel %vm336, %v5641, 0
  %v5665 = vsel %vm358, %v5545, 0
  %5667 = vmatprep.subr.bf16.mxu0 0
  %5668 = vmatpush1.bf16.msra.mxu0 %v5665
  %5669 = vmatprep.subr.bf16.mxu0 0
  %5670 = vmatpush1.bf16.msra.mxu0 0
  %5671 = vmatprep.subr.bf16.mxu0 0
  %5672 = vmatpush1.bf16.msra.mxu0 0
  %5673 = vmatprep.subr.bf16.mxu0 0
  %5674 = vmatpush1.bf16.msra.mxu0 0
  %5675 = vmatprep.subr.bf16.mxu0 0
  %5676 = vmatpush1.bf16.msra.mxu0 0
  %5677 = vmatprep.subr.bf16.mxu0 0
  %5678 = vmatpush1.bf16.msra.mxu0 0
  %5679 = vmatprep.subr.bf16.mxu0 0
  %5680 = vmatpush1.bf16.msra.mxu0 0
  %5681 = vmatprep.subr.bf16.mxu0 0
  %5682 = vmatpush1.bf16.msra.mxu0 0
  %5683 = vmatprep.subr.bf16.mxu0 0
  %5684 = vmatpush1.bf16.msra.mxu0 0
  %5685 = vmatprep.subr.bf16.mxu0 0
  %5686 = vmatpush1.bf16.msra.mxu0 0
  %5687 = vmatprep.subr.bf16.mxu0 0
  %5688 = vmatpush1.bf16.msra.mxu0 0
  %5689 = vmatprep.subr.bf16.mxu0 0
  %5690 = vmatpush1.bf16.msra.mxu0 0
  %5691 = vmatprep.subr.bf16.mxu0 0
  %5692 = vmatpush1.bf16.msra.mxu0 0
  %5693 = vmatprep.subr.bf16.mxu0 0
  %5694 = vmatpush1.bf16.msra.mxu0 0
  %5695 = vmatprep.subr.bf16.mxu0 0
  %5696 = vmatpush1.bf16.msra.mxu0 0
  %5697 = vmatprep.subr.bf16.mxu0 0
  %5698 = vmatpush1.bf16.msra.mxu0 0
  %5699 = vmatprep.mubr.bf16.mxu0 0
  %5700 = vmatmul.mubr.bf16.gmra.mrb[0].mxu0 %v5644
  %v5701 = vpop.f32.mrb[0].mxu0
  %v5702 = vadd.f32 0.0, %v5701
  %v5703 = vpop.f32.mrb[0].mxu0
  %v5704 = vpop.f32.mrb[0].mxu0
  %v5705 = vadd.f32 0.0, %v5704
  %v5706 = vpop.f32.mrb[0].mxu0
  %5707 = vmatprep.mubr.bf16.mxu0 0
  %5708 = vmatmul.mubr.bf16.gmra.mrb[0].mxu0 %v5647
  %v5709 = vpop.f32.mrb[0].mxu0
  %v5710 = vadd.f32 0.0, %v5709
  %v5711 = vpop.f32.mrb[0].mxu0
  %v5712 = vpop.f32.mrb[0].mxu0
  %v5713 = vadd.f32 0.0, %v5712
  %v5714 = vpop.f32.mrb[0].mxu0
  %5715 = vmatprep.mubr.bf16.mxu0 0
  %5716 = vmatmul.mubr.bf16.gmra.mrb[0].mxu0 %v5650
  %v5717 = vpop.f32.mrb[0].mxu0
  %v5718 = vadd.f32 0.0, %v5717
  %v5719 = vpop.f32.mrb[0].mxu0
  %v5720 = vpop.f32.mrb[0].mxu0
  %v5721 = vadd.f32 0.0, %v5720
  %v5722 = vpop.f32.mrb[0].mxu0
  %5723 = vmatprep.mubr.bf16.mxu0 0
  %5724 = vmatmul.mubr.bf16.gmra.mrb[0].mxu0 %v5653
  %v5725 = vpop.f32.mrb[0].mxu0
  %v5726 = vadd.f32 0.0, %v5725
  %v5727 = vpop.f32.mrb[0].mxu0
  %v5728 = vpop.f32.mrb[0].mxu0
  %v5729 = vadd.f32 0.0, %v5728
  %v5730 = vpop.f32.mrb[0].mxu0
  %5731 = vmatprep.mubr.bf16.mxu0 0
  %5732 = vmatmul.mubr.bf16.gmra.mrb[0].mxu0 %v5656
  %v5733 = vpop.f32.mrb[0].mxu0
  %v5734 = vadd.f32 0.0, %v5733
  %v5735 = vpop.f32.mrb[0].mxu0
  %v5736 = vpop.f32.mrb[0].mxu0
  %v5737 = vadd.f32 0.0, %v5736
  %v5738 = vpop.f32.mrb[0].mxu0
  %5739 = vmatprep.mubr.bf16.mxu0 0
  %5740 = vmatmul.mubr.bf16.gmra.mrb[0].mxu0 %v5659
  %v5741 = vpop.f32.mrb[0].mxu0
  %v5742 = vadd.f32 0.0, %v5741
  %v5743 = vpop.f32.mrb[0].mxu0
  %v5744 = vpop.f32.mrb[0].mxu0
  %v5745 = vadd.f32 0.0, %v5744
  %v5746 = vpop.f32.mrb[0].mxu0
  %5747 = vmatprep.mubr.bf16.mxu0 0
  %5748 = vmatmul.mubr.bf16.gmra.mrb[0].mxu0 %v5662
  %v5749 = vpop.f32.mrb[0].mxu0
  %v5750 = vadd.f32 0.0, %v5749
  %v5751 = vpop.f32.mrb[0].mxu0
  %v5752 = vpop.f32.mrb[0].mxu0
  %v5753 = vpop.f32.mrb[0].mxu0
  %5754 = vdwg.mxu0
  %v5755 = vadd.f32 %v5478, %v5702
  %v5756 = vadd.f32 %v5481, %v5705
  %v5757 = vadd.f32 %v5486, %v5710
  %v5758 = vadd.f32 %v5489, %v5713
  %v5759 = vadd.f32 %v5494, %v5718
  %v5760 = vadd.f32 %v5497, %v5721
  %v5761 = vadd.f32 %v5502, %v5726
  %v5762 = vadd.f32 %v5505, %v5729
  %v5763 = vadd.f32 %v5510, %v5734
  %v5764 = vadd.f32 %v5513, %v5737
  %v5765 = vadd.f32 %v5518, %v5742
  %v5766 = vadd.f32 %v5521, %v5745
  %v5767 = vadd.f32 %v5526, %v5750
  %v5768 = vld [vmem:[#allocation2 + $0x4] sm:$0xc]
  %v5769 = vld [vmem:[%s797] sm:$0x3]
  %v5771 = vunpack.c.l.b16 %v5768
  %v5772 = vpack.c.b16 %v5561, %v5771
  %v5773 = vrot.slane %v5772, 2
  %v5774 = vrot.slane %v5575, 2
  %v5775 = vsel %vm802, %v5773, %v5774
  %v5776 = vrot.slane %v5576, 2
  %v5777 = vsel %vm802, %v5774, %v5776
  %v5778 = vrot.slane %v5577, 2
  %v5779 = vsel %vm802, %v5776, %v5778
  %v5780 = vrot.slane %v5578, 2
  %v5781 = vsel %vm802, %v5778, %v5780
  %v5782 = vrot.slane %v5579, 2
  %v5783 = vsel %vm802, %v5780, %v5782
  %v5784 = vrot.slane %v5580, 2
  %v5785 = vsel %vm802, %v5782, %v5784
  %v5787 = vsel %vm336, %v5775, 0
  %v5790 = vsel %vm336, %v5777, 0
  %v5793 = vsel %vm336, %v5779, 0
  %v5796 = vsel %vm336, %v5781, 0
  %v5799 = vsel %vm336, %v5783, 0
  %v5802 = vsel %vm336, %v5785, 0
  %v5805 = vsel %vm336, %v5784, 0
  %v5808 = vsel %vm358, %v5769, 0
  %5810 = vmatprep.subr.bf16.mxu0 0
  %5811 = vmatpush1.bf16.msra.mxu0 %v5808
  %5812 = vmatprep.subr.bf16.mxu0 0
  %5813 = vmatpush1.bf16.msra.mxu0 0
  %5814 = vmatprep.subr.bf16.mxu0 0
  %5815 = vmatpush1.bf16.msra.mxu0 0
  %5816 = vmatprep.subr.bf16.mxu0 0
  %5817 = vmatpush1.bf16.msra.mxu0 0
  %5818 = vmatprep.subr.bf16.mxu0 0
  %5819 = vmatpush1.bf16.msra.mxu0 0
  %5820 = vmatprep.subr.bf16.mxu0 0
  %5821 = vmatpush1.bf16.msra.mxu0 0
  %5822 = vmatprep.subr.bf16.mxu0 0
  %5823 = vmatpush1.bf16.msra.mxu0 0
  %5824 = vmatprep.subr.bf16.mxu0 0
  %5825 = vmatpush1.bf16.msra.mxu0 0
  %5826 = vmatprep.subr.bf16.mxu0 0
  %5827 = vmatpush1.bf16.msra.mxu0 0
  %5828 = vmatprep.subr.bf16.mxu0 0
  %5829 = vmatpush1.bf16.msra.mxu0 0
  %5830 = vmatprep.subr.bf16.mxu0 0
  %5831 = vmatpush1.bf16.msra.mxu0 0
  %5832 = vmatprep.subr.bf16.mxu0 0
  %5833 = vmatpush1.bf16.msra.mxu0 0
  %5834 = vmatprep.subr.bf16.mxu0 0
  %5835 = vmatpush1.bf16.msra.mxu0 0
  %5836 = vmatprep.subr.bf16.mxu0 0
  %5837 = vmatpush1.bf16.msra.mxu0 0
  %5838 = vmatprep.subr.bf16.mxu0 0
  %5839 = vmatpush1.bf16.msra.mxu0 0
  %5840 = vmatprep.subr.bf16.mxu0 0
  %5841 = vmatpush1.bf16.msra.mxu0 0
  %5842 = vmatprep.mubr.bf16.mxu0 0
  %5843 = vmatmul.mubr.bf16.gmra.mrb[0].mxu0 %v5787
  %v5844 = vpop.f32.mrb[0].mxu0
  %v5845 = vadd.f32 0.0, %v5844
  %v5846 = vpop.f32.mrb[0].mxu0
  %v5847 = vpop.f32.mrb[0].mxu0
  %v5848 = vadd.f32 0.0, %v5847
  %v5849 = vpop.f32.mrb[0].mxu0
  %5850 = vmatprep.mubr.bf16.mxu0 0
  %5851 = vmatmul.mubr.bf16.gmra.mrb[0].mxu0 %v5790
  %v5852 = vpop.f32.mrb[0].mxu0
  %v5853 = vadd.f32 0.0, %v5852
  %v5854 = vpop.f32.mrb[0].mxu0
  %v5855 = vpop.f32.mrb[0].mxu0
  %v5856 = vadd.f32 0.0, %v5855
  %v5857 = vpop.f32.mrb[0].mxu0
  %5858 = vmatprep.mubr.bf16.mxu0 0
  %5859 = vmatmul.mubr.bf16.gmra.mrb[0].mxu0 %v5793
  %v5860 = vpop.f32.mrb[0].mxu0
  %v5861 = vadd.f32 0.0, %v5860
  %v5862 = vpop.f32.mrb[0].mxu0
  %v5863 = vpop.f32.mrb[0].mxu0
  %v5864 = vadd.f32 0.0, %v5863
  %v5865 = vpop.f32.mrb[0].mxu0
  %5866 = vmatprep.mubr.bf16.mxu0 0
  %5867 = vmatmul.mubr.bf16.gmra.mrb[0].mxu0 %v5796
  %v5868 = vpop.f32.mrb[0].mxu0
  %v5869 = vadd.f32 0.0, %v5868
  %v5870 = vpop.f32.mrb[0].mxu0
  %v5871 = vpop.f32.mrb[0].mxu0
  %v5872 = vadd.f32 0.0, %v5871
  %v5873 = vpop.f32.mrb[0].mxu0
  %5874 = vmatprep.mubr.bf16.mxu0 0
  %5875 = vmatmul.mubr.bf16.gmra.mrb[0].mxu0 %v5799
  %v5876 = vpop.f32.mrb[0].mxu0
  %v5877 = vadd.f32 0.0, %v5876
  %v5878 = vpop.f32.mrb[0].mxu0
  %v5879 = vpop.f32.mrb[0].mxu0
  %v5880 = vadd.f32 0.0, %v5879
  %v5881 = vpop.f32.mrb[0].mxu0
  %5882 = vmatprep.mubr.bf16.mxu0 0
  %5883 = vmatmul.mubr.bf16.gmra.mrb[0].mxu0 %v5802
  %v5884 = vpop.f32.mrb[0].mxu0
  %v5885 = vadd.f32 0.0, %v5884
  %v5886 = vpop.f32.mrb[0].mxu0
  %v5887 = vpop.f32.mrb[0].mxu0
  %v5888 = vadd.f32 0.0, %v5887
  %v5889 = vpop.f32.mrb[0].mxu0
  %5890 = vmatprep.mubr.bf16.mxu0 0
  %5891 = vmatmul.mubr.bf16.gmra.mrb[0].mxu0 %v5805
  %v5892 = vpop.f32.mrb[0].mxu0
  %v5893 = vadd.f32 0.0, %v5892
  %v5894 = vpop.f32.mrb[0].mxu0
  %v5895 = vpop.f32.mrb[0].mxu0
  %v5896 = vpop.f32.mrb[0].mxu0
  %5897 = vdwg.mxu0
  %v5898 = vadd.f32 %v5755, %v5845
  %v5899 = vadd.f32 %v5756, %v5848
  %v5900 = vadd.f32 %v5757, %v5853
  %v5901 = vadd.f32 %v5758, %v5856
  %v5902 = vadd.f32 %v5759, %v5861
  %v5903 = vadd.f32 %v5760, %v5864
  %v5904 = vadd.f32 %v5761, %v5869
  %v5905 = vadd.f32 %v5762, %v5872
  %v5906 = vadd.f32 %v5763, %v5877
  %v5907 = vadd.f32 %v5764, %v5880
  %v5908 = vadd.f32 %v5765, %v5885
  %v5909 = vadd.f32 %v5766, %v5888
  %v5910 = vadd.f32 %v5767, %v5893
  %v5911 = vld [vmem:[%s5] sm:$0xff]
  %v5912 = vld [vmem:[%s5 + $0x8] sm:$0xff]
  %v5913 = vld [vmem:[%s5 + $0x10] sm:$0xff]
  %v5914 = vld [vmem:[%s5 + $0x18] sm:$0xff]
  %v5915 = vld [vmem:[%s5 + $0x20] sm:$0xff]
  %v5916 = vld [vmem:[%s5 + $0x28] sm:$0xff]
  %v5917 = vld [vmem:[%s5 + $0x30] sm:$0xff]
  %v5918 = vld [vmem:[%s5 + $0x38] sm:$0xff]
  %v5919 = vld [vmem:[%s5 + $0x40] sm:$0xff]
  %v5920 = vld [vmem:[%s5 + $0x48] sm:$0xff]
  %v5921 = vld [vmem:[%s5 + $0x50] sm:$0xff]
  %v5922 = vld [vmem:[%s5 + $0x58] sm:$0xff]
  %v5923 = vld [vmem:[%s5 + $0x60] sm:$0xff]
  %v5924 = vadd.f32 %v5898, %v957
  %v5925 = vadd.f32 %v5899, %v957
  %v5926 = vadd.f32 %v5900, %v957
  %v5927 = vadd.f32 %v5901, %v957
  %v5928 = vadd.f32 %v5902, %v957
  %v5929 = vadd.f32 %v5903, %v957
  %v5930 = vadd.f32 %v5904, %v957
  %v5931 = vadd.f32 %v5905, %v957
  %v5932 = vadd.f32 %v5906, %v957
  %v5933 = vadd.f32 %v5907, %v957
  %v5934 = vadd.f32 %v5908, %v957
  %v5935 = vadd.f32 %v5909, %v957
  %v5936 = vadd.f32 %v5910, %v957
  %5937 = vst [vmem:[%s6 + $0x68] sm:$0xff] %v5924
  %5938 = vst [vmem:[%s6 + $0x70] sm:$0xff] %v5925
  %5939 = vst [vmem:[%s6 + $0x78] sm:$0xff] %v5926
  %5940 = vst [vmem:[%s6 + $0x80] sm:$0xff] %v5927
  %5941 = vst [vmem:[%s6 + $0x88] sm:$0xff] %v5928
  %5942 = vst [vmem:[%s6 + $0x90] sm:$0xff] %v5929
  %5943 = vst [vmem:[%s6 + $0x98] sm:$0xff] %v5930
  %5944 = vst [vmem:[%s6 + $0xa0] sm:$0xff] %v5931
  %5945 = vst [vmem:[%s6 + $0xa8] sm:$0xff] %v5932
  %5946 = vst [vmem:[%s6 + $0xb0] sm:$0xff] %v5933
  %5947 = vst [vmem:[%s6 + $0xb8] sm:$0xff] %v5934
  %5948 = vst [vmem:[%s6 + $0xc0] sm:$0xff] %v5935
  %5949 = vst [vmem:[%s6 + $0xc8] sm:$0xff] %v5936
  %5951 = vset.pattern.permute.xlu0 0
  %5952 = vperm.xlu0 %5951, %v5911
  %v5953 = vpop.permute.xlu0 %5952
  %5956 = vset.pattern.permute.xlu0 0
  %5957 = vperm.xlu0 %5956, %v5912
  %v5958 = vpop.permute.xlu0 %5957
  %5961 = vset.pattern.permute.xlu0 0
  %5962 = vperm.xlu0 %5961, %v5913
  %v5963 = vpop.permute.xlu0 %5962
  %5966 = vset.pattern.permute.xlu0 0
  %5967 = vperm.xlu0 %5966, %v5914
  %v5968 = vpop.permute.xlu0 %5967
  %5971 = vset.pattern.permute.xlu0 0
  %5972 = vperm.xlu0 %5971, %v5915
  %v5973 = vpop.permute.xlu0 %5972
  %5976 = vset.pattern.permute.xlu0 0
  %5977 = vperm.xlu0 %5976, %v5916
  %v5978 = vpop.permute.xlu0 %5977
  %5981 = vset.pattern.permute.xlu0 0
  %5982 = vperm.xlu0 %5981, %v5917
  %v5983 = vpop.permute.xlu0 %5982
  %5986 = vset.pattern.permute.xlu0 0
  %5987 = vperm.xlu0 %5986, %v5918
  %v5988 = vpop.permute.xlu0 %5987
  %5991 = vset.pattern.permute.xlu0 0
  %5992 = vperm.xlu0 %5991, %v5919
  %v5993 = vpop.permute.xlu0 %5992
  %5996 = vset.pattern.permute.xlu0 0
  %5997 = vperm.xlu0 %5996, %v5920
  %v5998 = vpop.permute.xlu0 %5997
  %6001 = vset.pattern.permute.xlu0 0
  %6002 = vperm.xlu0 %6001, %v5921
  %v6003 = vpop.permute.xlu0 %6002
  %6006 = vset.pattern.permute.xlu0 0
  %6007 = vperm.xlu0 %6006, %v5922
  %v6008 = vpop.permute.xlu0 %6007
  %6011 = vset.pattern.permute.xlu0 0
  %6012 = vperm.xlu0 %6011, %v5923
  %v6013 = vpop.permute.xlu0 %6012
  %v6015 = vmul.f32 %v5924, %v5953
  %v6016 = vmul.f32 %v5925, %v5958
  %v6017 = vmul.f32 %v5926, %v5963
  %v6018 = vmul.f32 %v5927, %v5968
  %v6019 = vmul.f32 %v5928, %v5973
  %v6020 = vmul.f32 %v5929, %v5978
  %v6021 = vmul.f32 %v5930, %v5983
  %v6022 = vmul.f32 %v5931, %v5988
  %v6023 = vmul.f32 %v5932, %v5993
  %v6024 = vmul.f32 %v5933, %v5998
  %v6025 = vmul.f32 %v5934, %v6003
  %v6026 = vmul.f32 %v5935, %v6008
  %v6027 = vmul.f32 %v5936, %v6013
  %v6028 = vpack.c.bf16 %v6016, %v6015
  %v6029 = vpack.c.bf16 %v6018, %v6017
  %v6030 = vpack.c.bf16 %v6020, %v6019
  %v6031 = vpack.c.bf16 %v6022, %v6021
  %v6032 = vpack.c.bf16 %v6024, %v6023
  %v6033 = vpack.c.bf16 %v6026, %v6025
  %v6034 = vpack.c.bf16 %v6027, %v6027
  %v6042 = vrot.slane %v6028, 2
  %v6043 = vrot.slane %v6029, 2
  %v6044 = vsel %vm802, %v6042, %v6043
  %v6045 = vrot.slane %v6030, 2
  %v6046 = vsel %vm802, %v6043, %v6045
  %v6047 = vrot.slane %v6031, 2
  %v6048 = vsel %vm802, %v6045, %v6047
  %v6049 = vrot.slane %v6032, 2
  %v6050 = vsel %vm802, %v6047, %v6049
  %v6051 = vrot.slane %v6033, 2
  %v6052 = vsel %vm802, %v6049, %v6051
  %v6053 = vrot.slane %v6034, 2
  %v6054 = vsel %vm802, %v6051, %v6053
  %6063 = vst [vmem:[#allocation3] sm:$0xc0] %v6042
  %6064 = vst [vmem:[#allocation3 + $0x8] sm:$0xff] %v6044
  %6065 = vst [vmem:[#allocation3 + $0x10] sm:$0xff] %v6046
  %6066 = vst [vmem:[#allocation3 + $0x18] sm:$0xff] %v6048
  %6067 = vst [vmem:[#allocation3 + $0x20] sm:$0xff] %v6050
  %6068 = vst [vmem:[#allocation3 + $0x28] sm:$0xff] %v6052
  %6069 = vst [vmem:[#allocation3 + $0x30] sm:$0xff] %v6054
  %6070 = vst [vmem:[#allocation3 + $0x38] sm:$0x3] %v6053
  %v6071 = vld [vmem:[#allocation3] sm:$0xff]
  %v6072 = vld [vmem:[#allocation3 + $0x8] sm:$0xff]
  %v6073 = vld [vmem:[#allocation3 + $0x10] sm:$0xff]
  %v6074 = vld [vmem:[#allocation3 + $0x18] sm:$0xff]
  %v6075 = vld [vmem:[#allocation3 + $0x20] sm:$0xff]
  %v6076 = vld [vmem:[#allocation3 + $0x28] sm:$0xff]
  %v6077 = vld [vmem:[#allocation3 + $0x30] sm:$0xf]
  %v6078 = vld [vmem:[%s2] sm:$0xf]
  %v6079 = vld [vmem:[%s2 + $0x4] sm:$0xf]
  %v6080 = vld [vmem:[%s2 + $0x8] sm:$0xf]
  %v6081 = vld [vmem:[%s2 + $0xc] sm:$0xf]
  %v6082 = vld [vmem:[%s2 + $0x10] sm:$0xf]
  %v6083 = vld [vmem:[%s2 + $0x14] sm:$0xf]
  %v6084 = vld [vmem:[%s2 + $0x18] sm:$0xf]
  %v6085 = vld [vmem:[%s2 + $0x1c] sm:$0xf]
  %v6086 = vld [vmem:[%s2 + $0x20] sm:$0xf]
  %v6087 = vld [vmem:[%s2 + $0x24] sm:$0xf]
  %v6088 = vld [vmem:[%s2 + $0x28] sm:$0xf]
  %v6089 = vld [vmem:[%s2 + $0x2c] sm:$0xf]
  %v6090 = vld [vmem:[%s2 + $0x30] sm:$0xf]
  %v6091 = vld [vmem:[%s2 + $0x34] sm:$0xf]
  %v6092 = vld [vmem:[%s2 + $0x38] sm:$0xf]
  %v6093 = vld [vmem:[%s2 + $0x3c] sm:$0xf]
  %v6094 = vld [vmem:[#allocation3 + $0x30] sm:$0x1f]
  %v6095 = vld [vmem:[%s1129] sm:$0xf]
  %v6096 = vld [vmem:[%s1129 + $0x4] sm:$0xf]
  %v6097 = vld [vmem:[%s1129 + $0x8] sm:$0xf]
  %v6098 = vld [vmem:[%s1129 + $0xc] sm:$0xf]
  %v6099 = vld [vmem:[%s1129 + $0x10] sm:$0xf]
  %v6100 = vld [vmem:[%s1129 + $0x14] sm:$0xf]
  %v6101 = vld [vmem:[%s1129 + $0x18] sm:$0xf]
  %v6102 = vld [vmem:[%s1129 + $0x1c] sm:$0xf]
  %v6103 = vld [vmem:[%s1129 + $0x20] sm:$0xf]
  %v6104 = vld [vmem:[%s1129 + $0x24] sm:$0xf]
  %v6105 = vld [vmem:[%s1129 + $0x28] sm:$0xf]
  %v6106 = vld [vmem:[%s1129 + $0x2c] sm:$0xf]
  %v6107 = vld [vmem:[%s1129 + $0x30] sm:$0xf]
  %v6108 = vld [vmem:[%s1129 + $0x34] sm:$0xf]
  %v6109 = vld [vmem:[%s1129 + $0x38] sm:$0xf]
  %v6110 = vld [vmem:[%s1129 + $0x3c] sm:$0xf]
  %v6112 = vshrl.u32 %v6071, 16
  %v6114 = vshll.u32 %v6071, 16
  %v6116 = vrot.slane %v6114, 1
  %v6117 = vor.u32 %v6112, %v6116
  %v6119 = vshll.u32 %v6072, 16
  %v6121 = vrot.slane %v6119, 1
  %v6122 = vsel %vm280, %v6117, %v6121
  %v6123 = vshrl.u32 %v6072, 16
  %v6125 = vor.u32 %v6123, %v6121
  %v6127 = vshll.u32 %v6073, 16
  %v6129 = vrot.slane %v6127, 1
  %v6130 = vsel %vm280, %v6125, %v6129
  %v6131 = vshrl.u32 %v6073, 16
  %v6133 = vor.u32 %v6131, %v6129
  %v6135 = vshll.u32 %v6074, 16
  %v6137 = vrot.slane %v6135, 1
  %v6138 = vsel %vm280, %v6133, %v6137
  %v6139 = vshrl.u32 %v6074, 16
  %v6141 = vor.u32 %v6139, %v6137
  %v6143 = vshll.u32 %v6075, 16
  %v6145 = vrot.slane %v6143, 1
  %v6146 = vsel %vm280, %v6141, %v6145
  %v6147 = vshrl.u32 %v6075, 16
  %v6149 = vor.u32 %v6147, %v6145
  %v6151 = vshll.u32 %v6076, 16
  %v6153 = vrot.slane %v6151, 1
  %v6154 = vsel %vm280, %v6149, %v6153
  %v6155 = vshrl.u32 %v6076, 16
  %v6157 = vor.u32 %v6155, %v6153
  %v6159 = vshll.u32 %v6094, 16
  %v6161 = vrot.slane %v6159, 1
  %v6162 = vsel %vm280, %v6157, %v6161
  %v6163 = vshrl.u32 %v6094, 16
  %v6165 = vor.u32 %v6163, %v6161
  %v6189 = vunpack.c.l.b16 %v6095
  %v6190 = vunpack.c.l.b16 %v6096
  %v6191 = vunpack.c.l.b16 %v6097
  %v6192 = vunpack.c.l.b16 %v6098
  %v6193 = vunpack.c.l.b16 %v6099
  %v6194 = vunpack.c.l.b16 %v6100
  %v6195 = vunpack.c.l.b16 %v6101
  %v6196 = vunpack.c.l.b16 %v6102
  %v6197 = vunpack.c.l.b16 %v6103
  %v6198 = vunpack.c.l.b16 %v6104
  %v6199 = vunpack.c.l.b16 %v6105
  %v6200 = vunpack.c.l.b16 %v6106
  %v6201 = vunpack.c.l.b16 %v6107
  %v6202 = vunpack.c.l.b16 %v6108
  %v6203 = vunpack.c.l.b16 %v6109
  %v6204 = vunpack.c.l.b16 %v6110
  %v6205 = vpack.c.b16 %v6190, %v6189
  %v6206 = vpack.c.b16 %v6192, %v6191
  %v6207 = vpack.c.b16 %v6194, %v6193
  %v6208 = vpack.c.b16 %v6196, %v6195
  %v6209 = vpack.c.b16 %v6198, %v6197
  %v6210 = vpack.c.b16 %v6200, %v6199
  %v6211 = vpack.c.b16 %v6202, %v6201
  %v6212 = vpack.c.b16 %v6204, %v6203
  %6221 = vmatprep.subr.bf16.mxu0 0
  %6222 = vmatpush1.bf16.msra.mxu0 %v6205
  %6223 = vmatprep.subr.bf16.mxu0 0
  %6224 = vmatpush1.bf16.msra.mxu0 %v6206
  %6225 = vmatprep.subr.bf16.mxu0 0
  %6226 = vmatpush1.bf16.msra.mxu0 %v6207
  %6227 = vmatprep.subr.bf16.mxu0 0
  %6228 = vmatpush1.bf16.msra.mxu0 %v6208
  %6229 = vmatprep.subr.bf16.mxu0 0
  %6230 = vmatpush1.bf16.msra.mxu0 %v6209
  %6231 = vmatprep.subr.bf16.mxu0 0
  %6232 = vmatpush1.bf16.msra.mxu0 %v6210
  %6233 = vmatprep.subr.bf16.mxu0 0
  %6234 = vmatpush1.bf16.msra.mxu0 %v6211
  %6235 = vmatprep.subr.bf16.mxu0 0
  %6236 = vmatpush1.bf16.msra.mxu0 %v6212
  %6237 = vmatprep.subr.bf16.mxu0 0
  %6238 = vmatpush1.bf16.msra.mxu0 0
  %6239 = vmatprep.subr.bf16.mxu0 0
  %6240 = vmatpush1.bf16.msra.mxu0 0
  %6241 = vmatprep.subr.bf16.mxu0 0
  %6242 = vmatpush1.bf16.msra.mxu0 0
  %6243 = vmatprep.subr.bf16.mxu0 0
  %6244 = vmatpush1.bf16.msra.mxu0 0
  %6245 = vmatprep.subr.bf16.mxu0 0
  %6246 = vmatpush1.bf16.msra.mxu0 0
  %6247 = vmatprep.subr.bf16.mxu0 0
  %6248 = vmatpush1.bf16.msra.mxu0 0
  %6249 = vmatprep.subr.bf16.mxu0 0
  %6250 = vmatpush1.bf16.msra.mxu0 0
  %6251 = vmatprep.subr.bf16.mxu0 0
  %6252 = vmatpush1.bf16.msra.mxu0 0
  %6253 = vmatprep.mubr.bf16.mxu0 0
  %6254 = vmatmul.mubr.bf16.gmra.mrb[0].mxu0 %v6122
  %v6255 = vpop.f32.mrb[0].mxu0
  %v6256 = vadd.f32 0.0, %v6255
  %v6257 = vpop.f32.mrb[0].mxu0
  %v6258 = vpop.f32.mrb[0].mxu0
  %v6259 = vadd.f32 0.0, %v6258
  %v6260 = vpop.f32.mrb[0].mxu0
  %6261 = vmatprep.mubr.bf16.mxu0 0
  %6262 = vmatmul.mubr.bf16.gmra.mrb[0].mxu0 %v6130
  %v6263 = vpop.f32.mrb[0].mxu0
  %v6264 = vadd.f32 0.0, %v6263
  %v6265 = vpop.f32.mrb[0].mxu0
  %v6266 = vpop.f32.mrb[0].mxu0
  %v6267 = vadd.f32 0.0, %v6266
  %v6268 = vpop.f32.mrb[0].mxu0
  %6269 = vmatprep.mubr.bf16.mxu0 0
  %6270 = vmatmul.mubr.bf16.gmra.mrb[0].mxu0 %v6138
  %v6271 = vpop.f32.mrb[0].mxu0
  %v6272 = vadd.f32 0.0, %v6271
  %v6273 = vpop.f32.mrb[0].mxu0
  %v6274 = vpop.f32.mrb[0].mxu0
  %v6275 = vadd.f32 0.0, %v6274
  %v6276 = vpop.f32.mrb[0].mxu0
  %6277 = vmatprep.mubr.bf16.mxu0 0
  %6278 = vmatmul.mubr.bf16.gmra.mrb[0].mxu0 %v6146
  %v6279 = vpop.f32.mrb[0].mxu0
  %v6280 = vadd.f32 0.0, %v6279
  %v6281 = vpop.f32.mrb[0].mxu0
  %v6282 = vpop.f32.mrb[0].mxu0
  %v6283 = vadd.f32 0.0, %v6282
  %v6284 = vpop.f32.mrb[0].mxu0
  %6285 = vmatprep.mubr.bf16.mxu0 0
  %6286 = vmatmul.mubr.bf16.gmra.mrb[0].mxu0 %v6154
  %v6287 = vpop.f32.mrb[0].mxu0
  %v6288 = vadd.f32 0.0, %v6287
  %v6289 = vpop.f32.mrb[0].mxu0
  %v6290 = vpop.f32.mrb[0].mxu0
  %v6291 = vadd.f32 0.0, %v6290
  %v6292 = vpop.f32.mrb[0].mxu0
  %6293 = vmatprep.mubr.bf16.mxu0 0
  %6294 = vmatmul.mubr.bf16.gmra.mrb[0].mxu0 %v6162
  %v6295 = vpop.f32.mrb[0].mxu0
  %v6296 = vadd.f32 0.0, %v6295
  %v6297 = vpop.f32.mrb[0].mxu0
  %v6298 = vpop.f32.mrb[0].mxu0
  %v6299 = vadd.f32 0.0, %v6298
  %v6300 = vpop.f32.mrb[0].mxu0
  %6301 = vmatprep.mubr.bf16.mxu0 0
  %6302 = vmatmul.mubr.bf16.gmra.mrb[0].mxu0 %v6165
  %v6303 = vpop.f32.mrb[0].mxu0
  %v6304 = vadd.f32 0.0, %v6303
  %v6305 = vpop.f32.mrb[0].mxu0
  %v6306 = vpop.f32.mrb[0].mxu0
  %v6307 = vpop.f32.mrb[0].mxu0
  %6308 = vdwg.mxu0
  %v6325 = vunpack.c.l.b16 %v6078
  %v6326 = vunpack.c.l.b16 %v6079
  %v6327 = vunpack.c.l.b16 %v6080
  %v6328 = vunpack.c.l.b16 %v6081
  %v6329 = vunpack.c.l.b16 %v6082
  %v6330 = vunpack.c.l.b16 %v6083
  %v6331 = vunpack.c.l.b16 %v6084
  %v6332 = vunpack.c.l.b16 %v6085
  %v6333 = vunpack.c.l.b16 %v6086
  %v6334 = vunpack.c.l.b16 %v6087
  %v6335 = vunpack.c.l.b16 %v6088
  %v6336 = vunpack.c.l.b16 %v6089
  %v6337 = vunpack.c.l.b16 %v6090
  %v6338 = vunpack.c.l.b16 %v6091
  %v6339 = vunpack.c.l.b16 %v6092
  %v6340 = vunpack.c.l.b16 %v6093
  %v6341 = vpack.c.b16 %v6326, %v6325
  %v6342 = vpack.c.b16 %v6328, %v6327
  %v6343 = vpack.c.b16 %v6330, %v6329
  %v6344 = vpack.c.b16 %v6332, %v6331
  %v6345 = vpack.c.b16 %v6334, %v6333
  %v6346 = vpack.c.b16 %v6336, %v6335
  %v6347 = vpack.c.b16 %v6338, %v6337
  %v6348 = vpack.c.b16 %v6340, %v6339
  %6357 = vmatprep.subr.bf16.mxu0 0
  %6358 = vmatpush1.bf16.msra.mxu0 %v6341
  %6359 = vmatprep.subr.bf16.mxu0 0
  %6360 = vmatpush1.bf16.msra.mxu0 %v6342
  %6361 = vmatprep.subr.bf16.mxu0 0
  %6362 = vmatpush1.bf16.msra.mxu0 %v6343
  %6363 = vmatprep.subr.bf16.mxu0 0
  %6364 = vmatpush1.bf16.msra.mxu0 %v6344
  %6365 = vmatprep.subr.bf16.mxu0 0
  %6366 = vmatpush1.bf16.msra.mxu0 %v6345
  %6367 = vmatprep.subr.bf16.mxu0 0
  %6368 = vmatpush1.bf16.msra.mxu0 %v6346
  %6369 = vmatprep.subr.bf16.mxu0 0
  %6370 = vmatpush1.bf16.msra.mxu0 %v6347
  %6371 = vmatprep.subr.bf16.mxu0 0
  %6372 = vmatpush1.bf16.msra.mxu0 %v6348
  %6373 = vmatprep.subr.bf16.mxu0 0
  %6374 = vmatpush1.bf16.msra.mxu0 0
  %6375 = vmatprep.subr.bf16.mxu0 0
  %6376 = vmatpush1.bf16.msra.mxu0 0
  %6377 = vmatprep.subr.bf16.mxu0 0
  %6378 = vmatpush1.bf16.msra.mxu0 0
  %6379 = vmatprep.subr.bf16.mxu0 0
  %6380 = vmatpush1.bf16.msra.mxu0 0
  %6381 = vmatprep.subr.bf16.mxu0 0
  %6382 = vmatpush1.bf16.msra.mxu0 0
  %6383 = vmatprep.subr.bf16.mxu0 0
  %6384 = vmatpush1.bf16.msra.mxu0 0
  %6385 = vmatprep.subr.bf16.mxu0 0
  %6386 = vmatpush1.bf16.msra.mxu0 0
  %6387 = vmatprep.subr.bf16.mxu0 0
  %6388 = vmatpush1.bf16.msra.mxu0 0
  %6389 = vmatprep.mubr.bf16.mxu0 0
  %6390 = vmatmul.mubr.bf16.gmra.mrb[0].mxu0 %v6071
  %v6391 = vpop.f32.mrb[0].mxu0
  %v6392 = vadd.f32 %v6256, %v6391
  %v6393 = vpop.f32.mrb[0].mxu0
  %v6394 = vpop.f32.mrb[0].mxu0
  %v6395 = vadd.f32 %v6259, %v6394
  %v6396 = vpop.f32.mrb[0].mxu0
  %6397 = vmatprep.mubr.bf16.mxu0 0
  %6398 = vmatmul.mubr.bf16.gmra.mrb[0].mxu0 %v6072
  %v6399 = vpop.f32.mrb[0].mxu0
  %v6400 = vadd.f32 %v6264, %v6399
  %v6401 = vpop.f32.mrb[0].mxu0
  %v6402 = vpop.f32.mrb[0].mxu0
  %v6403 = vadd.f32 %v6267, %v6402
  %v6404 = vpop.f32.mrb[0].mxu0
  %6405 = vmatprep.mubr.bf16.mxu0 0
  %6406 = vmatmul.mubr.bf16.gmra.mrb[0].mxu0 %v6073
  %v6407 = vpop.f32.mrb[0].mxu0
  %v6408 = vadd.f32 %v6272, %v6407
  %v6409 = vpop.f32.mrb[0].mxu0
  %v6410 = vpop.f32.mrb[0].mxu0
  %v6411 = vadd.f32 %v6275, %v6410
  %v6412 = vpop.f32.mrb[0].mxu0
  %6413 = vmatprep.mubr.bf16.mxu0 0
  %6414 = vmatmul.mubr.bf16.gmra.mrb[0].mxu0 %v6074
  %v6415 = vpop.f32.mrb[0].mxu0
  %v6416 = vadd.f32 %v6280, %v6415
  %v6417 = vpop.f32.mrb[0].mxu0
  %v6418 = vpop.f32.mrb[0].mxu0
  %v6419 = vadd.f32 %v6283, %v6418
  %v6420 = vpop.f32.mrb[0].mxu0
  %6421 = vmatprep.mubr.bf16.mxu0 0
  %6422 = vmatmul.mubr.bf16.gmra.mrb[0].mxu0 %v6075
  %v6423 = vpop.f32.mrb[0].mxu0
  %v6424 = vadd.f32 %v6288, %v6423
  %v6425 = vpop.f32.mrb[0].mxu0
  %v6426 = vpop.f32.mrb[0].mxu0
  %v6427 = vadd.f32 %v6291, %v6426
  %v6428 = vpop.f32.mrb[0].mxu0
  %6429 = vmatprep.mubr.bf16.mxu0 0
  %6430 = vmatmul.mubr.bf16.gmra.mrb[0].mxu0 %v6076
  %v6431 = vpop.f32.mrb[0].mxu0
  %v6432 = vadd.f32 %v6296, %v6431
  %v6433 = vpop.f32.mrb[0].mxu0
  %v6434 = vpop.f32.mrb[0].mxu0
  %v6435 = vadd.f32 %v6299, %v6434
  %v6436 = vpop.f32.mrb[0].mxu0
  %6437 = vmatprep.mubr.bf16.mxu0 0
  %6438 = vmatmul.mubr.bf16.gmra.mrb[0].mxu0 %v6077
  %v6439 = vpop.f32.mrb[0].mxu0
  %v6440 = vadd.f32 %v6304, %v6439
  %v6441 = vpop.f32.mrb[0].mxu0
  %v6442 = vpop.f32.mrb[0].mxu0
  %v6443 = vpop.f32.mrb[0].mxu0
  %6444 = vdwg.mxu0
  %v6445 = vld [vmem:[#allocation3] sm:$0xfe]
  %v6446 = vld [vmem:[%s1481] sm:$0xf]
  %v6447 = vld [vmem:[%s1481 + $0x4] sm:$0xf]
  %v6448 = vld [vmem:[%s1481 + $0x8] sm:$0xf]
  %v6449 = vld [vmem:[%s1481 + $0xc] sm:$0xf]
  %v6450 = vld [vmem:[%s1481 + $0x10] sm:$0xf]
  %v6451 = vld [vmem:[%s1481 + $0x14] sm:$0xf]
  %v6452 = vld [vmem:[%s1481 + $0x18] sm:$0xf]
  %v6453 = vld [vmem:[%s1481 + $0x1c] sm:$0xf]
  %v6454 = vld [vmem:[%s1481 + $0x20] sm:$0xf]
  %v6455 = vld [vmem:[%s1481 + $0x24] sm:$0xf]
  %v6456 = vld [vmem:[%s1481 + $0x28] sm:$0xf]
  %v6457 = vld [vmem:[%s1481 + $0x2c] sm:$0xf]
  %v6458 = vld [vmem:[%s1481 + $0x30] sm:$0xf]
  %v6459 = vld [vmem:[%s1481 + $0x34] sm:$0xf]
  %v6460 = vld [vmem:[%s1481 + $0x38] sm:$0xf]
  %v6461 = vld [vmem:[%s1481 + $0x3c] sm:$0xf]
  %v6469 = vrot.slane %v6445, 1
  %v6470 = vrot.slane %v6072, 1
  %v6471 = vsel %vm1505, %v6469, %v6470
  %v6472 = vrot.slane %v6073, 1
  %v6473 = vsel %vm1505, %v6470, %v6472
  %v6474 = vrot.slane %v6074, 1
  %v6475 = vsel %vm1505, %v6472, %v6474
  %v6476 = vrot.slane %v6075, 1
  %v6477 = vsel %vm1505, %v6474, %v6476
  %v6478 = vrot.slane %v6076, 1
  %v6479 = vsel %vm1505, %v6476, %v6478
  %v6480 = vrot.slane %v6094, 1
  %v6481 = vsel %vm1505, %v6478, %v6480
  %v6505 = vunpack.c.l.b16 %v6446
  %v6506 = vunpack.c.l.b16 %v6447
  %v6507 = vunpack.c.l.b16 %v6448
  %v6508 = vunpack.c.l.b16 %v6449
  %v6509 = vunpack.c.l.b16 %v6450
  %v6510 = vunpack.c.l.b16 %v6451
  %v6511 = vunpack.c.l.b16 %v6452
  %v6512 = vunpack.c.l.b16 %v6453
  %v6513 = vunpack.c.l.b16 %v6454
  %v6514 = vunpack.c.l.b16 %v6455
  %v6515 = vunpack.c.l.b16 %v6456
  %v6516 = vunpack.c.l.b16 %v6457
  %v6517 = vunpack.c.l.b16 %v6458
  %v6518 = vunpack.c.l.b16 %v6459
  %v6519 = vunpack.c.l.b16 %v6460
  %v6520 = vunpack.c.l.b16 %v6461
  %v6521 = vpack.c.b16 %v6506, %v6505
  %v6522 = vpack.c.b16 %v6508, %v6507
  %v6523 = vpack.c.b16 %v6510, %v6509
  %v6524 = vpack.c.b16 %v6512, %v6511
  %v6525 = vpack.c.b16 %v6514, %v6513
  %v6526 = vpack.c.b16 %v6516, %v6515
  %v6527 = vpack.c.b16 %v6518, %v6517
  %v6528 = vpack.c.b16 %v6520, %v6519
  %6537 = vmatprep.subr.bf16.mxu0 0
  %6538 = vmatpush1.bf16.msra.mxu0 %v6521
  %6539 = vmatprep.subr.bf16.mxu0 0
  %6540 = vmatpush1.bf16.msra.mxu0 %v6522
  %6541 = vmatprep.subr.bf16.mxu0 0
  %6542 = vmatpush1.bf16.msra.mxu0 %v6523
  %6543 = vmatprep.subr.bf16.mxu0 0
  %6544 = vmatpush1.bf16.msra.mxu0 %v6524
  %6545 = vmatprep.subr.bf16.mxu0 0
  %6546 = vmatpush1.bf16.msra.mxu0 %v6525
  %6547 = vmatprep.subr.bf16.mxu0 0
  %6548 = vmatpush1.bf16.msra.mxu0 %v6526
  %6549 = vmatprep.subr.bf16.mxu0 0
  %6550 = vmatpush1.bf16.msra.mxu0 %v6527
  %6551 = vmatprep.subr.bf16.mxu0 0
  %6552 = vmatpush1.bf16.msra.mxu0 %v6528
  %6553 = vmatprep.subr.bf16.mxu0 0
  %6554 = vmatpush1.bf16.msra.mxu0 0
  %6555 = vmatprep.subr.bf16.mxu0 0
  %6556 = vmatpush1.bf16.msra.mxu0 0
  %6557 = vmatprep.subr.bf16.mxu0 0
  %6558 = vmatpush1.bf16.msra.mxu0 0
  %6559 = vmatprep.subr.bf16.mxu0 0
  %6560 = vmatpush1.bf16.msra.mxu0 0
  %6561 = vmatprep.subr.bf16.mxu0 0
  %6562 = vmatpush1.bf16.msra.mxu0 0
  %6563 = vmatprep.subr.bf16.mxu0 0
  %6564 = vmatpush1.bf16.msra.mxu0 0
  %6565 = vmatprep.subr.bf16.mxu0 0
  %6566 = vmatpush1.bf16.msra.mxu0 0
  %6567 = vmatprep.subr.bf16.mxu0 0
  %6568 = vmatpush1.bf16.msra.mxu0 0
  %6569 = vmatprep.mubr.bf16.mxu0 0
  %6570 = vmatmul.mubr.bf16.gmra.mrb[0].mxu0 %v6471
  %v6571 = vpop.f32.mrb[0].mxu0
  %v6572 = vadd.f32 0.0, %v6571
  %v6573 = vpop.f32.mrb[0].mxu0
  %v6574 = vpop.f32.mrb[0].mxu0
  %v6575 = vadd.f32 0.0, %v6574
  %v6576 = vpop.f32.mrb[0].mxu0
  %6577 = vmatprep.mubr.bf16.mxu0 0
  %6578 = vmatmul.mubr.bf16.gmra.mrb[0].mxu0 %v6473
  %v6579 = vpop.f32.mrb[0].mxu0
  %v6580 = vadd.f32 0.0, %v6579
  %v6581 = vpop.f32.mrb[0].mxu0
  %v6582 = vpop.f32.mrb[0].mxu0
  %v6583 = vadd.f32 0.0, %v6582
  %v6584 = vpop.f32.mrb[0].mxu0
  %6585 = vmatprep.mubr.bf16.mxu0 0
  %6586 = vmatmul.mubr.bf16.gmra.mrb[0].mxu0 %v6475
  %v6587 = vpop.f32.mrb[0].mxu0
  %v6588 = vadd.f32 0.0, %v6587
  %v6589 = vpop.f32.mrb[0].mxu0
  %v6590 = vpop.f32.mrb[0].mxu0
  %v6591 = vadd.f32 0.0, %v6590
  %v6592 = vpop.f32.mrb[0].mxu0
  %6593 = vmatprep.mubr.bf16.mxu0 0
  %6594 = vmatmul.mubr.bf16.gmra.mrb[0].mxu0 %v6477
  %v6595 = vpop.f32.mrb[0].mxu0
  %v6596 = vadd.f32 0.0, %v6595
  %v6597 = vpop.f32.mrb[0].mxu0
  %v6598 = vpop.f32.mrb[0].mxu0
  %v6599 = vadd.f32 0.0, %v6598
  %v6600 = vpop.f32.mrb[0].mxu0
  %6601 = vmatprep.mubr.bf16.mxu0 0
  %6602 = vmatmul.mubr.bf16.gmra.mrb[0].mxu0 %v6479
  %v6603 = vpop.f32.mrb[0].mxu0
  %v6604 = vadd.f32 0.0, %v6603
  %v6605 = vpop.f32.mrb[0].mxu0
  %v6606 = vpop.f32.mrb[0].mxu0
  %v6607 = vadd.f32 0.0, %v6606
  %v6608 = vpop.f32.mrb[0].mxu0
  %6609 = vmatprep.mubr.bf16.mxu0 0
  %6610 = vmatmul.mubr.bf16.gmra.mrb[0].mxu0 %v6481
  %v6611 = vpop.f32.mrb[0].mxu0
  %v6612 = vadd.f32 0.0, %v6611
  %v6613 = vpop.f32.mrb[0].mxu0
  %v6614 = vpop.f32.mrb[0].mxu0
  %v6615 = vadd.f32 0.0, %v6614
  %v6616 = vpop.f32.mrb[0].mxu0
  %6617 = vmatprep.mubr.bf16.mxu0 0
  %6618 = vmatmul.mubr.bf16.gmra.mrb[0].mxu0 %v6480
  %v6619 = vpop.f32.mrb[0].mxu0
  %v6620 = vadd.f32 0.0, %v6619
  %v6621 = vpop.f32.mrb[0].mxu0
  %v6622 = vpop.f32.mrb[0].mxu0
  %v6623 = vpop.f32.mrb[0].mxu0
  %6624 = vdwg.mxu0
  %v6625 = vadd.f32 %v6392, %v6572
  %v6626 = vadd.f32 %v6395, %v6575
  %v6627 = vadd.f32 %v6400, %v6580
  %v6628 = vadd.f32 %v6403, %v6583
  %v6629 = vadd.f32 %v6408, %v6588
  %v6630 = vadd.f32 %v6411, %v6591
  %v6631 = vadd.f32 %v6416, %v6596
  %v6632 = vadd.f32 %v6419, %v6599
  %v6633 = vadd.f32 %v6424, %v6604
  %v6634 = vadd.f32 %v6427, %v6607
  %v6635 = vadd.f32 %v6432, %v6612
  %v6636 = vadd.f32 %v6435, %v6615
  %v6637 = vadd.f32 %v6440, %v6620
  %v6638 = vld [vmem:[#allocation3] sm:$0xe0]
  %v6639 = vld [vmem:[#allocation3 + $0x8] sm:$0xff]
  %v6640 = vld [vmem:[#allocation3 + $0x10] sm:$0xff]
  %v6641 = vld [vmem:[#allocation3 + $0x18] sm:$0xff]
  %v6642 = vld [vmem:[#allocation3 + $0x20] sm:$0xff]
  %v6643 = vld [vmem:[#allocation3 + $0x28] sm:$0xff]
  %v6644 = vld [vmem:[#allocation3 + $0x30] sm:$0xff]
  %v6645 = vld [vmem:[#allocation3 + $0x38] sm:$0x3]
  %v6646 = vld [vmem:[%s1683] sm:$0xf]
  %v6647 = vld [vmem:[%s1683 + $0x4] sm:$0xf]
  %v6648 = vld [vmem:[%s1683 + $0x8] sm:$0xf]
  %v6649 = vld [vmem:[%s1683 + $0xc] sm:$0xf]
  %v6650 = vld [vmem:[%s1683 + $0x10] sm:$0xf]
  %v6651 = vld [vmem:[%s1683 + $0x14] sm:$0xf]
  %v6652 = vld [vmem:[%s1683 + $0x18] sm:$0xf]
  %v6653 = vld [vmem:[%s1683 + $0x1c] sm:$0xf]
  %v6654 = vld [vmem:[%s1683 + $0x20] sm:$0xf]
  %v6655 = vld [vmem:[%s1683 + $0x24] sm:$0xf]
  %v6656 = vld [vmem:[%s1683 + $0x28] sm:$0xf]
  %v6657 = vld [vmem:[%s1683 + $0x2c] sm:$0xf]
  %v6658 = vld [vmem:[%s1683 + $0x30] sm:$0xf]
  %v6659 = vld [vmem:[%s1683 + $0x34] sm:$0xf]
  %v6660 = vld [vmem:[%s1683 + $0x38] sm:$0xf]
  %v6661 = vld [vmem:[%s1683 + $0x3c] sm:$0xf]
  %v6663 = vshrl.u32 %v6638, 16
  %v6665 = vrot.slane %v6663, 5
  %v6666 = vshll.u32 %v6638, 16
  %v6668 = vrot.slane %v6666, 6
  %v6669 = vor.u32 %v6665, %v6668
  %v6671 = vshrl.u32 %v6639, 16
  %v6673 = vrot.slane %v6671, 5
  %v6674 = vshll.u32 %v6639, 16
  %v6676 = vrot.slane %v6674, 6
  %v6677 = vor.u32 %v6673, %v6676
  %v6678 = vsel %vm169, %v6669, %v6677
  %v6680 = vshrl.u32 %v6640, 16
  %v6682 = vrot.slane %v6680, 5
  %v6683 = vshll.u32 %v6640, 16
  %v6685 = vrot.slane %v6683, 6
  %v6686 = vor.u32 %v6682, %v6685
  %v6687 = vsel %vm169, %v6677, %v6686
  %v6689 = vshrl.u32 %v6641, 16
  %v6691 = vrot.slane %v6689, 5
  %v6692 = vshll.u32 %v6641, 16
  %v6694 = vrot.slane %v6692, 6
  %v6695 = vor.u32 %v6691, %v6694
  %v6696 = vsel %vm169, %v6686, %v6695
  %v6698 = vshrl.u32 %v6642, 16
  %v6700 = vrot.slane %v6698, 5
  %v6701 = vshll.u32 %v6642, 16
  %v6703 = vrot.slane %v6701, 6
  %v6704 = vor.u32 %v6700, %v6703
  %v6705 = vsel %vm169, %v6695, %v6704
  %v6707 = vshrl.u32 %v6643, 16
  %v6709 = vrot.slane %v6707, 5
  %v6710 = vshll.u32 %v6643, 16
  %v6712 = vrot.slane %v6710, 6
  %v6713 = vor.u32 %v6709, %v6712
  %v6714 = vsel %vm169, %v6704, %v6713
  %v6716 = vshrl.u32 %v6644, 16
  %v6718 = vrot.slane %v6716, 5
  %v6719 = vshll.u32 %v6644, 16
  %v6721 = vrot.slane %v6719, 6
  %v6722 = vor.u32 %v6718, %v6721
  %v6723 = vsel %vm169, %v6713, %v6722
  %v6725 = vshrl.u32 %v6645, 16
  %v6727 = vrot.slane %v6725, 5
  %v6728 = vshll.u32 %v6645, 16
  %v6730 = vrot.slane %v6728, 6
  %v6731 = vor.u32 %v6727, %v6730
  %v6732 = vsel %vm169, %v6722, %v6731
  %v6756 = vunpack.c.l.b16 %v6646
  %v6757 = vunpack.c.l.b16 %v6647
  %v6758 = vunpack.c.l.b16 %v6648
  %v6759 = vunpack.c.l.b16 %v6649
  %v6760 = vunpack.c.l.b16 %v6650
  %v6761 = vunpack.c.l.b16 %v6651
  %v6762 = vunpack.c.l.b16 %v6652
  %v6763 = vunpack.c.l.b16 %v6653
  %v6764 = vunpack.c.l.b16 %v6654
  %v6765 = vunpack.c.l.b16 %v6655
  %v6766 = vunpack.c.l.b16 %v6656
  %v6767 = vunpack.c.l.b16 %v6657
  %v6768 = vunpack.c.l.b16 %v6658
  %v6769 = vunpack.c.l.b16 %v6659
  %v6770 = vunpack.c.l.b16 %v6660
  %v6771 = vunpack.c.l.b16 %v6661
  %v6772 = vpack.c.b16 %v6757, %v6756
  %v6773 = vpack.c.b16 %v6759, %v6758
  %v6774 = vpack.c.b16 %v6761, %v6760
  %v6775 = vpack.c.b16 %v6763, %v6762
  %v6776 = vpack.c.b16 %v6765, %v6764
  %v6777 = vpack.c.b16 %v6767, %v6766
  %v6778 = vpack.c.b16 %v6769, %v6768
  %v6779 = vpack.c.b16 %v6771, %v6770
  %6788 = vmatprep.subr.bf16.mxu0 0
  %6789 = vmatpush1.bf16.msra.mxu0 %v6772
  %6790 = vmatprep.subr.bf16.mxu0 0
  %6791 = vmatpush1.bf16.msra.mxu0 %v6773
  %6792 = vmatprep.subr.bf16.mxu0 0
  %6793 = vmatpush1.bf16.msra.mxu0 %v6774
  %6794 = vmatprep.subr.bf16.mxu0 0
  %6795 = vmatpush1.bf16.msra.mxu0 %v6775
  %6796 = vmatprep.subr.bf16.mxu0 0
  %6797 = vmatpush1.bf16.msra.mxu0 %v6776
  %6798 = vmatprep.subr.bf16.mxu0 0
  %6799 = vmatpush1.bf16.msra.mxu0 %v6777
  %6800 = vmatprep.subr.bf16.mxu0 0
  %6801 = vmatpush1.bf16.msra.mxu0 %v6778
  %6802 = vmatprep.subr.bf16.mxu0 0
  %6803 = vmatpush1.bf16.msra.mxu0 %v6779
  %6804 = vmatprep.subr.bf16.mxu0 0
  %6805 = vmatpush1.bf16.msra.mxu0 0
  %6806 = vmatprep.subr.bf16.mxu0 0
  %6807 = vmatpush1.bf16.msra.mxu0 0
  %6808 = vmatprep.subr.bf16.mxu0 0
  %6809 = vmatpush1.bf16.msra.mxu0 0
  %6810 = vmatprep.subr.bf16.mxu0 0
  %6811 = vmatpush1.bf16.msra.mxu0 0
  %6812 = vmatprep.subr.bf16.mxu0 0
  %6813 = vmatpush1.bf16.msra.mxu0 0
  %6814 = vmatprep.subr.bf16.mxu0 0
  %6815 = vmatpush1.bf16.msra.mxu0 0
  %6816 = vmatprep.subr.bf16.mxu0 0
  %6817 = vmatpush1.bf16.msra.mxu0 0
  %6818 = vmatprep.subr.bf16.mxu0 0
  %6819 = vmatpush1.bf16.msra.mxu0 0
  %6820 = vmatprep.mubr.bf16.mxu0 0
  %6821 = vmatmul.mubr.bf16.gmra.mrb[0].mxu0 %v6678
  %v6822 = vpop.f32.mrb[0].mxu0
  %v6823 = vadd.f32 0.0, %v6822
  %v6824 = vpop.f32.mrb[0].mxu0
  %v6825 = vpop.f32.mrb[0].mxu0
  %v6826 = vadd.f32 0.0, %v6825
  %v6827 = vpop.f32.mrb[0].mxu0
  %6828 = vmatprep.mubr.bf16.mxu0 0
  %6829 = vmatmul.mubr.bf16.gmra.mrb[0].mxu0 %v6687
  %v6830 = vpop.f32.mrb[0].mxu0
  %v6831 = vadd.f32 0.0, %v6830
  %v6832 = vpop.f32.mrb[0].mxu0
  %v6833 = vpop.f32.mrb[0].mxu0
  %v6834 = vadd.f32 0.0, %v6833
  %v6835 = vpop.f32.mrb[0].mxu0
  %6836 = vmatprep.mubr.bf16.mxu0 0
  %6837 = vmatmul.mubr.bf16.gmra.mrb[0].mxu0 %v6696
  %v6838 = vpop.f32.mrb[0].mxu0
  %v6839 = vadd.f32 0.0, %v6838
  %v6840 = vpop.f32.mrb[0].mxu0
  %v6841 = vpop.f32.mrb[0].mxu0
  %v6842 = vadd.f32 0.0, %v6841
  %v6843 = vpop.f32.mrb[0].mxu0
  %6844 = vmatprep.mubr.bf16.mxu0 0
  %6845 = vmatmul.mubr.bf16.gmra.mrb[0].mxu0 %v6705
  %v6846 = vpop.f32.mrb[0].mxu0
  %v6847 = vadd.f32 0.0, %v6846
  %v6848 = vpop.f32.mrb[0].mxu0
  %v6849 = vpop.f32.mrb[0].mxu0
  %v6850 = vadd.f32 0.0, %v6849
  %v6851 = vpop.f32.mrb[0].mxu0
  %6852 = vmatprep.mubr.bf16.mxu0 0
  %6853 = vmatmul.mubr.bf16.gmra.mrb[0].mxu0 %v6714
  %v6854 = vpop.f32.mrb[0].mxu0
  %v6855 = vadd.f32 0.0, %v6854
  %v6856 = vpop.f32.mrb[0].mxu0
  %v6857 = vpop.f32.mrb[0].mxu0
  %v6858 = vadd.f32 0.0, %v6857
  %v6859 = vpop.f32.mrb[0].mxu0
  %6860 = vmatprep.mubr.bf16.mxu0 0
  %6861 = vmatmul.mubr.bf16.gmra.mrb[0].mxu0 %v6723
  %v6862 = vpop.f32.mrb[0].mxu0
  %v6863 = vadd.f32 0.0, %v6862
  %v6864 = vpop.f32.mrb[0].mxu0
  %v6865 = vpop.f32.mrb[0].mxu0
  %v6866 = vadd.f32 0.0, %v6865
  %v6867 = vpop.f32.mrb[0].mxu0
  %6868 = vmatprep.mubr.bf16.mxu0 0
  %6869 = vmatmul.mubr.bf16.gmra.mrb[0].mxu0 %v6732
  %v6870 = vpop.f32.mrb[0].mxu0
  %v6871 = vadd.f32 0.0, %v6870
  %v6872 = vpop.f32.mrb[0].mxu0
  %v6873 = vpop.f32.mrb[0].mxu0
  %v6874 = vpop.f32.mrb[0].mxu0
  %6875 = vdwg.mxu0
  %v6876 = vadd.f32 %v6625, %v6823
  %v6877 = vadd.f32 %v6626, %v6826
  %v6878 = vadd.f32 %v6627, %v6831
  %v6879 = vadd.f32 %v6628, %v6834
  %v6880 = vadd.f32 %v6629, %v6839
  %v6881 = vadd.f32 %v6630, %v6842
  %v6882 = vadd.f32 %v6631, %v6847
  %v6883 = vadd.f32 %v6632, %v6850
  %v6884 = vadd.f32 %v6633, %v6855
  %v6885 = vadd.f32 %v6634, %v6858
  %v6886 = vadd.f32 %v6635, %v6863
  %v6887 = vadd.f32 %v6636, %v6866
  %v6888 = vadd.f32 %v6637, %v6871
  %v6889 = vld [vmem:[#allocation3] sm:$0xc0]
  %v6890 = vld [vmem:[%s1928] sm:$0xf]
  %v6891 = vld [vmem:[%s1928 + $0x4] sm:$0xf]
  %v6892 = vld [vmem:[%s1928 + $0x8] sm:$0xf]
  %v6893 = vld [vmem:[%s1928 + $0xc] sm:$0xf]
  %v6894 = vld [vmem:[%s1928 + $0x10] sm:$0xf]
  %v6895 = vld [vmem:[%s1928 + $0x14] sm:$0xf]
  %v6896 = vld [vmem:[%s1928 + $0x18] sm:$0xf]
  %v6897 = vld [vmem:[%s1928 + $0x1c] sm:$0xf]
  %v6898 = vld [vmem:[%s1928 + $0x20] sm:$0xf]
  %v6899 = vld [vmem:[%s1928 + $0x24] sm:$0xf]
  %v6900 = vld [vmem:[%s1928 + $0x28] sm:$0xf]
  %v6901 = vld [vmem:[%s1928 + $0x2c] sm:$0xf]
  %v6902 = vld [vmem:[%s1928 + $0x30] sm:$0xf]
  %v6903 = vld [vmem:[%s1928 + $0x34] sm:$0xf]
  %v6904 = vld [vmem:[%s1928 + $0x38] sm:$0xf]
  %v6905 = vld [vmem:[%s1928 + $0x3c] sm:$0xf]
  %v6914 = vrot.slane %v6889, 6
  %v6915 = vrot.slane %v6639, 6
  %v6916 = vsel %vm1953, %v6914, %v6915
  %v6917 = vrot.slane %v6640, 6
  %v6918 = vsel %vm1953, %v6915, %v6917
  %v6919 = vrot.slane %v6641, 6
  %v6920 = vsel %vm1953, %v6917, %v6919
  %v6921 = vrot.slane %v6642, 6
  %v6922 = vsel %vm1953, %v6919, %v6921
  %v6923 = vrot.slane %v6643, 6
  %v6924 = vsel %vm1953, %v6921, %v6923
  %v6925 = vrot.slane %v6644, 6
  %v6926 = vsel %vm1953, %v6923, %v6925
  %v6927 = vrot.slane %v6645, 6
  %v6928 = vsel %vm1953, %v6925, %v6927
  %v6952 = vunpack.c.l.b16 %v6890
  %v6953 = vunpack.c.l.b16 %v6891
  %v6954 = vunpack.c.l.b16 %v6892
  %v6955 = vunpack.c.l.b16 %v6893
  %v6956 = vunpack.c.l.b16 %v6894
  %v6957 = vunpack.c.l.b16 %v6895
  %v6958 = vunpack.c.l.b16 %v6896
  %v6959 = vunpack.c.l.b16 %v6897
  %v6960 = vunpack.c.l.b16 %v6898
  %v6961 = vunpack.c.l.b16 %v6899
  %v6962 = vunpack.c.l.b16 %v6900
  %v6963 = vunpack.c.l.b16 %v6901
  %v6964 = vunpack.c.l.b16 %v6902
  %v6965 = vunpack.c.l.b16 %v6903
  %v6966 = vunpack.c.l.b16 %v6904
  %v6967 = vunpack.c.l.b16 %v6905
  %v6968 = vpack.c.b16 %v6953, %v6952
  %v6969 = vpack.c.b16 %v6955, %v6954
  %v6970 = vpack.c.b16 %v6957, %v6956
  %v6971 = vpack.c.b16 %v6959, %v6958
  %v6972 = vpack.c.b16 %v6961, %v6960
  %v6973 = vpack.c.b16 %v6963, %v6962
  %v6974 = vpack.c.b16 %v6965, %v6964
  %v6975 = vpack.c.b16 %v6967, %v6966
  %6984 = vmatprep.subr.bf16.mxu0 0
  %6985 = vmatpush1.bf16.msra.mxu0 %v6968
  %6986 = vmatprep.subr.bf16.mxu0 0
  %6987 = vmatpush1.bf16.msra.mxu0 %v6969
  %6988 = vmatprep.subr.bf16.mxu0 0
  %6989 = vmatpush1.bf16.msra.mxu0 %v6970
  %6990 = vmatprep.subr.bf16.mxu0 0
  %6991 = vmatpush1.bf16.msra.mxu0 %v6971
  %6992 = vmatprep.subr.bf16.mxu0 0
  %6993 = vmatpush1.bf16.msra.mxu0 %v6972
  %6994 = vmatprep.subr.bf16.mxu0 0
  %6995 = vmatpush1.bf16.msra.mxu0 %v6973
  %6996 = vmatprep.subr.bf16.mxu0 0
  %6997 = vmatpush1.bf16.msra.mxu0 %v6974
  %6998 = vmatprep.subr.bf16.mxu0 0
  %6999 = vmatpush1.bf16.msra.mxu0 %v6975
  %7000 = vmatprep.subr.bf16.mxu0 0
  %7001 = vmatpush1.bf16.msra.mxu0 0
  %7002 = vmatprep.subr.bf16.mxu0 0
  %7003 = vmatpush1.bf16.msra.mxu0 0
  %7004 = vmatprep.subr.bf16.mxu0 0
  %7005 = vmatpush1.bf16.msra.mxu0 0
  %7006 = vmatprep.subr.bf16.mxu0 0
  %7007 = vmatpush1.bf16.msra.mxu0 0
  %7008 = vmatprep.subr.bf16.mxu0 0
  %7009 = vmatpush1.bf16.msra.mxu0 0
  %7010 = vmatprep.subr.bf16.mxu0 0
  %7011 = vmatpush1.bf16.msra.mxu0 0
  %7012 = vmatprep.subr.bf16.mxu0 0
  %7013 = vmatpush1.bf16.msra.mxu0 0
  %7014 = vmatprep.subr.bf16.mxu0 0
  %7015 = vmatpush1.bf16.msra.mxu0 0
  %7016 = vmatprep.mubr.bf16.mxu0 0
  %7017 = vmatmul.mubr.bf16.gmra.mrb[0].mxu0 %v6916
  %v7018 = vpop.f32.mrb[0].mxu0
  %v7019 = vadd.f32 0.0, %v7018
  %v7020 = vpop.f32.mrb[0].mxu0
  %v7021 = vpop.f32.mrb[0].mxu0
  %v7022 = vadd.f32 0.0, %v7021
  %v7023 = vpop.f32.mrb[0].mxu0
  %7024 = vmatprep.mubr.bf16.mxu0 0
  %7025 = vmatmul.mubr.bf16.gmra.mrb[0].mxu0 %v6918
  %v7026 = vpop.f32.mrb[0].mxu0
  %v7027 = vadd.f32 0.0, %v7026
  %v7028 = vpop.f32.mrb[0].mxu0
  %v7029 = vpop.f32.mrb[0].mxu0
  %v7030 = vadd.f32 0.0, %v7029
  %v7031 = vpop.f32.mrb[0].mxu0
  %7032 = vmatprep.mubr.bf16.mxu0 0
  %7033 = vmatmul.mubr.bf16.gmra.mrb[0].mxu0 %v6920
  %v7034 = vpop.f32.mrb[0].mxu0
  %v7035 = vadd.f32 0.0, %v7034
  %v7036 = vpop.f32.mrb[0].mxu0
  %v7037 = vpop.f32.mrb[0].mxu0
  %v7038 = vadd.f32 0.0, %v7037
  %v7039 = vpop.f32.mrb[0].mxu0
  %7040 = vmatprep.mubr.bf16.mxu0 0
  %7041 = vmatmul.mubr.bf16.gmra.mrb[0].mxu0 %v6922
  %v7042 = vpop.f32.mrb[0].mxu0
  %v7043 = vadd.f32 0.0, %v7042
  %v7044 = vpop.f32.mrb[0].mxu0
  %v7045 = vpop.f32.mrb[0].mxu0
  %v7046 = vadd.f32 0.0, %v7045
  %v7047 = vpop.f32.mrb[0].mxu0
  %7048 = vmatprep.mubr.bf16.mxu0 0
  %7049 = vmatmul.mubr.bf16.gmra.mrb[0].mxu0 %v6924
  %v7050 = vpop.f32.mrb[0].mxu0
  %v7051 = vadd.f32 0.0, %v7050
  %v7052 = vpop.f32.mrb[0].mxu0
  %v7053 = vpop.f32.mrb[0].mxu0
  %v7054 = vadd.f32 0.0, %v7053
  %v7055 = vpop.f32.mrb[0].mxu0
  %7056 = vmatprep.mubr.bf16.mxu0 0
  %7057 = vmatmul.mubr.bf16.gmra.mrb[0].mxu0 %v6926
  %v7058 = vpop.f32.mrb[0].mxu0
  %v7059 = vadd.f32 0.0, %v7058
  %v7060 = vpop.f32.mrb[0].mxu0
  %v7061 = vpop.f32.mrb[0].mxu0
  %v7062 = vadd.f32 0.0, %v7061
  %v7063 = vpop.f32.mrb[0].mxu0
  %7064 = vmatprep.mubr.bf16.mxu0 0
  %7065 = vmatmul.mubr.bf16.gmra.mrb[0].mxu0 %v6928
  %v7066 = vpop.f32.mrb[0].mxu0
  %v7067 = vadd.f32 0.0, %v7066
  %v7068 = vpop.f32.mrb[0].mxu0
  %v7069 = vpop.f32.mrb[0].mxu0
  %v7070 = vpop.f32.mrb[0].mxu0
  %7071 = vdwg.mxu0
  %v7072 = vadd.f32 %v6876, %v7019
  %v7073 = vadd.f32 %v6877, %v7022
  %v7074 = vadd.f32 %v6878, %v7027
  %v7075 = vadd.f32 %v6879, %v7030
  %v7076 = vadd.f32 %v6880, %v7035
  %v7077 = vadd.f32 %v6881, %v7038
  %v7078 = vadd.f32 %v6882, %v7043
  %v7079 = vadd.f32 %v6883, %v7046
  %v7080 = vadd.f32 %v6884, %v7051
  %v7081 = vadd.f32 %v6885, %v7054
  %v7082 = vadd.f32 %v6886, %v7059
  %v7083 = vadd.f32 %v6887, %v7062
  %v7084 = vadd.f32 %v6888, %v7067
  %v7085 = vld [vmem:[#allocation3 + $0x38] sm:$0x7]
  %v7086 = vld [vmem:[%s2126] sm:$0xf]
  %v7087 = vld [vmem:[%s2126 + $0x4] sm:$0xf]
  %v7088 = vld [vmem:[%s2126 + $0x8] sm:$0xf]
  %v7089 = vld [vmem:[%s2126 + $0xc] sm:$0xf]
  %v7090 = vld [vmem:[%s2126 + $0x10] sm:$0xf]
  %v7091 = vld [vmem:[%s2126 + $0x14] sm:$0xf]
  %v7092 = vld [vmem:[%s2126 + $0x18] sm:$0xf]
  %v7093 = vld [vmem:[%s2126 + $0x1c] sm:$0xf]
  %v7094 = vld [vmem:[%s2126 + $0x20] sm:$0xf]
  %v7095 = vld [vmem:[%s2126 + $0x24] sm:$0xf]
  %v7096 = vld [vmem:[%s2126 + $0x28] sm:$0xf]
  %v7097 = vld [vmem:[%s2126 + $0x2c] sm:$0xf]
  %v7098 = vld [vmem:[%s2126 + $0x30] sm:$0xf]
  %v7099 = vld [vmem:[%s2126 + $0x34] sm:$0xf]
  %v7100 = vld [vmem:[%s2126 + $0x38] sm:$0xf]
  %v7101 = vld [vmem:[%s2126 + $0x3c] sm:$0xf]
  %v7103 = vshrl.u32 %v6889, 16
  %v7105 = vrot.slane %v7103, 6
  %v7106 = vshll.u32 %v6889, 16
  %v7108 = vrot.slane %v7106, 7
  %v7109 = vor.u32 %v7105, %v7108
  %v7110 = vrot.slane %v6671, 6
  %v7111 = vrot.slane %v6674, 7
  %v7112 = vor.u32 %v7110, %v7111
  %v7113 = vsel %vm193, %v7109, %v7112
  %v7114 = vrot.slane %v6680, 6
  %v7115 = vrot.slane %v6683, 7
  %v7116 = vor.u32 %v7114, %v7115
  %v7117 = vsel %vm193, %v7112, %v7116
  %v7118 = vrot.slane %v6689, 6
  %v7119 = vrot.slane %v6692, 7
  %v7120 = vor.u32 %v7118, %v7119
  %v7121 = vsel %vm193, %v7116, %v7120
  %v7122 = vrot.slane %v6698, 6
  %v7123 = vrot.slane %v6701, 7
  %v7124 = vor.u32 %v7122, %v7123
  %v7125 = vsel %vm193, %v7120, %v7124
  %v7126 = vrot.slane %v6707, 6
  %v7127 = vrot.slane %v6710, 7
  %v7128 = vor.u32 %v7126, %v7127
  %v7129 = vsel %vm193, %v7124, %v7128
  %v7130 = vrot.slane %v6716, 6
  %v7131 = vrot.slane %v6719, 7
  %v7132 = vor.u32 %v7130, %v7131
  %v7133 = vsel %vm193, %v7128, %v7132
  %v7135 = vshrl.u32 %v7085, 16
  %v7137 = vrot.slane %v7135, 6
  %v7138 = vshll.u32 %v7085, 16
  %v7140 = vrot.slane %v7138, 7
  %v7141 = vor.u32 %v7137, %v7140
  %v7142 = vsel %vm193, %v7132, %v7141
  %v7166 = vunpack.c.l.b16 %v7086
  %v7167 = vunpack.c.l.b16 %v7087
  %v7168 = vunpack.c.l.b16 %v7088
  %v7169 = vunpack.c.l.b16 %v7089
  %v7170 = vunpack.c.l.b16 %v7090
  %v7171 = vunpack.c.l.b16 %v7091
  %v7172 = vunpack.c.l.b16 %v7092
  %v7173 = vunpack.c.l.b16 %v7093
  %v7174 = vunpack.c.l.b16 %v7094
  %v7175 = vunpack.c.l.b16 %v7095
  %v7176 = vunpack.c.l.b16 %v7096
  %v7177 = vunpack.c.l.b16 %v7097
  %v7178 = vunpack.c.l.b16 %v7098
  %v7179 = vunpack.c.l.b16 %v7099
  %v7180 = vunpack.c.l.b16 %v7100
  %v7181 = vunpack.c.l.b16 %v7101
  %v7182 = vpack.c.b16 %v7167, %v7166
  %v7183 = vpack.c.b16 %v7169, %v7168
  %v7184 = vpack.c.b16 %v7171, %v7170
  %v7185 = vpack.c.b16 %v7173, %v7172
  %v7186 = vpack.c.b16 %v7175, %v7174
  %v7187 = vpack.c.b16 %v7177, %v7176
  %v7188 = vpack.c.b16 %v7179, %v7178
  %v7189 = vpack.c.b16 %v7181, %v7180
  %7198 = vmatprep.subr.bf16.mxu0 0
  %7199 = vmatpush1.bf16.msra.mxu0 %v7182
  %7200 = vmatprep.subr.bf16.mxu0 0
  %7201 = vmatpush1.bf16.msra.mxu0 %v7183
  %7202 = vmatprep.subr.bf16.mxu0 0
  %7203 = vmatpush1.bf16.msra.mxu0 %v7184
  %7204 = vmatprep.subr.bf16.mxu0 0
  %7205 = vmatpush1.bf16.msra.mxu0 %v7185
  %7206 = vmatprep.subr.bf16.mxu0 0
  %7207 = vmatpush1.bf16.msra.mxu0 %v7186
  %7208 = vmatprep.subr.bf16.mxu0 0
  %7209 = vmatpush1.bf16.msra.mxu0 %v7187
  %7210 = vmatprep.subr.bf16.mxu0 0
  %7211 = vmatpush1.bf16.msra.mxu0 %v7188
  %7212 = vmatprep.subr.bf16.mxu0 0
  %7213 = vmatpush1.bf16.msra.mxu0 %v7189
  %7214 = vmatprep.subr.bf16.mxu0 0
  %7215 = vmatpush1.bf16.msra.mxu0 0
  %7216 = vmatprep.subr.bf16.mxu0 0
  %7217 = vmatpush1.bf16.msra.mxu0 0
  %7218 = vmatprep.subr.bf16.mxu0 0
  %7219 = vmatpush1.bf16.msra.mxu0 0
  %7220 = vmatprep.subr.bf16.mxu0 0
  %7221 = vmatpush1.bf16.msra.mxu0 0
  %7222 = vmatprep.subr.bf16.mxu0 0
  %7223 = vmatpush1.bf16.msra.mxu0 0
  %7224 = vmatprep.subr.bf16.mxu0 0
  %7225 = vmatpush1.bf16.msra.mxu0 0
  %7226 = vmatprep.subr.bf16.mxu0 0
  %7227 = vmatpush1.bf16.msra.mxu0 0
  %7228 = vmatprep.subr.bf16.mxu0 0
  %7229 = vmatpush1.bf16.msra.mxu0 0
  %7230 = vmatprep.mubr.bf16.mxu0 0
  %7231 = vmatmul.mubr.bf16.gmra.mrb[0].mxu0 %v7113
  %v7232 = vpop.f32.mrb[0].mxu0
  %v7233 = vadd.f32 0.0, %v7232
  %v7234 = vpop.f32.mrb[0].mxu0
  %v7235 = vpop.f32.mrb[0].mxu0
  %v7236 = vadd.f32 0.0, %v7235
  %v7237 = vpop.f32.mrb[0].mxu0
  %7238 = vmatprep.mubr.bf16.mxu0 0
  %7239 = vmatmul.mubr.bf16.gmra.mrb[0].mxu0 %v7117
  %v7240 = vpop.f32.mrb[0].mxu0
  %v7241 = vadd.f32 0.0, %v7240
  %v7242 = vpop.f32.mrb[0].mxu0
  %v7243 = vpop.f32.mrb[0].mxu0
  %v7244 = vadd.f32 0.0, %v7243
  %v7245 = vpop.f32.mrb[0].mxu0
  %7246 = vmatprep.mubr.bf16.mxu0 0
  %7247 = vmatmul.mubr.bf16.gmra.mrb[0].mxu0 %v7121
  %v7248 = vpop.f32.mrb[0].mxu0
  %v7249 = vadd.f32 0.0, %v7248
  %v7250 = vpop.f32.mrb[0].mxu0
  %v7251 = vpop.f32.mrb[0].mxu0
  %v7252 = vadd.f32 0.0, %v7251
  %v7253 = vpop.f32.mrb[0].mxu0
  %7254 = vmatprep.mubr.bf16.mxu0 0
  %7255 = vmatmul.mubr.bf16.gmra.mrb[0].mxu0 %v7125
  %v7256 = vpop.f32.mrb[0].mxu0
  %v7257 = vadd.f32 0.0, %v7256
  %v7258 = vpop.f32.mrb[0].mxu0
  %v7259 = vpop.f32.mrb[0].mxu0
  %v7260 = vadd.f32 0.0, %v7259
  %v7261 = vpop.f32.mrb[0].mxu0
  %7262 = vmatprep.mubr.bf16.mxu0 0
  %7263 = vmatmul.mubr.bf16.gmra.mrb[0].mxu0 %v7129
  %v7264 = vpop.f32.mrb[0].mxu0
  %v7265 = vadd.f32 0.0, %v7264
  %v7266 = vpop.f32.mrb[0].mxu0
  %v7267 = vpop.f32.mrb[0].mxu0
  %v7268 = vadd.f32 0.0, %v7267
  %v7269 = vpop.f32.mrb[0].mxu0
  %7270 = vmatprep.mubr.bf16.mxu0 0
  %7271 = vmatmul.mubr.bf16.gmra.mrb[0].mxu0 %v7133
  %v7272 = vpop.f32.mrb[0].mxu0
  %v7273 = vadd.f32 0.0, %v7272
  %v7274 = vpop.f32.mrb[0].mxu0
  %v7275 = vpop.f32.mrb[0].mxu0
  %v7276 = vadd.f32 0.0, %v7275
  %v7277 = vpop.f32.mrb[0].mxu0
  %7278 = vmatprep.mubr.bf16.mxu0 0
  %7279 = vmatmul.mubr.bf16.gmra.mrb[0].mxu0 %v7142
  %v7280 = vpop.f32.mrb[0].mxu0
  %v7281 = vadd.f32 0.0, %v7280
  %v7282 = vpop.f32.mrb[0].mxu0
  %v7283 = vpop.f32.mrb[0].mxu0
  %v7284 = vpop.f32.mrb[0].mxu0
  %7285 = vdwg.mxu0
  %v7286 = vadd.f32 %v7072, %v7233
  %v7287 = vadd.f32 %v7073, %v7236
  %v7288 = vadd.f32 %v7074, %v7241
  %v7289 = vadd.f32 %v7075, %v7244
  %v7290 = vadd.f32 %v7076, %v7249
  %v7291 = vadd.f32 %v7077, %v7252
  %v7292 = vadd.f32 %v7078, %v7257
  %v7293 = vadd.f32 %v7079, %v7260
  %v7294 = vadd.f32 %v7080, %v7265
  %v7295 = vadd.f32 %v7081, %v7268
  %v7296 = vadd.f32 %v7082, %v7273
  %v7297 = vadd.f32 %v7083, %v7276
  %v7298 = vadd.f32 %v7084, %v7281
  %v7299 = vld [vmem:[#allocation3 + $0x8] sm:$0xf8]
  %v7300 = vld [vmem:[#allocation3 + $0x38] sm:$0x7f]
  %v7301 = vld [vmem:[%s2342] sm:$0xf]
  %v7302 = vld [vmem:[%s2342 + $0x4] sm:$0xf]
  %v7303 = vld [vmem:[%s2342 + $0x8] sm:$0xf]
  %v7304 = vld [vmem:[%s2342 + $0xc] sm:$0xf]
  %v7305 = vld [vmem:[%s2342 + $0x10] sm:$0xf]
  %v7306 = vld [vmem:[%s2342 + $0x14] sm:$0xf]
  %v7307 = vld [vmem:[%s2342 + $0x18] sm:$0xf]
  %v7308 = vld [vmem:[%s2342 + $0x1c] sm:$0xf]
  %v7309 = vld [vmem:[%s2342 + $0x20] sm:$0xf]
  %v7310 = vld [vmem:[%s2342 + $0x24] sm:$0xf]
  %v7311 = vld [vmem:[%s2342 + $0x28] sm:$0xf]
  %v7312 = vld [vmem:[%s2342 + $0x2c] sm:$0xf]
  %v7313 = vld [vmem:[%s2342 + $0x30] sm:$0xf]
  %v7314 = vld [vmem:[%s2342 + $0x34] sm:$0xf]
  %v7315 = vld [vmem:[%s2342 + $0x38] sm:$0xf]
  %v7316 = vld [vmem:[%s2342 + $0x3c] sm:$0xf]
  %v7319 = vrot.slane %v7299, 3
  %v7320 = vrot.slane %v6640, 3
  %v7321 = vsel %vm2361, %v7319, %v7320
  %v7322 = vrot.slane %v6641, 3
  %v7323 = vsel %vm2361, %v7320, %v7322
  %v7324 = vrot.slane %v6642, 3
  %v7325 = vsel %vm2361, %v7322, %v7324
  %v7326 = vrot.slane %v6643, 3
  %v7327 = vsel %vm2361, %v7324, %v7326
  %v7328 = vrot.slane %v6644, 3
  %v7329 = vsel %vm2361, %v7326, %v7328
  %v7330 = vrot.slane %v7300, 3
  %v7331 = vsel %vm2361, %v7328, %v7330
  %v7355 = vunpack.c.l.b16 %v7301
  %v7356 = vunpack.c.l.b16 %v7302
  %v7357 = vunpack.c.l.b16 %v7303
  %v7358 = vunpack.c.l.b16 %v7304
  %v7359 = vunpack.c.l.b16 %v7305
  %v7360 = vunpack.c.l.b16 %v7306
  %v7361 = vunpack.c.l.b16 %v7307
  %v7362 = vunpack.c.l.b16 %v7308
  %v7363 = vunpack.c.l.b16 %v7309
  %v7364 = vunpack.c.l.b16 %v7310
  %v7365 = vunpack.c.l.b16 %v7311
  %v7366 = vunpack.c.l.b16 %v7312
  %v7367 = vunpack.c.l.b16 %v7313
  %v7368 = vunpack.c.l.b16 %v7314
  %v7369 = vunpack.c.l.b16 %v7315
  %v7370 = vunpack.c.l.b16 %v7316
  %v7371 = vpack.c.b16 %v7356, %v7355
  %v7372 = vpack.c.b16 %v7358, %v7357
  %v7373 = vpack.c.b16 %v7360, %v7359
  %v7374 = vpack.c.b16 %v7362, %v7361
  %v7375 = vpack.c.b16 %v7364, %v7363
  %v7376 = vpack.c.b16 %v7366, %v7365
  %v7377 = vpack.c.b16 %v7368, %v7367
  %v7378 = vpack.c.b16 %v7370, %v7369
  %7387 = vmatprep.subr.bf16.mxu0 0
  %7388 = vmatpush1.bf16.msra.mxu0 %v7371
  %7389 = vmatprep.subr.bf16.mxu0 0
  %7390 = vmatpush1.bf16.msra.mxu0 %v7372
  %7391 = vmatprep.subr.bf16.mxu0 0
  %7392 = vmatpush1.bf16.msra.mxu0 %v7373
  %7393 = vmatprep.subr.bf16.mxu0 0
  %7394 = vmatpush1.bf16.msra.mxu0 %v7374
  %7395 = vmatprep.subr.bf16.mxu0 0
  %7396 = vmatpush1.bf16.msra.mxu0 %v7375
  %7397 = vmatprep.subr.bf16.mxu0 0
  %7398 = vmatpush1.bf16.msra.mxu0 %v7376
  %7399 = vmatprep.subr.bf16.mxu0 0
  %7400 = vmatpush1.bf16.msra.mxu0 %v7377
  %7401 = vmatprep.subr.bf16.mxu0 0
  %7402 = vmatpush1.bf16.msra.mxu0 %v7378
  %7403 = vmatprep.subr.bf16.mxu0 0
  %7404 = vmatpush1.bf16.msra.mxu0 0
  %7405 = vmatprep.subr.bf16.mxu0 0
  %7406 = vmatpush1.bf16.msra.mxu0 0
  %7407 = vmatprep.subr.bf16.mxu0 0
  %7408 = vmatpush1.bf16.msra.mxu0 0
  %7409 = vmatprep.subr.bf16.mxu0 0
  %7410 = vmatpush1.bf16.msra.mxu0 0
  %7411 = vmatprep.subr.bf16.mxu0 0
  %7412 = vmatpush1.bf16.msra.mxu0 0
  %7413 = vmatprep.subr.bf16.mxu0 0
  %7414 = vmatpush1.bf16.msra.mxu0 0
  %7415 = vmatprep.subr.bf16.mxu0 0
  %7416 = vmatpush1.bf16.msra.mxu0 0
  %7417 = vmatprep.subr.bf16.mxu0 0
  %7418 = vmatpush1.bf16.msra.mxu0 0
  %7419 = vmatprep.mubr.bf16.mxu0 0
  %7420 = vmatmul.mubr.bf16.gmra.mrb[0].mxu0 %v7321
  %v7421 = vpop.f32.mrb[0].mxu0
  %v7422 = vadd.f32 0.0, %v7421
  %v7423 = vpop.f32.mrb[0].mxu0
  %v7424 = vpop.f32.mrb[0].mxu0
  %v7425 = vadd.f32 0.0, %v7424
  %v7426 = vpop.f32.mrb[0].mxu0
  %7427 = vmatprep.mubr.bf16.mxu0 0
  %7428 = vmatmul.mubr.bf16.gmra.mrb[0].mxu0 %v7323
  %v7429 = vpop.f32.mrb[0].mxu0
  %v7430 = vadd.f32 0.0, %v7429
  %v7431 = vpop.f32.mrb[0].mxu0
  %v7432 = vpop.f32.mrb[0].mxu0
  %v7433 = vadd.f32 0.0, %v7432
  %v7434 = vpop.f32.mrb[0].mxu0
  %7435 = vmatprep.mubr.bf16.mxu0 0
  %7436 = vmatmul.mubr.bf16.gmra.mrb[0].mxu0 %v7325
  %v7437 = vpop.f32.mrb[0].mxu0
  %v7438 = vadd.f32 0.0, %v7437
  %v7439 = vpop.f32.mrb[0].mxu0
  %v7440 = vpop.f32.mrb[0].mxu0
  %v7441 = vadd.f32 0.0, %v7440
  %v7442 = vpop.f32.mrb[0].mxu0
  %7443 = vmatprep.mubr.bf16.mxu0 0
  %7444 = vmatmul.mubr.bf16.gmra.mrb[0].mxu0 %v7327
  %v7445 = vpop.f32.mrb[0].mxu0
  %v7446 = vadd.f32 0.0, %v7445
  %v7447 = vpop.f32.mrb[0].mxu0
  %v7448 = vpop.f32.mrb[0].mxu0
  %v7449 = vadd.f32 0.0, %v7448
  %v7450 = vpop.f32.mrb[0].mxu0
  %7451 = vmatprep.mubr.bf16.mxu0 0
  %7452 = vmatmul.mubr.bf16.gmra.mrb[0].mxu0 %v7329
  %v7453 = vpop.f32.mrb[0].mxu0
  %v7454 = vadd.f32 0.0, %v7453
  %v7455 = vpop.f32.mrb[0].mxu0
  %v7456 = vpop.f32.mrb[0].mxu0
  %v7457 = vadd.f32 0.0, %v7456
  %v7458 = vpop.f32.mrb[0].mxu0
  %7459 = vmatprep.mubr.bf16.mxu0 0
  %7460 = vmatmul.mubr.bf16.gmra.mrb[0].mxu0 %v7331
  %v7461 = vpop.f32.mrb[0].mxu0
  %v7462 = vadd.f32 0.0, %v7461
  %v7463 = vpop.f32.mrb[0].mxu0
  %v7464 = vpop.f32.mrb[0].mxu0
  %v7465 = vadd.f32 0.0, %v7464
  %v7466 = vpop.f32.mrb[0].mxu0
  %7467 = vmatprep.mubr.bf16.mxu0 0
  %7468 = vmatmul.mubr.bf16.gmra.mrb[0].mxu0 %v7330
  %v7469 = vpop.f32.mrb[0].mxu0
  %v7470 = vadd.f32 0.0, %v7469
  %v7471 = vpop.f32.mrb[0].mxu0
  %v7472 = vpop.f32.mrb[0].mxu0
  %v7473 = vpop.f32.mrb[0].mxu0
  %7474 = vdwg.mxu0
  %v7475 = vadd.f32 %v7286, %v7422
  %v7476 = vadd.f32 %v7287, %v7425
  %v7477 = vadd.f32 %v7288, %v7430
  %v7478 = vadd.f32 %v7289, %v7433
  %v7479 = vadd.f32 %v7290, %v7438
  %v7480 = vadd.f32 %v7291, %v7441
  %v7481 = vadd.f32 %v7292, %v7446
  %v7482 = vadd.f32 %v7293, %v7449
  %v7483 = vadd.f32 %v7294, %v7454
  %v7484 = vadd.f32 %v7295, %v7457
  %v7485 = vadd.f32 %v7296, %v7462
  %v7486 = vadd.f32 %v7297, %v7465
  %v7487 = vadd.f32 %v7298, %v7470
  %v7488 = vld [vmem:[#allocation3 + $0x38] sm:$0xff]
  %v7489 = vld [vmem:[%s2532] sm:$0xf]
  %v7490 = vld [vmem:[%s2532 + $0x4] sm:$0xf]
  %v7491 = vld [vmem:[%s2532 + $0x8] sm:$0xf]
  %v7492 = vld [vmem:[%s2532 + $0xc] sm:$0xf]
  %v7493 = vld [vmem:[%s2532 + $0x10] sm:$0xf]
  %v7494 = vld [vmem:[%s2532 + $0x14] sm:$0xf]
  %v7495 = vld [vmem:[%s2532 + $0x18] sm:$0xf]
  %v7496 = vld [vmem:[%s2532 + $0x1c] sm:$0xf]
  %v7497 = vld [vmem:[%s2532 + $0x20] sm:$0xf]
  %v7498 = vld [vmem:[%s2532 + $0x24] sm:$0xf]
  %v7499 = vld [vmem:[%s2532 + $0x28] sm:$0xf]
  %v7500 = vld [vmem:[%s2532 + $0x2c] sm:$0xf]
  %v7501 = vld [vmem:[%s2532 + $0x30] sm:$0xf]
  %v7502 = vld [vmem:[%s2532 + $0x34] sm:$0xf]
  %v7503 = vld [vmem:[%s2532 + $0x38] sm:$0xf]
  %v7504 = vld [vmem:[%s2532 + $0x3c] sm:$0xf]
  %v7506 = vshrl.u32 %v7299, 16
  %v7508 = vrot.slane %v7506, 3
  %v7509 = vshll.u32 %v7299, 16
  %v7511 = vrot.slane %v7509, 4
  %v7512 = vor.u32 %v7508, %v7511
  %v7513 = vrot.slane %v6680, 3
  %v7514 = vrot.slane %v6683, 4
  %v7515 = vor.u32 %v7513, %v7514
  %v7516 = vsel %vm2549, %v7512, %v7515
  %v7517 = vrot.slane %v6689, 3
  %v7518 = vrot.slane %v6692, 4
  %v7519 = vor.u32 %v7517, %v7518
  %v7520 = vsel %vm2549, %v7515, %v7519
  %v7521 = vrot.slane %v6698, 3
  %v7522 = vrot.slane %v6701, 4
  %v7523 = vor.u32 %v7521, %v7522
  %v7524 = vsel %vm2549, %v7519, %v7523
  %v7525 = vrot.slane %v6707, 3
  %v7526 = vrot.slane %v6710, 4
  %v7527 = vor.u32 %v7525, %v7526
  %v7528 = vsel %vm2549, %v7523, %v7527
  %v7529 = vrot.slane %v6716, 3
  %v7530 = vrot.slane %v6719, 4
  %v7531 = vor.u32 %v7529, %v7530
  %v7532 = vsel %vm2549, %v7527, %v7531
  %v7534 = vshrl.u32 %v7488, 16
  %v7536 = vrot.slane %v7534, 3
  %v7537 = vshll.u32 %v7488, 16
  %v7539 = vrot.slane %v7537, 4
  %v7540 = vor.u32 %v7536, %v7539
  %v7541 = vsel %vm2549, %v7531, %v7540
  %v7565 = vunpack.c.l.b16 %v7489
  %v7566 = vunpack.c.l.b16 %v7490
  %v7567 = vunpack.c.l.b16 %v7491
  %v7568 = vunpack.c.l.b16 %v7492
  %v7569 = vunpack.c.l.b16 %v7493
  %v7570 = vunpack.c.l.b16 %v7494
  %v7571 = vunpack.c.l.b16 %v7495
  %v7572 = vunpack.c.l.b16 %v7496
  %v7573 = vunpack.c.l.b16 %v7497
  %v7574 = vunpack.c.l.b16 %v7498
  %v7575 = vunpack.c.l.b16 %v7499
  %v7576 = vunpack.c.l.b16 %v7500
  %v7577 = vunpack.c.l.b16 %v7501
  %v7578 = vunpack.c.l.b16 %v7502
  %v7579 = vunpack.c.l.b16 %v7503
  %v7580 = vunpack.c.l.b16 %v7504
  %v7581 = vpack.c.b16 %v7566, %v7565
  %v7582 = vpack.c.b16 %v7568, %v7567
  %v7583 = vpack.c.b16 %v7570, %v7569
  %v7584 = vpack.c.b16 %v7572, %v7571
  %v7585 = vpack.c.b16 %v7574, %v7573
  %v7586 = vpack.c.b16 %v7576, %v7575
  %v7587 = vpack.c.b16 %v7578, %v7577
  %v7588 = vpack.c.b16 %v7580, %v7579
  %7597 = vmatprep.subr.bf16.mxu0 0
  %7598 = vmatpush1.bf16.msra.mxu0 %v7581
  %7599 = vmatprep.subr.bf16.mxu0 0
  %7600 = vmatpush1.bf16.msra.mxu0 %v7582
  %7601 = vmatprep.subr.bf16.mxu0 0
  %7602 = vmatpush1.bf16.msra.mxu0 %v7583
  %7603 = vmatprep.subr.bf16.mxu0 0
  %7604 = vmatpush1.bf16.msra.mxu0 %v7584
  %7605 = vmatprep.subr.bf16.mxu0 0
  %7606 = vmatpush1.bf16.msra.mxu0 %v7585
  %7607 = vmatprep.subr.bf16.mxu0 0
  %7608 = vmatpush1.bf16.msra.mxu0 %v7586
  %7609 = vmatprep.subr.bf16.mxu0 0
  %7610 = vmatpush1.bf16.msra.mxu0 %v7587
  %7611 = vmatprep.subr.bf16.mxu0 0
  %7612 = vmatpush1.bf16.msra.mxu0 %v7588
  %7613 = vmatprep.subr.bf16.mxu0 0
  %7614 = vmatpush1.bf16.msra.mxu0 0
  %7615 = vmatprep.subr.bf16.mxu0 0
  %7616 = vmatpush1.bf16.msra.mxu0 0
  %7617 = vmatprep.subr.bf16.mxu0 0
  %7618 = vmatpush1.bf16.msra.mxu0 0
  %7619 = vmatprep.subr.bf16.mxu0 0
  %7620 = vmatpush1.bf16.msra.mxu0 0
  %7621 = vmatprep.subr.bf16.mxu0 0
  %7622 = vmatpush1.bf16.msra.mxu0 0
  %7623 = vmatprep.subr.bf16.mxu0 0
  %7624 = vmatpush1.bf16.msra.mxu0 0
  %7625 = vmatprep.subr.bf16.mxu0 0
  %7626 = vmatpush1.bf16.msra.mxu0 0
  %7627 = vmatprep.subr.bf16.mxu0 0
  %7628 = vmatpush1.bf16.msra.mxu0 0
  %7629 = vmatprep.mubr.bf16.mxu0 0
  %7630 = vmatmul.mubr.bf16.gmra.mrb[0].mxu0 %v7516
  %v7631 = vpop.f32.mrb[0].mxu0
  %v7632 = vadd.f32 0.0, %v7631
  %v7633 = vpop.f32.mrb[0].mxu0
  %v7634 = vpop.f32.mrb[0].mxu0
  %v7635 = vadd.f32 0.0, %v7634
  %v7636 = vpop.f32.mrb[0].mxu0
  %7637 = vmatprep.mubr.bf16.mxu0 0
  %7638 = vmatmul.mubr.bf16.gmra.mrb[0].mxu0 %v7520
  %v7639 = vpop.f32.mrb[0].mxu0
  %v7640 = vadd.f32 0.0, %v7639
  %v7641 = vpop.f32.mrb[0].mxu0
  %v7642 = vpop.f32.mrb[0].mxu0
  %v7643 = vadd.f32 0.0, %v7642
  %v7644 = vpop.f32.mrb[0].mxu0
  %7645 = vmatprep.mubr.bf16.mxu0 0
  %7646 = vmatmul.mubr.bf16.gmra.mrb[0].mxu0 %v7524
  %v7647 = vpop.f32.mrb[0].mxu0
  %v7648 = vadd.f32 0.0, %v7647
  %v7649 = vpop.f32.mrb[0].mxu0
  %v7650 = vpop.f32.mrb[0].mxu0
  %v7651 = vadd.f32 0.0, %v7650
  %v7652 = vpop.f32.mrb[0].mxu0
  %7653 = vmatprep.mubr.bf16.mxu0 0
  %7654 = vmatmul.mubr.bf16.gmra.mrb[0].mxu0 %v7528
  %v7655 = vpop.f32.mrb[0].mxu0
  %v7656 = vadd.f32 0.0, %v7655
  %v7657 = vpop.f32.mrb[0].mxu0
  %v7658 = vpop.f32.mrb[0].mxu0
  %v7659 = vadd.f32 0.0, %v7658
  %v7660 = vpop.f32.mrb[0].mxu0
  %7661 = vmatprep.mubr.bf16.mxu0 0
  %7662 = vmatmul.mubr.bf16.gmra.mrb[0].mxu0 %v7532
  %v7663 = vpop.f32.mrb[0].mxu0
  %v7664 = vadd.f32 0.0, %v7663
  %v7665 = vpop.f32.mrb[0].mxu0
  %v7666 = vpop.f32.mrb[0].mxu0
  %v7667 = vadd.f32 0.0, %v7666
  %v7668 = vpop.f32.mrb[0].mxu0
  %7669 = vmatprep.mubr.bf16.mxu0 0
  %7670 = vmatmul.mubr.bf16.gmra.mrb[0].mxu0 %v7541
  %v7671 = vpop.f32.mrb[0].mxu0
  %v7672 = vadd.f32 0.0, %v7671
  %v7673 = vpop.f32.mrb[0].mxu0
  %v7674 = vpop.f32.mrb[0].mxu0
  %v7675 = vadd.f32 0.0, %v7674
  %v7676 = vpop.f32.mrb[0].mxu0
  %7677 = vmatprep.mubr.bf16.mxu0 0
  %7678 = vmatmul.mubr.bf16.gmra.mrb[0].mxu0 %v7540
  %v7679 = vpop.f32.mrb[0].mxu0
  %v7680 = vadd.f32 0.0, %v7679
  %v7681 = vpop.f32.mrb[0].mxu0
  %v7682 = vpop.f32.mrb[0].mxu0
  %v7683 = vpop.f32.mrb[0].mxu0
  %7684 = vdwg.mxu0
  %v7685 = vadd.f32 %v7475, %v7632
  %v7686 = vadd.f32 %v7476, %v7635
  %v7687 = vadd.f32 %v7477, %v7640
  %v7688 = vadd.f32 %v7478, %v7643
  %v7689 = vadd.f32 %v7479, %v7648
  %v7690 = vadd.f32 %v7480, %v7651
  %v7691 = vadd.f32 %v7481, %v7656
  %v7692 = vadd.f32 %v7482, %v7659
  %v7693 = vadd.f32 %v7483, %v7664
  %v7694 = vadd.f32 %v7484, %v7667
  %v7695 = vadd.f32 %v7485, %v7672
  %v7696 = vadd.f32 %v7486, %v7675
  %v7697 = vadd.f32 %v7487, %v7680
  %v7698 = vld [vmem:[#allocation3 + $0x8] sm:$0xf0]
  %v7699 = vld [vmem:[%s2744] sm:$0xf]
  %v7700 = vld [vmem:[%s2744 + $0x4] sm:$0xf]
  %v7701 = vld [vmem:[%s2744 + $0x8] sm:$0xf]
  %v7702 = vld [vmem:[%s2744 + $0xc] sm:$0xf]
  %v7703 = vld [vmem:[%s2744 + $0x10] sm:$0xf]
  %v7704 = vld [vmem:[%s2744 + $0x14] sm:$0xf]
  %v7705 = vld [vmem:[%s2744 + $0x18] sm:$0xf]
  %v7706 = vld [vmem:[%s2744 + $0x1c] sm:$0xf]
  %v7707 = vld [vmem:[%s2744 + $0x20] sm:$0xf]
  %v7708 = vld [vmem:[%s2744 + $0x24] sm:$0xf]
  %v7709 = vld [vmem:[%s2744 + $0x28] sm:$0xf]
  %v7710 = vld [vmem:[%s2744 + $0x2c] sm:$0xf]
  %v7711 = vld [vmem:[%s2744 + $0x30] sm:$0xf]
  %v7712 = vld [vmem:[%s2744 + $0x34] sm:$0xf]
  %v7713 = vld [vmem:[%s2744 + $0x38] sm:$0xf]
  %v7714 = vld [vmem:[%s2744 + $0x3c] sm:$0xf]
  %v7717 = vrot.slane %v7698, 4
  %v7718 = vrot.slane %v6640, 4
  %v7719 = vsel %vm2763, %v7717, %v7718
  %v7720 = vrot.slane %v6641, 4
  %v7721 = vsel %vm2763, %v7718, %v7720
  %v7722 = vrot.slane %v6642, 4
  %v7723 = vsel %vm2763, %v7720, %v7722
  %v7724 = vrot.slane %v6643, 4
  %v7725 = vsel %vm2763, %v7722, %v7724
  %v7726 = vrot.slane %v6644, 4
  %v7727 = vsel %vm2763, %v7724, %v7726
  %v7728 = vrot.slane %v7488, 4
  %v7729 = vsel %vm2763, %v7726, %v7728
  %v7753 = vunpack.c.l.b16 %v7699
  %v7754 = vunpack.c.l.b16 %v7700
  %v7755 = vunpack.c.l.b16 %v7701
  %v7756 = vunpack.c.l.b16 %v7702
  %v7757 = vunpack.c.l.b16 %v7703
  %v7758 = vunpack.c.l.b16 %v7704
  %v7759 = vunpack.c.l.b16 %v7705
  %v7760 = vunpack.c.l.b16 %v7706
  %v7761 = vunpack.c.l.b16 %v7707
  %v7762 = vunpack.c.l.b16 %v7708
  %v7763 = vunpack.c.l.b16 %v7709
  %v7764 = vunpack.c.l.b16 %v7710
  %v7765 = vunpack.c.l.b16 %v7711
  %v7766 = vunpack.c.l.b16 %v7712
  %v7767 = vunpack.c.l.b16 %v7713
  %v7768 = vunpack.c.l.b16 %v7714
  %v7769 = vpack.c.b16 %v7754, %v7753
  %v7770 = vpack.c.b16 %v7756, %v7755
  %v7771 = vpack.c.b16 %v7758, %v7757
  %v7772 = vpack.c.b16 %v7760, %v7759
  %v7773 = vpack.c.b16 %v7762, %v7761
  %v7774 = vpack.c.b16 %v7764, %v7763
  %v7775 = vpack.c.b16 %v7766, %v7765
  %v7776 = vpack.c.b16 %v7768, %v7767
  %7785 = vmatprep.subr.bf16.mxu0 0
  %7786 = vmatpush1.bf16.msra.mxu0 %v7769
  %7787 = vmatprep.subr.bf16.mxu0 0
  %7788 = vmatpush1.bf16.msra.mxu0 %v7770
  %7789 = vmatprep.subr.bf16.mxu0 0
  %7790 = vmatpush1.bf16.msra.mxu0 %v7771
  %7791 = vmatprep.subr.bf16.mxu0 0
  %7792 = vmatpush1.bf16.msra.mxu0 %v7772
  %7793 = vmatprep.subr.bf16.mxu0 0
  %7794 = vmatpush1.bf16.msra.mxu0 %v7773
  %7795 = vmatprep.subr.bf16.mxu0 0
  %7796 = vmatpush1.bf16.msra.mxu0 %v7774
  %7797 = vmatprep.subr.bf16.mxu0 0
  %7798 = vmatpush1.bf16.msra.mxu0 %v7775
  %7799 = vmatprep.subr.bf16.mxu0 0
  %7800 = vmatpush1.bf16.msra.mxu0 %v7776
  %7801 = vmatprep.subr.bf16.mxu0 0
  %7802 = vmatpush1.bf16.msra.mxu0 0
  %7803 = vmatprep.subr.bf16.mxu0 0
  %7804 = vmatpush1.bf16.msra.mxu0 0
  %7805 = vmatprep.subr.bf16.mxu0 0
  %7806 = vmatpush1.bf16.msra.mxu0 0
  %7807 = vmatprep.subr.bf16.mxu0 0
  %7808 = vmatpush1.bf16.msra.mxu0 0
  %7809 = vmatprep.subr.bf16.mxu0 0
  %7810 = vmatpush1.bf16.msra.mxu0 0
  %7811 = vmatprep.subr.bf16.mxu0 0
  %7812 = vmatpush1.bf16.msra.mxu0 0
  %7813 = vmatprep.subr.bf16.mxu0 0
  %7814 = vmatpush1.bf16.msra.mxu0 0
  %7815 = vmatprep.subr.bf16.mxu0 0
  %7816 = vmatpush1.bf16.msra.mxu0 0
  %7817 = vmatprep.mubr.bf16.mxu0 0
  %7818 = vmatmul.mubr.bf16.gmra.mrb[0].mxu0 %v7719
  %v7819 = vpop.f32.mrb[0].mxu0
  %v7820 = vadd.f32 0.0, %v7819
  %v7821 = vpop.f32.mrb[0].mxu0
  %v7822 = vpop.f32.mrb[0].mxu0
  %v7823 = vadd.f32 0.0, %v7822
  %v7824 = vpop.f32.mrb[0].mxu0
  %7825 = vmatprep.mubr.bf16.mxu0 0
  %7826 = vmatmul.mubr.bf16.gmra.mrb[0].mxu0 %v7721
  %v7827 = vpop.f32.mrb[0].mxu0
  %v7828 = vadd.f32 0.0, %v7827
  %v7829 = vpop.f32.mrb[0].mxu0
  %v7830 = vpop.f32.mrb[0].mxu0
  %v7831 = vadd.f32 0.0, %v7830
  %v7832 = vpop.f32.mrb[0].mxu0
  %7833 = vmatprep.mubr.bf16.mxu0 0
  %7834 = vmatmul.mubr.bf16.gmra.mrb[0].mxu0 %v7723
  %v7835 = vpop.f32.mrb[0].mxu0
  %v7836 = vadd.f32 0.0, %v7835
  %v7837 = vpop.f32.mrb[0].mxu0
  %v7838 = vpop.f32.mrb[0].mxu0
  %v7839 = vadd.f32 0.0, %v7838
  %v7840 = vpop.f32.mrb[0].mxu0
  %7841 = vmatprep.mubr.bf16.mxu0 0
  %7842 = vmatmul.mubr.bf16.gmra.mrb[0].mxu0 %v7725
  %v7843 = vpop.f32.mrb[0].mxu0
  %v7844 = vadd.f32 0.0, %v7843
  %v7845 = vpop.f32.mrb[0].mxu0
  %v7846 = vpop.f32.mrb[0].mxu0
  %v7847 = vadd.f32 0.0, %v7846
  %v7848 = vpop.f32.mrb[0].mxu0
  %7849 = vmatprep.mubr.bf16.mxu0 0
  %7850 = vmatmul.mubr.bf16.gmra.mrb[0].mxu0 %v7727
  %v7851 = vpop.f32.mrb[0].mxu0
  %v7852 = vadd.f32 0.0, %v7851
  %v7853 = vpop.f32.mrb[0].mxu0
  %v7854 = vpop.f32.mrb[0].mxu0
  %v7855 = vadd.f32 0.0, %v7854
  %v7856 = vpop.f32.mrb[0].mxu0
  %7857 = vmatprep.mubr.bf16.mxu0 0
  %7858 = vmatmul.mubr.bf16.gmra.mrb[0].mxu0 %v7729
  %v7859 = vpop.f32.mrb[0].mxu0
  %v7860 = vadd.f32 0.0, %v7859
  %v7861 = vpop.f32.mrb[0].mxu0
  %v7862 = vpop.f32.mrb[0].mxu0
  %v7863 = vadd.f32 0.0, %v7862
  %v7864 = vpop.f32.mrb[0].mxu0
  %7865 = vmatprep.mubr.bf16.mxu0 0
  %7866 = vmatmul.mubr.bf16.gmra.mrb[0].mxu0 %v7728
  %v7867 = vpop.f32.mrb[0].mxu0
  %v7868 = vadd.f32 0.0, %v7867
  %v7869 = vpop.f32.mrb[0].mxu0
  %v7870 = vpop.f32.mrb[0].mxu0
  %v7871 = vpop.f32.mrb[0].mxu0
  %7872 = vdwg.mxu0
  %v7873 = vadd.f32 %v7685, %v7820
  %v7874 = vadd.f32 %v7686, %v7823
  %v7875 = vadd.f32 %v7687, %v7828
  %v7876 = vadd.f32 %v7688, %v7831
  %v7877 = vadd.f32 %v7689, %v7836
  %v7878 = vadd.f32 %v7690, %v7839
  %v7879 = vadd.f32 %v7691, %v7844
  %v7880 = vadd.f32 %v7692, %v7847
  %v7881 = vadd.f32 %v7693, %v7852
  %v7882 = vadd.f32 %v7694, %v7855
  %v7883 = vadd.f32 %v7695, %v7860
  %v7884 = vadd.f32 %v7696, %v7863
  %v7885 = vadd.f32 %v7697, %v7868
  %v7886 = vld [vmem:[%s5] sm:$0xff]
  %v7887 = vld [vmem:[%s5 + $0x8] sm:$0xff]
  %v7888 = vld [vmem:[%s5 + $0x10] sm:$0xff]
  %v7889 = vld [vmem:[%s5 + $0x18] sm:$0xff]
  %v7890 = vld [vmem:[%s5 + $0x20] sm:$0xff]
  %v7891 = vld [vmem:[%s5 + $0x28] sm:$0xff]
  %v7892 = vld [vmem:[%s5 + $0x30] sm:$0xff]
  %v7893 = vld [vmem:[%s5 + $0x38] sm:$0xff]
  %v7894 = vld [vmem:[%s5 + $0x40] sm:$0xff]
  %v7895 = vld [vmem:[%s5 + $0x48] sm:$0xff]
  %v7896 = vld [vmem:[%s5 + $0x50] sm:$0xff]
  %v7897 = vld [vmem:[%s5 + $0x58] sm:$0xff]
  %v7898 = vld [vmem:[%s5 + $0x60] sm:$0xff]
  %v7899 = vadd.f32 %v7873, %v2949
  %v7900 = vadd.f32 %v7874, %v2949
  %v7901 = vadd.f32 %v7875, %v2949
  %v7902 = vadd.f32 %v7876, %v2949
  %v7903 = vadd.f32 %v7877, %v2949
  %v7904 = vadd.f32 %v7878, %v2949
  %v7905 = vadd.f32 %v7879, %v2949
  %v7906 = vadd.f32 %v7880, %v2949
  %v7907 = vadd.f32 %v7881, %v2949
  %v7908 = vadd.f32 %v7882, %v2949
  %v7909 = vadd.f32 %v7883, %v2949
  %v7910 = vadd.f32 %v7884, %v2949
  %v7911 = vadd.f32 %v7885, %v2949
  %v7912 = vmax.f32 %v7899, 0.0
  %v7913 = vmax.f32 %v7900, 0.0
  %v7914 = vmax.f32 %v7901, 0.0
  %v7915 = vmax.f32 %v7902, 0.0
  %v7916 = vmax.f32 %v7903, 0.0
  %v7917 = vmax.f32 %v7904, 0.0
  %v7918 = vmax.f32 %v7905, 0.0
  %v7919 = vmax.f32 %v7906, 0.0
  %v7920 = vmax.f32 %v7907, 0.0
  %v7921 = vmax.f32 %v7908, 0.0
  %v7922 = vmax.f32 %v7909, 0.0
  %v7923 = vmax.f32 %v7910, 0.0
  %v7924 = vmax.f32 %v7911, 0.0
  %v7925 = vmul.f32 %v7912, %v2979
  %v7926 = vmul.f32 %v7913, %v2979
  %v7927 = vmul.f32 %v7914, %v2979
  %v7928 = vmul.f32 %v7915, %v2979
  %v7929 = vmul.f32 %v7916, %v2979
  %v7930 = vmul.f32 %v7917, %v2979
  %v7931 = vmul.f32 %v7918, %v2979
  %v7932 = vmul.f32 %v7919, %v2979
  %v7933 = vmul.f32 %v7920, %v2979
  %v7934 = vmul.f32 %v7921, %v2979
  %v7935 = vmul.f32 %v7922, %v2979
  %v7936 = vmul.f32 %v7923, %v2979
  %v7937 = vmul.f32 %v7924, %v2979
  %v7938 = vadd.f32 %v7925, %v2996
  %v7939 = vadd.f32 %v7926, %v2996
  %v7940 = vadd.f32 %v7927, %v2996
  %v7941 = vadd.f32 %v7928, %v2996
  %v7942 = vadd.f32 %v7929, %v2996
  %v7943 = vadd.f32 %v7930, %v2996
  %v7944 = vadd.f32 %v7931, %v2996
  %v7945 = vadd.f32 %v7932, %v2996
  %v7946 = vadd.f32 %v7933, %v2996
  %v7947 = vadd.f32 %v7934, %v2996
  %v7948 = vadd.f32 %v7935, %v2996
  %v7949 = vadd.f32 %v7936, %v2996
  %v7950 = vadd.f32 %v7937, %v2996
  %7952 = vset.pattern.permute.xlu0 0
  %7953 = vperm.xlu0 %7952, %v7886
  %v7954 = vpop.permute.xlu0 %7953
  %7957 = vset.pattern.permute.xlu0 0
  %7958 = vperm.xlu0 %7957, %v7887
  %v7959 = vpop.permute.xlu0 %7958
  %7962 = vset.pattern.permute.xlu0 0
  %7963 = vperm.xlu0 %7962, %v7888
  %v7964 = vpop.permute.xlu0 %7963
  %7967 = vset.pattern.permute.xlu0 0
  %7968 = vperm.xlu0 %7967, %v7889
  %v7969 = vpop.permute.xlu0 %7968
  %7972 = vset.pattern.permute.xlu0 0
  %7973 = vperm.xlu0 %7972, %v7890
  %v7974 = vpop.permute.xlu0 %7973
  %7977 = vset.pattern.permute.xlu0 0
  %7978 = vperm.xlu0 %7977, %v7891
  %v7979 = vpop.permute.xlu0 %7978
  %7982 = vset.pattern.permute.xlu0 0
  %7983 = vperm.xlu0 %7982, %v7892
  %v7984 = vpop.permute.xlu0 %7983
  %7987 = vset.pattern.permute.xlu0 0
  %7988 = vperm.xlu0 %7987, %v7893
  %v7989 = vpop.permute.xlu0 %7988
  %7992 = vset.pattern.permute.xlu0 0
  %7993 = vperm.xlu0 %7992, %v7894
  %v7994 = vpop.permute.xlu0 %7993
  %7997 = vset.pattern.permute.xlu0 0
  %7998 = vperm.xlu0 %7997, %v7895
  %v7999 = vpop.permute.xlu0 %7998
  %8002 = vset.pattern.permute.xlu0 0
  %8003 = vperm.xlu0 %8002, %v7896
  %v8004 = vpop.permute.xlu0 %8003
  %8007 = vset.pattern.permute.xlu0 0
  %8008 = vperm.xlu0 %8007, %v7897
  %v8009 = vpop.permute.xlu0 %8008
  %8012 = vset.pattern.permute.xlu0 0
  %8013 = vperm.xlu0 %8012, %v7898
  %v8014 = vpop.permute.xlu0 %8013
  %v8016 = vmul.f32 %v7938, %v7954
  %v8017 = vmul.f32 %v7939, %v7959
  %v8018 = vmul.f32 %v7940, %v7964
  %v8019 = vmul.f32 %v7941, %v7969
  %v8020 = vmul.f32 %v7942, %v7974
  %v8021 = vmul.f32 %v7943, %v7979
  %v8022 = vmul.f32 %v7944, %v7984
  %v8023 = vmul.f32 %v7945, %v7989
  %v8024 = vmul.f32 %v7946, %v7994
  %v8025 = vmul.f32 %v7947, %v7999
  %v8026 = vmul.f32 %v7948, %v8004
  %v8027 = vmul.f32 %v7949, %v8009
  %v8028 = vmul.f32 %v7950, %v8014
  %v8029 = vpack.c.bf16 %v8017, %v8016
  %v8030 = vpack.c.bf16 %v8019, %v8018
  %v8031 = vpack.c.bf16 %v8021, %v8020
  %v8032 = vpack.c.bf16 %v8023, %v8022
  %v8033 = vpack.c.bf16 %v8025, %v8024
  %v8034 = vpack.c.bf16 %v8027, %v8026
  %v8035 = vpack.c.bf16 %v8028, %v8028
  %v8043 = vrot.slane %v8029, 2
  %v8044 = vrot.slane %v8030, 2
  %v8045 = vsel %vm802, %v8043, %v8044
  %v8046 = vrot.slane %v8031, 2
  %v8047 = vsel %vm802, %v8044, %v8046
  %v8048 = vrot.slane %v8032, 2
  %v8049 = vsel %vm802, %v8046, %v8048
  %v8050 = vrot.slane %v8033, 2
  %v8051 = vsel %vm802, %v8048, %v8050
  %v8052 = vrot.slane %v8034, 2
  %v8053 = vsel %vm802, %v8050, %v8052
  %v8054 = vrot.slane %v8035, 2
  %v8055 = vsel %vm802, %v8052, %v8054
  %8064 = vst [vmem:[#allocation4] sm:$0xc0] %v8043
  %8065 = vst [vmem:[#allocation4 + $0x8] sm:$0xff] %v8045
  %8066 = vst [vmem:[#allocation4 + $0x10] sm:$0xff] %v8047
  %8067 = vst [vmem:[#allocation4 + $0x18] sm:$0xff] %v8049
  %8068 = vst [vmem:[#allocation4 + $0x20] sm:$0xff] %v8051
  %8069 = vst [vmem:[#allocation4 + $0x28] sm:$0xff] %v8053
  %8070 = vst [vmem:[#allocation4 + $0x30] sm:$0xff] %v8055
  %8071 = vst [vmem:[#allocation4 + $0x38] sm:$0x3] %v8054
  %v8072 = vld [vmem:[#allocation4] sm:$0xff]
  %v8073 = vld [vmem:[#allocation4 + $0x8] sm:$0xff]
  %v8074 = vld [vmem:[#allocation4 + $0x10] sm:$0xff]
  %v8075 = vld [vmem:[#allocation4 + $0x18] sm:$0xff]
  %v8076 = vld [vmem:[#allocation4 + $0x20] sm:$0xff]
  %v8077 = vld [vmem:[#allocation4 + $0x28] sm:$0xff]
  %v8078 = vld [vmem:[#allocation4 + $0x30] sm:$0xf]
  %v8079 = vld [vmem:[%s3] sm:$0xf]
  %v8080 = vld [vmem:[%s3 + $0x4] sm:$0xf]
  %v8081 = vld [vmem:[%s3 + $0x8] sm:$0xf]
  %v8082 = vld [vmem:[%s3 + $0xc] sm:$0xf]
  %v8083 = vld [vmem:[%s3 + $0x10] sm:$0xf]
  %v8084 = vld [vmem:[%s3 + $0x14] sm:$0xf]
  %v8085 = vld [vmem:[%s3 + $0x18] sm:$0xf]
  %v8086 = vld [vmem:[%s3 + $0x1c] sm:$0xf]
  %v8087 = vld [vmem:[%s3 + $0x20] sm:$0xf]
  %v8088 = vld [vmem:[%s3 + $0x24] sm:$0xf]
  %v8089 = vld [vmem:[%s3 + $0x28] sm:$0xf]
  %v8090 = vld [vmem:[%s3 + $0x2c] sm:$0xf]
  %v8091 = vld [vmem:[%s3 + $0x30] sm:$0xf]
  %v8092 = vld [vmem:[%s3 + $0x34] sm:$0xf]
  %v8093 = vld [vmem:[%s3 + $0x38] sm:$0xf]
  %v8094 = vld [vmem:[%s3 + $0x3c] sm:$0xf]
  %v8095 = vld [vmem:[#allocation4 + $0x30] sm:$0x1f]
  %v8096 = vld [vmem:[%s3155] sm:$0xf]
  %v8097 = vld [vmem:[%s3155 + $0x4] sm:$0xf]
  %v8098 = vld [vmem:[%s3155 + $0x8] sm:$0xf]
  %v8099 = vld [vmem:[%s3155 + $0xc] sm:$0xf]
  %v8100 = vld [vmem:[%s3155 + $0x10] sm:$0xf]
  %v8101 = vld [vmem:[%s3155 + $0x14] sm:$0xf]
  %v8102 = vld [vmem:[%s3155 + $0x18] sm:$0xf]
  %v8103 = vld [vmem:[%s3155 + $0x1c] sm:$0xf]
  %v8104 = vld [vmem:[%s3155 + $0x20] sm:$0xf]
  %v8105 = vld [vmem:[%s3155 + $0x24] sm:$0xf]
  %v8106 = vld [vmem:[%s3155 + $0x28] sm:$0xf]
  %v8107 = vld [vmem:[%s3155 + $0x2c] sm:$0xf]
  %v8108 = vld [vmem:[%s3155 + $0x30] sm:$0xf]
  %v8109 = vld [vmem:[%s3155 + $0x34] sm:$0xf]
  %v8110 = vld [vmem:[%s3155 + $0x38] sm:$0xf]
  %v8111 = vld [vmem:[%s3155 + $0x3c] sm:$0xf]
  %v8113 = vshrl.u32 %v8072, 16
  %v8115 = vshll.u32 %v8072, 16
  %v8117 = vrot.slane %v8115, 1
  %v8118 = vor.u32 %v8113, %v8117
  %v8120 = vshll.u32 %v8073, 16
  %v8122 = vrot.slane %v8120, 1
  %v8123 = vsel %vm280, %v8118, %v8122
  %v8124 = vshrl.u32 %v8073, 16
  %v8126 = vor.u32 %v8124, %v8122
  %v8128 = vshll.u32 %v8074, 16
  %v8130 = vrot.slane %v8128, 1
  %v8131 = vsel %vm280, %v8126, %v8130
  %v8132 = vshrl.u32 %v8074, 16
  %v8134 = vor.u32 %v8132, %v8130
  %v8136 = vshll.u32 %v8075, 16
  %v8138 = vrot.slane %v8136, 1
  %v8139 = vsel %vm280, %v8134, %v8138
  %v8140 = vshrl.u32 %v8075, 16
  %v8142 = vor.u32 %v8140, %v8138
  %v8144 = vshll.u32 %v8076, 16
  %v8146 = vrot.slane %v8144, 1
  %v8147 = vsel %vm280, %v8142, %v8146
  %v8148 = vshrl.u32 %v8076, 16
  %v8150 = vor.u32 %v8148, %v8146
  %v8152 = vshll.u32 %v8077, 16
  %v8154 = vrot.slane %v8152, 1
  %v8155 = vsel %vm280, %v8150, %v8154
  %v8156 = vshrl.u32 %v8077, 16
  %v8158 = vor.u32 %v8156, %v8154
  %v8160 = vshll.u32 %v8095, 16
  %v8162 = vrot.slane %v8160, 1
  %v8163 = vsel %vm280, %v8158, %v8162
  %v8164 = vshrl.u32 %v8095, 16
  %v8166 = vor.u32 %v8164, %v8162
  %v8190 = vunpack.c.l.b16 %v8096
  %v8191 = vunpack.c.l.b16 %v8097
  %v8192 = vunpack.c.l.b16 %v8098
  %v8193 = vunpack.c.l.b16 %v8099
  %v8194 = vunpack.c.l.b16 %v8100
  %v8195 = vunpack.c.l.b16 %v8101
  %v8196 = vunpack.c.l.b16 %v8102
  %v8197 = vunpack.c.l.b16 %v8103
  %v8198 = vunpack.c.l.b16 %v8104
  %v8199 = vunpack.c.l.b16 %v8105
  %v8200 = vunpack.c.l.b16 %v8106
  %v8201 = vunpack.c.l.b16 %v8107
  %v8202 = vunpack.c.l.b16 %v8108
  %v8203 = vunpack.c.l.b16 %v8109
  %v8204 = vunpack.c.l.b16 %v8110
  %v8205 = vunpack.c.l.b16 %v8111
  %v8206 = vpack.c.b16 %v8191, %v8190
  %v8207 = vpack.c.b16 %v8193, %v8192
  %v8208 = vpack.c.b16 %v8195, %v8194
  %v8209 = vpack.c.b16 %v8197, %v8196
  %v8210 = vpack.c.b16 %v8199, %v8198
  %v8211 = vpack.c.b16 %v8201, %v8200
  %v8212 = vpack.c.b16 %v8203, %v8202
  %v8213 = vpack.c.b16 %v8205, %v8204
  %8222 = vmatprep.subr.bf16.mxu0 0
  %8223 = vmatpush1.bf16.msra.mxu0 %v8206
  %8224 = vmatprep.subr.bf16.mxu0 0
  %8225 = vmatpush1.bf16.msra.mxu0 %v8207
  %8226 = vmatprep.subr.bf16.mxu0 0
  %8227 = vmatpush1.bf16.msra.mxu0 %v8208
  %8228 = vmatprep.subr.bf16.mxu0 0
  %8229 = vmatpush1.bf16.msra.mxu0 %v8209
  %8230 = vmatprep.subr.bf16.mxu0 0
  %8231 = vmatpush1.bf16.msra.mxu0 %v8210
  %8232 = vmatprep.subr.bf16.mxu0 0
  %8233 = vmatpush1.bf16.msra.mxu0 %v8211
  %8234 = vmatprep.subr.bf16.mxu0 0
  %8235 = vmatpush1.bf16.msra.mxu0 %v8212
  %8236 = vmatprep.subr.bf16.mxu0 0
  %8237 = vmatpush1.bf16.msra.mxu0 %v8213
  %8238 = vmatprep.subr.bf16.mxu0 0
  %8239 = vmatpush1.bf16.msra.mxu0 0
  %8240 = vmatprep.subr.bf16.mxu0 0
  %8241 = vmatpush1.bf16.msra.mxu0 0
  %8242 = vmatprep.subr.bf16.mxu0 0
  %8243 = vmatpush1.bf16.msra.mxu0 0
  %8244 = vmatprep.subr.bf16.mxu0 0
  %8245 = vmatpush1.bf16.msra.mxu0 0
  %8246 = vmatprep.subr.bf16.mxu0 0
  %8247 = vmatpush1.bf16.msra.mxu0 0
  %8248 = vmatprep.subr.bf16.mxu0 0
  %8249 = vmatpush1.bf16.msra.mxu0 0
  %8250 = vmatprep.subr.bf16.mxu0 0
  %8251 = vmatpush1.bf16.msra.mxu0 0
  %8252 = vmatprep.subr.bf16.mxu0 0
  %8253 = vmatpush1.bf16.msra.mxu0 0
  %8254 = vmatprep.mubr.bf16.mxu0 0
  %8255 = vmatmul.mubr.bf16.gmra.mrb[0].mxu0 %v8123
  %v8256 = vpop.f32.mrb[0].mxu0
  %v8257 = vadd.f32 0.0, %v8256
  %v8258 = vpop.f32.mrb[0].mxu0
  %v8259 = vpop.f32.mrb[0].mxu0
  %v8260 = vadd.f32 0.0, %v8259
  %v8261 = vpop.f32.mrb[0].mxu0
  %8262 = vmatprep.mubr.bf16.mxu0 0
  %8263 = vmatmul.mubr.bf16.gmra.mrb[0].mxu0 %v8131
  %v8264 = vpop.f32.mrb[0].mxu0
  %v8265 = vadd.f32 0.0, %v8264
  %v8266 = vpop.f32.mrb[0].mxu0
  %v8267 = vpop.f32.mrb[0].mxu0
  %v8268 = vadd.f32 0.0, %v8267
  %v8269 = vpop.f32.mrb[0].mxu0
  %8270 = vmatprep.mubr.bf16.mxu0 0
  %8271 = vmatmul.mubr.bf16.gmra.mrb[0].mxu0 %v8139
  %v8272 = vpop.f32.mrb[0].mxu0
  %v8273 = vadd.f32 0.0, %v8272
  %v8274 = vpop.f32.mrb[0].mxu0
  %v8275 = vpop.f32.mrb[0].mxu0
  %v8276 = vadd.f32 0.0, %v8275
  %v8277 = vpop.f32.mrb[0].mxu0
  %8278 = vmatprep.mubr.bf16.mxu0 0
  %8279 = vmatmul.mubr.bf16.gmra.mrb[0].mxu0 %v8147
  %v8280 = vpop.f32.mrb[0].mxu0
  %v8281 = vadd.f32 0.0, %v8280
  %v8282 = vpop.f32.mrb[0].mxu0
  %v8283 = vpop.f32.mrb[0].mxu0
  %v8284 = vadd.f32 0.0, %v8283
  %v8285 = vpop.f32.mrb[0].mxu0
  %8286 = vmatprep.mubr.bf16.mxu0 0
  %8287 = vmatmul.mubr.bf16.gmra.mrb[0].mxu0 %v8155
  %v8288 = vpop.f32.mrb[0].mxu0
  %v8289 = vadd.f32 0.0, %v8288
  %v8290 = vpop.f32.mrb[0].mxu0
  %v8291 = vpop.f32.mrb[0].mxu0
  %v8292 = vadd.f32 0.0, %v8291
  %v8293 = vpop.f32.mrb[0].mxu0
  %8294 = vmatprep.mubr.bf16.mxu0 0
  %8295 = vmatmul.mubr.bf16.gmra.mrb[0].mxu0 %v8163
  %v8296 = vpop.f32.mrb[0].mxu0
  %v8297 = vadd.f32 0.0, %v8296
  %v8298 = vpop.f32.mrb[0].mxu0
  %v8299 = vpop.f32.mrb[0].mxu0
  %v8300 = vadd.f32 0.0, %v8299
  %v8301 = vpop.f32.mrb[0].mxu0
  %8302 = vmatprep.mubr.bf16.mxu0 0
  %8303 = vmatmul.mubr.bf16.gmra.mrb[0].mxu0 %v8166
  %v8304 = vpop.f32.mrb[0].mxu0
  %v8305 = vadd.f32 0.0, %v8304
  %v8306 = vpop.f32.mrb[0].mxu0
  %v8307 = vpop.f32.mrb[0].mxu0
  %v8308 = vpop.f32.mrb[0].mxu0
  %8309 = vdwg.mxu0
  %v8326 = vunpack.c.l.b16 %v8079
  %v8327 = vunpack.c.l.b16 %v8080
  %v8328 = vunpack.c.l.b16 %v8081
  %v8329 = vunpack.c.l.b16 %v8082
  %v8330 = vunpack.c.l.b16 %v8083
  %v8331 = vunpack.c.l.b16 %v8084
  %v8332 = vunpack.c.l.b16 %v8085
  %v8333 = vunpack.c.l.b16 %v8086
  %v8334 = vunpack.c.l.b16 %v8087
  %v8335 = vunpack.c.l.b16 %v8088
  %v8336 = vunpack.c.l.b16 %v8089
  %v8337 = vunpack.c.l.b16 %v8090
  %v8338 = vunpack.c.l.b16 %v8091
  %v8339 = vunpack.c.l.b16 %v8092
  %v8340 = vunpack.c.l.b16 %v8093
  %v8341 = vunpack.c.l.b16 %v8094
  %v8342 = vpack.c.b16 %v8327, %v8326
  %v8343 = vpack.c.b16 %v8329, %v8328
  %v8344 = vpack.c.b16 %v8331, %v8330
  %v8345 = vpack.c.b16 %v8333, %v8332
  %v8346 = vpack.c.b16 %v8335, %v8334
  %v8347 = vpack.c.b16 %v8337, %v8336
  %v8348 = vpack.c.b16 %v8339, %v8338
  %v8349 = vpack.c.b16 %v8341, %v8340
  %8358 = vmatprep.subr.bf16.mxu0 0
  %8359 = vmatpush1.bf16.msra.mxu0 %v8342
  %8360 = vmatprep.subr.bf16.mxu0 0
  %8361 = vmatpush1.bf16.msra.mxu0 %v8343
  %8362 = vmatprep.subr.bf16.mxu0 0
  %8363 = vmatpush1.bf16.msra.mxu0 %v8344
  %8364 = vmatprep.subr.bf16.mxu0 0
  %8365 = vmatpush1.bf16.msra.mxu0 %v8345
  %8366 = vmatprep.subr.bf16.mxu0 0
  %8367 = vmatpush1.bf16.msra.mxu0 %v8346
  %8368 = vmatprep.subr.bf16.mxu0 0
  %8369 = vmatpush1.bf16.msra.mxu0 %v8347
  %8370 = vmatprep.subr.bf16.mxu0 0
  %8371 = vmatpush1.bf16.msra.mxu0 %v8348
  %8372 = vmatprep.subr.bf16.mxu0 0
  %8373 = vmatpush1.bf16.msra.mxu0 %v8349
  %8374 = vmatprep.subr.bf16.mxu0 0
  %8375 = vmatpush1.bf16.msra.mxu0 0
  %8376 = vmatprep.subr.bf16.mxu0 0
  %8377 = vmatpush1.bf16.msra.mxu0 0
  %8378 = vmatprep.subr.bf16.mxu0 0
  %8379 = vmatpush1.bf16.msra.mxu0 0
  %8380 = vmatprep.subr.bf16.mxu0 0
  %8381 = vmatpush1.bf16.msra.mxu0 0
  %8382 = vmatprep.subr.bf16.mxu0 0
  %8383 = vmatpush1.bf16.msra.mxu0 0
  %8384 = vmatprep.subr.bf16.mxu0 0
  %8385 = vmatpush1.bf16.msra.mxu0 0
  %8386 = vmatprep.subr.bf16.mxu0 0
  %8387 = vmatpush1.bf16.msra.mxu0 0
  %8388 = vmatprep.subr.bf16.mxu0 0
  %8389 = vmatpush1.bf16.msra.mxu0 0
  %8390 = vmatprep.mubr.bf16.mxu0 0
  %8391 = vmatmul.mubr.bf16.gmra.mrb[0].mxu0 %v8072
  %v8392 = vpop.f32.mrb[0].mxu0
  %v8393 = vadd.f32 %v8257, %v8392
  %v8394 = vpop.f32.mrb[0].mxu0
  %v8395 = vpop.f32.mrb[0].mxu0
  %v8396 = vadd.f32 %v8260, %v8395
  %v8397 = vpop.f32.mrb[0].mxu0
  %8398 = vmatprep.mubr.bf16.mxu0 0
  %8399 = vmatmul.mubr.bf16.gmra.mrb[0].mxu0 %v8073
  %v8400 = vpop.f32.mrb[0].mxu0
  %v8401 = vadd.f32 %v8265, %v8400
  %v8402 = vpop.f32.mrb[0].mxu0
  %v8403 = vpop.f32.mrb[0].mxu0
  %v8404 = vadd.f32 %v8268, %v8403
  %v8405 = vpop.f32.mrb[0].mxu0
  %8406 = vmatprep.mubr.bf16.mxu0 0
  %8407 = vmatmul.mubr.bf16.gmra.mrb[0].mxu0 %v8074
  %v8408 = vpop.f32.mrb[0].mxu0
  %v8409 = vadd.f32 %v8273, %v8408
  %v8410 = vpop.f32.mrb[0].mxu0
  %v8411 = vpop.f32.mrb[0].mxu0
  %v8412 = vadd.f32 %v8276, %v8411
  %v8413 = vpop.f32.mrb[0].mxu0
  %8414 = vmatprep.mubr.bf16.mxu0 0
  %8415 = vmatmul.mubr.bf16.gmra.mrb[0].mxu0 %v8075
  %v8416 = vpop.f32.mrb[0].mxu0
  %v8417 = vadd.f32 %v8281, %v8416
  %v8418 = vpop.f32.mrb[0].mxu0
  %v8419 = vpop.f32.mrb[0].mxu0
  %v8420 = vadd.f32 %v8284, %v8419
  %v8421 = vpop.f32.mrb[0].mxu0
  %8422 = vmatprep.mubr.bf16.mxu0 0
  %8423 = vmatmul.mubr.bf16.gmra.mrb[0].mxu0 %v8076
  %v8424 = vpop.f32.mrb[0].mxu0
  %v8425 = vadd.f32 %v8289, %v8424
  %v8426 = vpop.f32.mrb[0].mxu0
  %v8427 = vpop.f32.mrb[0].mxu0
  %v8428 = vadd.f32 %v8292, %v8427
  %v8429 = vpop.f32.mrb[0].mxu0
  %8430 = vmatprep.mubr.bf16.mxu0 0
  %8431 = vmatmul.mubr.bf16.gmra.mrb[0].mxu0 %v8077
  %v8432 = vpop.f32.mrb[0].mxu0
  %v8433 = vadd.f32 %v8297, %v8432
  %v8434 = vpop.f32.mrb[0].mxu0
  %v8435 = vpop.f32.mrb[0].mxu0
  %v8436 = vadd.f32 %v8300, %v8435
  %v8437 = vpop.f32.mrb[0].mxu0
  %8438 = vmatprep.mubr.bf16.mxu0 0
  %8439 = vmatmul.mubr.bf16.gmra.mrb[0].mxu0 %v8078
  %v8440 = vpop.f32.mrb[0].mxu0
  %v8441 = vadd.f32 %v8305, %v8440
  %v8442 = vpop.f32.mrb[0].mxu0
  %v8443 = vpop.f32.mrb[0].mxu0
  %v8444 = vpop.f32.mrb[0].mxu0
  %8445 = vdwg.mxu0
  %v8446 = vld [vmem:[#allocation4] sm:$0xfe]
  %v8447 = vld [vmem:[%s3507] sm:$0xf]
  %v8448 = vld [vmem:[%s3507 + $0x4] sm:$0xf]
  %v8449 = vld [vmem:[%s3507 + $0x8] sm:$0xf]
  %v8450 = vld [vmem:[%s3507 + $0xc] sm:$0xf]
  %v8451 = vld [vmem:[%s3507 + $0x10] sm:$0xf]
  %v8452 = vld [vmem:[%s3507 + $0x14] sm:$0xf]
  %v8453 = vld [vmem:[%s3507 + $0x18] sm:$0xf]
  %v8454 = vld [vmem:[%s3507 + $0x1c] sm:$0xf]
  %v8455 = vld [vmem:[%s3507 + $0x20] sm:$0xf]
  %v8456 = vld [vmem:[%s3507 + $0x24] sm:$0xf]
  %v8457 = vld [vmem:[%s3507 + $0x28] sm:$0xf]
  %v8458 = vld [vmem:[%s3507 + $0x2c] sm:$0xf]
  %v8459 = vld [vmem:[%s3507 + $0x30] sm:$0xf]
  %v8460 = vld [vmem:[%s3507 + $0x34] sm:$0xf]
  %v8461 = vld [vmem:[%s3507 + $0x38] sm:$0xf]
  %v8462 = vld [vmem:[%s3507 + $0x3c] sm:$0xf]
  %v8470 = vrot.slane %v8446, 1
  %v8471 = vrot.slane %v8073, 1
  %v8472 = vsel %vm1505, %v8470, %v8471
  %v8473 = vrot.slane %v8074, 1
  %v8474 = vsel %vm1505, %v8471, %v8473
  %v8475 = vrot.slane %v8075, 1
  %v8476 = vsel %vm1505, %v8473, %v8475
  %v8477 = vrot.slane %v8076, 1
  %v8478 = vsel %vm1505, %v8475, %v8477
  %v8479 = vrot.slane %v8077, 1
  %v8480 = vsel %vm1505, %v8477, %v8479
  %v8481 = vrot.slane %v8095, 1
  %v8482 = vsel %vm1505, %v8479, %v8481
  %v8506 = vunpack.c.l.b16 %v8447
  %v8507 = vunpack.c.l.b16 %v8448
  %v8508 = vunpack.c.l.b16 %v8449
  %v8509 = vunpack.c.l.b16 %v8450
  %v8510 = vunpack.c.l.b16 %v8451
  %v8511 = vunpack.c.l.b16 %v8452
  %v8512 = vunpack.c.l.b16 %v8453
  %v8513 = vunpack.c.l.b16 %v8454
  %v8514 = vunpack.c.l.b16 %v8455
  %v8515 = vunpack.c.l.b16 %v8456
  %v8516 = vunpack.c.l.b16 %v8457
  %v8517 = vunpack.c.l.b16 %v8458
  %v8518 = vunpack.c.l.b16 %v8459
  %v8519 = vunpack.c.l.b16 %v8460
  %v8520 = vunpack.c.l.b16 %v8461
  %v8521 = vunpack.c.l.b16 %v8462
  %v8522 = vpack.c.b16 %v8507, %v8506
  %v8523 = vpack.c.b16 %v8509, %v8508
  %v8524 = vpack.c.b16 %v8511, %v8510
  %v8525 = vpack.c.b16 %v8513, %v8512
  %v8526 = vpack.c.b16 %v8515, %v8514
  %v8527 = vpack.c.b16 %v8517, %v8516
  %v8528 = vpack.c.b16 %v8519, %v8518
  %v8529 = vpack.c.b16 %v8521, %v8520
  %8538 = vmatprep.subr.bf16.mxu0 0
  %8539 = vmatpush1.bf16.msra.mxu0 %v8522
  %8540 = vmatprep.subr.bf16.mxu0 0
  %8541 = vmatpush1.bf16.msra.mxu0 %v8523
  %8542 = vmatprep.subr.bf16.mxu0 0
  %8543 = vmatpush1.bf16.msra.mxu0 %v8524
  %8544 = vmatprep.subr.bf16.mxu0 0
  %8545 = vmatpush1.bf16.msra.mxu0 %v8525
  %8546 = vmatprep.subr.bf16.mxu0 0
  %8547 = vmatpush1.bf16.msra.mxu0 %v8526
  %8548 = vmatprep.subr.bf16.mxu0 0
  %8549 = vmatpush1.bf16.msra.mxu0 %v8527
  %8550 = vmatprep.subr.bf16.mxu0 0
  %8551 = vmatpush1.bf16.msra.mxu0 %v8528
  %8552 = vmatprep.subr.bf16.mxu0 0
  %8553 = vmatpush1.bf16.msra.mxu0 %v8529
  %8554 = vmatprep.subr.bf16.mxu0 0
  %8555 = vmatpush1.bf16.msra.mxu0 0
  %8556 = vmatprep.subr.bf16.mxu0 0
  %8557 = vmatpush1.bf16.msra.mxu0 0
  %8558 = vmatprep.subr.bf16.mxu0 0
  %8559 = vmatpush1.bf16.msra.mxu0 0
  %8560 = vmatprep.subr.bf16.mxu0 0
  %8561 = vmatpush1.bf16.msra.mxu0 0
  %8562 = vmatprep.subr.bf16.mxu0 0
  %8563 = vmatpush1.bf16.msra.mxu0 0
  %8564 = vmatprep.subr.bf16.mxu0 0
  %8565 = vmatpush1.bf16.msra.mxu0 0
  %8566 = vmatprep.subr.bf16.mxu0 0
  %8567 = vmatpush1.bf16.msra.mxu0 0
  %8568 = vmatprep.subr.bf16.mxu0 0
  %8569 = vmatpush1.bf16.msra.mxu0 0
  %8570 = vmatprep.mubr.bf16.mxu0 0
  %8571 = vmatmul.mubr.bf16.gmra.mrb[0].mxu0 %v8472
  %v8572 = vpop.f32.mrb[0].mxu0
  %v8573 = vadd.f32 0.0, %v8572
  %v8574 = vpop.f32.mrb[0].mxu0
  %v8575 = vpop.f32.mrb[0].mxu0
  %v8576 = vadd.f32 0.0, %v8575
  %v8577 = vpop.f32.mrb[0].mxu0
  %8578 = vmatprep.mubr.bf16.mxu0 0
  %8579 = vmatmul.mubr.bf16.gmra.mrb[0].mxu0 %v8474
  %v8580 = vpop.f32.mrb[0].mxu0
  %v8581 = vadd.f32 0.0, %v8580
  %v8582 = vpop.f32.mrb[0].mxu0
  %v8583 = vpop.f32.mrb[0].mxu0
  %v8584 = vadd.f32 0.0, %v8583
  %v8585 = vpop.f32.mrb[0].mxu0
  %8586 = vmatprep.mubr.bf16.mxu0 0
  %8587 = vmatmul.mubr.bf16.gmra.mrb[0].mxu0 %v8476
  %v8588 = vpop.f32.mrb[0].mxu0
  %v8589 = vadd.f32 0.0, %v8588
  %v8590 = vpop.f32.mrb[0].mxu0
  %v8591 = vpop.f32.mrb[0].mxu0
  %v8592 = vadd.f32 0.0, %v8591
  %v8593 = vpop.f32.mrb[0].mxu0
  %8594 = vmatprep.mubr.bf16.mxu0 0
  %8595 = vmatmul.mubr.bf16.gmra.mrb[0].mxu0 %v8478
  %v8596 = vpop.f32.mrb[0].mxu0
  %v8597 = vadd.f32 0.0, %v8596
  %v8598 = vpop.f32.mrb[0].mxu0
  %v8599 = vpop.f32.mrb[0].mxu0
  %v8600 = vadd.f32 0.0, %v8599
  %v8601 = vpop.f32.mrb[0].mxu0
  %8602 = vmatprep.mubr.bf16.mxu0 0
  %8603 = vmatmul.mubr.bf16.gmra.mrb[0].mxu0 %v8480
  %v8604 = vpop.f32.mrb[0].mxu0
  %v8605 = vadd.f32 0.0, %v8604
  %v8606 = vpop.f32.mrb[0].mxu0
  %v8607 = vpop.f32.mrb[0].mxu0
  %v8608 = vadd.f32 0.0, %v8607
  %v8609 = vpop.f32.mrb[0].mxu0
  %8610 = vmatprep.mubr.bf16.mxu0 0
  %8611 = vmatmul.mubr.bf16.gmra.mrb[0].mxu0 %v8482
  %v8612 = vpop.f32.mrb[0].mxu0
  %v8613 = vadd.f32 0.0, %v8612
  %v8614 = vpop.f32.mrb[0].mxu0
  %v8615 = vpop.f32.mrb[0].mxu0
  %v8616 = vadd.f32 0.0, %v8615
  %v8617 = vpop.f32.mrb[0].mxu0
  %8618 = vmatprep.mubr.bf16.mxu0 0
  %8619 = vmatmul.mubr.bf16.gmra.mrb[0].mxu0 %v8481
  %v8620 = vpop.f32.mrb[0].mxu0
  %v8621 = vadd.f32 0.0, %v8620
  %v8622 = vpop.f32.mrb[0].mxu0
  %v8623 = vpop.f32.mrb[0].mxu0
  %v8624 = vpop.f32.mrb[0].mxu0
  %8625 = vdwg.mxu0
  %v8626 = vadd.f32 %v8393, %v8573
  %v8627 = vadd.f32 %v8396, %v8576
  %v8628 = vadd.f32 %v8401, %v8581
  %v8629 = vadd.f32 %v8404, %v8584
  %v8630 = vadd.f32 %v8409, %v8589
  %v8631 = vadd.f32 %v8412, %v8592
  %v8632 = vadd.f32 %v8417, %v8597
  %v8633 = vadd.f32 %v8420, %v8600
  %v8634 = vadd.f32 %v8425, %v8605
  %v8635 = vadd.f32 %v8428, %v8608
  %v8636 = vadd.f32 %v8433, %v8613
  %v8637 = vadd.f32 %v8436, %v8616
  %v8638 = vadd.f32 %v8441, %v8621
  %v8639 = vld [vmem:[#allocation4] sm:$0xe0]
  %v8640 = vld [vmem:[#allocation4 + $0x8] sm:$0xff]
  %v8641 = vld [vmem:[#allocation4 + $0x10] sm:$0xff]
  %v8642 = vld [vmem:[#allocation4 + $0x18] sm:$0xff]
  %v8643 = vld [vmem:[#allocation4 + $0x20] sm:$0xff]
  %v8644 = vld [vmem:[#allocation4 + $0x28] sm:$0xff]
  %v8645 = vld [vmem:[#allocation4 + $0x30] sm:$0xff]
  %v8646 = vld [vmem:[#allocation4 + $0x38] sm:$0x3]
  %v8647 = vld [vmem:[%s3708] sm:$0xf]
  %v8648 = vld [vmem:[%s3708 + $0x4] sm:$0xf]
  %v8649 = vld [vmem:[%s3708 + $0x8] sm:$0xf]
  %v8650 = vld [vmem:[%s3708 + $0xc] sm:$0xf]
  %v8651 = vld [vmem:[%s3708 + $0x10] sm:$0xf]
  %v8652 = vld [vmem:[%s3708 + $0x14] sm:$0xf]
  %v8653 = vld [vmem:[%s3708 + $0x18] sm:$0xf]
  %v8654 = vld [vmem:[%s3708 + $0x1c] sm:$0xf]
  %v8655 = vld [vmem:[%s3708 + $0x20] sm:$0xf]
  %v8656 = vld [vmem:[%s3708 + $0x24] sm:$0xf]
  %v8657 = vld [vmem:[%s3708 + $0x28] sm:$0xf]
  %v8658 = vld [vmem:[%s3708 + $0x2c] sm:$0xf]
  %v8659 = vld [vmem:[%s3708 + $0x30] sm:$0xf]
  %v8660 = vld [vmem:[%s3708 + $0x34] sm:$0xf]
  %v8661 = vld [vmem:[%s3708 + $0x38] sm:$0xf]
  %v8662 = vld [vmem:[%s3708 + $0x3c] sm:$0xf]
  %v8664 = vshrl.u32 %v8639, 16
  %v8666 = vrot.slane %v8664, 5
  %v8667 = vshll.u32 %v8639, 16
  %v8669 = vrot.slane %v8667, 6
  %v8670 = vor.u32 %v8666, %v8669
  %v8672 = vshrl.u32 %v8640, 16
  %v8674 = vrot.slane %v8672, 5
  %v8675 = vshll.u32 %v8640, 16
  %v8677 = vrot.slane %v8675, 6
  %v8678 = vor.u32 %v8674, %v8677
  %v8679 = vsel %vm169, %v8670, %v8678
  %v8681 = vshrl.u32 %v8641, 16
  %v8683 = vrot.slane %v8681, 5
  %v8684 = vshll.u32 %v8641, 16
  %v8686 = vrot.slane %v8684, 6
  %v8687 = vor.u32 %v8683, %v8686
  %v8688 = vsel %vm169, %v8678, %v8687
  %v8690 = vshrl.u32 %v8642, 16
  %v8692 = vrot.slane %v8690, 5
  %v8693 = vshll.u32 %v8642, 16
  %v8695 = vrot.slane %v8693, 6
  %v8696 = vor.u32 %v8692, %v8695
  %v8697 = vsel %vm169, %v8687, %v8696
  %v8699 = vshrl.u32 %v8643, 16
  %v8701 = vrot.slane %v8699, 5
  %v8702 = vshll.u32 %v8643, 16
  %v8704 = vrot.slane %v8702, 6
  %v8705 = vor.u32 %v8701, %v8704
  %v8706 = vsel %vm169, %v8696, %v8705
  %v8708 = vshrl.u32 %v8644, 16
  %v8710 = vrot.slane %v8708, 5
  %v8711 = vshll.u32 %v8644, 16
  %v8713 = vrot.slane %v8711, 6
  %v8714 = vor.u32 %v8710, %v8713
  %v8715 = vsel %vm169, %v8705, %v8714
  %v8717 = vshrl.u32 %v8645, 16
  %v8719 = vrot.slane %v8717, 5
  %v8720 = vshll.u32 %v8645, 16
  %v8722 = vrot.slane %v8720, 6
  %v8723 = vor.u32 %v8719, %v8722
  %v8724 = vsel %vm169, %v8714, %v8723
  %v8726 = vshrl.u32 %v8646, 16
  %v8728 = vrot.slane %v8726, 5
  %v8729 = vshll.u32 %v8646, 16
  %v8731 = vrot.slane %v8729, 6
  %v8732 = vor.u32 %v8728, %v8731
  %v8733 = vsel %vm169, %v8723, %v8732
  %v8757 = vunpack.c.l.b16 %v8647
  %v8758 = vunpack.c.l.b16 %v8648
  %v8759 = vunpack.c.l.b16 %v8649
  %v8760 = vunpack.c.l.b16 %v8650
  %v8761 = vunpack.c.l.b16 %v8651
  %v8762 = vunpack.c.l.b16 %v8652
  %v8763 = vunpack.c.l.b16 %v8653
  %v8764 = vunpack.c.l.b16 %v8654
  %v8765 = vunpack.c.l.b16 %v8655
  %v8766 = vunpack.c.l.b16 %v8656
  %v8767 = vunpack.c.l.b16 %v8657
  %v8768 = vunpack.c.l.b16 %v8658
  %v8769 = vunpack.c.l.b16 %v8659
  %v8770 = vunpack.c.l.b16 %v8660
  %v8771 = vunpack.c.l.b16 %v8661
  %v8772 = vunpack.c.l.b16 %v8662
  %v8773 = vpack.c.b16 %v8758, %v8757
  %v8774 = vpack.c.b16 %v8760, %v8759
  %v8775 = vpack.c.b16 %v8762, %v8761
  %v8776 = vpack.c.b16 %v8764, %v8763
  %v8777 = vpack.c.b16 %v8766, %v8765
  %v8778 = vpack.c.b16 %v8768, %v8767
  %v8779 = vpack.c.b16 %v8770, %v8769
  %v8780 = vpack.c.b16 %v8772, %v8771
  %8789 = vmatprep.subr.bf16.mxu0 0
  %8790 = vmatpush1.bf16.msra.mxu0 %v8773
  %8791 = vmatprep.subr.bf16.mxu0 0
  %8792 = vmatpush1.bf16.msra.mxu0 %v8774
  %8793 = vmatprep.subr.bf16.mxu0 0
  %8794 = vmatpush1.bf16.msra.mxu0 %v8775
  %8795 = vmatprep.subr.bf16.mxu0 0
  %8796 = vmatpush1.bf16.msra.mxu0 %v8776
  %8797 = vmatprep.subr.bf16.mxu0 0
  %8798 = vmatpush1.bf16.msra.mxu0 %v8777
  %8799 = vmatprep.subr.bf16.mxu0 0
  %8800 = vmatpush1.bf16.msra.mxu0 %v8778
  %8801 = vmatprep.subr.bf16.mxu0 0
  %8802 = vmatpush1.bf16.msra.mxu0 %v8779
  %8803 = vmatprep.subr.bf16.mxu0 0
  %8804 = vmatpush1.bf16.msra.mxu0 %v8780
  %8805 = vmatprep.subr.bf16.mxu0 0
  %8806 = vmatpush1.bf16.msra.mxu0 0
  %8807 = vmatprep.subr.bf16.mxu0 0
  %8808 = vmatpush1.bf16.msra.mxu0 0
  %8809 = vmatprep.subr.bf16.mxu0 0
  %8810 = vmatpush1.bf16.msra.mxu0 0
  %8811 = vmatprep.subr.bf16.mxu0 0
  %8812 = vmatpush1.bf16.msra.mxu0 0
  %8813 = vmatprep.subr.bf16.mxu0 0
  %8814 = vmatpush1.bf16.msra.mxu0 0
  %8815 = vmatprep.subr.bf16.mxu0 0
  %8816 = vmatpush1.bf16.msra.mxu0 0
  %8817 = vmatprep.subr.bf16.mxu0 0
  %8818 = vmatpush1.bf16.msra.mxu0 0
  %8819 = vmatprep.subr.bf16.mxu0 0
  %8820 = vmatpush1.bf16.msra.mxu0 0
  %8821 = vmatprep.mubr.bf16.mxu0 0
  %8822 = vmatmul.mubr.bf16.gmra.mrb[0].mxu0 %v8679
  %v8823 = vpop.f32.mrb[0].mxu0
  %v8824 = vadd.f32 0.0, %v8823
  %v8825 = vpop.f32.mrb[0].mxu0
  %v8826 = vpop.f32.mrb[0].mxu0
  %v8827 = vadd.f32 0.0, %v8826
  %v8828 = vpop.f32.mrb[0].mxu0
  %8829 = vmatprep.mubr.bf16.mxu0 0
  %8830 = vmatmul.mubr.bf16.gmra.mrb[0].mxu0 %v8688
  %v8831 = vpop.f32.mrb[0].mxu0
  %v8832 = vadd.f32 0.0, %v8831
  %v8833 = vpop.f32.mrb[0].mxu0
  %v8834 = vpop.f32.mrb[0].mxu0
  %v8835 = vadd.f32 0.0, %v8834
  %v8836 = vpop.f32.mrb[0].mxu0
  %8837 = vmatprep.mubr.bf16.mxu0 0
  %8838 = vmatmul.mubr.bf16.gmra.mrb[0].mxu0 %v8697
  %v8839 = vpop.f32.mrb[0].mxu0
  %v8840 = vadd.f32 0.0, %v8839
  %v8841 = vpop.f32.mrb[0].mxu0
  %v8842 = vpop.f32.mrb[0].mxu0
  %v8843 = vadd.f32 0.0, %v8842
  %v8844 = vpop.f32.mrb[0].mxu0
  %8845 = vmatprep.mubr.bf16.mxu0 0
  %8846 = vmatmul.mubr.bf16.gmra.mrb[0].mxu0 %v8706
  %v8847 = vpop.f32.mrb[0].mxu0
  %v8848 = vadd.f32 0.0, %v8847
  %v8849 = vpop.f32.mrb[0].mxu0
  %v8850 = vpop.f32.mrb[0].mxu0
  %v8851 = vadd.f32 0.0, %v8850
  %v8852 = vpop.f32.mrb[0].mxu0
  %8853 = vmatprep.mubr.bf16.mxu0 0
  %8854 = vmatmul.mubr.bf16.gmra.mrb[0].mxu0 %v8715
  %v8855 = vpop.f32.mrb[0].mxu0
  %v8856 = vadd.f32 0.0, %v8855
  %v8857 = vpop.f32.mrb[0].mxu0
  %v8858 = vpop.f32.mrb[0].mxu0
  %v8859 = vadd.f32 0.0, %v8858
  %v8860 = vpop.f32.mrb[0].mxu0
  %8861 = vmatprep.mubr.bf16.mxu0 0
  %8862 = vmatmul.mubr.bf16.gmra.mrb[0].mxu0 %v8724
  %v8863 = vpop.f32.mrb[0].mxu0
  %v8864 = vadd.f32 0.0, %v8863
  %v8865 = vpop.f32.mrb[0].mxu0
  %v8866 = vpop.f32.mrb[0].mxu0
  %v8867 = vadd.f32 0.0, %v8866
  %v8868 = vpop.f32.mrb[0].mxu0
  %8869 = vmatprep.mubr.bf16.mxu0 0
  %8870 = vmatmul.mubr.bf16.gmra.mrb[0].mxu0 %v8733
  %v8871 = vpop.f32.mrb[0].mxu0
  %v8872 = vadd.f32 0.0, %v8871
  %v8873 = vpop.f32.mrb[0].mxu0
  %v8874 = vpop.f32.mrb[0].mxu0
  %v8875 = vpop.f32.mrb[0].mxu0
  %8876 = vdwg.mxu0
  %v8877 = vadd.f32 %v8626, %v8824
  %v8878 = vadd.f32 %v8627, %v8827
  %v8879 = vadd.f32 %v8628, %v8832
  %v8880 = vadd.f32 %v8629, %v8835
  %v8881 = vadd.f32 %v8630, %v8840
  %v8882 = vadd.f32 %v8631, %v8843
  %v8883 = vadd.f32 %v8632, %v8848
  %v8884 = vadd.f32 %v8633, %v8851
  %v8885 = vadd.f32 %v8634, %v8856
  %v8886 = vadd.f32 %v8635, %v8859
  %v8887 = vadd.f32 %v8636, %v8864
  %v8888 = vadd.f32 %v8637, %v8867
  %v8889 = vadd.f32 %v8638, %v8872
  %v8890 = vld [vmem:[#allocation4] sm:$0xc0]
  %v8891 = vld [vmem:[%s3953] sm:$0xf]
  %v8892 = vld [vmem:[%s3953 + $0x4] sm:$0xf]
  %v8893 = vld [vmem:[%s3953 + $0x8] sm:$0xf]
  %v8894 = vld [vmem:[%s3953 + $0xc] sm:$0xf]
  %v8895 = vld [vmem:[%s3953 + $0x10] sm:$0xf]
  %v8896 = vld [vmem:[%s3953 + $0x14] sm:$0xf]
  %v8897 = vld [vmem:[%s3953 + $0x18] sm:$0xf]
  %v8898 = vld [vmem:[%s3953 + $0x1c] sm:$0xf]
  %v8899 = vld [vmem:[%s3953 + $0x20] sm:$0xf]
  %v8900 = vld [vmem:[%s3953 + $0x24] sm:$0xf]
  %v8901 = vld [vmem:[%s3953 + $0x28] sm:$0xf]
  %v8902 = vld [vmem:[%s3953 + $0x2c] sm:$0xf]
  %v8903 = vld [vmem:[%s3953 + $0x30] sm:$0xf]
  %v8904 = vld [vmem:[%s3953 + $0x34] sm:$0xf]
  %v8905 = vld [vmem:[%s3953 + $0x38] sm:$0xf]
  %v8906 = vld [vmem:[%s3953 + $0x3c] sm:$0xf]
  %v8915 = vrot.slane %v8890, 6
  %v8916 = vrot.slane %v8640, 6
  %v8917 = vsel %vm1953, %v8915, %v8916
  %v8918 = vrot.slane %v8641, 6
  %v8919 = vsel %vm1953, %v8916, %v8918
  %v8920 = vrot.slane %v8642, 6
  %v8921 = vsel %vm1953, %v8918, %v8920
  %v8922 = vrot.slane %v8643, 6
  %v8923 = vsel %vm1953, %v8920, %v8922
  %v8924 = vrot.slane %v8644, 6
  %v8925 = vsel %vm1953, %v8922, %v8924
  %v8926 = vrot.slane %v8645, 6
  %v8927 = vsel %vm1953, %v8924, %v8926
  %v8928 = vrot.slane %v8646, 6
  %v8929 = vsel %vm1953, %v8926, %v8928
  %v8953 = vunpack.c.l.b16 %v8891
  %v8954 = vunpack.c.l.b16 %v8892
  %v8955 = vunpack.c.l.b16 %v8893
  %v8956 = vunpack.c.l.b16 %v8894
  %v8957 = vunpack.c.l.b16 %v8895
  %v8958 = vunpack.c.l.b16 %v8896
  %v8959 = vunpack.c.l.b16 %v8897
  %v8960 = vunpack.c.l.b16 %v8898
  %v8961 = vunpack.c.l.b16 %v8899
  %v8962 = vunpack.c.l.b16 %v8900
  %v8963 = vunpack.c.l.b16 %v8901
  %v8964 = vunpack.c.l.b16 %v8902
  %v8965 = vunpack.c.l.b16 %v8903
  %v8966 = vunpack.c.l.b16 %v8904
  %v8967 = vunpack.c.l.b16 %v8905
  %v8968 = vunpack.c.l.b16 %v8906
  %v8969 = vpack.c.b16 %v8954, %v8953
  %v8970 = vpack.c.b16 %v8956, %v8955
  %v8971 = vpack.c.b16 %v8958, %v8957
  %v8972 = vpack.c.b16 %v8960, %v8959
  %v8973 = vpack.c.b16 %v8962, %v8961
  %v8974 = vpack.c.b16 %v8964, %v8963
  %v8975 = vpack.c.b16 %v8966, %v8965
  %v8976 = vpack.c.b16 %v8968, %v8967
  %8985 = vmatprep.subr.bf16.mxu0 0
  %8986 = vmatpush1.bf16.msra.mxu0 %v8969
  %8987 = vmatprep.subr.bf16.mxu0 0
  %8988 = vmatpush1.bf16.msra.mxu0 %v8970
  %8989 = vmatprep.subr.bf16.mxu0 0
  %8990 = vmatpush1.bf16.msra.mxu0 %v8971
  %8991 = vmatprep.subr.bf16.mxu0 0
  %8992 = vmatpush1.bf16.msra.mxu0 %v8972
  %8993 = vmatprep.subr.bf16.mxu0 0
  %8994 = vmatpush1.bf16.msra.mxu0 %v8973
  %8995 = vmatprep.subr.bf16.mxu0 0
  %8996 = vmatpush1.bf16.msra.mxu0 %v8974
  %8997 = vmatprep.subr.bf16.mxu0 0
  %8998 = vmatpush1.bf16.msra.mxu0 %v8975
  %8999 = vmatprep.subr.bf16.mxu0 0
  %9000 = vmatpush1.bf16.msra.mxu0 %v8976
  %9001 = vmatprep.subr.bf16.mxu0 0
  %9002 = vmatpush1.bf16.msra.mxu0 0
  %9003 = vmatprep.subr.bf16.mxu0 0
  %9004 = vmatpush1.bf16.msra.mxu0 0
  %9005 = vmatprep.subr.bf16.mxu0 0
  %9006 = vmatpush1.bf16.msra.mxu0 0
  %9007 = vmatprep.subr.bf16.mxu0 0
  %9008 = vmatpush1.bf16.msra.mxu0 0
  %9009 = vmatprep.subr.bf16.mxu0 0
  %9010 = vmatpush1.bf16.msra.mxu0 0
  %9011 = vmatprep.subr.bf16.mxu0 0
  %9012 = vmatpush1.bf16.msra.mxu0 0
  %9013 = vmatprep.subr.bf16.mxu0 0
  %9014 = vmatpush1.bf16.msra.mxu0 0
  %9015 = vmatprep.subr.bf16.mxu0 0
  %9016 = vmatpush1.bf16.msra.mxu0 0
  %9017 = vmatprep.mubr.bf16.mxu0 0
  %9018 = vmatmul.mubr.bf16.gmra.mrb[0].mxu0 %v8917
  %v9019 = vpop.f32.mrb[0].mxu0
  %v9020 = vadd.f32 0.0, %v9019
  %v9021 = vpop.f32.mrb[0].mxu0
  %v9022 = vpop.f32.mrb[0].mxu0
  %v9023 = vadd.f32 0.0, %v9022
  %v9024 = vpop.f32.mrb[0].mxu0
  %9025 = vmatprep.mubr.bf16.mxu0 0
  %9026 = vmatmul.mubr.bf16.gmra.mrb[0].mxu0 %v8919
  %v9027 = vpop.f32.mrb[0].mxu0
  %v9028 = vadd.f32 0.0, %v9027
  %v9029 = vpop.f32.mrb[0].mxu0
  %v9030 = vpop.f32.mrb[0].mxu0
  %v9031 = vadd.f32 0.0, %v9030
  %v9032 = vpop.f32.mrb[0].mxu0
  %9033 = vmatprep.mubr.bf16.mxu0 0
  %9034 = vmatmul.mubr.bf16.gmra.mrb[0].mxu0 %v8921
  %v9035 = vpop.f32.mrb[0].mxu0
  %v9036 = vadd.f32 0.0, %v9035
  %v9037 = vpop.f32.mrb[0].mxu0
  %v9038 = vpop.f32.mrb[0].mxu0
  %v9039 = vadd.f32 0.0, %v9038
  %v9040 = vpop.f32.mrb[0].mxu0
  %9041 = vmatprep.mubr.bf16.mxu0 0
  %9042 = vmatmul.mubr.bf16.gmra.mrb[0].mxu0 %v8923
  %v9043 = vpop.f32.mrb[0].mxu0
  %v9044 = vadd.f32 0.0, %v9043
  %v9045 = vpop.f32.mrb[0].mxu0
  %v9046 = vpop.f32.mrb[0].mxu0
  %v9047 = vadd.f32 0.0, %v9046
  %v9048 = vpop.f32.mrb[0].mxu0
  %9049 = vmatprep.mubr.bf16.mxu0 0
  %9050 = vmatmul.mubr.bf16.gmra.mrb[0].mxu0 %v8925
  %v9051 = vpop.f32.mrb[0].mxu0
  %v9052 = vadd.f32 0.0, %v9051
  %v9053 = vpop.f32.mrb[0].mxu0
  %v9054 = vpop.f32.mrb[0].mxu0
  %v9055 = vadd.f32 0.0, %v9054
  %v9056 = vpop.f32.mrb[0].mxu0
  %9057 = vmatprep.mubr.bf16.mxu0 0
  %9058 = vmatmul.mubr.bf16.gmra.mrb[0].mxu0 %v8927
  %v9059 = vpop.f32.mrb[0].mxu0
  %v9060 = vadd.f32 0.0, %v9059
  %v9061 = vpop.f32.mrb[0].mxu0
  %v9062 = vpop.f32.mrb[0].mxu0
  %v9063 = vadd.f32 0.0, %v9062
  %v9064 = vpop.f32.mrb[0].mxu0
  %9065 = vmatprep.mubr.bf16.mxu0 0
  %9066 = vmatmul.mubr.bf16.gmra.mrb[0].mxu0 %v8929
  %v9067 = vpop.f32.mrb[0].mxu0
  %v9068 = vadd.f32 0.0, %v9067
  %v9069 = vpop.f32.mrb[0].mxu0
  %v9070 = vpop.f32.mrb[0].mxu0
  %v9071 = vpop.f32.mrb[0].mxu0
  %9072 = vdwg.mxu0
  %v9073 = vadd.f32 %v8877, %v9020
  %v9074 = vadd.f32 %v8878, %v9023
  %v9075 = vadd.f32 %v8879, %v9028
  %v9076 = vadd.f32 %v8880, %v9031
  %v9077 = vadd.f32 %v8881, %v9036
  %v9078 = vadd.f32 %v8882, %v9039
  %v9079 = vadd.f32 %v8883, %v9044
  %v9080 = vadd.f32 %v8884, %v9047
  %v9081 = vadd.f32 %v8885, %v9052
  %v9082 = vadd.f32 %v8886, %v9055
  %v9083 = vadd.f32 %v8887, %v9060
  %v9084 = vadd.f32 %v8888, %v9063
  %v9085 = vadd.f32 %v8889, %v9068
  %v9086 = vld [vmem:[#allocation4 + $0x38] sm:$0x7]
  %v9087 = vld [vmem:[%s4150] sm:$0xf]
  %v9088 = vld [vmem:[%s4150 + $0x4] sm:$0xf]
  %v9089 = vld [vmem:[%s4150 + $0x8] sm:$0xf]
  %v9090 = vld [vmem:[%s4150 + $0xc] sm:$0xf]
  %v9091 = vld [vmem:[%s4150 + $0x10] sm:$0xf]
  %v9092 = vld [vmem:[%s4150 + $0x14] sm:$0xf]
  %v9093 = vld [vmem:[%s4150 + $0x18] sm:$0xf]
  %v9094 = vld [vmem:[%s4150 + $0x1c] sm:$0xf]
  %v9095 = vld [vmem:[%s4150 + $0x20] sm:$0xf]
  %v9096 = vld [vmem:[%s4150 + $0x24] sm:$0xf]
  %v9097 = vld [vmem:[%s4150 + $0x28] sm:$0xf]
  %v9098 = vld [vmem:[%s4150 + $0x2c] sm:$0xf]
  %v9099 = vld [vmem:[%s4150 + $0x30] sm:$0xf]
  %v9100 = vld [vmem:[%s4150 + $0x34] sm:$0xf]
  %v9101 = vld [vmem:[%s4150 + $0x38] sm:$0xf]
  %v9102 = vld [vmem:[%s4150 + $0x3c] sm:$0xf]
  %v9104 = vshrl.u32 %v8890, 16
  %v9106 = vrot.slane %v9104, 6
  %v9107 = vshll.u32 %v8890, 16
  %v9109 = vrot.slane %v9107, 7
  %v9110 = vor.u32 %v9106, %v9109
  %v9111 = vrot.slane %v8672, 6
  %v9112 = vrot.slane %v8675, 7
  %v9113 = vor.u32 %v9111, %v9112
  %v9114 = vsel %vm193, %v9110, %v9113
  %v9115 = vrot.slane %v8681, 6
  %v9116 = vrot.slane %v8684, 7
  %v9117 = vor.u32 %v9115, %v9116
  %v9118 = vsel %vm193, %v9113, %v9117
  %v9119 = vrot.slane %v8690, 6
  %v9120 = vrot.slane %v8693, 7
  %v9121 = vor.u32 %v9119, %v9120
  %v9122 = vsel %vm193, %v9117, %v9121
  %v9123 = vrot.slane %v8699, 6
  %v9124 = vrot.slane %v8702, 7
  %v9125 = vor.u32 %v9123, %v9124
  %v9126 = vsel %vm193, %v9121, %v9125
  %v9127 = vrot.slane %v8708, 6
  %v9128 = vrot.slane %v8711, 7
  %v9129 = vor.u32 %v9127, %v9128
  %v9130 = vsel %vm193, %v9125, %v9129
  %v9131 = vrot.slane %v8717, 6
  %v9132 = vrot.slane %v8720, 7
  %v9133 = vor.u32 %v9131, %v9132
  %v9134 = vsel %vm193, %v9129, %v9133
  %v9136 = vshrl.u32 %v9086, 16
  %v9138 = vrot.slane %v9136, 6
  %v9139 = vshll.u32 %v9086, 16
  %v9141 = vrot.slane %v9139, 7
  %v9142 = vor.u32 %v9138, %v9141
  %v9143 = vsel %vm193, %v9133, %v9142
  %v9167 = vunpack.c.l.b16 %v9087
  %v9168 = vunpack.c.l.b16 %v9088
  %v9169 = vunpack.c.l.b16 %v9089
  %v9170 = vunpack.c.l.b16 %v9090
  %v9171 = vunpack.c.l.b16 %v9091
  %v9172 = vunpack.c.l.b16 %v9092
  %v9173 = vunpack.c.l.b16 %v9093
  %v9174 = vunpack.c.l.b16 %v9094
  %v9175 = vunpack.c.l.b16 %v9095
  %v9176 = vunpack.c.l.b16 %v9096
  %v9177 = vunpack.c.l.b16 %v9097
  %v9178 = vunpack.c.l.b16 %v9098
  %v9179 = vunpack.c.l.b16 %v9099
  %v9180 = vunpack.c.l.b16 %v9100
  %v9181 = vunpack.c.l.b16 %v9101
  %v9182 = vunpack.c.l.b16 %v9102
  %v9183 = vpack.c.b16 %v9168, %v9167
  %v9184 = vpack.c.b16 %v9170, %v9169
  %v9185 = vpack.c.b16 %v9172, %v9171
  %v9186 = vpack.c.b16 %v9174, %v9173
  %v9187 = vpack.c.b16 %v9176, %v9175
  %v9188 = vpack.c.b16 %v9178, %v9177
  %v9189 = vpack.c.b16 %v9180, %v9179
  %v9190 = vpack.c.b16 %v9182, %v9181
  %9199 = vmatprep.subr.bf16.mxu0 0
  %9200 = vmatpush1.bf16.msra.mxu0 %v9183
  %9201 = vmatprep.subr.bf16.mxu0 0
  %9202 = vmatpush1.bf16.msra.mxu0 %v9184
  %9203 = vmatprep.subr.bf16.mxu0 0
  %9204 = vmatpush1.bf16.msra.mxu0 %v9185
  %9205 = vmatprep.subr.bf16.mxu0 0
  %9206 = vmatpush1.bf16.msra.mxu0 %v9186
  %9207 = vmatprep.subr.bf16.mxu0 0
  %9208 = vmatpush1.bf16.msra.mxu0 %v9187
  %9209 = vmatprep.subr.bf16.mxu0 0
  %9210 = vmatpush1.bf16.msra.mxu0 %v9188
  %9211 = vmatprep.subr.bf16.mxu0 0
  %9212 = vmatpush1.bf16.msra.mxu0 %v9189
  %9213 = vmatprep.subr.bf16.mxu0 0
  %9214 = vmatpush1.bf16.msra.mxu0 %v9190
  %9215 = vmatprep.subr.bf16.mxu0 0
  %9216 = vmatpush1.bf16.msra.mxu0 0
  %9217 = vmatprep.subr.bf16.mxu0 0
  %9218 = vmatpush1.bf16.msra.mxu0 0
  %9219 = vmatprep.subr.bf16.mxu0 0
  %9220 = vmatpush1.bf16.msra.mxu0 0
  %9221 = vmatprep.subr.bf16.mxu0 0
  %9222 = vmatpush1.bf16.msra.mxu0 0
  %9223 = vmatprep.subr.bf16.mxu0 0
  %9224 = vmatpush1.bf16.msra.mxu0 0
  %9225 = vmatprep.subr.bf16.mxu0 0
  %9226 = vmatpush1.bf16.msra.mxu0 0
  %9227 = vmatprep.subr.bf16.mxu0 0
  %9228 = vmatpush1.bf16.msra.mxu0 0
  %9229 = vmatprep.subr.bf16.mxu0 0
  %9230 = vmatpush1.bf16.msra.mxu0 0
  %9231 = vmatprep.mubr.bf16.mxu0 0
  %9232 = vmatmul.mubr.bf16.gmra.mrb[0].mxu0 %v9114
  %v9233 = vpop.f32.mrb[0].mxu0
  %v9234 = vadd.f32 0.0, %v9233
  %v9235 = vpop.f32.mrb[0].mxu0
  %v9236 = vpop.f32.mrb[0].mxu0
  %v9237 = vadd.f32 0.0, %v9236
  %v9238 = vpop.f32.mrb[0].mxu0
  %9239 = vmatprep.mubr.bf16.mxu0 0
  %9240 = vmatmul.mubr.bf16.gmra.mrb[0].mxu0 %v9118
  %v9241 = vpop.f32.mrb[0].mxu0
  %v9242 = vadd.f32 0.0, %v9241
  %v9243 = vpop.f32.mrb[0].mxu0
  %v9244 = vpop.f32.mrb[0].mxu0
  %v9245 = vadd.f32 0.0, %v9244
  %v9246 = vpop.f32.mrb[0].mxu0
  %9247 = vmatprep.mubr.bf16.mxu0 0
  %9248 = vmatmul.mubr.bf16.gmra.mrb[0].mxu0 %v9122
  %v9249 = vpop.f32.mrb[0].mxu0
  %v9250 = vadd.f32 0.0, %v9249
  %v9251 = vpop.f32.mrb[0].mxu0
  %v9252 = vpop.f32.mrb[0].mxu0
  %v9253 = vadd.f32 0.0, %v9252
  %v9254 = vpop.f32.mrb[0].mxu0
  %9255 = vmatprep.mubr.bf16.mxu0 0
  %9256 = vmatmul.mubr.bf16.gmra.mrb[0].mxu0 %v9126
  %v9257 = vpop.f32.mrb[0].mxu0
  %v9258 = vadd.f32 0.0, %v9257
  %v9259 = vpop.f32.mrb[0].mxu0
  %v9260 = vpop.f32.mrb[0].mxu0
  %v9261 = vadd.f32 0.0, %v9260
  %v9262 = vpop.f32.mrb[0].mxu0
  %9263 = vmatprep.mubr.bf16.mxu0 0
  %9264 = vmatmul.mubr.bf16.gmra.mrb[0].mxu0 %v9130
  %v9265 = vpop.f32.mrb[0].mxu0
  %v9266 = vadd.f32 0.0, %v9265
  %v9267 = vpop.f32.mrb[0].mxu0
  %v9268 = vpop.f32.mrb[0].mxu0
  %v9269 = vadd.f32 0.0, %v9268
  %v9270 = vpop.f32.mrb[0].mxu0
  %9271 = vmatprep.mubr.bf16.mxu0 0
  %9272 = vmatmul.mubr.bf16.gmra.mrb[0].mxu0 %v9134
  %v9273 = vpop.f32.mrb[0].mxu0
  %v9274 = vadd.f32 0.0, %v9273
  %v9275 = vpop.f32.mrb[0].mxu0
  %v9276 = vpop.f32.mrb[0].mxu0
  %v9277 = vadd.f32 0.0, %v9276
  %v9278 = vpop.f32.mrb[0].mxu0
  %9279 = vmatprep.mubr.bf16.mxu0 0
  %9280 = vmatmul.mubr.bf16.gmra.mrb[0].mxu0 %v9143
  %v9281 = vpop.f32.mrb[0].mxu0
  %v9282 = vadd.f32 0.0, %v9281
  %v9283 = vpop.f32.mrb[0].mxu0
  %v9284 = vpop.f32.mrb[0].mxu0
  %v9285 = vpop.f32.mrb[0].mxu0
  %9286 = vdwg.mxu0
  %v9287 = vadd.f32 %v9073, %v9234
  %v9288 = vadd.f32 %v9074, %v9237
  %v9289 = vadd.f32 %v9075, %v9242
  %v9290 = vadd.f32 %v9076, %v9245
  %v9291 = vadd.f32 %v9077, %v9250
  %v9292 = vadd.f32 %v9078, %v9253
  %v9293 = vadd.f32 %v9079, %v9258
  %v9294 = vadd.f32 %v9080, %v9261
  %v9295 = vadd.f32 %v9081, %v9266
  %v9296 = vadd.f32 %v9082, %v9269
  %v9297 = vadd.f32 %v9083, %v9274
  %v9298 = vadd.f32 %v9084, %v9277
  %v9299 = vadd.f32 %v9085, %v9282
  %v9300 = vld [vmem:[#allocation4 + $0x8] sm:$0xf8]
  %v9301 = vld [vmem:[#allocation4 + $0x38] sm:$0x7f]
  %v9302 = vld [vmem:[%s4366] sm:$0xf]
  %v9303 = vld [vmem:[%s4366 + $0x4] sm:$0xf]
  %v9304 = vld [vmem:[%s4366 + $0x8] sm:$0xf]
  %v9305 = vld [vmem:[%s4366 + $0xc] sm:$0xf]
  %v9306 = vld [vmem:[%s4366 + $0x10] sm:$0xf]
  %v9307 = vld [vmem:[%s4366 + $0x14] sm:$0xf]
  %v9308 = vld [vmem:[%s4366 + $0x18] sm:$0xf]
  %v9309 = vld [vmem:[%s4366 + $0x1c] sm:$0xf]
  %v9310 = vld [vmem:[%s4366 + $0x20] sm:$0xf]
  %v9311 = vld [vmem:[%s4366 + $0x24] sm:$0xf]
  %v9312 = vld [vmem:[%s4366 + $0x28] sm:$0xf]
  %v9313 = vld [vmem:[%s4366 + $0x2c] sm:$0xf]
  %v9314 = vld [vmem:[%s4366 + $0x30] sm:$0xf]
  %v9315 = vld [vmem:[%s4366 + $0x34] sm:$0xf]
  %v9316 = vld [vmem:[%s4366 + $0x38] sm:$0xf]
  %v9317 = vld [vmem:[%s4366 + $0x3c] sm:$0xf]
  %v9320 = vrot.slane %v9300, 3
  %v9321 = vrot.slane %v8641, 3
  %v9322 = vsel %vm2361, %v9320, %v9321
  %v9323 = vrot.slane %v8642, 3
  %v9324 = vsel %vm2361, %v9321, %v9323
  %v9325 = vrot.slane %v8643, 3
  %v9326 = vsel %vm2361, %v9323, %v9325
  %v9327 = vrot.slane %v8644, 3
  %v9328 = vsel %vm2361, %v9325, %v9327
  %v9329 = vrot.slane %v8645, 3
  %v9330 = vsel %vm2361, %v9327, %v9329
  %v9331 = vrot.slane %v9301, 3
  %v9332 = vsel %vm2361, %v9329, %v9331
  %v9356 = vunpack.c.l.b16 %v9302
  %v9357 = vunpack.c.l.b16 %v9303
  %v9358 = vunpack.c.l.b16 %v9304
  %v9359 = vunpack.c.l.b16 %v9305
  %v9360 = vunpack.c.l.b16 %v9306
  %v9361 = vunpack.c.l.b16 %v9307
  %v9362 = vunpack.c.l.b16 %v9308
  %v9363 = vunpack.c.l.b16 %v9309
  %v9364 = vunpack.c.l.b16 %v9310
  %v9365 = vunpack.c.l.b16 %v9311
  %v9366 = vunpack.c.l.b16 %v9312
  %v9367 = vunpack.c.l.b16 %v9313
  %v9368 = vunpack.c.l.b16 %v9314
  %v9369 = vunpack.c.l.b16 %v9315
  %v9370 = vunpack.c.l.b16 %v9316
  %v9371 = vunpack.c.l.b16 %v9317
  %v9372 = vpack.c.b16 %v9357, %v9356
  %v9373 = vpack.c.b16 %v9359, %v9358
  %v9374 = vpack.c.b16 %v9361, %v9360
  %v9375 = vpack.c.b16 %v9363, %v9362
  %v9376 = vpack.c.b16 %v9365, %v9364
  %v9377 = vpack.c.b16 %v9367, %v9366
  %v9378 = vpack.c.b16 %v9369, %v9368
  %v9379 = vpack.c.b16 %v9371, %v9370
  %9388 = vmatprep.subr.bf16.mxu0 0
  %9389 = vmatpush1.bf16.msra.mxu0 %v9372
  %9390 = vmatprep.subr.bf16.mxu0 0
  %9391 = vmatpush1.bf16.msra.mxu0 %v9373
  %9392 = vmatprep.subr.bf16.mxu0 0
  %9393 = vmatpush1.bf16.msra.mxu0 %v9374
  %9394 = vmatprep.subr.bf16.mxu0 0
  %9395 = vmatpush1.bf16.msra.mxu0 %v9375
  %9396 = vmatprep.subr.bf16.mxu0 0
  %9397 = vmatpush1.bf16.msra.mxu0 %v9376
  %9398 = vmatprep.subr.bf16.mxu0 0
  %9399 = vmatpush1.bf16.msra.mxu0 %v9377
  %9400 = vmatprep.subr.bf16.mxu0 0
  %9401 = vmatpush1.bf16.msra.mxu0 %v9378
  %9402 = vmatprep.subr.bf16.mxu0 0
  %9403 = vmatpush1.bf16.msra.mxu0 %v9379
  %9404 = vmatprep.subr.bf16.mxu0 0
  %9405 = vmatpush1.bf16.msra.mxu0 0
  %9406 = vmatprep.subr.bf16.mxu0 0
  %9407 = vmatpush1.bf16.msra.mxu0 0
  %9408 = vmatprep.subr.bf16.mxu0 0
  %9409 = vmatpush1.bf16.msra.mxu0 0
  %9410 = vmatprep.subr.bf16.mxu0 0
  %9411 = vmatpush1.bf16.msra.mxu0 0
  %9412 = vmatprep.subr.bf16.mxu0 0
  %9413 = vmatpush1.bf16.msra.mxu0 0
  %9414 = vmatprep.subr.bf16.mxu0 0
  %9415 = vmatpush1.bf16.msra.mxu0 0
  %9416 = vmatprep.subr.bf16.mxu0 0
  %9417 = vmatpush1.bf16.msra.mxu0 0
  %9418 = vmatprep.subr.bf16.mxu0 0
  %9419 = vmatpush1.bf16.msra.mxu0 0
  %9420 = vmatprep.mubr.bf16.mxu0 0
  %9421 = vmatmul.mubr.bf16.gmra.mrb[0].mxu0 %v9322
  %v9422 = vpop.f32.mrb[0].mxu0
  %v9423 = vadd.f32 0.0, %v9422
  %v9424 = vpop.f32.mrb[0].mxu0
  %v9425 = vpop.f32.mrb[0].mxu0
  %v9426 = vadd.f32 0.0, %v9425
  %v9427 = vpop.f32.mrb[0].mxu0
  %9428 = vmatprep.mubr.bf16.mxu0 0
  %9429 = vmatmul.mubr.bf16.gmra.mrb[0].mxu0 %v9324
  %v9430 = vpop.f32.mrb[0].mxu0
  %v9431 = vadd.f32 0.0, %v9430
  %v9432 = vpop.f32.mrb[0].mxu0
  %v9433 = vpop.f32.mrb[0].mxu0
  %v9434 = vadd.f32 0.0, %v9433
  %v9435 = vpop.f32.mrb[0].mxu0
  %9436 = vmatprep.mubr.bf16.mxu0 0
  %9437 = vmatmul.mubr.bf16.gmra.mrb[0].mxu0 %v9326
  %v9438 = vpop.f32.mrb[0].mxu0
  %v9439 = vadd.f32 0.0, %v9438
  %v9440 = vpop.f32.mrb[0].mxu0
  %v9441 = vpop.f32.mrb[0].mxu0
  %v9442 = vadd.f32 0.0, %v9441
  %v9443 = vpop.f32.mrb[0].mxu0
  %9444 = vmatprep.mubr.bf16.mxu0 0
  %9445 = vmatmul.mubr.bf16.gmra.mrb[0].mxu0 %v9328
  %v9446 = vpop.f32.mrb[0].mxu0
  %v9447 = vadd.f32 0.0, %v9446
  %v9448 = vpop.f32.mrb[0].mxu0
  %v9449 = vpop.f32.mrb[0].mxu0
  %v9450 = vadd.f32 0.0, %v9449
  %v9451 = vpop.f32.mrb[0].mxu0
  %9452 = vmatprep.mubr.bf16.mxu0 0
  %9453 = vmatmul.mubr.bf16.gmra.mrb[0].mxu0 %v9330
  %v9454 = vpop.f32.mrb[0].mxu0
  %v9455 = vadd.f32 0.0, %v9454
  %v9456 = vpop.f32.mrb[0].mxu0
  %v9457 = vpop.f32.mrb[0].mxu0
  %v9458 = vadd.f32 0.0, %v9457
  %v9459 = vpop.f32.mrb[0].mxu0
  %9460 = vmatprep.mubr.bf16.mxu0 0
  %9461 = vmatmul.mubr.bf16.gmra.mrb[0].mxu0 %v9332
  %v9462 = vpop.f32.mrb[0].mxu0
  %v9463 = vadd.f32 0.0, %v9462
  %v9464 = vpop.f32.mrb[0].mxu0
  %v9465 = vpop.f32.mrb[0].mxu0
  %v9466 = vadd.f32 0.0, %v9465
  %v9467 = vpop.f32.mrb[0].mxu0
  %9468 = vmatprep.mubr.bf16.mxu0 0
  %9469 = vmatmul.mubr.bf16.gmra.mrb[0].mxu0 %v9331
  %v9470 = vpop.f32.mrb[0].mxu0
  %v9471 = vadd.f32 0.0, %v9470
  %v9472 = vpop.f32.mrb[0].mxu0
  %v9473 = vpop.f32.mrb[0].mxu0
  %v9474 = vpop.f32.mrb[0].mxu0
  %9475 = vdwg.mxu0
  %v9476 = vadd.f32 %v9287, %v9423
  %v9477 = vadd.f32 %v9288, %v9426
  %v9478 = vadd.f32 %v9289, %v9431
  %v9479 = vadd.f32 %v9290, %v9434
  %v9480 = vadd.f32 %v9291, %v9439
  %v9481 = vadd.f32 %v9292, %v9442
  %v9482 = vadd.f32 %v9293, %v9447
  %v9483 = vadd.f32 %v9294, %v9450
  %v9484 = vadd.f32 %v9295, %v9455
  %v9485 = vadd.f32 %v9296, %v9458
  %v9486 = vadd.f32 %v9297, %v9463
  %v9487 = vadd.f32 %v9298, %v9466
  %v9488 = vadd.f32 %v9299, %v9471
  %v9489 = vld [vmem:[#allocation4 + $0x38] sm:$0xff]
  %v9490 = vld [vmem:[%s4555] sm:$0xf]
  %v9491 = vld [vmem:[%s4555 + $0x4] sm:$0xf]
  %v9492 = vld [vmem:[%s4555 + $0x8] sm:$0xf]
  %v9493 = vld [vmem:[%s4555 + $0xc] sm:$0xf]
  %v9494 = vld [vmem:[%s4555 + $0x10] sm:$0xf]
  %v9495 = vld [vmem:[%s4555 + $0x14] sm:$0xf]
  %v9496 = vld [vmem:[%s4555 + $0x18] sm:$0xf]
  %v9497 = vld [vmem:[%s4555 + $0x1c] sm:$0xf]
  %v9498 = vld [vmem:[%s4555 + $0x20] sm:$0xf]
  %v9499 = vld [vmem:[%s4555 + $0x24] sm:$0xf]
  %v9500 = vld [vmem:[%s4555 + $0x28] sm:$0xf]
  %v9501 = vld [vmem:[%s4555 + $0x2c] sm:$0xf]
  %v9502 = vld [vmem:[%s4555 + $0x30] sm:$0xf]
  %v9503 = vld [vmem:[%s4555 + $0x34] sm:$0xf]
  %v9504 = vld [vmem:[%s4555 + $0x38] sm:$0xf]
  %v9505 = vld [vmem:[%s4555 + $0x3c] sm:$0xf]
  %v9507 = vshrl.u32 %v9300, 16
  %v9509 = vrot.slane %v9507, 3
  %v9510 = vshll.u32 %v9300, 16
  %v9512 = vrot.slane %v9510, 4
  %v9513 = vor.u32 %v9509, %v9512
  %v9514 = vrot.slane %v8681, 3
  %v9515 = vrot.slane %v8684, 4
  %v9516 = vor.u32 %v9514, %v9515
  %v9517 = vsel %vm2549, %v9513, %v9516
  %v9518 = vrot.slane %v8690, 3
  %v9519 = vrot.slane %v8693, 4
  %v9520 = vor.u32 %v9518, %v9519
  %v9521 = vsel %vm2549, %v9516, %v9520
  %v9522 = vrot.slane %v8699, 3
  %v9523 = vrot.slane %v8702, 4
  %v9524 = vor.u32 %v9522, %v9523
  %v9525 = vsel %vm2549, %v9520, %v9524
  %v9526 = vrot.slane %v8708, 3
  %v9527 = vrot.slane %v8711, 4
  %v9528 = vor.u32 %v9526, %v9527
  %v9529 = vsel %vm2549, %v9524, %v9528
  %v9530 = vrot.slane %v8717, 3
  %v9531 = vrot.slane %v8720, 4
  %v9532 = vor.u32 %v9530, %v9531
  %v9533 = vsel %vm2549, %v9528, %v9532
  %v9535 = vshrl.u32 %v9489, 16
  %v9537 = vrot.slane %v9535, 3
  %v9538 = vshll.u32 %v9489, 16
  %v9540 = vrot.slane %v9538, 4
  %v9541 = vor.u32 %v9537, %v9540
  %v9542 = vsel %vm2549, %v9532, %v9541
  %v9566 = vunpack.c.l.b16 %v9490
  %v9567 = vunpack.c.l.b16 %v9491
  %v9568 = vunpack.c.l.b16 %v9492
  %v9569 = vunpack.c.l.b16 %v9493
  %v9570 = vunpack.c.l.b16 %v9494
  %v9571 = vunpack.c.l.b16 %v9495
  %v9572 = vunpack.c.l.b16 %v9496
  %v9573 = vunpack.c.l.b16 %v9497
  %v9574 = vunpack.c.l.b16 %v9498
  %v9575 = vunpack.c.l.b16 %v9499
  %v9576 = vunpack.c.l.b16 %v9500
  %v9577 = vunpack.c.l.b16 %v9501
  %v9578 = vunpack.c.l.b16 %v9502
  %v9579 = vunpack.c.l.b16 %v9503
  %v9580 = vunpack.c.l.b16 %v9504
  %v9581 = vunpack.c.l.b16 %v9505
  %v9582 = vpack.c.b16 %v9567, %v9566
  %v9583 = vpack.c.b16 %v9569, %v9568
  %v9584 = vpack.c.b16 %v9571, %v9570
  %v9585 = vpack.c.b16 %v9573, %v9572
  %v9586 = vpack.c.b16 %v9575, %v9574
  %v9587 = vpack.c.b16 %v9577, %v9576
  %v9588 = vpack.c.b16 %v9579, %v9578
  %v9589 = vpack.c.b16 %v9581, %v9580
  %9598 = vmatprep.subr.bf16.mxu0 0
  %9599 = vmatpush1.bf16.msra.mxu0 %v9582
  %9600 = vmatprep.subr.bf16.mxu0 0
  %9601 = vmatpush1.bf16.msra.mxu0 %v9583
  %9602 = vmatprep.subr.bf16.mxu0 0
  %9603 = vmatpush1.bf16.msra.mxu0 %v9584
  %9604 = vmatprep.subr.bf16.mxu0 0
  %9605 = vmatpush1.bf16.msra.mxu0 %v9585
  %9606 = vmatprep.subr.bf16.mxu0 0
  %9607 = vmatpush1.bf16.msra.mxu0 %v9586
  %9608 = vmatprep.subr.bf16.mxu0 0
  %9609 = vmatpush1.bf16.msra.mxu0 %v9587
  %9610 = vmatprep.subr.bf16.mxu0 0
  %9611 = vmatpush1.bf16.msra.mxu0 %v9588
  %9612 = vmatprep.subr.bf16.mxu0 0
  %9613 = vmatpush1.bf16.msra.mxu0 %v9589
  %9614 = vmatprep.subr.bf16.mxu0 0
  %9615 = vmatpush1.bf16.msra.mxu0 0
  %9616 = vmatprep.subr.bf16.mxu0 0
  %9617 = vmatpush1.bf16.msra.mxu0 0
  %9618 = vmatprep.subr.bf16.mxu0 0
  %9619 = vmatpush1.bf16.msra.mxu0 0
  %9620 = vmatprep.subr.bf16.mxu0 0
  %9621 = vmatpush1.bf16.msra.mxu0 0
  %9622 = vmatprep.subr.bf16.mxu0 0
  %9623 = vmatpush1.bf16.msra.mxu0 0
  %9624 = vmatprep.subr.bf16.mxu0 0
  %9625 = vmatpush1.bf16.msra.mxu0 0
  %9626 = vmatprep.subr.bf16.mxu0 0
  %9627 = vmatpush1.bf16.msra.mxu0 0
  %9628 = vmatprep.subr.bf16.mxu0 0
  %9629 = vmatpush1.bf16.msra.mxu0 0
  %9630 = vmatprep.mubr.bf16.mxu0 0
  %9631 = vmatmul.mubr.bf16.gmra.mrb[0].mxu0 %v9517
  %v9632 = vpop.f32.mrb[0].mxu0
  %v9633 = vadd.f32 0.0, %v9632
  %v9634 = vpop.f32.mrb[0].mxu0
  %v9635 = vpop.f32.mrb[0].mxu0
  %v9636 = vadd.f32 0.0, %v9635
  %v9637 = vpop.f32.mrb[0].mxu0
  %9638 = vmatprep.mubr.bf16.mxu0 0
  %9639 = vmatmul.mubr.bf16.gmra.mrb[0].mxu0 %v9521
  %v9640 = vpop.f32.mrb[0].mxu0
  %v9641 = vadd.f32 0.0, %v9640
  %v9642 = vpop.f32.mrb[0].mxu0
  %v9643 = vpop.f32.mrb[0].mxu0
  %v9644 = vadd.f32 0.0, %v9643
  %v9645 = vpop.f32.mrb[0].mxu0
  %9646 = vmatprep.mubr.bf16.mxu0 0
  %9647 = vmatmul.mubr.bf16.gmra.mrb[0].mxu0 %v9525
  %v9648 = vpop.f32.mrb[0].mxu0
  %v9649 = vadd.f32 0.0, %v9648
  %v9650 = vpop.f32.mrb[0].mxu0
  %v9651 = vpop.f32.mrb[0].mxu0
  %v9652 = vadd.f32 0.0, %v9651
  %v9653 = vpop.f32.mrb[0].mxu0
  %9654 = vmatprep.mubr.bf16.mxu0 0
  %9655 = vmatmul.mubr.bf16.gmra.mrb[0].mxu0 %v9529
  %v9656 = vpop.f32.mrb[0].mxu0
  %v9657 = vadd.f32 0.0, %v9656
  %v9658 = vpop.f32.mrb[0].mxu0
  %v9659 = vpop.f32.mrb[0].mxu0
  %v9660 = vadd.f32 0.0, %v9659
  %v9661 = vpop.f32.mrb[0].mxu0
  %9662 = vmatprep.mubr.bf16.mxu0 0
  %9663 = vmatmul.mubr.bf16.gmra.mrb[0].mxu0 %v9533
  %v9664 = vpop.f32.mrb[0].mxu0
  %v9665 = vadd.f32 0.0, %v9664
  %v9666 = vpop.f32.mrb[0].mxu0
  %v9667 = vpop.f32.mrb[0].mxu0
  %v9668 = vadd.f32 0.0, %v9667
  %v9669 = vpop.f32.mrb[0].mxu0
  %9670 = vmatprep.mubr.bf16.mxu0 0
  %9671 = vmatmul.mubr.bf16.gmra.mrb[0].mxu0 %v9542
  %v9672 = vpop.f32.mrb[0].mxu0
  %v9673 = vadd.f32 0.0, %v9672
  %v9674 = vpop.f32.mrb[0].mxu0
  %v9675 = vpop.f32.mrb[0].mxu0
  %v9676 = vadd.f32 0.0, %v9675
  %v9677 = vpop.f32.mrb[0].mxu0
  %9678 = vmatprep.mubr.bf16.mxu0 0
  %9679 = vmatmul.mubr.bf16.gmra.mrb[0].mxu0 %v9541
  %v9680 = vpop.f32.mrb[0].mxu0
  %v9681 = vadd.f32 0.0, %v9680
  %v9682 = vpop.f32.mrb[0].mxu0
  %v9683 = vpop.f32.mrb[0].mxu0
  %v9684 = vpop.f32.mrb[0].mxu0
  %9685 = vdwg.mxu0
  %v9686 = vadd.f32 %v9476, %v9633
  %v9687 = vadd.f32 %v9477, %v9636
  %v9688 = vadd.f32 %v9478, %v9641
  %v9689 = vadd.f32 %v9479, %v9644
  %v9690 = vadd.f32 %v9480, %v9649
  %v9691 = vadd.f32 %v9481, %v9652
  %v9692 = vadd.f32 %v9482, %v9657
  %v9693 = vadd.f32 %v9483, %v9660
  %v9694 = vadd.f32 %v9484, %v9665
  %v9695 = vadd.f32 %v9485, %v9668
  %v9696 = vadd.f32 %v9486, %v9673
  %v9697 = vadd.f32 %v9487, %v9676
  %v9698 = vadd.f32 %v9488, %v9681
  %v9699 = vld [vmem:[#allocation4 + $0x8] sm:$0xf0]
  %v9700 = vld [vmem:[%s4766] sm:$0xf]
  %v9701 = vld [vmem:[%s4766 + $0x4] sm:$0xf]
  %v9702 = vld [vmem:[%s4766 + $0x8] sm:$0xf]
  %v9703 = vld [vmem:[%s4766 + $0xc] sm:$0xf]
  %v9704 = vld [vmem:[%s4766 + $0x10] sm:$0xf]
  %v9705 = vld [vmem:[%s4766 + $0x14] sm:$0xf]
  %v9706 = vld [vmem:[%s4766 + $0x18] sm:$0xf]
  %v9707 = vld [vmem:[%s4766 + $0x1c] sm:$0xf]
  %v9708 = vld [vmem:[%s4766 + $0x20] sm:$0xf]
  %v9709 = vld [vmem:[%s4766 + $0x24] sm:$0xf]
  %v9710 = vld [vmem:[%s4766 + $0x28] sm:$0xf]
  %v9711 = vld [vmem:[%s4766 + $0x2c] sm:$0xf]
  %v9712 = vld [vmem:[%s4766 + $0x30] sm:$0xf]
  %v9713 = vld [vmem:[%s4766 + $0x34] sm:$0xf]
  %v9714 = vld [vmem:[%s4766 + $0x38] sm:$0xf]
  %v9715 = vld [vmem:[%s4766 + $0x3c] sm:$0xf]
  %v9718 = vrot.slane %v9699, 4
  %v9719 = vrot.slane %v8641, 4
  %v9720 = vsel %vm2763, %v9718, %v9719
  %v9721 = vrot.slane %v8642, 4
  %v9722 = vsel %vm2763, %v9719, %v9721
  %v9723 = vrot.slane %v8643, 4
  %v9724 = vsel %vm2763, %v9721, %v9723
  %v9725 = vrot.slane %v8644, 4
  %v9726 = vsel %vm2763, %v9723, %v9725
  %v9727 = vrot.slane %v8645, 4
  %v9728 = vsel %vm2763, %v9725, %v9727
  %v9729 = vrot.slane %v9489, 4
  %v9730 = vsel %vm2763, %v9727, %v9729
  %v9754 = vunpack.c.l.b16 %v9700
  %v9755 = vunpack.c.l.b16 %v9701
  %v9756 = vunpack.c.l.b16 %v9702
  %v9757 = vunpack.c.l.b16 %v9703
  %v9758 = vunpack.c.l.b16 %v9704
  %v9759 = vunpack.c.l.b16 %v9705
  %v9760 = vunpack.c.l.b16 %v9706
  %v9761 = vunpack.c.l.b16 %v9707
  %v9762 = vunpack.c.l.b16 %v9708
  %v9763 = vunpack.c.l.b16 %v9709
  %v9764 = vunpack.c.l.b16 %v9710
  %v9765 = vunpack.c.l.b16 %v9711
  %v9766 = vunpack.c.l.b16 %v9712
  %v9767 = vunpack.c.l.b16 %v9713
  %v9768 = vunpack.c.l.b16 %v9714
  %v9769 = vunpack.c.l.b16 %v9715
  %v9770 = vpack.c.b16 %v9755, %v9754
  %v9771 = vpack.c.b16 %v9757, %v9756
  %v9772 = vpack.c.b16 %v9759, %v9758
  %v9773 = vpack.c.b16 %v9761, %v9760
  %v9774 = vpack.c.b16 %v9763, %v9762
  %v9775 = vpack.c.b16 %v9765, %v9764
  %v9776 = vpack.c.b16 %v9767, %v9766
  %v9777 = vpack.c.b16 %v9769, %v9768
  %9786 = vmatprep.subr.bf16.mxu0 0
  %9787 = vmatpush1.bf16.msra.mxu0 %v9770
  %9788 = vmatprep.subr.bf16.mxu0 0
  %9789 = vmatpush1.bf16.msra.mxu0 %v9771
  %9790 = vmatprep.subr.bf16.mxu0 0
  %9791 = vmatpush1.bf16.msra.mxu0 %v9772
  %9792 = vmatprep.subr.bf16.mxu0 0
  %9793 = vmatpush1.bf16.msra.mxu0 %v9773
  %9794 = vmatprep.subr.bf16.mxu0 0
  %9795 = vmatpush1.bf16.msra.mxu0 %v9774
  %9796 = vmatprep.subr.bf16.mxu0 0
  %9797 = vmatpush1.bf16.msra.mxu0 %v9775
  %9798 = vmatprep.subr.bf16.mxu0 0
  %9799 = vmatpush1.bf16.msra.mxu0 %v9776
  %9800 = vmatprep.subr.bf16.mxu0 0
  %9801 = vmatpush1.bf16.msra.mxu0 %v9777
  %9802 = vmatprep.subr.bf16.mxu0 0
  %9803 = vmatpush1.bf16.msra.mxu0 0
  %9804 = vmatprep.subr.bf16.mxu0 0
  %9805 = vmatpush1.bf16.msra.mxu0 0
  %9806 = vmatprep.subr.bf16.mxu0 0
  %9807 = vmatpush1.bf16.msra.mxu0 0
  %9808 = vmatprep.subr.bf16.mxu0 0
  %9809 = vmatpush1.bf16.msra.mxu0 0
  %9810 = vmatprep.subr.bf16.mxu0 0
  %9811 = vmatpush1.bf16.msra.mxu0 0
  %9812 = vmatprep.subr.bf16.mxu0 0
  %9813 = vmatpush1.bf16.msra.mxu0 0
  %9814 = vmatprep.subr.bf16.mxu0 0
  %9815 = vmatpush1.bf16.msra.mxu0 0
  %9816 = vmatprep.subr.bf16.mxu0 0
  %9817 = vmatpush1.bf16.msra.mxu0 0
  %9818 = vmatprep.mubr.bf16.mxu0 0
  %9819 = vmatmul.mubr.bf16.gmra.mrb[0].mxu0 %v9720
  %v9820 = vpop.f32.mrb[0].mxu0
  %v9821 = vadd.f32 0.0, %v9820
  %v9822 = vpop.f32.mrb[0].mxu0
  %v9823 = vpop.f32.mrb[0].mxu0
  %v9824 = vadd.f32 0.0, %v9823
  %v9825 = vpop.f32.mrb[0].mxu0
  %9826 = vmatprep.mubr.bf16.mxu0 0
  %9827 = vmatmul.mubr.bf16.gmra.mrb[0].mxu0 %v9722
  %v9828 = vpop.f32.mrb[0].mxu0
  %v9829 = vadd.f32 0.0, %v9828
  %v9830 = vpop.f32.mrb[0].mxu0
  %v9831 = vpop.f32.mrb[0].mxu0
  %v9832 = vadd.f32 0.0, %v9831
  %v9833 = vpop.f32.mrb[0].mxu0
  %9834 = vmatprep.mubr.bf16.mxu0 0
  %9835 = vmatmul.mubr.bf16.gmra.mrb[0].mxu0 %v9724
  %v9836 = vpop.f32.mrb[0].mxu0
  %v9837 = vadd.f32 0.0, %v9836
  %v9838 = vpop.f32.mrb[0].mxu0
  %v9839 = vpop.f32.mrb[0].mxu0
  %v9840 = vadd.f32 0.0, %v9839
  %v9841 = vpop.f32.mrb[0].mxu0
  %9842 = vmatprep.mubr.bf16.mxu0 0
  %9843 = vmatmul.mubr.bf16.gmra.mrb[0].mxu0 %v9726
  %v9844 = vpop.f32.mrb[0].mxu0
  %v9845 = vadd.f32 0.0, %v9844
  %v9846 = vpop.f32.mrb[0].mxu0
  %v9847 = vpop.f32.mrb[0].mxu0
  %v9848 = vadd.f32 0.0, %v9847
  %v9849 = vpop.f32.mrb[0].mxu0
  %9850 = vmatprep.mubr.bf16.mxu0 0
  %9851 = vmatmul.mubr.bf16.gmra.mrb[0].mxu0 %v9728
  %v9852 = vpop.f32.mrb[0].mxu0
  %v9853 = vadd.f32 0.0, %v9852
  %v9854 = vpop.f32.mrb[0].mxu0
  %v9855 = vpop.f32.mrb[0].mxu0
  %v9856 = vadd.f32 0.0, %v9855
  %v9857 = vpop.f32.mrb[0].mxu0
  %9858 = vmatprep.mubr.bf16.mxu0 0
  %9859 = vmatmul.mubr.bf16.gmra.mrb[0].mxu0 %v9730
  %v9860 = vpop.f32.mrb[0].mxu0
  %v9861 = vadd.f32 0.0, %v9860
  %v9862 = vpop.f32.mrb[0].mxu0
  %v9863 = vpop.f32.mrb[0].mxu0
  %v9864 = vadd.f32 0.0, %v9863
  %v9865 = vpop.f32.mrb[0].mxu0
  %9866 = vmatprep.mubr.bf16.mxu0 0
  %9867 = vmatmul.mubr.bf16.gmra.mrb[0].mxu0 %v9729
  %v9868 = vpop.f32.mrb[0].mxu0
  %v9869 = vadd.f32 0.0, %v9868
  %v9870 = vpop.f32.mrb[0].mxu0
  %v9871 = vpop.f32.mrb[0].mxu0
  %v9872 = vpop.f32.mrb[0].mxu0
  %9873 = vdwg.mxu0
  %v9874 = vadd.f32 %v9686, %v9821
  %v9875 = vadd.f32 %v9687, %v9824
  %v9876 = vadd.f32 %v9688, %v9829
  %v9877 = vadd.f32 %v9689, %v9832
  %v9878 = vadd.f32 %v9690, %v9837
  %v9879 = vadd.f32 %v9691, %v9840
  %v9880 = vadd.f32 %v9692, %v9845
  %v9881 = vadd.f32 %v9693, %v9848
  %v9882 = vadd.f32 %v9694, %v9853
  %v9883 = vadd.f32 %v9695, %v9856
  %v9884 = vadd.f32 %v9696, %v9861
  %v9885 = vadd.f32 %v9697, %v9864
  %v9886 = vadd.f32 %v9698, %v9869
  %v9887 = vadd.f32 %v9874, %v4957
  %v9888 = vadd.f32 %v9875, %v4957
  %v9889 = vadd.f32 %v9876, %v4957
  %v9890 = vadd.f32 %v9877, %v4957
  %v9891 = vadd.f32 %v9878, %v4957
  %v9892 = vadd.f32 %v9879, %v4957
  %v9893 = vadd.f32 %v9880, %v4957
  %v9894 = vadd.f32 %v9881, %v4957
  %v9895 = vadd.f32 %v9882, %v4957
  %v9896 = vadd.f32 %v9883, %v4957
  %v9897 = vadd.f32 %v9884, %v4957
  %v9898 = vadd.f32 %v9885, %v4957
  %v9899 = vadd.f32 %v9886, %v4957
  %v9900 = vmax.f32 %v9887, 0.0
  %v9901 = vmax.f32 %v9888, 0.0
  %v9902 = vmax.f32 %v9889, 0.0
  %v9903 = vmax.f32 %v9890, 0.0
  %v9904 = vmax.f32 %v9891, 0.0
  %v9905 = vmax.f32 %v9892, 0.0
  %v9906 = vmax.f32 %v9893, 0.0
  %v9907 = vmax.f32 %v9894, 0.0
  %v9908 = vmax.f32 %v9895, 0.0
  %v9909 = vmax.f32 %v9896, 0.0
  %v9910 = vmax.f32 %v9897, 0.0
  %v9911 = vmax.f32 %v9898, 0.0
  %v9912 = vmax.f32 %v9899, 0.0
  %v9913 = vmul.f32 %v9900, %v4987
  %v9914 = vmul.f32 %v9901, %v4987
  %v9915 = vmul.f32 %v9902, %v4987
  %v9916 = vmul.f32 %v9903, %v4987
  %v9917 = vmul.f32 %v9904, %v4987
  %v9918 = vmul.f32 %v9905, %v4987
  %v9919 = vmul.f32 %v9906, %v4987
  %v9920 = vmul.f32 %v9907, %v4987
  %v9921 = vmul.f32 %v9908, %v4987
  %v9922 = vmul.f32 %v9909, %v4987
  %v9923 = vmul.f32 %v9910, %v4987
  %v9924 = vmul.f32 %v9911, %v4987
  %v9925 = vmul.f32 %v9912, %v4987
  %v9926 = vadd.f32 %v9913, %v5004
  %v9927 = vadd.f32 %v9914, %v5004
  %v9928 = vadd.f32 %v9915, %v5004
  %v9929 = vadd.f32 %v9916, %v5004
  %v9930 = vadd.f32 %v9917, %v5004
  %v9931 = vadd.f32 %v9918, %v5004
  %v9932 = vadd.f32 %v9919, %v5004
  %v9933 = vadd.f32 %v9920, %v5004
  %v9934 = vadd.f32 %v9921, %v5004
  %v9935 = vadd.f32 %v9922, %v5004
  %v9936 = vadd.f32 %v9923, %v5004
  %v9937 = vadd.f32 %v9924, %v5004
  %v9938 = vadd.f32 %v9925, %v5004
  %v9939 = vld [vmem:[%s6 + $0x68] sm:$0xff]
  %v9940 = vld [vmem:[%s6 + $0x70] sm:$0xff]
  %v9941 = vld [vmem:[%s6 + $0x78] sm:$0xff]
  %v9942 = vld [vmem:[%s6 + $0x80] sm:$0xff]
  %v9943 = vld [vmem:[%s6 + $0x88] sm:$0xff]
  %v9944 = vld [vmem:[%s6 + $0x90] sm:$0xff]
  %v9945 = vld [vmem:[%s6 + $0x98] sm:$0xff]
  %v9946 = vld [vmem:[%s6 + $0xa0] sm:$0xff]
  %v9947 = vld [vmem:[%s6 + $0xa8] sm:$0xff]
  %v9948 = vld [vmem:[%s6 + $0xb0] sm:$0xff]
  %v9949 = vld [vmem:[%s6 + $0xb8] sm:$0xff]
  %v9950 = vld [vmem:[%s6 + $0xc0] sm:$0xff]
  %v9951 = vld [vmem:[%s6 + $0xc8] sm:$0xff]
  %v9952 = vadd.f32 %v9939, %v9926
  %v9953 = vadd.f32 %v9940, %v9927
  %v9954 = vadd.f32 %v9941, %v9928
  %v9955 = vadd.f32 %v9942, %v9929
  %v9956 = vadd.f32 %v9943, %v9930
  %v9957 = vadd.f32 %v9944, %v9931
  %v9958 = vadd.f32 %v9945, %v9932
  %v9959 = vadd.f32 %v9946, %v9933
  %v9960 = vadd.f32 %v9947, %v9934
  %v9961 = vadd.f32 %v9948, %v9935
  %v9962 = vadd.f32 %v9949, %v9936
  %v9963 = vadd.f32 %v9950, %v9937
  %v9964 = vadd.f32 %v9951, %v9938
  %9965 = vst [vmem:[%s6 + $0x68] sm:$0xff] %v9952
  %9966 = vst [vmem:[%s6 + $0x70] sm:$0xff] %v9953
  %9967 = vst [vmem:[%s6 + $0x78] sm:$0xff] %v9954
  %9968 = vst [vmem:[%s6 + $0x80] sm:$0xff] %v9955
  %9969 = vst [vmem:[%s6 + $0x88] sm:$0xff] %v9956
  %9970 = vst [vmem:[%s6 + $0x90] sm:$0xff] %v9957
  %9971 = vst [vmem:[%s6 + $0x98] sm:$0xff] %v9958
  %9972 = vst [vmem:[%s6 + $0xa0] sm:$0xff] %v9959
  %9973 = vst [vmem:[%s6 + $0xa8] sm:$0xff] %v9960
  %9974 = vst [vmem:[%s6 + $0xb0] sm:$0xff] %v9961
  %9975 = vst [vmem:[%s6 + $0xb8] sm:$0xff] %v9962
  %9976 = vst [vmem:[%s6 + $0xc0] sm:$0xff] %v9963
  %9977 = vst [vmem:[%s6 + $0xc8] sm:$0xff] %v9964
  // Predicated region
  $region26: #{down_forward.1} parent=0 // pred_check
    _
  $region27: #{down_forward.1} parent=0 // pred_check_branch
    %9979 = sbr.rel (0) target = $region29
  $region28: #{down_forward.1} parent=0 // pred_region
    _
  $region29: #{down_forward.1} parent=0 // pred_fallthru
    _
  // Predicated region
  $region30: #{down_forward.1} parent=0 // pred_check
    _
  $region31: #{down_forward.1} parent=0 // pred_check_branch
    %9981 = sbr.rel (0) target = $region33
  $region32: #{down_forward.1} parent=0 // pred_region
    _
  $region33: #{down_forward.1} parent=0 // pred_fallthru
    _

</llo_original>
